<compile_context>
chip_gen: v6e
topology: v6e:2x2x1
jax: 0.10.0
libtpu: 0.0.40
codegen_flags: <defaults>
</compile_context>

<pallas_src>
import functools

import jax
import jax.numpy as jnp
from jax import lax
from jax.experimental import pallas as pl
from jax.experimental.pallas import tpu as pltpu

# hyper-parameters (from the PyTorch module)
N_EMBD = 64
BLOCK_SIZE = 32
N_HEAD = 4
N_LAYER = 4
HEAD_SIZE = N_EMBD // N_HEAD
VOCAB_SIZE = 65                  # char-level vocab (synthetic; len(chars) in the reference)
VOCAB_PAD = 128                  # lane-dense padded width for tok_emb / lm_head
LN_EPS = 1e-5
SCALE = float(N_EMBD) ** -0.5    # reference scales by C**-0.5 with C = n_embd (folded into wq)
NEG_INF = -1e30                  # plain Python float -> no captured tracer constant


def _layernorm(x, w, b):
    mu = jnp.mean(x, axis=-1, keepdims=True)
    var = jnp.mean((x - mu) ** 2, axis=-1, keepdims=True)
    return (x - mu) * lax.rsqrt(var + LN_EPS) * w + b


def _fused_forward_kernel(idx_ref, tok_ref, pos_ref,
                          ln1w_ref, ln1b_ref, wqkv_ref,
                          wp_ref, bp_ref, ln2w_ref, ln2b_ref,
                          w1_ref, b1_ref, w2_ref, b2_ref,
                          lnfw_ref, lnfb_ref, wlm_ref, blm_ref,
                          o_ref, *, batch, seq_len):
    """Entire forward pass; activations flattened to (N=B*T, C) except attention."""
    n = batch * seq_len
    idx = idx_ref[...]                                           # (N, 1) int32 token ids

    # --- token-embedding gather as an exact one-hot bf16 matmul ---
    one_hot = (idx == lax.broadcasted_iota(jnp.int32, (n, VOCAB_PAD), 1)).astype(jnp.bfloat16)
    x = jnp.dot(one_hot, tok_ref[...], preferred_element_type=jnp.float32)   # (N, C) f32

    # --- positional embedding, added fully in-kernel (tile (T, C) over batch) ---
    pos = pos_ref[0:seq_len, :]                                  # (T, C) static slice
    x = x + jnp.concatenate([pos] * batch, axis=0)               # (N, C)

    # --- per-sequence causal mask as an additive bias, built once ---
    row = lax.broadcasted_iota(jnp.int32, (seq_len, seq_len), 0)
    col = lax.broadcasted_iota(jnp.int32, (seq_len, seq_len), 1)
    mask_bias = jnp.where(col <= row, 0.0, NEG_INF).astype(jnp.float32)      # (T, T)

    for l in range(N_LAYER):                                     # unrolled: weights stacked on axis 0
        # ---- multi-head causal self-attention on LN1(x) ----
        h = _layernorm(x, ln1w_ref[l], ln1b_ref[l])
        qkv = jnp.dot(h.astype(jnp.bfloat16), wqkv_ref[l],
                      preferred_element_type=jnp.float32)        # (N, 3C): [q*scale | k | v]
        q3 = qkv[:, 0 * N_EMBD:1 * N_EMBD].reshape(batch, seq_len, N_EMBD)
        k3 = qkv[:, 1 * N_EMBD:2 * N_EMBD].reshape(batch, seq_len, N_EMBD)
        v3 = qkv[:, 2 * N_EMBD:3 * N_EMBD].reshape(batch, seq_len, N_EMBD)

        heads = []
        for hh in range(N_HEAD):                                 # small static head loop
            sl = slice(hh * HEAD_SIZE, (hh + 1) * HEAD_SIZE)
            qh = q3[:, :, sl].astype(jnp.bfloat16)               # (B, T, D)
            kh = k3[:, :, sl].astype(jnp.bfloat16)
            vh = v3[:, :, sl].astype(jnp.bfloat16)
            # contraction over the last dim of both operands -> no explicit transpose
            wei = jnp.einsum('bqd,bkd->bqk', qh, kh,
                             preferred_element_type=jnp.float32)  # (B, T, T); scale already in wq
            wei = wei + mask_bias[None]
            m = jnp.max(wei, axis=-1, keepdims=True)
            e = jnp.exp(wei - m)
            p = e / jnp.sum(e, axis=-1, keepdims=True)            # exact softmax (parity w/ torch)
            heads.append(jnp.einsum('bqk,bkd->bqd', p.astype(jnp.bfloat16), vh,
                                    preferred_element_type=jnp.float32))     # (B, T, D)

        # concat heads, back to flattened rows, single (N,64)@(64,64) output projection
        concat = jnp.concatenate(heads, axis=-1).reshape(n, N_EMBD)          # (N, C)
        sa = jnp.dot(concat.astype(jnp.bfloat16), wp_ref[l],
                     preferred_element_type=jnp.float32) + bp_ref[l]
        x = x + sa                                               # residual 1 (dropout = 0.0)

        # ---- feed-forward on LN2(x) ----
        h2 = _layernorm(x, ln2w_ref[l], ln2b_ref[l])
        ff = jnp.dot(h2.astype(jnp.bfloat16), w1_ref[l],
                     preferred_element_type=jnp.float32) + b1_ref[l]
        ff = jnp.maximum(ff, 0.0)
        ff = jnp.dot(ff.astype(jnp.bfloat16), w2_ref[l],
                     preferred_element_type=jnp.float32) + b2_ref[l]
        x = x + ff                                               # residual 2

    # ---- final LayerNorm + lm_head (lane-dense 128-wide padded output) ----
    hf = _layernorm(x, lnfw_ref[...], lnfb_ref[...])
    o_ref[...] = jnp.dot(hf.astype(jnp.bfloat16), wlm_ref[...],
                         preferred_element_type=jnp.float32) + blm_ref[...]


def forward(params, idx, *, return_padded=False):
    """BigramLanguageModel.forward with targets=None -> logits (B, T, vocab)."""
    B, T = idx.shape
    N = B * T
    idx_flat = idx.reshape(N, 1).astype(jnp.int32)

    args = [idx_flat, params['tok_emb'], params['pos_emb'],
            params['ln1_w'], params['ln1_b'], params['wqkv'],
            params['wp'], params['bp'], params['ln2_w'], params['ln2_b'],
            params['w1'], params['b1'], params['w2'], params['b2'],
            params['lnf_w'], params['lnf_b'], params['wlm'], params['blm']]

    vmem = pltpu.MemorySpace.VMEM
    out = pl.pallas_call(
        functools.partial(_fused_forward_kernel, batch=B, seq_len=T),
        out_shape=jax.ShapeDtypeStruct((N, VOCAB_PAD), jnp.float32),
        in_specs=[pl.BlockSpec(memory_space=vmem) for _ in args],
        out_specs=pl.BlockSpec(memory_space=vmem),
    )(*args)

    logits = out.reshape(B, T, VOCAB_PAD)
    if return_padded:
        return logits                              # pad columns 65..127 are exactly 0-weighted
    return logits[:, :, :VOCAB_SIZE]               # torch-compatible shape


def init_params(key):
    def lin(k, fan_in, fan_out):
        kw, kb = jax.random.split(k)
        bound = 1.0 / (fan_in ** 0.5)
        w = jax.random.uniform(kw, (fan_in, fan_out), jnp.float32, -bound, bound)
        b = jax.random.uniform(kb, (1, fan_out), jnp.float32, -bound, bound)
        return w, b

    keys = jax.random.split(key, 3 + N_LAYER)
    tok = jax.random.normal(keys[0], (VOCAB_SIZE, N_EMBD), jnp.float32)
    params = {
        # one-hot gather operand: bf16 is exact for the one-hot, tok_emb stored bf16
        'tok_emb': jnp.pad(tok, ((0, VOCAB_PAD - VOCAB_SIZE), (0, 0))).astype(jnp.bfloat16),
        'pos_emb': jax.random.normal(keys[1], (BLOCK_SIZE, N_EMBD), jnp.float32),
    }

    wqkv, wp, bp = [], [], []
    w1, b1, w2, b2 = [], [], [], []
    for l in range(N_LAYER):
        bkeys = jax.random.split(keys[2 + l], 6)
        wk_, _ = lin(bkeys[0], N_EMBD, N_EMBD)      # key/query/value: no bias
        wq_, _ = lin(bkeys[1], N_EMBD, N_EMBD)
        wv_, _ = lin(bkeys[2], N_EMBD, N_EMBD)
        # fuse q/k/v along the output axis; fold SCALE (=0.125, exact in bf16) into wq
        wqkv.append(jnp.concatenate([wq_ * SCALE, wk_, wv_], axis=1))        # (64, 192)
        w, b = lin(bkeys[3], N_EMBD, N_EMBD); wp.append(w); bp.append(b)
        w, b = lin(bkeys[4], N_EMBD, 4 * N_EMBD); w1.append(w); b1.append(b)
        w, b = lin(bkeys[5], 4 * N_EMBD, N_EMBD); w2.append(w); b2.append(b)

    stack_bf16 = lambda ws: jnp.stack(ws).astype(jnp.bfloat16)  # MXU operands stored bf16
    stack_f32 = lambda ws: jnp.stack(ws)                        # biases stay f32
    params.update(
        wqkv=stack_bf16(wqkv),
        wp=stack_bf16(wp), bp=stack_f32(bp),
        w1=stack_bf16(w1), b1=stack_f32(b1),
        w2=stack_bf16(w2), b2=stack_f32(b2),
        ln1_w=jnp.ones((N_LAYER, 1, N_EMBD), jnp.float32),
        ln1_b=jnp.zeros((N_LAYER, 1, N_EMBD), jnp.float32),
        ln2_w=jnp.ones((N_LAYER, 1, N_EMBD), jnp.float32),
        ln2_b=jnp.zeros((N_LAYER, 1, N_EMBD), jnp.float32),
    )

    wlm, blm = lin(keys[2 + N_LAYER], N_EMBD, VOCAB_SIZE)
    params['wlm'] = jnp.pad(wlm, ((0, 0), (0, VOCAB_PAD - VOCAB_SIZE))).astype(jnp.bfloat16)
    params['blm'] = jnp.pad(blm, ((0, 0), (0, VOCAB_PAD - VOCAB_SIZE)))
    params['lnf_w'] = jnp.ones((1, N_EMBD), jnp.float32)
    params['lnf_b'] = jnp.zeros((1, N_EMBD), jnp.float32)
    return params
    # TODO(synk): generate() (multinomial sampling loop) and the cross-entropy loss
    # branch (targets != None) are host-side control flow, not implemented as kernels.


if __name__ == "__main__":
    key = jax.random.PRNGKey(0)
    pkey, ikey = jax.random.split(key)
    params = init_params(pkey)

    B, T = 2, 8                                              # T <= block_size (32)
    idx = jax.random.randint(ikey, (B, T), 0, VOCAB_SIZE, dtype=jnp.int32)

    logits = jax.block_until_ready(jax.jit(forward)(params, idx))
    assert logits.shape == (B, T, VOCAB_SIZE)
    assert bool(jnp.all(jnp.isfinite(logits)))
    print("KERNEL_OK")
</pallas_src>

<mosaic_0001>
module attributes {stable_mosaic.version = 11 : i64} {
  func.func @_fused_forward_kernel(%arg0: memref<16x1xi32, #tpu.memory_space<vmem>>, %arg1: memref<128x64xbf16, #tpu.memory_space<vmem>>, %arg2: memref<32x64xf32, #tpu.memory_space<vmem>>, %arg3: memref<4x1x64xf32, #tpu.memory_space<vmem>>, %arg4: memref<4x1x64xf32, #tpu.memory_space<vmem>>, %arg5: memref<4x64x192xbf16, #tpu.memory_space<vmem>>, %arg6: memref<4x64x64xbf16, #tpu.memory_space<vmem>>, %arg7: memref<4x1x64xf32, #tpu.memory_space<vmem>>, %arg8: memref<4x1x64xf32, #tpu.memory_space<vmem>>, %arg9: memref<4x1x64xf32, #tpu.memory_space<vmem>>, %arg10: memref<4x64x256xbf16, #tpu.memory_space<vmem>>, %arg11: memref<4x1x256xf32, #tpu.memory_space<vmem>>, %arg12: memref<4x256x64xbf16, #tpu.memory_space<vmem>>, %arg13: memref<4x1x64xf32, #tpu.memory_space<vmem>>, %arg14: memref<1x64xf32, #tpu.memory_space<vmem>>, %arg15: memref<1x64xf32, #tpu.memory_space<vmem>>, %arg16: memref<64x128xbf16, #tpu.memory_space<vmem>>, %arg17: memref<1x128xf32, #tpu.memory_space<vmem>>, %arg18: memref<16x128xf32, #tpu.memory_space<vmem>>) attributes {dimension_semantics = [], scalar_prefetch = 0 : i64, scratch_operands = 0 : i64, tpu.core_type = #tpu.core_type<tc>} {
    %c0 = arith.constant 0 : index
    %c0_0 = arith.constant 0 : index
    %0 = vector.load %arg0[%c0, %c0_0] : memref<16x1xi32, #tpu.memory_space<vmem>>, vector<16x1xi32>
    %1 = tpu.iota {dimensions = array<i32: 1>} : vector<16x128xi32>
    %2 = vector.broadcast %0 : vector<16x1xi32> to vector<16x128xi32>
    %3 = arith.cmpi eq, %2, %1 : vector<16x128xi32>
    %4 = arith.extui %3 : vector<16x128xi1> to vector<16x128xi32>
    %5 = arith.sitofp %4 : vector<16x128xi32> to vector<16x128xf32>
    %6 = arith.truncf %5 : vector<16x128xf32> to vector<16x128xbf16>
    %c0_1 = arith.constant 0 : index
    %c0_2 = arith.constant 0 : index
    %7 = vector.load %arg1[%c0_1, %c0_2] : memref<128x64xbf16, #tpu.memory_space<vmem>>, vector<128x64xbf16>
    %cst = arith.constant dense<0.000000e+00> : vector<16x64xf32>
    %8 = tpu.matmul %6, %7, %cst {dimension_numbers = #tpu.dot_dimension_numbers<[1], [0], [0], [1], [0, 0, 1, 1], [], []>} : vector<16x128xbf16>, vector<128x64xbf16>, vector<16x64xf32> -> vector<16x64xf32>
    %c0_3 = arith.constant 0 : index
    %c0_4 = arith.constant 0 : index
    %9 = vector.load %arg2[%c0_3, %c0_4] : memref<32x64xf32, #tpu.memory_space<vmem>>, vector<8x64xf32>
    %10 = tpu.concatenate %9, %9 in 0 : vector<8x64xf32>, vector<8x64xf32> -> vector<16x64xf32>
    %11 = arith.addf %8, %10 : vector<16x64xf32>
    %12 = tpu.iota {dimensions = array<i32: 0>} : vector<8x8xi32>
    %13 = tpu.iota {dimensions = array<i32: 1>} : vector<8x8xi32>
    %14 = arith.cmpi sle, %13, %12 : vector<8x8xi32>
    %cst_5 = arith.constant 0.000000e+00 : f32
    %cst_6 = arith.constant -1.000000e+30 : f32
    %15 = vector.broadcast %cst_5 : f32 to vector<8x8xf32>
    %16 = vector.broadcast %cst_6 : f32 to vector<8x8xf32>
    %17 = arith.select %14, %15, %16 : vector<8x8xi1>, vector<8x8xf32>
    %c0_7 = arith.constant 0 : index
    %c0_8 = arith.constant 0 : index
    %c0_9 = arith.constant 0 : index
    %18 = vector.load %arg3[%c0_7, %c0_8, %c0_9] : memref<4x1x64xf32, #tpu.memory_space<vmem>>, vector<1x1x64xf32>
    %19 = vector.shape_cast %18 : vector<1x1x64xf32> to vector<1x64xf32>
    %c0_10 = arith.constant 0 : index
    %c0_11 = arith.constant 0 : index
    %c0_12 = arith.constant 0 : index
    %20 = vector.load %arg4[%c0_10, %c0_11, %c0_12] : memref<4x1x64xf32, #tpu.memory_space<vmem>>, vector<1x1x64xf32>
    %21 = vector.shape_cast %20 : vector<1x1x64xf32> to vector<1x64xf32>
    %cst_13 = arith.constant dense<0.000000e+00> : vector<16xf32>
    %22 = vector.multi_reduction <add>, %11, %cst_13 [1] : vector<16x64xf32> to vector<16xf32>
    %23 = vector.shape_cast %22 : vector<16xf32> to vector<16x1xf32>
    %cst_14 = arith.constant 6.400000e+01 : f32
    %24 = vector.broadcast %cst_14 : f32 to vector<16x1xf32>
    %25 = arith.divf %23, %24 : vector<16x1xf32>
    %26 = vector.broadcast %25 : vector<16x1xf32> to vector<16x64xf32>
    %27 = arith.subf %11, %26 : vector<16x64xf32>
    %28 = arith.mulf %27, %27 : vector<16x64xf32>
    %cst_15 = arith.constant dense<0.000000e+00> : vector<16xf32>
    %29 = vector.multi_reduction <add>, %28, %cst_15 [1] : vector<16x64xf32> to vector<16xf32>
    %30 = vector.shape_cast %29 : vector<16xf32> to vector<16x1xf32>
    %cst_16 = arith.constant 6.400000e+01 : f32
    %31 = vector.broadcast %cst_16 : f32 to vector<16x1xf32>
    %32 = arith.divf %30, %31 : vector<16x1xf32>
    %33 = vector.broadcast %25 : vector<16x1xf32> to vector<16x64xf32>
    %34 = arith.subf %11, %33 : vector<16x64xf32>
    %cst_17 = arith.constant 9.99999974E-6 : f32
    %35 = vector.broadcast %cst_17 : f32 to vector<16x1xf32>
    %36 = arith.addf %32, %35 : vector<16x1xf32>
    %37 = math.rsqrt %36 : vector<16x1xf32>
    %38 = vector.broadcast %37 : vector<16x1xf32> to vector<16x64xf32>
    %39 = arith.mulf %34, %38 : vector<16x64xf32>
    %40 = vector.broadcast %19 : vector<1x64xf32> to vector<16x64xf32>
    %41 = arith.mulf %39, %40 : vector<16x64xf32>
    %42 = vector.broadcast %21 : vector<1x64xf32> to vector<16x64xf32>
    %43 = arith.addf %41, %42 : vector<16x64xf32>
    %44 = arith.truncf %43 : vector<16x64xf32> to vector<16x64xbf16>
    %c0_18 = arith.constant 0 : index
    %c0_19 = arith.constant 0 : index
    %c0_20 = arith.constant 0 : index
    %45 = vector.load %arg5[%c0_18, %c0_19, %c0_20] : memref<4x64x192xbf16, #tpu.memory_space<vmem>>, vector<1x64x192xbf16>
    %46 = vector.shape_cast %45 : vector<1x64x192xbf16> to vector<64x192xbf16>
    %cst_21 = arith.constant dense<0.000000e+00> : vector<16x192xf32>
    %47 = tpu.matmul %44, %46, %cst_21 {dimension_numbers = #tpu.dot_dimension_numbers<[1], [0], [0], [1], [0, 0, 1, 1], [], []>} : vector<16x64xbf16>, vector<64x192xbf16>, vector<16x192xf32> -> vector<16x192xf32>
    %48 = vector.extract_strided_slice %47 {offsets = [0, 0], sizes = [16, 64], strides = [1, 1]} : vector<16x192xf32> to vector<16x64xf32>
    %49 = vector.shape_cast %48 : vector<16x64xf32> to vector<2x8x64xf32>
    %50 = vector.extract_strided_slice %47 {offsets = [0, 64], sizes = [16, 64], strides = [1, 1]} : vector<16x192xf32> to vector<16x64xf32>
    %51 = vector.shape_cast %50 : vector<16x64xf32> to vector<2x8x64xf32>
    %52 = vector.extract_strided_slice %47 {offsets = [0, 128], sizes = [16, 64], strides = [1, 1]} : vector<16x192xf32> to vector<16x64xf32>
    %53 = vector.shape_cast %52 : vector<16x64xf32> to vector<2x8x64xf32>
    %54 = vector.extract_strided_slice %49 {offsets = [0, 0, 0], sizes = [2, 8, 16], strides = [1, 1, 1]} : vector<2x8x64xf32> to vector<2x8x16xf32>
    %55 = arith.truncf %54 : vector<2x8x16xf32> to vector<2x8x16xbf16>
    %56 = vector.extract_strided_slice %51 {offsets = [0, 0, 0], sizes = [2, 8, 16], strides = [1, 1, 1]} : vector<2x8x64xf32> to vector<2x8x16xf32>
    %57 = arith.truncf %56 : vector<2x8x16xf32> to vector<2x8x16xbf16>
    %58 = vector.extract_strided_slice %53 {offsets = [0, 0, 0], sizes = [2, 8, 16], strides = [1, 1, 1]} : vector<2x8x64xf32> to vector<2x8x16xf32>
    %59 = arith.truncf %58 : vector<2x8x16xf32> to vector<2x8x16xbf16>
    "tpu.trace_start"() <{level = 10 : i32, message = "bqd,bkd->bqk"}> : () -> ()
    %cst_22 = arith.constant dense<0.000000e+00> : vector<2x8x8xf32>
    %60 = tpu.matmul %55, %57, %cst_22 {dimension_numbers = #tpu.dot_dimension_numbers<[2], [2], [1], [1], [0, 0, 0, 1, 1, 1], [0], [0]>} : vector<2x8x16xbf16>, vector<2x8x16xbf16>, vector<2x8x8xf32> -> vector<2x8x8xf32>
    "tpu.trace_stop"() : () -> ()
    %61 = vector.shape_cast %17 : vector<8x8xf32> to vector<1x8x8xf32>
    %62 = vector.broadcast %61 : vector<1x8x8xf32> to vector<2x8x8xf32>
    %63 = arith.addf %60, %62 : vector<2x8x8xf32>
    %cst_23 = arith.constant dense<0xFF800000> : vector<2x8xf32>
    %64 = vector.multi_reduction <maximumf>, %63, %cst_23 [2] : vector<2x8x8xf32> to vector<2x8xf32>
    %65 = vector.shape_cast %64 : vector<2x8xf32> to vector<2x8x1xf32>
    %66 = vector.broadcast %65 : vector<2x8x1xf32> to vector<2x8x8xf32>
    %67 = arith.subf %63, %66 : vector<2x8x8xf32>
    %68 = math.exp %67 : vector<2x8x8xf32>
    %cst_24 = arith.constant dense<0.000000e+00> : vector<2x8xf32>
    %69 = vector.multi_reduction <add>, %68, %cst_24 [2] : vector<2x8x8xf32> to vector<2x8xf32>
    %70 = vector.shape_cast %69 : vector<2x8xf32> to vector<2x8x1xf32>
    %71 = vector.broadcast %70 : vector<2x8x1xf32> to vector<2x8x8xf32>
    %72 = arith.divf %68, %71 : vector<2x8x8xf32>
    %73 = arith.truncf %72 : vector<2x8x8xf32> to vector<2x8x8xbf16>
    "tpu.trace_start"() <{level = 10 : i32, message = "bqk,bkd->bqd"}> : () -> ()
    %cst_25 = arith.constant dense<0.000000e+00> : vector<2x8x16xf32>
    %74 = tpu.matmul %73, %59, %cst_25 {dimension_numbers = #tpu.dot_dimension_numbers<[2], [1], [1], [2], [0, 0, 0, 1, 1, 2], [0], [0]>} : vector<2x8x8xbf16>, vector<2x8x16xbf16>, vector<2x8x16xf32> -> vector<2x8x16xf32>
    "tpu.trace_stop"() : () -> ()
    %75 = vector.extract_strided_slice %49 {offsets = [0, 0, 16], sizes = [2, 8, 16], strides = [1, 1, 1]} : vector<2x8x64xf32> to vector<2x8x16xf32>
    %76 = arith.truncf %75 : vector<2x8x16xf32> to vector<2x8x16xbf16>
    %77 = vector.extract_strided_slice %51 {offsets = [0, 0, 16], sizes = [2, 8, 16], strides = [1, 1, 1]} : vector<2x8x64xf32> to vector<2x8x16xf32>
    %78 = arith.truncf %77 : vector<2x8x16xf32> to vector<2x8x16xbf16>
    %79 = vector.extract_strided_slice %53 {offsets = [0, 0, 16], sizes = [2, 8, 16], strides = [1, 1, 1]} : vector<2x8x64xf32> to vector<2x8x16xf32>
    %80 = arith.truncf %79 : vector<2x8x16xf32> to vector<2x8x16xbf16>
    "tpu.trace_start"() <{level = 10 : i32, message = "bqd,bkd->bqk"}> : () -> ()
    %cst_26 = arith.constant dense<0.000000e+00> : vector<2x8x8xf32>
    %81 = tpu.matmul %76, %78, %cst_26 {dimension_numbers = #tpu.dot_dimension_numbers<[2], [2], [1], [1], [0, 0, 0, 1, 1, 1], [0], [0]>} : vector<2x8x16xbf16>, vector<2x8x16xbf16>, vector<2x8x8xf32> -> vector<2x8x8xf32>
    "tpu.trace_stop"() : () -> ()
    %82 = vector.shape_cast %17 : vector<8x8xf32> to vector<1x8x8xf32>
    %83 = vector.broadcast %82 : vector<1x8x8xf32> to vector<2x8x8xf32>
    %84 = arith.addf %81, %83 : vector<2x8x8xf32>
    %cst_27 = arith.constant dense<0xFF800000> : vector<2x8xf32>
    %85 = vector.multi_reduction <maximumf>, %84, %cst_27 [2] : vector<2x8x8xf32> to vector<2x8xf32>
    %86 = vector.shape_cast %85 : vector<2x8xf32> to vector<2x8x1xf32>
    %87 = vector.broadcast %86 : vector<2x8x1xf32> to vector<2x8x8xf32>
    %88 = arith.subf %84, %87 : vector<2x8x8xf32>
    %89 = math.exp %88 : vector<2x8x8xf32>
    %cst_28 = arith.constant dense<0.000000e+00> : vector<2x8xf32>
    %90 = vector.multi_reduction <add>, %89, %cst_28 [2] : vector<2x8x8xf32> to vector<2x8xf32>
    %91 = vector.shape_cast %90 : vector<2x8xf32> to vector<2x8x1xf32>
    %92 = vector.broadcast %91 : vector<2x8x1xf32> to vector<2x8x8xf32>
    %93 = arith.divf %89, %92 : vector<2x8x8xf32>
    %94 = arith.truncf %93 : vector<2x8x8xf32> to vector<2x8x8xbf16>
    "tpu.trace_start"() <{level = 10 : i32, message = "bqk,bkd->bqd"}> : () -> ()
    %cst_29 = arith.constant dense<0.000000e+00> : vector<2x8x16xf32>
    %95 = tpu.matmul %94, %80, %cst_29 {dimension_numbers = #tpu.dot_dimension_numbers<[2], [1], [1], [2], [0, 0, 0, 1, 1, 2], [0], [0]>} : vector<2x8x8xbf16>, vector<2x8x16xbf16>, vector<2x8x16xf32> -> vector<2x8x16xf32>
    "tpu.trace_stop"() : () -> ()
    %96 = vector.extract_strided_slice %49 {offsets = [0, 0, 32], sizes = [2, 8, 16], strides = [1, 1, 1]} : vector<2x8x64xf32> to vector<2x8x16xf32>
    %97 = arith.truncf %96 : vector<2x8x16xf32> to vector<2x8x16xbf16>
    %98 = vector.extract_strided_slice %51 {offsets = [0, 0, 32], sizes = [2, 8, 16], strides = [1, 1, 1]} : vector<2x8x64xf32> to vector<2x8x16xf32>
    %99 = arith.truncf %98 : vector<2x8x16xf32> to vector<2x8x16xbf16>
    %100 = vector.extract_strided_slice %53 {offsets = [0, 0, 32], sizes = [2, 8, 16], strides = [1, 1, 1]} : vector<2x8x64xf32> to vector<2x8x16xf32>
    %101 = arith.truncf %100 : vector<2x8x16xf32> to vector<2x8x16xbf16>
    "tpu.trace_start"() <{level = 10 : i32, message = "bqd,bkd->bqk"}> : () -> ()
    %cst_30 = arith.constant dense<0.000000e+00> : vector<2x8x8xf32>
    %102 = tpu.matmul %97, %99, %cst_30 {dimension_numbers = #tpu.dot_dimension_numbers<[2], [2], [1], [1], [0, 0, 0, 1, 1, 1], [0], [0]>} : vector<2x8x16xbf16>, vector<2x8x16xbf16>, vector<2x8x8xf32> -> vector<2x8x8xf32>
    "tpu.trace_stop"() : () -> ()
    %103 = vector.shape_cast %17 : vector<8x8xf32> to vector<1x8x8xf32>
    %104 = vector.broadcast %103 : vector<1x8x8xf32> to vector<2x8x8xf32>
    %105 = arith.addf %102, %104 : vector<2x8x8xf32>
    %cst_31 = arith.constant dense<0xFF800000> : vector<2x8xf32>
    %106 = vector.multi_reduction <maximumf>, %105, %cst_31 [2] : vector<2x8x8xf32> to vector<2x8xf32>
    %107 = vector.shape_cast %106 : vector<2x8xf32> to vector<2x8x1xf32>
    %108 = vector.broadcast %107 : vector<2x8x1xf32> to vector<2x8x8xf32>
    %109 = arith.subf %105, %108 : vector<2x8x8xf32>
    %110 = math.exp %109 : vector<2x8x8xf32>
    %cst_32 = arith.constant dense<0.000000e+00> : vector<2x8xf32>
    %111 = vector.multi_reduction <add>, %110, %cst_32 [2] : vector<2x8x8xf32> to vector<2x8xf32>
    %112 = vector.shape_cast %111 : vector<2x8xf32> to vector<2x8x1xf32>
    %113 = vector.broadcast %112 : vector<2x8x1xf32> to vector<2x8x8xf32>
    %114 = arith.divf %110, %113 : vector<2x8x8xf32>
    %115 = arith.truncf %114 : vector<2x8x8xf32> to vector<2x8x8xbf16>
    "tpu.trace_start"() <{level = 10 : i32, message = "bqk,bkd->bqd"}> : () -> ()
    %cst_33 = arith.constant dense<0.000000e+00> : vector<2x8x16xf32>
    %116 = tpu.matmul %115, %101, %cst_33 {dimension_numbers = #tpu.dot_dimension_numbers<[2], [1], [1], [2], [0, 0, 0, 1, 1, 2], [0], [0]>} : vector<2x8x8xbf16>, vector<2x8x16xbf16>, vector<2x8x16xf32> -> vector<2x8x16xf32>
    "tpu.trace_stop"() : () -> ()
    %117 = vector.extract_strided_slice %49 {offsets = [0, 0, 48], sizes = [2, 8, 16], strides = [1, 1, 1]} : vector<2x8x64xf32> to vector<2x8x16xf32>
    %118 = arith.truncf %117 : vector<2x8x16xf32> to vector<2x8x16xbf16>
    %119 = vector.extract_strided_slice %51 {offsets = [0, 0, 48], sizes = [2, 8, 16], strides = [1, 1, 1]} : vector<2x8x64xf32> to vector<2x8x16xf32>
    %120 = arith.truncf %119 : vector<2x8x16xf32> to vector<2x8x16xbf16>
    %121 = vector.extract_strided_slice %53 {offsets = [0, 0, 48], sizes = [2, 8, 16], strides = [1, 1, 1]} : vector<2x8x64xf32> to vector<2x8x16xf32>
    %122 = arith.truncf %121 : vector<2x8x16xf32> to vector<2x8x16xbf16>
    "tpu.trace_start"() <{level = 10 : i32, message = "bqd,bkd->bqk"}> : () -> ()
    %cst_34 = arith.constant dense<0.000000e+00> : vector<2x8x8xf32>
    %123 = tpu.matmul %118, %120, %cst_34 {dimension_numbers = #tpu.dot_dimension_numbers<[2], [2], [1], [1], [0, 0, 0, 1, 1, 1], [0], [0]>} : vector<2x8x16xbf16>, vector<2x8x16xbf16>, vector<2x8x8xf32> -> vector<2x8x8xf32>
    "tpu.trace_stop"() : () -> ()
    %124 = vector.shape_cast %17 : vector<8x8xf32> to vector<1x8x8xf32>
    %125 = vector.broadcast %124 : vector<1x8x8xf32> to vector<2x8x8xf32>
    %126 = arith.addf %123, %125 : vector<2x8x8xf32>
    %cst_35 = arith.constant dense<0xFF800000> : vector<2x8xf32>
    %127 = vector.multi_reduction <maximumf>, %126, %cst_35 [2] : vector<2x8x8xf32> to vector<2x8xf32>
    %128 = vector.shape_cast %127 : vector<2x8xf32> to vector<2x8x1xf32>
    %129 = vector.broadcast %128 : vector<2x8x1xf32> to vector<2x8x8xf32>
    %130 = arith.subf %126, %129 : vector<2x8x8xf32>
    %131 = math.exp %130 : vector<2x8x8xf32>
    %cst_36 = arith.constant dense<0.000000e+00> : vector<2x8xf32>
    %132 = vector.multi_reduction <add>, %131, %cst_36 [2] : vector<2x8x8xf32> to vector<2x8xf32>
    %133 = vector.shape_cast %132 : vector<2x8xf32> to vector<2x8x1xf32>
    %134 = vector.broadcast %133 : vector<2x8x1xf32> to vector<2x8x8xf32>
    %135 = arith.divf %131, %134 : vector<2x8x8xf32>
    %136 = arith.truncf %135 : vector<2x8x8xf32> to vector<2x8x8xbf16>
    "tpu.trace_start"() <{level = 10 : i32, message = "bqk,bkd->bqd"}> : () -> ()
    %cst_37 = arith.constant dense<0.000000e+00> : vector<2x8x16xf32>
    %137 = tpu.matmul %136, %122, %cst_37 {dimension_numbers = #tpu.dot_dimension_numbers<[2], [1], [1], [2], [0, 0, 0, 1, 1, 2], [0], [0]>} : vector<2x8x8xbf16>, vector<2x8x16xbf16>, vector<2x8x16xf32> -> vector<2x8x16xf32>
    "tpu.trace_stop"() : () -> ()
    %138 = tpu.concatenate %74, %95, %116, %137 in 2 : vector<2x8x16xf32>, vector<2x8x16xf32>, vector<2x8x16xf32>, vector<2x8x16xf32> -> vector<2x8x64xf32>
    %139 = vector.shape_cast %138 : vector<2x8x64xf32> to vector<16x64xf32>
    %140 = arith.truncf %139 : vector<16x64xf32> to vector<16x64xbf16>
    %c0_38 = arith.constant 0 : index
    %c0_39 = arith.constant 0 : index
    %c0_40 = arith.constant 0 : index
    %141 = vector.load %arg6[%c0_38, %c0_39, %c0_40] : memref<4x64x64xbf16, #tpu.memory_space<vmem>>, vector<1x64x64xbf16>
    %142 = vector.shape_cast %141 : vector<1x64x64xbf16> to vector<64x64xbf16>
    %cst_41 = arith.constant dense<0.000000e+00> : vector<16x64xf32>
    %143 = tpu.matmul %140, %142, %cst_41 {dimension_numbers = #tpu.dot_dimension_numbers<[1], [0], [0], [1], [0, 0, 1, 1], [], []>} : vector<16x64xbf16>, vector<64x64xbf16>, vector<16x64xf32> -> vector<16x64xf32>
    %c0_42 = arith.constant 0 : index
    %c0_43 = arith.constant 0 : index
    %c0_44 = arith.constant 0 : index
    %144 = vector.load %arg7[%c0_42, %c0_43, %c0_44] : memref<4x1x64xf32, #tpu.memory_space<vmem>>, vector<1x1x64xf32>
    %145 = vector.shape_cast %144 : vector<1x1x64xf32> to vector<1x64xf32>
    %146 = vector.broadcast %145 : vector<1x64xf32> to vector<16x64xf32>
    %147 = arith.addf %143, %146 : vector<16x64xf32>
    %148 = arith.addf %11, %147 : vector<16x64xf32>
    %c0_45 = arith.constant 0 : index
    %c0_46 = arith.constant 0 : index
    %c0_47 = arith.constant 0 : index
    %149 = vector.load %arg8[%c0_45, %c0_46, %c0_47] : memref<4x1x64xf32, #tpu.memory_space<vmem>>, vector<1x1x64xf32>
    %150 = vector.shape_cast %149 : vector<1x1x64xf32> to vector<1x64xf32>
    %c0_48 = arith.constant 0 : index
    %c0_49 = arith.constant 0 : index
    %c0_50 = arith.constant 0 : index
    %151 = vector.load %arg9[%c0_48, %c0_49, %c0_50] : memref<4x1x64xf32, #tpu.memory_space<vmem>>, vector<1x1x64xf32>
    %152 = vector.shape_cast %151 : vector<1x1x64xf32> to vector<1x64xf32>
    %cst_51 = arith.constant dense<0.000000e+00> : vector<16xf32>
    %153 = vector.multi_reduction <add>, %148, %cst_51 [1] : vector<16x64xf32> to vector<16xf32>
    %154 = vector.shape_cast %153 : vector<16xf32> to vector<16x1xf32>
    %cst_52 = arith.constant 6.400000e+01 : f32
    %155 = vector.broadcast %cst_52 : f32 to vector<16x1xf32>
    %156 = arith.divf %154, %155 : vector<16x1xf32>
    %157 = vector.broadcast %156 : vector<16x1xf32> to vector<16x64xf32>
    %158 = arith.subf %148, %157 : vector<16x64xf32>
    %159 = arith.mulf %158, %158 : vector<16x64xf32>
    %cst_53 = arith.constant dense<0.000000e+00> : vector<16xf32>
    %160 = vector.multi_reduction <add>, %159, %cst_53 [1] : vector<16x64xf32> to vector<16xf32>
    %161 = vector.shape_cast %160 : vector<16xf32> to vector<16x1xf32>
    %cst_54 = arith.constant 6.400000e+01 : f32
    %162 = vector.broadcast %cst_54 : f32 to vector<16x1xf32>
    %163 = arith.divf %161, %162 : vector<16x1xf32>
    %164 = vector.broadcast %156 : vector<16x1xf32> to vector<16x64xf32>
    %165 = arith.subf %148, %164 : vector<16x64xf32>
    %cst_55 = arith.constant 9.99999974E-6 : f32
    %166 = vector.broadcast %cst_55 : f32 to vector<16x1xf32>
    %167 = arith.addf %163, %166 : vector<16x1xf32>
    %168 = math.rsqrt %167 : vector<16x1xf32>
    %169 = vector.broadcast %168 : vector<16x1xf32> to vector<16x64xf32>
    %170 = arith.mulf %165, %169 : vector<16x64xf32>
    %171 = vector.broadcast %150 : vector<1x64xf32> to vector<16x64xf32>
    %172 = arith.mulf %170, %171 : vector<16x64xf32>
    %173 = vector.broadcast %152 : vector<1x64xf32> to vector<16x64xf32>
    %174 = arith.addf %172, %173 : vector<16x64xf32>
    %175 = arith.truncf %174 : vector<16x64xf32> to vector<16x64xbf16>
    %c0_56 = arith.constant 0 : index
    %c0_57 = arith.constant 0 : index
    %c0_58 = arith.constant 0 : index
    %176 = vector.load %arg10[%c0_56, %c0_57, %c0_58] : memref<4x64x256xbf16, #tpu.memory_space<vmem>>, vector<1x64x256xbf16>
    %177 = vector.shape_cast %176 : vector<1x64x256xbf16> to vector<64x256xbf16>
    %cst_59 = arith.constant dense<0.000000e+00> : vector<16x256xf32>
    %178 = tpu.matmul %175, %177, %cst_59 {dimension_numbers = #tpu.dot_dimension_numbers<[1], [0], [0], [1], [0, 0, 1, 1], [], []>} : vector<16x64xbf16>, vector<64x256xbf16>, vector<16x256xf32> -> vector<16x256xf32>
    %c0_60 = arith.constant 0 : index
    %c0_61 = arith.constant 0 : index
    %c0_62 = arith.constant 0 : index
    %179 = vector.load %arg11[%c0_60, %c0_61, %c0_62] : memref<4x1x256xf32, #tpu.memory_space<vmem>>, vector<1x1x256xf32>
    %180 = vector.shape_cast %179 : vector<1x1x256xf32> to vector<1x256xf32>
    %181 = vector.broadcast %180 : vector<1x256xf32> to vector<16x256xf32>
    %182 = arith.addf %178, %181 : vector<16x256xf32>
    %cst_63 = arith.constant 0.000000e+00 : f32
    %183 = vector.broadcast %cst_63 : f32 to vector<16x256xf32>
    %184 = arith.maximumf %182, %183 : vector<16x256xf32>
    %185 = arith.truncf %184 : vector<16x256xf32> to vector<16x256xbf16>
    %c0_64 = arith.constant 0 : index
    %c0_65 = arith.constant 0 : index
    %c0_66 = arith.constant 0 : index
    %186 = vector.load %arg12[%c0_64, %c0_65, %c0_66] : memref<4x256x64xbf16, #tpu.memory_space<vmem>>, vector<1x256x64xbf16>
    %187 = vector.shape_cast %186 : vector<1x256x64xbf16> to vector<256x64xbf16>
    %cst_67 = arith.constant dense<0.000000e+00> : vector<16x64xf32>
    %188 = tpu.matmul %185, %187, %cst_67 {dimension_numbers = #tpu.dot_dimension_numbers<[1], [0], [0], [1], [0, 0, 1, 1], [], []>} : vector<16x256xbf16>, vector<256x64xbf16>, vector<16x64xf32> -> vector<16x64xf32>
    %c0_68 = arith.constant 0 : index
    %c0_69 = arith.constant 0 : index
    %c0_70 = arith.constant 0 : index
    %189 = vector.load %arg13[%c0_68, %c0_69, %c0_70] : memref<4x1x64xf32, #tpu.memory_space<vmem>>, vector<1x1x64xf32>
    %190 = vector.shape_cast %189 : vector<1x1x64xf32> to vector<1x64xf32>
    %191 = vector.broadcast %190 : vector<1x64xf32> to vector<16x64xf32>
    %192 = arith.addf %188, %191 : vector<16x64xf32>
    %193 = arith.addf %148, %192 : vector<16x64xf32>
    %c1 = arith.constant 1 : index
    %c0_71 = arith.constant 0 : index
    %c0_72 = arith.constant 0 : index
    %194 = vector.load %arg3[%c1, %c0_71, %c0_72] : memref<4x1x64xf32, #tpu.memory_space<vmem>>, vector<1x1x64xf32>
    %195 = vector.shape_cast %194 : vector<1x1x64xf32> to vector<1x64xf32>
    %c1_73 = arith.constant 1 : index
    %c0_74 = arith.constant 0 : index
    %c0_75 = arith.constant 0 : index
    %196 = vector.load %arg4[%c1_73, %c0_74, %c0_75] : memref<4x1x64xf32, #tpu.memory_space<vmem>>, vector<1x1x64xf32>
    %197 = vector.shape_cast %196 : vector<1x1x64xf32> to vector<1x64xf32>
    %cst_76 = arith.constant dense<0.000000e+00> : vector<16xf32>
    %198 = vector.multi_reduction <add>, %193, %cst_76 [1] : vector<16x64xf32> to vector<16xf32>
    %199 = vector.shape_cast %198 : vector<16xf32> to vector<16x1xf32>
    %cst_77 = arith.constant 6.400000e+01 : f32
    %200 = vector.broadcast %cst_77 : f32 to vector<16x1xf32>
    %201 = arith.divf %199, %200 : vector<16x1xf32>
    %202 = vector.broadcast %201 : vector<16x1xf32> to vector<16x64xf32>
    %203 = arith.subf %193, %202 : vector<16x64xf32>
    %204 = arith.mulf %203, %203 : vector<16x64xf32>
    %cst_78 = arith.constant dense<0.000000e+00> : vector<16xf32>
    %205 = vector.multi_reduction <add>, %204, %cst_78 [1] : vector<16x64xf32> to vector<16xf32>
    %206 = vector.shape_cast %205 : vector<16xf32> to vector<16x1xf32>
    %cst_79 = arith.constant 6.400000e+01 : f32
    %207 = vector.broadcast %cst_79 : f32 to vector<16x1xf32>
    %208 = arith.divf %206, %207 : vector<16x1xf32>
    %209 = vector.broadcast %201 : vector<16x1xf32> to vector<16x64xf32>
    %210 = arith.subf %193, %209 : vector<16x64xf32>
    %cst_80 = arith.constant 9.99999974E-6 : f32
    %211 = vector.broadcast %cst_80 : f32 to vector<16x1xf32>
    %212 = arith.addf %208, %211 : vector<16x1xf32>
    %213 = math.rsqrt %212 : vector<16x1xf32>
    %214 = vector.broadcast %213 : vector<16x1xf32> to vector<16x64xf32>
    %215 = arith.mulf %210, %214 : vector<16x64xf32>
    %216 = vector.broadcast %195 : vector<1x64xf32> to vector<16x64xf32>
    %217 = arith.mulf %215, %216 : vector<16x64xf32>
    %218 = vector.broadcast %197 : vector<1x64xf32> to vector<16x64xf32>
    %219 = arith.addf %217, %218 : vector<16x64xf32>
    %220 = arith.truncf %219 : vector<16x64xf32> to vector<16x64xbf16>
    %c1_81 = arith.constant 1 : index
    %c0_82 = arith.constant 0 : index
    %c0_83 = arith.constant 0 : index
    %221 = vector.load %arg5[%c1_81, %c0_82, %c0_83] : memref<4x64x192xbf16, #tpu.memory_space<vmem>>, vector<1x64x192xbf16>
    %222 = vector.shape_cast %221 : vector<1x64x192xbf16> to vector<64x192xbf16>
    %cst_84 = arith.constant dense<0.000000e+00> : vector<16x192xf32>
    %223 = tpu.matmul %220, %222, %cst_84 {dimension_numbers = #tpu.dot_dimension_numbers<[1], [0], [0], [1], [0, 0, 1, 1], [], []>} : vector<16x64xbf16>, vector<64x192xbf16>, vector<16x192xf32> -> vector<16x192xf32>
    %224 = vector.extract_strided_slice %223 {offsets = [0, 0], sizes = [16, 64], strides = [1, 1]} : vector<16x192xf32> to vector<16x64xf32>
    %225 = vector.shape_cast %224 : vector<16x64xf32> to vector<2x8x64xf32>
    %226 = vector.extract_strided_slice %223 {offsets = [0, 64], sizes = [16, 64], strides = [1, 1]} : vector<16x192xf32> to vector<16x64xf32>
    %227 = vector.shape_cast %226 : vector<16x64xf32> to vector<2x8x64xf32>
    %228 = vector.extract_strided_slice %223 {offsets = [0, 128], sizes = [16, 64], strides = [1, 1]} : vector<16x192xf32> to vector<16x64xf32>
    %229 = vector.shape_cast %228 : vector<16x64xf32> to vector<2x8x64xf32>
    %230 = vector.extract_strided_slice %225 {offsets = [0, 0, 0], sizes = [2, 8, 16], strides = [1, 1, 1]} : vector<2x8x64xf32> to vector<2x8x16xf32>
    %231 = arith.truncf %230 : vector<2x8x16xf32> to vector<2x8x16xbf16>
    %232 = vector.extract_strided_slice %227 {offsets = [0, 0, 0], sizes = [2, 8, 16], strides = [1, 1, 1]} : vector<2x8x64xf32> to vector<2x8x16xf32>
    %233 = arith.truncf %232 : vector<2x8x16xf32> to vector<2x8x16xbf16>
    %234 = vector.extract_strided_slice %229 {offsets = [0, 0, 0], sizes = [2, 8, 16], strides = [1, 1, 1]} : vector<2x8x64xf32> to vector<2x8x16xf32>
    %235 = arith.truncf %234 : vector<2x8x16xf32> to vector<2x8x16xbf16>
    "tpu.trace_start"() <{level = 10 : i32, message = "bqd,bkd->bqk"}> : () -> ()
    %cst_85 = arith.constant dense<0.000000e+00> : vector<2x8x8xf32>
    %236 = tpu.matmul %231, %233, %cst_85 {dimension_numbers = #tpu.dot_dimension_numbers<[2], [2], [1], [1], [0, 0, 0, 1, 1, 1], [0], [0]>} : vector<2x8x16xbf16>, vector<2x8x16xbf16>, vector<2x8x8xf32> -> vector<2x8x8xf32>
    "tpu.trace_stop"() : () -> ()
    %237 = vector.shape_cast %17 : vector<8x8xf32> to vector<1x8x8xf32>
    %238 = vector.broadcast %237 : vector<1x8x8xf32> to vector<2x8x8xf32>
    %239 = arith.addf %236, %238 : vector<2x8x8xf32>
    %cst_86 = arith.constant dense<0xFF800000> : vector<2x8xf32>
    %240 = vector.multi_reduction <maximumf>, %239, %cst_86 [2] : vector<2x8x8xf32> to vector<2x8xf32>
    %241 = vector.shape_cast %240 : vector<2x8xf32> to vector<2x8x1xf32>
    %242 = vector.broadcast %241 : vector<2x8x1xf32> to vector<2x8x8xf32>
    %243 = arith.subf %239, %242 : vector<2x8x8xf32>
    %244 = math.exp %243 : vector<2x8x8xf32>
    %cst_87 = arith.constant dense<0.000000e+00> : vector<2x8xf32>
    %245 = vector.multi_reduction <add>, %244, %cst_87 [2] : vector<2x8x8xf32> to vector<2x8xf32>
    %246 = vector.shape_cast %245 : vector<2x8xf32> to vector<2x8x1xf32>
    %247 = vector.broadcast %246 : vector<2x8x1xf32> to vector<2x8x8xf32>
    %248 = arith.divf %244, %247 : vector<2x8x8xf32>
    %249 = arith.truncf %248 : vector<2x8x8xf32> to vector<2x8x8xbf16>
    "tpu.trace_start"() <{level = 10 : i32, message = "bqk,bkd->bqd"}> : () -> ()
    %cst_88 = arith.constant dense<0.000000e+00> : vector<2x8x16xf32>
    %250 = tpu.matmul %249, %235, %cst_88 {dimension_numbers = #tpu.dot_dimension_numbers<[2], [1], [1], [2], [0, 0, 0, 1, 1, 2], [0], [0]>} : vector<2x8x8xbf16>, vector<2x8x16xbf16>, vector<2x8x16xf32> -> vector<2x8x16xf32>
    "tpu.trace_stop"() : () -> ()
    %251 = vector.extract_strided_slice %225 {offsets = [0, 0, 16], sizes = [2, 8, 16], strides = [1, 1, 1]} : vector<2x8x64xf32> to vector<2x8x16xf32>
    %252 = arith.truncf %251 : vector<2x8x16xf32> to vector<2x8x16xbf16>
    %253 = vector.extract_strided_slice %227 {offsets = [0, 0, 16], sizes = [2, 8, 16], strides = [1, 1, 1]} : vector<2x8x64xf32> to vector<2x8x16xf32>
    %254 = arith.truncf %253 : vector<2x8x16xf32> to vector<2x8x16xbf16>
    %255 = vector.extract_strided_slice %229 {offsets = [0, 0, 16], sizes = [2, 8, 16], strides = [1, 1, 1]} : vector<2x8x64xf32> to vector<2x8x16xf32>
    %256 = arith.truncf %255 : vector<2x8x16xf32> to vector<2x8x16xbf16>
    "tpu.trace_start"() <{level = 10 : i32, message = "bqd,bkd->bqk"}> : () -> ()
    %cst_89 = arith.constant dense<0.000000e+00> : vector<2x8x8xf32>
    %257 = tpu.matmul %252, %254, %cst_89 {dimension_numbers = #tpu.dot_dimension_numbers<[2], [2], [1], [1], [0, 0, 0, 1, 1, 1], [0], [0]>} : vector<2x8x16xbf16>, vector<2x8x16xbf16>, vector<2x8x8xf32> -> vector<2x8x8xf32>
    "tpu.trace_stop"() : () -> ()
    %258 = vector.shape_cast %17 : vector<8x8xf32> to vector<1x8x8xf32>
    %259 = vector.broadcast %258 : vector<1x8x8xf32> to vector<2x8x8xf32>
    %260 = arith.addf %257, %259 : vector<2x8x8xf32>
    %cst_90 = arith.constant dense<0xFF800000> : vector<2x8xf32>
    %261 = vector.multi_reduction <maximumf>, %260, %cst_90 [2] : vector<2x8x8xf32> to vector<2x8xf32>
    %262 = vector.shape_cast %261 : vector<2x8xf32> to vector<2x8x1xf32>
    %263 = vector.broadcast %262 : vector<2x8x1xf32> to vector<2x8x8xf32>
    %264 = arith.subf %260, %263 : vector<2x8x8xf32>
    %265 = math.exp %264 : vector<2x8x8xf32>
    %cst_91 = arith.constant dense<0.000000e+00> : vector<2x8xf32>
    %266 = vector.multi_reduction <add>, %265, %cst_91 [2] : vector<2x8x8xf32> to vector<2x8xf32>
    %267 = vector.shape_cast %266 : vector<2x8xf32> to vector<2x8x1xf32>
    %268 = vector.broadcast %267 : vector<2x8x1xf32> to vector<2x8x8xf32>
    %269 = arith.divf %265, %268 : vector<2x8x8xf32>
    %270 = arith.truncf %269 : vector<2x8x8xf32> to vector<2x8x8xbf16>
    "tpu.trace_start"() <{level = 10 : i32, message = "bqk,bkd->bqd"}> : () -> ()
    %cst_92 = arith.constant dense<0.000000e+00> : vector<2x8x16xf32>
    %271 = tpu.matmul %270, %256, %cst_92 {dimension_numbers = #tpu.dot_dimension_numbers<[2], [1], [1], [2], [0, 0, 0, 1, 1, 2], [0], [0]>} : vector<2x8x8xbf16>, vector<2x8x16xbf16>, vector<2x8x16xf32> -> vector<2x8x16xf32>
    "tpu.trace_stop"() : () -> ()
    %272 = vector.extract_strided_slice %225 {offsets = [0, 0, 32], sizes = [2, 8, 16], strides = [1, 1, 1]} : vector<2x8x64xf32> to vector<2x8x16xf32>
    %273 = arith.truncf %272 : vector<2x8x16xf32> to vector<2x8x16xbf16>
    %274 = vector.extract_strided_slice %227 {offsets = [0, 0, 32], sizes = [2, 8, 16], strides = [1, 1, 1]} : vector<2x8x64xf32> to vector<2x8x16xf32>
    %275 = arith.truncf %274 : vector<2x8x16xf32> to vector<2x8x16xbf16>
    %276 = vector.extract_strided_slice %229 {offsets = [0, 0, 32], sizes = [2, 8, 16], strides = [1, 1, 1]} : vector<2x8x64xf32> to vector<2x8x16xf32>
    %277 = arith.truncf %276 : vector<2x8x16xf32> to vector<2x8x16xbf16>
    "tpu.trace_start"() <{level = 10 : i32, message = "bqd,bkd->bqk"}> : () -> ()
    %cst_93 = arith.constant dense<0.000000e+00> : vector<2x8x8xf32>
    %278 = tpu.matmul %273, %275, %cst_93 {dimension_numbers = #tpu.dot_dimension_numbers<[2], [2], [1], [1], [0, 0, 0, 1, 1, 1], [0], [0]>} : vector<2x8x16xbf16>, vector<2x8x16xbf16>, vector<2x8x8xf32> -> vector<2x8x8xf32>
    "tpu.trace_stop"() : () -> ()
    %279 = vector.shape_cast %17 : vector<8x8xf32> to vector<1x8x8xf32>
    %280 = vector.broadcast %279 : vector<1x8x8xf32> to vector<2x8x8xf32>
    %281 = arith.addf %278, %280 : vector<2x8x8xf32>
    %cst_94 = arith.constant dense<0xFF800000> : vector<2x8xf32>
    %282 = vector.multi_reduction <maximumf>, %281, %cst_94 [2] : vector<2x8x8xf32> to vector<2x8xf32>
    %283 = vector.shape_cast %282 : vector<2x8xf32> to vector<2x8x1xf32>
    %284 = vector.broadcast %283 : vector<2x8x1xf32> to vector<2x8x8xf32>
    %285 = arith.subf %281, %284 : vector<2x8x8xf32>
    %286 = math.exp %285 : vector<2x8x8xf32>
    %cst_95 = arith.constant dense<0.000000e+00> : vector<2x8xf32>
    %287 = vector.multi_reduction <add>, %286, %cst_95 [2] : vector<2x8x8xf32> to vector<2x8xf32>
    %288 = vector.shape_cast %287 : vector<2x8xf32> to vector<2x8x1xf32>
    %289 = vector.broadcast %288 : vector<2x8x1xf32> to vector<2x8x8xf32>
    %290 = arith.divf %286, %289 : vector<2x8x8xf32>
    %291 = arith.truncf %290 : vector<2x8x8xf32> to vector<2x8x8xbf16>
    "tpu.trace_start"() <{level = 10 : i32, message = "bqk,bkd->bqd"}> : () -> ()
    %cst_96 = arith.constant dense<0.000000e+00> : vector<2x8x16xf32>
    %292 = tpu.matmul %291, %277, %cst_96 {dimension_numbers = #tpu.dot_dimension_numbers<[2], [1], [1], [2], [0, 0, 0, 1, 1, 2], [0], [0]>} : vector<2x8x8xbf16>, vector<2x8x16xbf16>, vector<2x8x16xf32> -> vector<2x8x16xf32>
    "tpu.trace_stop"() : () -> ()
    %293 = vector.extract_strided_slice %225 {offsets = [0, 0, 48], sizes = [2, 8, 16], strides = [1, 1, 1]} : vector<2x8x64xf32> to vector<2x8x16xf32>
    %294 = arith.truncf %293 : vector<2x8x16xf32> to vector<2x8x16xbf16>
    %295 = vector.extract_strided_slice %227 {offsets = [0, 0, 48], sizes = [2, 8, 16], strides = [1, 1, 1]} : vector<2x8x64xf32> to vector<2x8x16xf32>
    %296 = arith.truncf %295 : vector<2x8x16xf32> to vector<2x8x16xbf16>
    %297 = vector.extract_strided_slice %229 {offsets = [0, 0, 48], sizes = [2, 8, 16], strides = [1, 1, 1]} : vector<2x8x64xf32> to vector<2x8x16xf32>
    %298 = arith.truncf %297 : vector<2x8x16xf32> to vector<2x8x16xbf16>
    "tpu.trace_start"() <{level = 10 : i32, message = "bqd,bkd->bqk"}> : () -> ()
    %cst_97 = arith.constant dense<0.000000e+00> : vector<2x8x8xf32>
    %299 = tpu.matmul %294, %296, %cst_97 {dimension_numbers = #tpu.dot_dimension_numbers<[2], [2], [1], [1], [0, 0, 0, 1, 1, 1], [0], [0]>} : vector<2x8x16xbf16>, vector<2x8x16xbf16>, vector<2x8x8xf32> -> vector<2x8x8xf32>
    "tpu.trace_stop"() : () -> ()
    %300 = vector.shape_cast %17 : vector<8x8xf32> to vector<1x8x8xf32>
    %301 = vector.broadcast %300 : vector<1x8x8xf32> to vector<2x8x8xf32>
    %302 = arith.addf %299, %301 : vector<2x8x8xf32>
    %cst_98 = arith.constant dense<0xFF800000> : vector<2x8xf32>
    %303 = vector.multi_reduction <maximumf>, %302, %cst_98 [2] : vector<2x8x8xf32> to vector<2x8xf32>
    %304 = vector.shape_cast %303 : vector<2x8xf32> to vector<2x8x1xf32>
    %305 = vector.broadcast %304 : vector<2x8x1xf32> to vector<2x8x8xf32>
    %306 = arith.subf %302, %305 : vector<2x8x8xf32>
    %307 = math.exp %306 : vector<2x8x8xf32>
    %cst_99 = arith.constant dense<0.000000e+00> : vector<2x8xf32>
    %308 = vector.multi_reduction <add>, %307, %cst_99 [2] : vector<2x8x8xf32> to vector<2x8xf32>
    %309 = vector.shape_cast %308 : vector<2x8xf32> to vector<2x8x1xf32>
    %310 = vector.broadcast %309 : vector<2x8x1xf32> to vector<2x8x8xf32>
    %311 = arith.divf %307, %310 : vector<2x8x8xf32>
    %312 = arith.truncf %311 : vector<2x8x8xf32> to vector<2x8x8xbf16>
    "tpu.trace_start"() <{level = 10 : i32, message = "bqk,bkd->bqd"}> : () -> ()
    %cst_100 = arith.constant dense<0.000000e+00> : vector<2x8x16xf32>
    %313 = tpu.matmul %312, %298, %cst_100 {dimension_numbers = #tpu.dot_dimension_numbers<[2], [1], [1], [2], [0, 0, 0, 1, 1, 2], [0], [0]>} : vector<2x8x8xbf16>, vector<2x8x16xbf16>, vector<2x8x16xf32> -> vector<2x8x16xf32>
    "tpu.trace_stop"() : () -> ()
    %314 = tpu.concatenate %250, %271, %292, %313 in 2 : vector<2x8x16xf32>, vector<2x8x16xf32>, vector<2x8x16xf32>, vector<2x8x16xf32> -> vector<2x8x64xf32>
    %315 = vector.shape_cast %314 : vector<2x8x64xf32> to vector<16x64xf32>
    %316 = arith.truncf %315 : vector<16x64xf32> to vector<16x64xbf16>
    %c1_101 = arith.constant 1 : index
    %c0_102 = arith.constant 0 : index
    %c0_103 = arith.constant 0 : index
    %317 = vector.load %arg6[%c1_101, %c0_102, %c0_103] : memref<4x64x64xbf16, #tpu.memory_space<vmem>>, vector<1x64x64xbf16>
    %318 = vector.shape_cast %317 : vector<1x64x64xbf16> to vector<64x64xbf16>
    %cst_104 = arith.constant dense<0.000000e+00> : vector<16x64xf32>
    %319 = tpu.matmul %316, %318, %cst_104 {dimension_numbers = #tpu.dot_dimension_numbers<[1], [0], [0], [1], [0, 0, 1, 1], [], []>} : vector<16x64xbf16>, vector<64x64xbf16>, vector<16x64xf32> -> vector<16x64xf32>
    %c1_105 = arith.constant 1 : index
    %c0_106 = arith.constant 0 : index
    %c0_107 = arith.constant 0 : index
    %320 = vector.load %arg7[%c1_105, %c0_106, %c0_107] : memref<4x1x64xf32, #tpu.memory_space<vmem>>, vector<1x1x64xf32>
    %321 = vector.shape_cast %320 : vector<1x1x64xf32> to vector<1x64xf32>
    %322 = vector.broadcast %321 : vector<1x64xf32> to vector<16x64xf32>
    %323 = arith.addf %319, %322 : vector<16x64xf32>
    %324 = arith.addf %193, %323 : vector<16x64xf32>
    %c1_108 = arith.constant 1 : index
    %c0_109 = arith.constant 0 : index
    %c0_110 = arith.constant 0 : index
    %325 = vector.load %arg8[%c1_108, %c0_109, %c0_110] : memref<4x1x64xf32, #tpu.memory_space<vmem>>, vector<1x1x64xf32>
    %326 = vector.shape_cast %325 : vector<1x1x64xf32> to vector<1x64xf32>
    %c1_111 = arith.constant 1 : index
    %c0_112 = arith.constant 0 : index
    %c0_113 = arith.constant 0 : index
    %327 = vector.load %arg9[%c1_111, %c0_112, %c0_113] : memref<4x1x64xf32, #tpu.memory_space<vmem>>, vector<1x1x64xf32>
    %328 = vector.shape_cast %327 : vector<1x1x64xf32> to vector<1x64xf32>
    %cst_114 = arith.constant dense<0.000000e+00> : vector<16xf32>
    %329 = vector.multi_reduction <add>, %324, %cst_114 [1] : vector<16x64xf32> to vector<16xf32>
    %330 = vector.shape_cast %329 : vector<16xf32> to vector<16x1xf32>
    %cst_115 = arith.constant 6.400000e+01 : f32
    %331 = vector.broadcast %cst_115 : f32 to vector<16x1xf32>
    %332 = arith.divf %330, %331 : vector<16x1xf32>
    %333 = vector.broadcast %332 : vector<16x1xf32> to vector<16x64xf32>
    %334 = arith.subf %324, %333 : vector<16x64xf32>
    %335 = arith.mulf %334, %334 : vector<16x64xf32>
    %cst_116 = arith.constant dense<0.000000e+00> : vector<16xf32>
    %336 = vector.multi_reduction <add>, %335, %cst_116 [1] : vector<16x64xf32> to vector<16xf32>
    %337 = vector.shape_cast %336 : vector<16xf32> to vector<16x1xf32>
    %cst_117 = arith.constant 6.400000e+01 : f32
    %338 = vector.broadcast %cst_117 : f32 to vector<16x1xf32>
    %339 = arith.divf %337, %338 : vector<16x1xf32>
    %340 = vector.broadcast %332 : vector<16x1xf32> to vector<16x64xf32>
    %341 = arith.subf %324, %340 : vector<16x64xf32>
    %cst_118 = arith.constant 9.99999974E-6 : f32
    %342 = vector.broadcast %cst_118 : f32 to vector<16x1xf32>
    %343 = arith.addf %339, %342 : vector<16x1xf32>
    %344 = math.rsqrt %343 : vector<16x1xf32>
    %345 = vector.broadcast %344 : vector<16x1xf32> to vector<16x64xf32>
    %346 = arith.mulf %341, %345 : vector<16x64xf32>
    %347 = vector.broadcast %326 : vector<1x64xf32> to vector<16x64xf32>
    %348 = arith.mulf %346, %347 : vector<16x64xf32>
    %349 = vector.broadcast %328 : vector<1x64xf32> to vector<16x64xf32>
    %350 = arith.addf %348, %349 : vector<16x64xf32>
    %351 = arith.truncf %350 : vector<16x64xf32> to vector<16x64xbf16>
    %c1_119 = arith.constant 1 : index
    %c0_120 = arith.constant 0 : index
    %c0_121 = arith.constant 0 : index
    %352 = vector.load %arg10[%c1_119, %c0_120, %c0_121] : memref<4x64x256xbf16, #tpu.memory_space<vmem>>, vector<1x64x256xbf16>
    %353 = vector.shape_cast %352 : vector<1x64x256xbf16> to vector<64x256xbf16>
    %cst_122 = arith.constant dense<0.000000e+00> : vector<16x256xf32>
    %354 = tpu.matmul %351, %353, %cst_122 {dimension_numbers = #tpu.dot_dimension_numbers<[1], [0], [0], [1], [0, 0, 1, 1], [], []>} : vector<16x64xbf16>, vector<64x256xbf16>, vector<16x256xf32> -> vector<16x256xf32>
    %c1_123 = arith.constant 1 : index
    %c0_124 = arith.constant 0 : index
    %c0_125 = arith.constant 0 : index
    %355 = vector.load %arg11[%c1_123, %c0_124, %c0_125] : memref<4x1x256xf32, #tpu.memory_space<vmem>>, vector<1x1x256xf32>
    %356 = vector.shape_cast %355 : vector<1x1x256xf32> to vector<1x256xf32>
    %357 = vector.broadcast %356 : vector<1x256xf32> to vector<16x256xf32>
    %358 = arith.addf %354, %357 : vector<16x256xf32>
    %cst_126 = arith.constant 0.000000e+00 : f32
    %359 = vector.broadcast %cst_126 : f32 to vector<16x256xf32>
    %360 = arith.maximumf %358, %359 : vector<16x256xf32>
    %361 = arith.truncf %360 : vector<16x256xf32> to vector<16x256xbf16>
    %c1_127 = arith.constant 1 : index
    %c0_128 = arith.constant 0 : index
    %c0_129 = arith.constant 0 : index
    %362 = vector.load %arg12[%c1_127, %c0_128, %c0_129] : memref<4x256x64xbf16, #tpu.memory_space<vmem>>, vector<1x256x64xbf16>
    %363 = vector.shape_cast %362 : vector<1x256x64xbf16> to vector<256x64xbf16>
    %cst_130 = arith.constant dense<0.000000e+00> : vector<16x64xf32>
    %364 = tpu.matmul %361, %363, %cst_130 {dimension_numbers = #tpu.dot_dimension_numbers<[1], [0], [0], [1], [0, 0, 1, 1], [], []>} : vector<16x256xbf16>, vector<256x64xbf16>, vector<16x64xf32> -> vector<16x64xf32>
    %c1_131 = arith.constant 1 : index
    %c0_132 = arith.constant 0 : index
    %c0_133 = arith.constant 0 : index
    %365 = vector.load %arg13[%c1_131, %c0_132, %c0_133] : memref<4x1x64xf32, #tpu.memory_space<vmem>>, vector<1x1x64xf32>
    %366 = vector.shape_cast %365 : vector<1x1x64xf32> to vector<1x64xf32>
    %367 = vector.broadcast %366 : vector<1x64xf32> to vector<16x64xf32>
    %368 = arith.addf %364, %367 : vector<16x64xf32>
    %369 = arith.addf %324, %368 : vector<16x64xf32>
    %c2 = arith.constant 2 : index
    %c0_134 = arith.constant 0 : index
    %c0_135 = arith.constant 0 : index
    %370 = vector.load %arg3[%c2, %c0_134, %c0_135] : memref<4x1x64xf32, #tpu.memory_space<vmem>>, vector<1x1x64xf32>
    %371 = vector.shape_cast %370 : vector<1x1x64xf32> to vector<1x64xf32>
    %c2_136 = arith.constant 2 : index
    %c0_137 = arith.constant 0 : index
    %c0_138 = arith.constant 0 : index
    %372 = vector.load %arg4[%c2_136, %c0_137, %c0_138] : memref<4x1x64xf32, #tpu.memory_space<vmem>>, vector<1x1x64xf32>
    %373 = vector.shape_cast %372 : vector<1x1x64xf32> to vector<1x64xf32>
    %cst_139 = arith.constant dense<0.000000e+00> : vector<16xf32>
    %374 = vector.multi_reduction <add>, %369, %cst_139 [1] : vector<16x64xf32> to vector<16xf32>
    %375 = vector.shape_cast %374 : vector<16xf32> to vector<16x1xf32>
    %cst_140 = arith.constant 6.400000e+01 : f32
    %376 = vector.broadcast %cst_140 : f32 to vector<16x1xf32>
    %377 = arith.divf %375, %376 : vector<16x1xf32>
    %378 = vector.broadcast %377 : vector<16x1xf32> to vector<16x64xf32>
    %379 = arith.subf %369, %378 : vector<16x64xf32>
    %380 = arith.mulf %379, %379 : vector<16x64xf32>
    %cst_141 = arith.constant dense<0.000000e+00> : vector<16xf32>
    %381 = vector.multi_reduction <add>, %380, %cst_141 [1] : vector<16x64xf32> to vector<16xf32>
    %382 = vector.shape_cast %381 : vector<16xf32> to vector<16x1xf32>
    %cst_142 = arith.constant 6.400000e+01 : f32
    %383 = vector.broadcast %cst_142 : f32 to vector<16x1xf32>
    %384 = arith.divf %382, %383 : vector<16x1xf32>
    %385 = vector.broadcast %377 : vector<16x1xf32> to vector<16x64xf32>
    %386 = arith.subf %369, %385 : vector<16x64xf32>
    %cst_143 = arith.constant 9.99999974E-6 : f32
    %387 = vector.broadcast %cst_143 : f32 to vector<16x1xf32>
    %388 = arith.addf %384, %387 : vector<16x1xf32>
    %389 = math.rsqrt %388 : vector<16x1xf32>
    %390 = vector.broadcast %389 : vector<16x1xf32> to vector<16x64xf32>
    %391 = arith.mulf %386, %390 : vector<16x64xf32>
    %392 = vector.broadcast %371 : vector<1x64xf32> to vector<16x64xf32>
    %393 = arith.mulf %391, %392 : vector<16x64xf32>
    %394 = vector.broadcast %373 : vector<1x64xf32> to vector<16x64xf32>
    %395 = arith.addf %393, %394 : vector<16x64xf32>
    %396 = arith.truncf %395 : vector<16x64xf32> to vector<16x64xbf16>
    %c2_144 = arith.constant 2 : index
    %c0_145 = arith.constant 0 : index
    %c0_146 = arith.constant 0 : index
    %397 = vector.load %arg5[%c2_144, %c0_145, %c0_146] : memref<4x64x192xbf16, #tpu.memory_space<vmem>>, vector<1x64x192xbf16>
    %398 = vector.shape_cast %397 : vector<1x64x192xbf16> to vector<64x192xbf16>
    %cst_147 = arith.constant dense<0.000000e+00> : vector<16x192xf32>
    %399 = tpu.matmul %396, %398, %cst_147 {dimension_numbers = #tpu.dot_dimension_numbers<[1], [0], [0], [1], [0, 0, 1, 1], [], []>} : vector<16x64xbf16>, vector<64x192xbf16>, vector<16x192xf32> -> vector<16x192xf32>
    %400 = vector.extract_strided_slice %399 {offsets = [0, 0], sizes = [16, 64], strides = [1, 1]} : vector<16x192xf32> to vector<16x64xf32>
    %401 = vector.shape_cast %400 : vector<16x64xf32> to vector<2x8x64xf32>
    %402 = vector.extract_strided_slice %399 {offsets = [0, 64], sizes = [16, 64], strides = [1, 1]} : vector<16x192xf32> to vector<16x64xf32>
    %403 = vector.shape_cast %402 : vector<16x64xf32> to vector<2x8x64xf32>
    %404 = vector.extract_strided_slice %399 {offsets = [0, 128], sizes = [16, 64], strides = [1, 1]} : vector<16x192xf32> to vector<16x64xf32>
    %405 = vector.shape_cast %404 : vector<16x64xf32> to vector<2x8x64xf32>
    %406 = vector.extract_strided_slice %401 {offsets = [0, 0, 0], sizes = [2, 8, 16], strides = [1, 1, 1]} : vector<2x8x64xf32> to vector<2x8x16xf32>
    %407 = arith.truncf %406 : vector<2x8x16xf32> to vector<2x8x16xbf16>
    %408 = vector.extract_strided_slice %403 {offsets = [0, 0, 0], sizes = [2, 8, 16], strides = [1, 1, 1]} : vector<2x8x64xf32> to vector<2x8x16xf32>
    %409 = arith.truncf %408 : vector<2x8x16xf32> to vector<2x8x16xbf16>
    %410 = vector.extract_strided_slice %405 {offsets = [0, 0, 0], sizes = [2, 8, 16], strides = [1, 1, 1]} : vector<2x8x64xf32> to vector<2x8x16xf32>
    %411 = arith.truncf %410 : vector<2x8x16xf32> to vector<2x8x16xbf16>
    "tpu.trace_start"() <{level = 10 : i32, message = "bqd,bkd->bqk"}> : () -> ()
    %cst_148 = arith.constant dense<0.000000e+00> : vector<2x8x8xf32>
    %412 = tpu.matmul %407, %409, %cst_148 {dimension_numbers = #tpu.dot_dimension_numbers<[2], [2], [1], [1], [0, 0, 0, 1, 1, 1], [0], [0]>} : vector<2x8x16xbf16>, vector<2x8x16xbf16>, vector<2x8x8xf32> -> vector<2x8x8xf32>
    "tpu.trace_stop"() : () -> ()
    %413 = vector.shape_cast %17 : vector<8x8xf32> to vector<1x8x8xf32>
    %414 = vector.broadcast %413 : vector<1x8x8xf32> to vector<2x8x8xf32>
    %415 = arith.addf %412, %414 : vector<2x8x8xf32>
    %cst_149 = arith.constant dense<0xFF800000> : vector<2x8xf32>
    %416 = vector.multi_reduction <maximumf>, %415, %cst_149 [2] : vector<2x8x8xf32> to vector<2x8xf32>
    %417 = vector.shape_cast %416 : vector<2x8xf32> to vector<2x8x1xf32>
    %418 = vector.broadcast %417 : vector<2x8x1xf32> to vector<2x8x8xf32>
    %419 = arith.subf %415, %418 : vector<2x8x8xf32>
    %420 = math.exp %419 : vector<2x8x8xf32>
    %cst_150 = arith.constant dense<0.000000e+00> : vector<2x8xf32>
    %421 = vector.multi_reduction <add>, %420, %cst_150 [2] : vector<2x8x8xf32> to vector<2x8xf32>
    %422 = vector.shape_cast %421 : vector<2x8xf32> to vector<2x8x1xf32>
    %423 = vector.broadcast %422 : vector<2x8x1xf32> to vector<2x8x8xf32>
    %424 = arith.divf %420, %423 : vector<2x8x8xf32>
    %425 = arith.truncf %424 : vector<2x8x8xf32> to vector<2x8x8xbf16>
    "tpu.trace_start"() <{level = 10 : i32, message = "bqk,bkd->bqd"}> : () -> ()
    %cst_151 = arith.constant dense<0.000000e+00> : vector<2x8x16xf32>
    %426 = tpu.matmul %425, %411, %cst_151 {dimension_numbers = #tpu.dot_dimension_numbers<[2], [1], [1], [2], [0, 0, 0, 1, 1, 2], [0], [0]>} : vector<2x8x8xbf16>, vector<2x8x16xbf16>, vector<2x8x16xf32> -> vector<2x8x16xf32>
    "tpu.trace_stop"() : () -> ()
    %427 = vector.extract_strided_slice %401 {offsets = [0, 0, 16], sizes = [2, 8, 16], strides = [1, 1, 1]} : vector<2x8x64xf32> to vector<2x8x16xf32>
    %428 = arith.truncf %427 : vector<2x8x16xf32> to vector<2x8x16xbf16>
    %429 = vector.extract_strided_slice %403 {offsets = [0, 0, 16], sizes = [2, 8, 16], strides = [1, 1, 1]} : vector<2x8x64xf32> to vector<2x8x16xf32>
    %430 = arith.truncf %429 : vector<2x8x16xf32> to vector<2x8x16xbf16>
    %431 = vector.extract_strided_slice %405 {offsets = [0, 0, 16], sizes = [2, 8, 16], strides = [1, 1, 1]} : vector<2x8x64xf32> to vector<2x8x16xf32>
    %432 = arith.truncf %431 : vector<2x8x16xf32> to vector<2x8x16xbf16>
    "tpu.trace_start"() <{level = 10 : i32, message = "bqd,bkd->bqk"}> : () -> ()
    %cst_152 = arith.constant dense<0.000000e+00> : vector<2x8x8xf32>
    %433 = tpu.matmul %428, %430, %cst_152 {dimension_numbers = #tpu.dot_dimension_numbers<[2], [2], [1], [1], [0, 0, 0, 1, 1, 1], [0], [0]>} : vector<2x8x16xbf16>, vector<2x8x16xbf16>, vector<2x8x8xf32> -> vector<2x8x8xf32>
    "tpu.trace_stop"() : () -> ()
    %434 = vector.shape_cast %17 : vector<8x8xf32> to vector<1x8x8xf32>
    %435 = vector.broadcast %434 : vector<1x8x8xf32> to vector<2x8x8xf32>
    %436 = arith.addf %433, %435 : vector<2x8x8xf32>
    %cst_153 = arith.constant dense<0xFF800000> : vector<2x8xf32>
    %437 = vector.multi_reduction <maximumf>, %436, %cst_153 [2] : vector<2x8x8xf32> to vector<2x8xf32>
    %438 = vector.shape_cast %437 : vector<2x8xf32> to vector<2x8x1xf32>
    %439 = vector.broadcast %438 : vector<2x8x1xf32> to vector<2x8x8xf32>
    %440 = arith.subf %436, %439 : vector<2x8x8xf32>
    %441 = math.exp %440 : vector<2x8x8xf32>
    %cst_154 = arith.constant dense<0.000000e+00> : vector<2x8xf32>
    %442 = vector.multi_reduction <add>, %441, %cst_154 [2] : vector<2x8x8xf32> to vector<2x8xf32>
    %443 = vector.shape_cast %442 : vector<2x8xf32> to vector<2x8x1xf32>
    %444 = vector.broadcast %443 : vector<2x8x1xf32> to vector<2x8x8xf32>
    %445 = arith.divf %441, %444 : vector<2x8x8xf32>
    %446 = arith.truncf %445 : vector<2x8x8xf32> to vector<2x8x8xbf16>
    "tpu.trace_start"() <{level = 10 : i32, message = "bqk,bkd->bqd"}> : () -> ()
    %cst_155 = arith.constant dense<0.000000e+00> : vector<2x8x16xf32>
    %447 = tpu.matmul %446, %432, %cst_155 {dimension_numbers = #tpu.dot_dimension_numbers<[2], [1], [1], [2], [0, 0, 0, 1, 1, 2], [0], [0]>} : vector<2x8x8xbf16>, vector<2x8x16xbf16>, vector<2x8x16xf32> -> vector<2x8x16xf32>
    "tpu.trace_stop"() : () -> ()
    %448 = vector.extract_strided_slice %401 {offsets = [0, 0, 32], sizes = [2, 8, 16], strides = [1, 1, 1]} : vector<2x8x64xf32> to vector<2x8x16xf32>
    %449 = arith.truncf %448 : vector<2x8x16xf32> to vector<2x8x16xbf16>
    %450 = vector.extract_strided_slice %403 {offsets = [0, 0, 32], sizes = [2, 8, 16], strides = [1, 1, 1]} : vector<2x8x64xf32> to vector<2x8x16xf32>
    %451 = arith.truncf %450 : vector<2x8x16xf32> to vector<2x8x16xbf16>
    %452 = vector.extract_strided_slice %405 {offsets = [0, 0, 32], sizes = [2, 8, 16], strides = [1, 1, 1]} : vector<2x8x64xf32> to vector<2x8x16xf32>
    %453 = arith.truncf %452 : vector<2x8x16xf32> to vector<2x8x16xbf16>
    "tpu.trace_start"() <{level = 10 : i32, message = "bqd,bkd->bqk"}> : () -> ()
    %cst_156 = arith.constant dense<0.000000e+00> : vector<2x8x8xf32>
    %454 = tpu.matmul %449, %451, %cst_156 {dimension_numbers = #tpu.dot_dimension_numbers<[2], [2], [1], [1], [0, 0, 0, 1, 1, 1], [0], [0]>} : vector<2x8x16xbf16>, vector<2x8x16xbf16>, vector<2x8x8xf32> -> vector<2x8x8xf32>
    "tpu.trace_stop"() : () -> ()
    %455 = vector.shape_cast %17 : vector<8x8xf32> to vector<1x8x8xf32>
    %456 = vector.broadcast %455 : vector<1x8x8xf32> to vector<2x8x8xf32>
    %457 = arith.addf %454, %456 : vector<2x8x8xf32>
    %cst_157 = arith.constant dense<0xFF800000> : vector<2x8xf32>
    %458 = vector.multi_reduction <maximumf>, %457, %cst_157 [2] : vector<2x8x8xf32> to vector<2x8xf32>
    %459 = vector.shape_cast %458 : vector<2x8xf32> to vector<2x8x1xf32>
    %460 = vector.broadcast %459 : vector<2x8x1xf32> to vector<2x8x8xf32>
    %461 = arith.subf %457, %460 : vector<2x8x8xf32>
    %462 = math.exp %461 : vector<2x8x8xf32>
    %cst_158 = arith.constant dense<0.000000e+00> : vector<2x8xf32>
    %463 = vector.multi_reduction <add>, %462, %cst_158 [2] : vector<2x8x8xf32> to vector<2x8xf32>
    %464 = vector.shape_cast %463 : vector<2x8xf32> to vector<2x8x1xf32>
    %465 = vector.broadcast %464 : vector<2x8x1xf32> to vector<2x8x8xf32>
    %466 = arith.divf %462, %465 : vector<2x8x8xf32>
    %467 = arith.truncf %466 : vector<2x8x8xf32> to vector<2x8x8xbf16>
    "tpu.trace_start"() <{level = 10 : i32, message = "bqk,bkd->bqd"}> : () -> ()
    %cst_159 = arith.constant dense<0.000000e+00> : vector<2x8x16xf32>
    %468 = tpu.matmul %467, %453, %cst_159 {dimension_numbers = #tpu.dot_dimension_numbers<[2], [1], [1], [2], [0, 0, 0, 1, 1, 2], [0], [0]>} : vector<2x8x8xbf16>, vector<2x8x16xbf16>, vector<2x8x16xf32> -> vector<2x8x16xf32>
    "tpu.trace_stop"() : () -> ()
    %469 = vector.extract_strided_slice %401 {offsets = [0, 0, 48], sizes = [2, 8, 16], strides = [1, 1, 1]} : vector<2x8x64xf32> to vector<2x8x16xf32>
    %470 = arith.truncf %469 : vector<2x8x16xf32> to vector<2x8x16xbf16>
    %471 = vector.extract_strided_slice %403 {offsets = [0, 0, 48], sizes = [2, 8, 16], strides = [1, 1, 1]} : vector<2x8x64xf32> to vector<2x8x16xf32>
    %472 = arith.truncf %471 : vector<2x8x16xf32> to vector<2x8x16xbf16>
    %473 = vector.extract_strided_slice %405 {offsets = [0, 0, 48], sizes = [2, 8, 16], strides = [1, 1, 1]} : vector<2x8x64xf32> to vector<2x8x16xf32>
    %474 = arith.truncf %473 : vector<2x8x16xf32> to vector<2x8x16xbf16>
    "tpu.trace_start"() <{level = 10 : i32, message = "bqd,bkd->bqk"}> : () -> ()
    %cst_160 = arith.constant dense<0.000000e+00> : vector<2x8x8xf32>
    %475 = tpu.matmul %470, %472, %cst_160 {dimension_numbers = #tpu.dot_dimension_numbers<[2], [2], [1], [1], [0, 0, 0, 1, 1, 1], [0], [0]>} : vector<2x8x16xbf16>, vector<2x8x16xbf16>, vector<2x8x8xf32> -> vector<2x8x8xf32>
    "tpu.trace_stop"() : () -> ()
    %476 = vector.shape_cast %17 : vector<8x8xf32> to vector<1x8x8xf32>
    %477 = vector.broadcast %476 : vector<1x8x8xf32> to vector<2x8x8xf32>
    %478 = arith.addf %475, %477 : vector<2x8x8xf32>
    %cst_161 = arith.constant dense<0xFF800000> : vector<2x8xf32>
    %479 = vector.multi_reduction <maximumf>, %478, %cst_161 [2] : vector<2x8x8xf32> to vector<2x8xf32>
    %480 = vector.shape_cast %479 : vector<2x8xf32> to vector<2x8x1xf32>
    %481 = vector.broadcast %480 : vector<2x8x1xf32> to vector<2x8x8xf32>
    %482 = arith.subf %478, %481 : vector<2x8x8xf32>
    %483 = math.exp %482 : vector<2x8x8xf32>
    %cst_162 = arith.constant dense<0.000000e+00> : vector<2x8xf32>
    %484 = vector.multi_reduction <add>, %483, %cst_162 [2] : vector<2x8x8xf32> to vector<2x8xf32>
    %485 = vector.shape_cast %484 : vector<2x8xf32> to vector<2x8x1xf32>
    %486 = vector.broadcast %485 : vector<2x8x1xf32> to vector<2x8x8xf32>
    %487 = arith.divf %483, %486 : vector<2x8x8xf32>
    %488 = arith.truncf %487 : vector<2x8x8xf32> to vector<2x8x8xbf16>
    "tpu.trace_start"() <{level = 10 : i32, message = "bqk,bkd->bqd"}> : () -> ()
    %cst_163 = arith.constant dense<0.000000e+00> : vector<2x8x16xf32>
    %489 = tpu.matmul %488, %474, %cst_163 {dimension_numbers = #tpu.dot_dimension_numbers<[2], [1], [1], [2], [0, 0, 0, 1, 1, 2], [0], [0]>} : vector<2x8x8xbf16>, vector<2x8x16xbf16>, vector<2x8x16xf32> -> vector<2x8x16xf32>
    "tpu.trace_stop"() : () -> ()
    %490 = tpu.concatenate %426, %447, %468, %489 in 2 : vector<2x8x16xf32>, vector<2x8x16xf32>, vector<2x8x16xf32>, vector<2x8x16xf32> -> vector<2x8x64xf32>
    %491 = vector.shape_cast %490 : vector<2x8x64xf32> to vector<16x64xf32>
    %492 = arith.truncf %491 : vector<16x64xf32> to vector<16x64xbf16>
    %c2_164 = arith.constant 2 : index
    %c0_165 = arith.constant 0 : index
    %c0_166 = arith.constant 0 : index
    %493 = vector.load %arg6[%c2_164, %c0_165, %c0_166] : memref<4x64x64xbf16, #tpu.memory_space<vmem>>, vector<1x64x64xbf16>
    %494 = vector.shape_cast %493 : vector<1x64x64xbf16> to vector<64x64xbf16>
    %cst_167 = arith.constant dense<0.000000e+00> : vector<16x64xf32>
    %495 = tpu.matmul %492, %494, %cst_167 {dimension_numbers = #tpu.dot_dimension_numbers<[1], [0], [0], [1], [0, 0, 1, 1], [], []>} : vector<16x64xbf16>, vector<64x64xbf16>, vector<16x64xf32> -> vector<16x64xf32>
    %c2_168 = arith.constant 2 : index
    %c0_169 = arith.constant 0 : index
    %c0_170 = arith.constant 0 : index
    %496 = vector.load %arg7[%c2_168, %c0_169, %c0_170] : memref<4x1x64xf32, #tpu.memory_space<vmem>>, vector<1x1x64xf32>
    %497 = vector.shape_cast %496 : vector<1x1x64xf32> to vector<1x64xf32>
    %498 = vector.broadcast %497 : vector<1x64xf32> to vector<16x64xf32>
    %499 = arith.addf %495, %498 : vector<16x64xf32>
    %500 = arith.addf %369, %499 : vector<16x64xf32>
    %c2_171 = arith.constant 2 : index
    %c0_172 = arith.constant 0 : index
    %c0_173 = arith.constant 0 : index
    %501 = vector.load %arg8[%c2_171, %c0_172, %c0_173] : memref<4x1x64xf32, #tpu.memory_space<vmem>>, vector<1x1x64xf32>
    %502 = vector.shape_cast %501 : vector<1x1x64xf32> to vector<1x64xf32>
    %c2_174 = arith.constant 2 : index
    %c0_175 = arith.constant 0 : index
    %c0_176 = arith.constant 0 : index
    %503 = vector.load %arg9[%c2_174, %c0_175, %c0_176] : memref<4x1x64xf32, #tpu.memory_space<vmem>>, vector<1x1x64xf32>
    %504 = vector.shape_cast %503 : vector<1x1x64xf32> to vector<1x64xf32>
    %cst_177 = arith.constant dense<0.000000e+00> : vector<16xf32>
    %505 = vector.multi_reduction <add>, %500, %cst_177 [1] : vector<16x64xf32> to vector<16xf32>
    %506 = vector.shape_cast %505 : vector<16xf32> to vector<16x1xf32>
    %cst_178 = arith.constant 6.400000e+01 : f32
    %507 = vector.broadcast %cst_178 : f32 to vector<16x1xf32>
    %508 = arith.divf %506, %507 : vector<16x1xf32>
    %509 = vector.broadcast %508 : vector<16x1xf32> to vector<16x64xf32>
    %510 = arith.subf %500, %509 : vector<16x64xf32>
    %511 = arith.mulf %510, %510 : vector<16x64xf32>
    %cst_179 = arith.constant dense<0.000000e+00> : vector<16xf32>
    %512 = vector.multi_reduction <add>, %511, %cst_179 [1] : vector<16x64xf32> to vector<16xf32>
    %513 = vector.shape_cast %512 : vector<16xf32> to vector<16x1xf32>
    %cst_180 = arith.constant 6.400000e+01 : f32
    %514 = vector.broadcast %cst_180 : f32 to vector<16x1xf32>
    %515 = arith.divf %513, %514 : vector<16x1xf32>
    %516 = vector.broadcast %508 : vector<16x1xf32> to vector<16x64xf32>
    %517 = arith.subf %500, %516 : vector<16x64xf32>
    %cst_181 = arith.constant 9.99999974E-6 : f32
    %518 = vector.broadcast %cst_181 : f32 to vector<16x1xf32>
    %519 = arith.addf %515, %518 : vector<16x1xf32>
    %520 = math.rsqrt %519 : vector<16x1xf32>
    %521 = vector.broadcast %520 : vector<16x1xf32> to vector<16x64xf32>
    %522 = arith.mulf %517, %521 : vector<16x64xf32>
    %523 = vector.broadcast %502 : vector<1x64xf32> to vector<16x64xf32>
    %524 = arith.mulf %522, %523 : vector<16x64xf32>
    %525 = vector.broadcast %504 : vector<1x64xf32> to vector<16x64xf32>
    %526 = arith.addf %524, %525 : vector<16x64xf32>
    %527 = arith.truncf %526 : vector<16x64xf32> to vector<16x64xbf16>
    %c2_182 = arith.constant 2 : index
    %c0_183 = arith.constant 0 : index
    %c0_184 = arith.constant 0 : index
    %528 = vector.load %arg10[%c2_182, %c0_183, %c0_184] : memref<4x64x256xbf16, #tpu.memory_space<vmem>>, vector<1x64x256xbf16>
    %529 = vector.shape_cast %528 : vector<1x64x256xbf16> to vector<64x256xbf16>
    %cst_185 = arith.constant dense<0.000000e+00> : vector<16x256xf32>
    %530 = tpu.matmul %527, %529, %cst_185 {dimension_numbers = #tpu.dot_dimension_numbers<[1], [0], [0], [1], [0, 0, 1, 1], [], []>} : vector<16x64xbf16>, vector<64x256xbf16>, vector<16x256xf32> -> vector<16x256xf32>
    %c2_186 = arith.constant 2 : index
    %c0_187 = arith.constant 0 : index
    %c0_188 = arith.constant 0 : index
    %531 = vector.load %arg11[%c2_186, %c0_187, %c0_188] : memref<4x1x256xf32, #tpu.memory_space<vmem>>, vector<1x1x256xf32>
    %532 = vector.shape_cast %531 : vector<1x1x256xf32> to vector<1x256xf32>
    %533 = vector.broadcast %532 : vector<1x256xf32> to vector<16x256xf32>
    %534 = arith.addf %530, %533 : vector<16x256xf32>
    %cst_189 = arith.constant 0.000000e+00 : f32
    %535 = vector.broadcast %cst_189 : f32 to vector<16x256xf32>
    %536 = arith.maximumf %534, %535 : vector<16x256xf32>
    %537 = arith.truncf %536 : vector<16x256xf32> to vector<16x256xbf16>
    %c2_190 = arith.constant 2 : index
    %c0_191 = arith.constant 0 : index
    %c0_192 = arith.constant 0 : index
    %538 = vector.load %arg12[%c2_190, %c0_191, %c0_192] : memref<4x256x64xbf16, #tpu.memory_space<vmem>>, vector<1x256x64xbf16>
    %539 = vector.shape_cast %538 : vector<1x256x64xbf16> to vector<256x64xbf16>
    %cst_193 = arith.constant dense<0.000000e+00> : vector<16x64xf32>
    %540 = tpu.matmul %537, %539, %cst_193 {dimension_numbers = #tpu.dot_dimension_numbers<[1], [0], [0], [1], [0, 0, 1, 1], [], []>} : vector<16x256xbf16>, vector<256x64xbf16>, vector<16x64xf32> -> vector<16x64xf32>
    %c2_194 = arith.constant 2 : index
    %c0_195 = arith.constant 0 : index
    %c0_196 = arith.constant 0 : index
    %541 = vector.load %arg13[%c2_194, %c0_195, %c0_196] : memref<4x1x64xf32, #tpu.memory_space<vmem>>, vector<1x1x64xf32>
    %542 = vector.shape_cast %541 : vector<1x1x64xf32> to vector<1x64xf32>
    %543 = vector.broadcast %542 : vector<1x64xf32> to vector<16x64xf32>
    %544 = arith.addf %540, %543 : vector<16x64xf32>
    %545 = arith.addf %500, %544 : vector<16x64xf32>
    %c3 = arith.constant 3 : index
    %c0_197 = arith.constant 0 : index
    %c0_198 = arith.constant 0 : index
    %546 = vector.load %arg3[%c3, %c0_197, %c0_198] : memref<4x1x64xf32, #tpu.memory_space<vmem>>, vector<1x1x64xf32>
    %547 = vector.shape_cast %546 : vector<1x1x64xf32> to vector<1x64xf32>
    %c3_199 = arith.constant 3 : index
    %c0_200 = arith.constant 0 : index
    %c0_201 = arith.constant 0 : index
    %548 = vector.load %arg4[%c3_199, %c0_200, %c0_201] : memref<4x1x64xf32, #tpu.memory_space<vmem>>, vector<1x1x64xf32>
    %549 = vector.shape_cast %548 : vector<1x1x64xf32> to vector<1x64xf32>
    %cst_202 = arith.constant dense<0.000000e+00> : vector<16xf32>
    %550 = vector.multi_reduction <add>, %545, %cst_202 [1] : vector<16x64xf32> to vector<16xf32>
    %551 = vector.shape_cast %550 : vector<16xf32> to vector<16x1xf32>
    %cst_203 = arith.constant 6.400000e+01 : f32
    %552 = vector.broadcast %cst_203 : f32 to vector<16x1xf32>
    %553 = arith.divf %551, %552 : vector<16x1xf32>
    %554 = vector.broadcast %553 : vector<16x1xf32> to vector<16x64xf32>
    %555 = arith.subf %545, %554 : vector<16x64xf32>
    %556 = arith.mulf %555, %555 : vector<16x64xf32>
    %cst_204 = arith.constant dense<0.000000e+00> : vector<16xf32>
    %557 = vector.multi_reduction <add>, %556, %cst_204 [1] : vector<16x64xf32> to vector<16xf32>
    %558 = vector.shape_cast %557 : vector<16xf32> to vector<16x1xf32>
    %cst_205 = arith.constant 6.400000e+01 : f32
    %559 = vector.broadcast %cst_205 : f32 to vector<16x1xf32>
    %560 = arith.divf %558, %559 : vector<16x1xf32>
    %561 = vector.broadcast %553 : vector<16x1xf32> to vector<16x64xf32>
    %562 = arith.subf %545, %561 : vector<16x64xf32>
    %cst_206 = arith.constant 9.99999974E-6 : f32
    %563 = vector.broadcast %cst_206 : f32 to vector<16x1xf32>
    %564 = arith.addf %560, %563 : vector<16x1xf32>
    %565 = math.rsqrt %564 : vector<16x1xf32>
    %566 = vector.broadcast %565 : vector<16x1xf32> to vector<16x64xf32>
    %567 = arith.mulf %562, %566 : vector<16x64xf32>
    %568 = vector.broadcast %547 : vector<1x64xf32> to vector<16x64xf32>
    %569 = arith.mulf %567, %568 : vector<16x64xf32>
    %570 = vector.broadcast %549 : vector<1x64xf32> to vector<16x64xf32>
    %571 = arith.addf %569, %570 : vector<16x64xf32>
    %572 = arith.truncf %571 : vector<16x64xf32> to vector<16x64xbf16>
    %c3_207 = arith.constant 3 : index
    %c0_208 = arith.constant 0 : index
    %c0_209 = arith.constant 0 : index
    %573 = vector.load %arg5[%c3_207, %c0_208, %c0_209] : memref<4x64x192xbf16, #tpu.memory_space<vmem>>, vector<1x64x192xbf16>
    %574 = vector.shape_cast %573 : vector<1x64x192xbf16> to vector<64x192xbf16>
    %cst_210 = arith.constant dense<0.000000e+00> : vector<16x192xf32>
    %575 = tpu.matmul %572, %574, %cst_210 {dimension_numbers = #tpu.dot_dimension_numbers<[1], [0], [0], [1], [0, 0, 1, 1], [], []>} : vector<16x64xbf16>, vector<64x192xbf16>, vector<16x192xf32> -> vector<16x192xf32>
    %576 = vector.extract_strided_slice %575 {offsets = [0, 0], sizes = [16, 64], strides = [1, 1]} : vector<16x192xf32> to vector<16x64xf32>
    %577 = vector.shape_cast %576 : vector<16x64xf32> to vector<2x8x64xf32>
    %578 = vector.extract_strided_slice %575 {offsets = [0, 64], sizes = [16, 64], strides = [1, 1]} : vector<16x192xf32> to vector<16x64xf32>
    %579 = vector.shape_cast %578 : vector<16x64xf32> to vector<2x8x64xf32>
    %580 = vector.extract_strided_slice %575 {offsets = [0, 128], sizes = [16, 64], strides = [1, 1]} : vector<16x192xf32> to vector<16x64xf32>
    %581 = vector.shape_cast %580 : vector<16x64xf32> to vector<2x8x64xf32>
    %582 = vector.extract_strided_slice %577 {offsets = [0, 0, 0], sizes = [2, 8, 16], strides = [1, 1, 1]} : vector<2x8x64xf32> to vector<2x8x16xf32>
    %583 = arith.truncf %582 : vector<2x8x16xf32> to vector<2x8x16xbf16>
    %584 = vector.extract_strided_slice %579 {offsets = [0, 0, 0], sizes = [2, 8, 16], strides = [1, 1, 1]} : vector<2x8x64xf32> to vector<2x8x16xf32>
    %585 = arith.truncf %584 : vector<2x8x16xf32> to vector<2x8x16xbf16>
    %586 = vector.extract_strided_slice %581 {offsets = [0, 0, 0], sizes = [2, 8, 16], strides = [1, 1, 1]} : vector<2x8x64xf32> to vector<2x8x16xf32>
    %587 = arith.truncf %586 : vector<2x8x16xf32> to vector<2x8x16xbf16>
    "tpu.trace_start"() <{level = 10 : i32, message = "bqd,bkd->bqk"}> : () -> ()
    %cst_211 = arith.constant dense<0.000000e+00> : vector<2x8x8xf32>
    %588 = tpu.matmul %583, %585, %cst_211 {dimension_numbers = #tpu.dot_dimension_numbers<[2], [2], [1], [1], [0, 0, 0, 1, 1, 1], [0], [0]>} : vector<2x8x16xbf16>, vector<2x8x16xbf16>, vector<2x8x8xf32> -> vector<2x8x8xf32>
    "tpu.trace_stop"() : () -> ()
    %589 = vector.shape_cast %17 : vector<8x8xf32> to vector<1x8x8xf32>
    %590 = vector.broadcast %589 : vector<1x8x8xf32> to vector<2x8x8xf32>
    %591 = arith.addf %588, %590 : vector<2x8x8xf32>
    %cst_212 = arith.constant dense<0xFF800000> : vector<2x8xf32>
    %592 = vector.multi_reduction <maximumf>, %591, %cst_212 [2] : vector<2x8x8xf32> to vector<2x8xf32>
    %593 = vector.shape_cast %592 : vector<2x8xf32> to vector<2x8x1xf32>
    %594 = vector.broadcast %593 : vector<2x8x1xf32> to vector<2x8x8xf32>
    %595 = arith.subf %591, %594 : vector<2x8x8xf32>
    %596 = math.exp %595 : vector<2x8x8xf32>
    %cst_213 = arith.constant dense<0.000000e+00> : vector<2x8xf32>
    %597 = vector.multi_reduction <add>, %596, %cst_213 [2] : vector<2x8x8xf32> to vector<2x8xf32>
    %598 = vector.shape_cast %597 : vector<2x8xf32> to vector<2x8x1xf32>
    %599 = vector.broadcast %598 : vector<2x8x1xf32> to vector<2x8x8xf32>
    %600 = arith.divf %596, %599 : vector<2x8x8xf32>
    %601 = arith.truncf %600 : vector<2x8x8xf32> to vector<2x8x8xbf16>
    "tpu.trace_start"() <{level = 10 : i32, message = "bqk,bkd->bqd"}> : () -> ()
    %cst_214 = arith.constant dense<0.000000e+00> : vector<2x8x16xf32>
    %602 = tpu.matmul %601, %587, %cst_214 {dimension_numbers = #tpu.dot_dimension_numbers<[2], [1], [1], [2], [0, 0, 0, 1, 1, 2], [0], [0]>} : vector<2x8x8xbf16>, vector<2x8x16xbf16>, vector<2x8x16xf32> -> vector<2x8x16xf32>
    "tpu.trace_stop"() : () -> ()
    %603 = vector.extract_strided_slice %577 {offsets = [0, 0, 16], sizes = [2, 8, 16], strides = [1, 1, 1]} : vector<2x8x64xf32> to vector<2x8x16xf32>
    %604 = arith.truncf %603 : vector<2x8x16xf32> to vector<2x8x16xbf16>
    %605 = vector.extract_strided_slice %579 {offsets = [0, 0, 16], sizes = [2, 8, 16], strides = [1, 1, 1]} : vector<2x8x64xf32> to vector<2x8x16xf32>
    %606 = arith.truncf %605 : vector<2x8x16xf32> to vector<2x8x16xbf16>
    %607 = vector.extract_strided_slice %581 {offsets = [0, 0, 16], sizes = [2, 8, 16], strides = [1, 1, 1]} : vector<2x8x64xf32> to vector<2x8x16xf32>
    %608 = arith.truncf %607 : vector<2x8x16xf32> to vector<2x8x16xbf16>
    "tpu.trace_start"() <{level = 10 : i32, message = "bqd,bkd->bqk"}> : () -> ()
    %cst_215 = arith.constant dense<0.000000e+00> : vector<2x8x8xf32>
    %609 = tpu.matmul %604, %606, %cst_215 {dimension_numbers = #tpu.dot_dimension_numbers<[2], [2], [1], [1], [0, 0, 0, 1, 1, 1], [0], [0]>} : vector<2x8x16xbf16>, vector<2x8x16xbf16>, vector<2x8x8xf32> -> vector<2x8x8xf32>
    "tpu.trace_stop"() : () -> ()
    %610 = vector.shape_cast %17 : vector<8x8xf32> to vector<1x8x8xf32>
    %611 = vector.broadcast %610 : vector<1x8x8xf32> to vector<2x8x8xf32>
    %612 = arith.addf %609, %611 : vector<2x8x8xf32>
    %cst_216 = arith.constant dense<0xFF800000> : vector<2x8xf32>
    %613 = vector.multi_reduction <maximumf>, %612, %cst_216 [2] : vector<2x8x8xf32> to vector<2x8xf32>
    %614 = vector.shape_cast %613 : vector<2x8xf32> to vector<2x8x1xf32>
    %615 = vector.broadcast %614 : vector<2x8x1xf32> to vector<2x8x8xf32>
    %616 = arith.subf %612, %615 : vector<2x8x8xf32>
    %617 = math.exp %616 : vector<2x8x8xf32>
    %cst_217 = arith.constant dense<0.000000e+00> : vector<2x8xf32>
    %618 = vector.multi_reduction <add>, %617, %cst_217 [2] : vector<2x8x8xf32> to vector<2x8xf32>
    %619 = vector.shape_cast %618 : vector<2x8xf32> to vector<2x8x1xf32>
    %620 = vector.broadcast %619 : vector<2x8x1xf32> to vector<2x8x8xf32>
    %621 = arith.divf %617, %620 : vector<2x8x8xf32>
    %622 = arith.truncf %621 : vector<2x8x8xf32> to vector<2x8x8xbf16>
    "tpu.trace_start"() <{level = 10 : i32, message = "bqk,bkd->bqd"}> : () -> ()
    %cst_218 = arith.constant dense<0.000000e+00> : vector<2x8x16xf32>
    %623 = tpu.matmul %622, %608, %cst_218 {dimension_numbers = #tpu.dot_dimension_numbers<[2], [1], [1], [2], [0, 0, 0, 1, 1, 2], [0], [0]>} : vector<2x8x8xbf16>, vector<2x8x16xbf16>, vector<2x8x16xf32> -> vector<2x8x16xf32>
    "tpu.trace_stop"() : () -> ()
    %624 = vector.extract_strided_slice %577 {offsets = [0, 0, 32], sizes = [2, 8, 16], strides = [1, 1, 1]} : vector<2x8x64xf32> to vector<2x8x16xf32>
    %625 = arith.truncf %624 : vector<2x8x16xf32> to vector<2x8x16xbf16>
    %626 = vector.extract_strided_slice %579 {offsets = [0, 0, 32], sizes = [2, 8, 16], strides = [1, 1, 1]} : vector<2x8x64xf32> to vector<2x8x16xf32>
    %627 = arith.truncf %626 : vector<2x8x16xf32> to vector<2x8x16xbf16>
    %628 = vector.extract_strided_slice %581 {offsets = [0, 0, 32], sizes = [2, 8, 16], strides = [1, 1, 1]} : vector<2x8x64xf32> to vector<2x8x16xf32>
    %629 = arith.truncf %628 : vector<2x8x16xf32> to vector<2x8x16xbf16>
    "tpu.trace_start"() <{level = 10 : i32, message = "bqd,bkd->bqk"}> : () -> ()
    %cst_219 = arith.constant dense<0.000000e+00> : vector<2x8x8xf32>
    %630 = tpu.matmul %625, %627, %cst_219 {dimension_numbers = #tpu.dot_dimension_numbers<[2], [2], [1], [1], [0, 0, 0, 1, 1, 1], [0], [0]>} : vector<2x8x16xbf16>, vector<2x8x16xbf16>, vector<2x8x8xf32> -> vector<2x8x8xf32>
    "tpu.trace_stop"() : () -> ()
    %631 = vector.shape_cast %17 : vector<8x8xf32> to vector<1x8x8xf32>
    %632 = vector.broadcast %631 : vector<1x8x8xf32> to vector<2x8x8xf32>
    %633 = arith.addf %630, %632 : vector<2x8x8xf32>
    %cst_220 = arith.constant dense<0xFF800000> : vector<2x8xf32>
    %634 = vector.multi_reduction <maximumf>, %633, %cst_220 [2] : vector<2x8x8xf32> to vector<2x8xf32>
    %635 = vector.shape_cast %634 : vector<2x8xf32> to vector<2x8x1xf32>
    %636 = vector.broadcast %635 : vector<2x8x1xf32> to vector<2x8x8xf32>
    %637 = arith.subf %633, %636 : vector<2x8x8xf32>
    %638 = math.exp %637 : vector<2x8x8xf32>
    %cst_221 = arith.constant dense<0.000000e+00> : vector<2x8xf32>
    %639 = vector.multi_reduction <add>, %638, %cst_221 [2] : vector<2x8x8xf32> to vector<2x8xf32>
    %640 = vector.shape_cast %639 : vector<2x8xf32> to vector<2x8x1xf32>
    %641 = vector.broadcast %640 : vector<2x8x1xf32> to vector<2x8x8xf32>
    %642 = arith.divf %638, %641 : vector<2x8x8xf32>
    %643 = arith.truncf %642 : vector<2x8x8xf32> to vector<2x8x8xbf16>
    "tpu.trace_start"() <{level = 10 : i32, message = "bqk,bkd->bqd"}> : () -> ()
    %cst_222 = arith.constant dense<0.000000e+00> : vector<2x8x16xf32>
    %644 = tpu.matmul %643, %629, %cst_222 {dimension_numbers = #tpu.dot_dimension_numbers<[2], [1], [1], [2], [0, 0, 0, 1, 1, 2], [0], [0]>} : vector<2x8x8xbf16>, vector<2x8x16xbf16>, vector<2x8x16xf32> -> vector<2x8x16xf32>
    "tpu.trace_stop"() : () -> ()
    %645 = vector.extract_strided_slice %577 {offsets = [0, 0, 48], sizes = [2, 8, 16], strides = [1, 1, 1]} : vector<2x8x64xf32> to vector<2x8x16xf32>
    %646 = arith.truncf %645 : vector<2x8x16xf32> to vector<2x8x16xbf16>
    %647 = vector.extract_strided_slice %579 {offsets = [0, 0, 48], sizes = [2, 8, 16], strides = [1, 1, 1]} : vector<2x8x64xf32> to vector<2x8x16xf32>
    %648 = arith.truncf %647 : vector<2x8x16xf32> to vector<2x8x16xbf16>
    %649 = vector.extract_strided_slice %581 {offsets = [0, 0, 48], sizes = [2, 8, 16], strides = [1, 1, 1]} : vector<2x8x64xf32> to vector<2x8x16xf32>
    %650 = arith.truncf %649 : vector<2x8x16xf32> to vector<2x8x16xbf16>
    "tpu.trace_start"() <{level = 10 : i32, message = "bqd,bkd->bqk"}> : () -> ()
    %cst_223 = arith.constant dense<0.000000e+00> : vector<2x8x8xf32>
    %651 = tpu.matmul %646, %648, %cst_223 {dimension_numbers = #tpu.dot_dimension_numbers<[2], [2], [1], [1], [0, 0, 0, 1, 1, 1], [0], [0]>} : vector<2x8x16xbf16>, vector<2x8x16xbf16>, vector<2x8x8xf32> -> vector<2x8x8xf32>
    "tpu.trace_stop"() : () -> ()
    %652 = vector.shape_cast %17 : vector<8x8xf32> to vector<1x8x8xf32>
    %653 = vector.broadcast %652 : vector<1x8x8xf32> to vector<2x8x8xf32>
    %654 = arith.addf %651, %653 : vector<2x8x8xf32>
    %cst_224 = arith.constant dense<0xFF800000> : vector<2x8xf32>
    %655 = vector.multi_reduction <maximumf>, %654, %cst_224 [2] : vector<2x8x8xf32> to vector<2x8xf32>
    %656 = vector.shape_cast %655 : vector<2x8xf32> to vector<2x8x1xf32>
    %657 = vector.broadcast %656 : vector<2x8x1xf32> to vector<2x8x8xf32>
    %658 = arith.subf %654, %657 : vector<2x8x8xf32>
    %659 = math.exp %658 : vector<2x8x8xf32>
    %cst_225 = arith.constant dense<0.000000e+00> : vector<2x8xf32>
    %660 = vector.multi_reduction <add>, %659, %cst_225 [2] : vector<2x8x8xf32> to vector<2x8xf32>
    %661 = vector.shape_cast %660 : vector<2x8xf32> to vector<2x8x1xf32>
    %662 = vector.broadcast %661 : vector<2x8x1xf32> to vector<2x8x8xf32>
    %663 = arith.divf %659, %662 : vector<2x8x8xf32>
    %664 = arith.truncf %663 : vector<2x8x8xf32> to vector<2x8x8xbf16>
    "tpu.trace_start"() <{level = 10 : i32, message = "bqk,bkd->bqd"}> : () -> ()
    %cst_226 = arith.constant dense<0.000000e+00> : vector<2x8x16xf32>
    %665 = tpu.matmul %664, %650, %cst_226 {dimension_numbers = #tpu.dot_dimension_numbers<[2], [1], [1], [2], [0, 0, 0, 1, 1, 2], [0], [0]>} : vector<2x8x8xbf16>, vector<2x8x16xbf16>, vector<2x8x16xf32> -> vector<2x8x16xf32>
    "tpu.trace_stop"() : () -> ()
    %666 = tpu.concatenate %602, %623, %644, %665 in 2 : vector<2x8x16xf32>, vector<2x8x16xf32>, vector<2x8x16xf32>, vector<2x8x16xf32> -> vector<2x8x64xf32>
    %667 = vector.shape_cast %666 : vector<2x8x64xf32> to vector<16x64xf32>
    %668 = arith.truncf %667 : vector<16x64xf32> to vector<16x64xbf16>
    %c3_227 = arith.constant 3 : index
    %c0_228 = arith.constant 0 : index
    %c0_229 = arith.constant 0 : index
    %669 = vector.load %arg6[%c3_227, %c0_228, %c0_229] : memref<4x64x64xbf16, #tpu.memory_space<vmem>>, vector<1x64x64xbf16>
    %670 = vector.shape_cast %669 : vector<1x64x64xbf16> to vector<64x64xbf16>
    %cst_230 = arith.constant dense<0.000000e+00> : vector<16x64xf32>
    %671 = tpu.matmul %668, %670, %cst_230 {dimension_numbers = #tpu.dot_dimension_numbers<[1], [0], [0], [1], [0, 0, 1, 1], [], []>} : vector<16x64xbf16>, vector<64x64xbf16>, vector<16x64xf32> -> vector<16x64xf32>
    %c3_231 = arith.constant 3 : index
    %c0_232 = arith.constant 0 : index
    %c0_233 = arith.constant 0 : index
    %672 = vector.load %arg7[%c3_231, %c0_232, %c0_233] : memref<4x1x64xf32, #tpu.memory_space<vmem>>, vector<1x1x64xf32>
    %673 = vector.shape_cast %672 : vector<1x1x64xf32> to vector<1x64xf32>
    %674 = vector.broadcast %673 : vector<1x64xf32> to vector<16x64xf32>
    %675 = arith.addf %671, %674 : vector<16x64xf32>
    %676 = arith.addf %545, %675 : vector<16x64xf32>
    %c3_234 = arith.constant 3 : index
    %c0_235 = arith.constant 0 : index
    %c0_236 = arith.constant 0 : index
    %677 = vector.load %arg8[%c3_234, %c0_235, %c0_236] : memref<4x1x64xf32, #tpu.memory_space<vmem>>, vector<1x1x64xf32>
    %678 = vector.shape_cast %677 : vector<1x1x64xf32> to vector<1x64xf32>
    %c3_237 = arith.constant 3 : index
    %c0_238 = arith.constant 0 : index
    %c0_239 = arith.constant 0 : index
    %679 = vector.load %arg9[%c3_237, %c0_238, %c0_239] : memref<4x1x64xf32, #tpu.memory_space<vmem>>, vector<1x1x64xf32>
    %680 = vector.shape_cast %679 : vector<1x1x64xf32> to vector<1x64xf32>
    %cst_240 = arith.constant dense<0.000000e+00> : vector<16xf32>
    %681 = vector.multi_reduction <add>, %676, %cst_240 [1] : vector<16x64xf32> to vector<16xf32>
    %682 = vector.shape_cast %681 : vector<16xf32> to vector<16x1xf32>
    %cst_241 = arith.constant 6.400000e+01 : f32
    %683 = vector.broadcast %cst_241 : f32 to vector<16x1xf32>
    %684 = arith.divf %682, %683 : vector<16x1xf32>
    %685 = vector.broadcast %684 : vector<16x1xf32> to vector<16x64xf32>
    %686 = arith.subf %676, %685 : vector<16x64xf32>
    %687 = arith.mulf %686, %686 : vector<16x64xf32>
    %cst_242 = arith.constant dense<0.000000e+00> : vector<16xf32>
    %688 = vector.multi_reduction <add>, %687, %cst_242 [1] : vector<16x64xf32> to vector<16xf32>
    %689 = vector.shape_cast %688 : vector<16xf32> to vector<16x1xf32>
    %cst_243 = arith.constant 6.400000e+01 : f32
    %690 = vector.broadcast %cst_243 : f32 to vector<16x1xf32>
    %691 = arith.divf %689, %690 : vector<16x1xf32>
    %692 = vector.broadcast %684 : vector<16x1xf32> to vector<16x64xf32>
    %693 = arith.subf %676, %692 : vector<16x64xf32>
    %cst_244 = arith.constant 9.99999974E-6 : f32
    %694 = vector.broadcast %cst_244 : f32 to vector<16x1xf32>
    %695 = arith.addf %691, %694 : vector<16x1xf32>
    %696 = math.rsqrt %695 : vector<16x1xf32>
    %697 = vector.broadcast %696 : vector<16x1xf32> to vector<16x64xf32>
    %698 = arith.mulf %693, %697 : vector<16x64xf32>
    %699 = vector.broadcast %678 : vector<1x64xf32> to vector<16x64xf32>
    %700 = arith.mulf %698, %699 : vector<16x64xf32>
    %701 = vector.broadcast %680 : vector<1x64xf32> to vector<16x64xf32>
    %702 = arith.addf %700, %701 : vector<16x64xf32>
    %703 = arith.truncf %702 : vector<16x64xf32> to vector<16x64xbf16>
    %c3_245 = arith.constant 3 : index
    %c0_246 = arith.constant 0 : index
    %c0_247 = arith.constant 0 : index
    %704 = vector.load %arg10[%c3_245, %c0_246, %c0_247] : memref<4x64x256xbf16, #tpu.memory_space<vmem>>, vector<1x64x256xbf16>
    %705 = vector.shape_cast %704 : vector<1x64x256xbf16> to vector<64x256xbf16>
    %cst_248 = arith.constant dense<0.000000e+00> : vector<16x256xf32>
    %706 = tpu.matmul %703, %705, %cst_248 {dimension_numbers = #tpu.dot_dimension_numbers<[1], [0], [0], [1], [0, 0, 1, 1], [], []>} : vector<16x64xbf16>, vector<64x256xbf16>, vector<16x256xf32> -> vector<16x256xf32>
    %c3_249 = arith.constant 3 : index
    %c0_250 = arith.constant 0 : index
    %c0_251 = arith.constant 0 : index
    %707 = vector.load %arg11[%c3_249, %c0_250, %c0_251] : memref<4x1x256xf32, #tpu.memory_space<vmem>>, vector<1x1x256xf32>
    %708 = vector.shape_cast %707 : vector<1x1x256xf32> to vector<1x256xf32>
    %709 = vector.broadcast %708 : vector<1x256xf32> to vector<16x256xf32>
    %710 = arith.addf %706, %709 : vector<16x256xf32>
    %cst_252 = arith.constant 0.000000e+00 : f32
    %711 = vector.broadcast %cst_252 : f32 to vector<16x256xf32>
    %712 = arith.maximumf %710, %711 : vector<16x256xf32>
    %713 = arith.truncf %712 : vector<16x256xf32> to vector<16x256xbf16>
    %c3_253 = arith.constant 3 : index
    %c0_254 = arith.constant 0 : index
    %c0_255 = arith.constant 0 : index
    %714 = vector.load %arg12[%c3_253, %c0_254, %c0_255] : memref<4x256x64xbf16, #tpu.memory_space<vmem>>, vector<1x256x64xbf16>
    %715 = vector.shape_cast %714 : vector<1x256x64xbf16> to vector<256x64xbf16>
    %cst_256 = arith.constant dense<0.000000e+00> : vector<16x64xf32>
    %716 = tpu.matmul %713, %715, %cst_256 {dimension_numbers = #tpu.dot_dimension_numbers<[1], [0], [0], [1], [0, 0, 1, 1], [], []>} : vector<16x256xbf16>, vector<256x64xbf16>, vector<16x64xf32> -> vector<16x64xf32>
    %c3_257 = arith.constant 3 : index
    %c0_258 = arith.constant 0 : index
    %c0_259 = arith.constant 0 : index
    %717 = vector.load %arg13[%c3_257, %c0_258, %c0_259] : memref<4x1x64xf32, #tpu.memory_space<vmem>>, vector<1x1x64xf32>
    %718 = vector.shape_cast %717 : vector<1x1x64xf32> to vector<1x64xf32>
    %719 = vector.broadcast %718 : vector<1x64xf32> to vector<16x64xf32>
    %720 = arith.addf %716, %719 : vector<16x64xf32>
    %721 = arith.addf %676, %720 : vector<16x64xf32>
    %c0_260 = arith.constant 0 : index
    %c0_261 = arith.constant 0 : index
    %722 = vector.load %arg14[%c0_260, %c0_261] : memref<1x64xf32, #tpu.memory_space<vmem>>, vector<1x64xf32>
    %c0_262 = arith.constant 0 : index
    %c0_263 = arith.constant 0 : index
    %723 = vector.load %arg15[%c0_262, %c0_263] : memref<1x64xf32, #tpu.memory_space<vmem>>, vector<1x64xf32>
    %cst_264 = arith.constant dense<0.000000e+00> : vector<16xf32>
    %724 = vector.multi_reduction <add>, %721, %cst_264 [1] : vector<16x64xf32> to vector<16xf32>
    %725 = vector.shape_cast %724 : vector<16xf32> to vector<16x1xf32>
    %cst_265 = arith.constant 6.400000e+01 : f32
    %726 = vector.broadcast %cst_265 : f32 to vector<16x1xf32>
    %727 = arith.divf %725, %726 : vector<16x1xf32>
    %728 = vector.broadcast %727 : vector<16x1xf32> to vector<16x64xf32>
    %729 = arith.subf %721, %728 : vector<16x64xf32>
    %730 = arith.mulf %729, %729 : vector<16x64xf32>
    %cst_266 = arith.constant dense<0.000000e+00> : vector<16xf32>
    %731 = vector.multi_reduction <add>, %730, %cst_266 [1] : vector<16x64xf32> to vector<16xf32>
    %732 = vector.shape_cast %731 : vector<16xf32> to vector<16x1xf32>
    %cst_267 = arith.constant 6.400000e+01 : f32
    %733 = vector.broadcast %cst_267 : f32 to vector<16x1xf32>
    %734 = arith.divf %732, %733 : vector<16x1xf32>
    %735 = vector.broadcast %727 : vector<16x1xf32> to vector<16x64xf32>
    %736 = arith.subf %721, %735 : vector<16x64xf32>
    %cst_268 = arith.constant 9.99999974E-6 : f32
    %737 = vector.broadcast %cst_268 : f32 to vector<16x1xf32>
    %738 = arith.addf %734, %737 : vector<16x1xf32>
    %739 = math.rsqrt %738 : vector<16x1xf32>
    %740 = vector.broadcast %739 : vector<16x1xf32> to vector<16x64xf32>
    %741 = arith.mulf %736, %740 : vector<16x64xf32>
    %742 = vector.broadcast %722 : vector<1x64xf32> to vector<16x64xf32>
    %743 = arith.mulf %741, %742 : vector<16x64xf32>
    %744 = vector.broadcast %723 : vector<1x64xf32> to vector<16x64xf32>
    %745 = arith.addf %743, %744 : vector<16x64xf32>
    %746 = arith.truncf %745 : vector<16x64xf32> to vector<16x64xbf16>
    %c0_269 = arith.constant 0 : index
    %c0_270 = arith.constant 0 : index
    %747 = vector.load %arg16[%c0_269, %c0_270] : memref<64x128xbf16, #tpu.memory_space<vmem>>, vector<64x128xbf16>
    %cst_271 = arith.constant dense<0.000000e+00> : vector<16x128xf32>
    %748 = tpu.matmul %746, %747, %cst_271 {dimension_numbers = #tpu.dot_dimension_numbers<[1], [0], [0], [1], [0, 0, 1, 1], [], []>} : vector<16x64xbf16>, vector<64x128xbf16>, vector<16x128xf32> -> vector<16x128xf32>
    %c0_272 = arith.constant 0 : index
    %c0_273 = arith.constant 0 : index
    %749 = vector.load %arg17[%c0_272, %c0_273] : memref<1x128xf32, #tpu.memory_space<vmem>>, vector<1x128xf32>
    %750 = vector.broadcast %749 : vector<1x128xf32> to vector<16x128xf32>
    %751 = arith.addf %748, %750 : vector<16x128xf32>
    %c0_274 = arith.constant 0 : index
    %c0_275 = arith.constant 0 : index
    %752 = vector.load %arg18[%c0_274, %c0_275] : memref<16x128xf32, #tpu.memory_space<vmem>>, vector<16x128xf32>
    tpu.vector_store %arg18[%c0_274, %c0_275], %751 {strides = array<i32>} : memref<16x128xf32, #tpu.memory_space<vmem>>, vector<16x128xf32>,
    return
  }
}

</mosaic_0001>

<llo_original>
// kernel: forward.1
$region0: #{forward.1}
  #allocation0 [shape = 'u32[]', space=smem, size = 0x4, offset = 0x4, fixed_abs, tag = 'smem constant byte address 0x4 - core index']
  #allocation1 [shape = 'u32[144,128]{1,0:T(1,128)}', space=vmem, size = 0x12000, scoped, tag = 'internal scratch']
  %s0 = inlined_call_operand.vmem [shape: s32[16,1], index: 0, kind: input, shape index: {}]
  %s1 = inlined_call_operand.vmem [shape: bf16[128,64], index: 1, kind: input, shape index: {}]
  %s2 = inlined_call_operand.vmem [shape: f32[32,64], index: 2, kind: input, shape index: {}]
  %s3 = inlined_call_operand.vmem [shape: f32[4,1,64], index: 3, kind: input, shape index: {}]
  %s4 = inlined_call_operand.vmem [shape: f32[4,1,64], index: 4, kind: input, shape index: {}]
  %s5 = inlined_call_operand.vmem [shape: bf16[4,64,192], index: 5, kind: input, shape index: {}]
  %s6 = inlined_call_operand.vmem [shape: bf16[4,64,64], index: 6, kind: input, shape index: {}]
  %s7 = inlined_call_operand.vmem [shape: f32[4,1,64], index: 7, kind: input, shape index: {}]
  %s8 = inlined_call_operand.vmem [shape: f32[4,1,64], index: 8, kind: input, shape index: {}]
  %s9 = inlined_call_operand.vmem [shape: f32[4,1,64], index: 9, kind: input, shape index: {}]
  %s10 = inlined_call_operand.vmem [shape: bf16[4,64,256], index: 10, kind: input, shape index: {}]
  %s11 = inlined_call_operand.vmem [shape: f32[4,1,256], index: 11, kind: input, shape index: {}]
  %s12 = inlined_call_operand.vmem [shape: bf16[4,256,64], index: 12, kind: input, shape index: {}]
  %s13 = inlined_call_operand.vmem [shape: f32[4,1,64], index: 13, kind: input, shape index: {}]
  %s14 = inlined_call_operand.vmem [shape: f32[1,64], index: 14, kind: input, shape index: {}]
  %s15 = inlined_call_operand.vmem [shape: f32[1,64], index: 15, kind: input, shape index: {}]
  %s16 = inlined_call_operand.vmem [shape: bf16[64,128], index: 16, kind: input, shape index: {}]
  %s17 = inlined_call_operand.vmem [shape: f32[1,128], index: 17, kind: input, shape index: {}]
  %s18 = inlined_call_operand.hbm [shape: f32[16,128], index: 18, kind: output, shape index: {}]
  %s19 = sld [smem:[#allocation0]]
  $region82: #{forward.1} parent=0
    _
  %s21 = ssub.s32 1, %s19
  %s22 = scalar_select 0, %s21, %s19
  $region1: #{forward.1} parent=0
    #allocation2 [shape = 'u8[8192]{0}', space=vmem, size = 0x2000, scoped, tag = 'output window, operand 0, single buffered']
    #allocation3 [shape = 's32[1]{0}', space=sflag, size = 0x4, scoped, tag = 'scoped memory for forward.1']
    %23 = vsyncpa [#allocation3], 0
    // Predicated region
    $region2: #{forward.1} parent=1 // pred_check
      _
    $region3: #{forward.1} parent=1 // pred_check_branch
      %25 = sbr.rel (0) target = $region5
    $region4: #{forward.1} parent=1 // pred_region
      _
    $region5: #{forward.1} parent=1 // pred_fallthru
      _
    // Predicated region
    $region6: #{forward.1} parent=1 // pred_check
      _
    $region7: #{forward.1} parent=1 // pred_check_branch
      %27 = sbr.rel (0) target = $region9
    $region8: #{forward.1} parent=1 // pred_region
      _
    $region9: #{forward.1} parent=1 // pred_fallthru
      _
    // Predicated region
    $region10: #{forward.1} parent=1 // pred_check
      _
    $region11: #{forward.1} parent=1 // pred_check_branch
      %29 = sbr.rel (0) target = $region13
    $region12: #{forward.1} parent=1 // pred_region
      _
    $region13: #{forward.1} parent=1 // pred_fallthru
      _
    // Predicated region
    $region14: #{forward.1} parent=1 // pred_check
      _
    $region15: #{forward.1} parent=1 // pred_check_branch
      %31 = sbr.rel (0) target = $region17
    $region16: #{forward.1} parent=1 // pred_region
      _
    $region17: #{forward.1} parent=1 // pred_fallthru
      _
    // Predicated region
    $region18: #{forward.1} parent=1 // pred_check
      _
    $region19: #{forward.1} parent=1 // pred_check_branch
      %33 = sbr.rel (0) target = $region21
    $region20: #{forward.1} parent=1 // pred_region
      _
    $region21: #{forward.1} parent=1 // pred_fallthru
      _
    // Predicated region
    $region22: #{forward.1} parent=1 // pred_check
      _
    $region23: #{forward.1} parent=1 // pred_check_branch
      %35 = sbr.rel (0) target = $region25
    $region24: #{forward.1} parent=1 // pred_region
      _
    $region25: #{forward.1} parent=1 // pred_fallthru
      _
    // Predicated region
    $region26: #{forward.1} parent=1 // pred_check
      _
    $region27: #{forward.1} parent=1 // pred_check_branch
      %37 = sbr.rel (0) target = $region29
    $region28: #{forward.1} parent=1 // pred_region
      _
    $region29: #{forward.1} parent=1 // pred_fallthru
      _
    // Predicated region
    $region30: #{forward.1} parent=1 // pred_check
      _
    $region31: #{forward.1} parent=1 // pred_check_branch
      %39 = sbr.rel (0) target = $region33
    $region32: #{forward.1} parent=1 // pred_region
      _
    $region33: #{forward.1} parent=1 // pred_fallthru
      _
    // Predicated region
    $region34: #{forward.1} parent=1 // pred_check
      _
    $region35: #{forward.1} parent=1 // pred_check_branch
      %41 = sbr.rel (0) target = $region37
    $region36: #{forward.1} parent=1 // pred_region
      _
    $region37: #{forward.1} parent=1 // pred_fallthru
      _
    // Predicated region
    $region38: #{forward.1} parent=1 // pred_check
      _
    $region39: #{forward.1} parent=1 // pred_check_branch
      %43 = sbr.rel (0) target = $region41
    $region40: #{forward.1} parent=1 // pred_region
      _
    $region41: #{forward.1} parent=1 // pred_fallthru
      _
    // Predicated region
    $region42: #{forward.1} parent=1 // pred_check
      _
    $region43: #{forward.1} parent=1 // pred_check_branch
      %45 = sbr.rel (0) target = $region45
    $region44: #{forward.1} parent=1 // pred_region
      _
    $region45: #{forward.1} parent=1 // pred_fallthru
      _
    // Predicated region
    $region46: #{forward.1} parent=1 // pred_check
      _
    $region47: #{forward.1} parent=1 // pred_check_branch
      %47 = sbr.rel (0) target = $region49
    $region48: #{forward.1} parent=1 // pred_region
      _
    $region49: #{forward.1} parent=1 // pred_fallthru
      _
    // Predicated region
    $region50: #{forward.1} parent=1 // pred_check
      _
    $region51: #{forward.1} parent=1 // pred_check_branch
      %49 = sbr.rel (0) target = $region53
    $region52: #{forward.1} parent=1 // pred_region
      _
    $region53: #{forward.1} parent=1 // pred_fallthru
      _
    // Predicated region
    $region54: #{forward.1} parent=1 // pred_check
      _
    $region55: #{forward.1} parent=1 // pred_check_branch
      %51 = sbr.rel (0) target = $region57
    $region56: #{forward.1} parent=1 // pred_region
      _
    $region57: #{forward.1} parent=1 // pred_fallthru
      _
    // Predicated region
    $region58: #{forward.1} parent=1 // pred_check
      _
    $region59: #{forward.1} parent=1 // pred_check_branch
      %53 = sbr.rel (0) target = $region61
    $region60: #{forward.1} parent=1 // pred_region
      _
    $region61: #{forward.1} parent=1 // pred_fallthru
      _
    // Predicated region
    $region62: #{forward.1} parent=1 // pred_check
      _
    $region63: #{forward.1} parent=1 // pred_check_branch
      %55 = sbr.rel (0) target = $region65
    $region64: #{forward.1} parent=1 // pred_region
      _
    $region65: #{forward.1} parent=1 // pred_fallthru
      _
    // Predicated region
    $region66: #{forward.1} parent=1 // pred_check
      _
    $region67: #{forward.1} parent=1 // pred_check_branch
      %57 = sbr.rel (0) target = $region69
    $region68: #{forward.1} parent=1 // pred_region
      _
    $region69: #{forward.1} parent=1 // pred_fallthru
      _
    // Predicated region
    $region70: #{forward.1} parent=1 // pred_check
      _
    $region71: #{forward.1} parent=1 // pred_check_branch
      %59 = sbr.rel (0) target = $region73
    $region72: #{forward.1} parent=1 // pred_region
      _
    $region73: #{forward.1} parent=1 // pred_fallthru
      _
    %v61 = vld [vmem:[%s0] sm:$0xff]
    %v62 = vld [vmem:[%s0 + $0x8] sm:$0xff]
    %v63 = vlaneseq
    %v64 = vand.u32 %v63, 127
    %65 = vset.pattern.permute.xlu0 0
    %66 = vperm.xlu0 %65, %v61
    %v67 = vpop.permute.xlu0 %66
    %68 = vset.pattern.permute.xlu0 0
    %69 = vperm.xlu0 %68, %v62
    %v70 = vpop.permute.xlu0 %69
    %vm71 = vcmp.eq.s32.totalorder %v67, %v64
    %vm72 = vcmp.eq.s32.totalorder %v70, %v64
    %v73 = vsel %vm71, 1, 0
    %v74 = vsel %vm72, 1, 0
    %v75 = vcvt.s32.f32 %v73
    %v76 = vcvt.s32.f32 %v74
    %v77 = vpack.c.bf16 %v76, %v75
    %v78 = vld [vmem:[%s1] sm:$0xf]
    %v79 = vld [vmem:[%s1 + $0x4] sm:$0xf]
    %v80 = vld [vmem:[%s1 + $0x8] sm:$0xf]
    %v81 = vld [vmem:[%s1 + $0xc] sm:$0xf]
    %v82 = vld [vmem:[%s1 + $0x10] sm:$0xf]
    %v83 = vld [vmem:[%s1 + $0x14] sm:$0xf]
    %v84 = vld [vmem:[%s1 + $0x18] sm:$0xf]
    %v85 = vld [vmem:[%s1 + $0x1c] sm:$0xf]
    %v86 = vld [vmem:[%s1 + $0x20] sm:$0xf]
    %v87 = vld [vmem:[%s1 + $0x24] sm:$0xf]
    %v88 = vld [vmem:[%s1 + $0x28] sm:$0xf]
    %v89 = vld [vmem:[%s1 + $0x2c] sm:$0xf]
    %v90 = vld [vmem:[%s1 + $0x30] sm:$0xf]
    %v91 = vld [vmem:[%s1 + $0x34] sm:$0xf]
    %v92 = vld [vmem:[%s1 + $0x38] sm:$0xf]
    %v93 = vld [vmem:[%s1 + $0x3c] sm:$0xf]
    %v94 = vld [vmem:[%s2] sm:$0xff]
    %v111 = vunpack.c.l.b16 %v78
    %v112 = vunpack.c.l.b16 %v79
    %v113 = vunpack.c.l.b16 %v80
    %v114 = vunpack.c.l.b16 %v81
    %v115 = vunpack.c.l.b16 %v82
    %v116 = vunpack.c.l.b16 %v83
    %v117 = vunpack.c.l.b16 %v84
    %v118 = vunpack.c.l.b16 %v85
    %v119 = vunpack.c.l.b16 %v86
    %v120 = vunpack.c.l.b16 %v87
    %v121 = vunpack.c.l.b16 %v88
    %v122 = vunpack.c.l.b16 %v89
    %v123 = vunpack.c.l.b16 %v90
    %v124 = vunpack.c.l.b16 %v91
    %v125 = vunpack.c.l.b16 %v92
    %v126 = vunpack.c.l.b16 %v93
    %v127 = vpack.c.b16 %v112, %v111
    %v128 = vpack.c.b16 %v114, %v113
    %v129 = vpack.c.b16 %v116, %v115
    %v130 = vpack.c.b16 %v118, %v117
    %v131 = vpack.c.b16 %v120, %v119
    %v132 = vpack.c.b16 %v122, %v121
    %v133 = vpack.c.b16 %v124, %v123
    %v134 = vpack.c.b16 %v126, %v125
    %143 = vmatprep.subr.bf16.mxu0 0
    %144 = vmatpush1.bf16.msra.mxu0 %v134
    %145 = vmatprep.subr.bf16.mxu0 0
    %146 = vmatpush1.bf16.msra.mxu0 %v133
    %147 = vmatprep.subr.bf16.mxu0 0
    %148 = vmatpush1.bf16.msra.mxu0 %v132
    %149 = vmatprep.subr.bf16.mxu0 0
    %150 = vmatpush1.bf16.msra.mxu0 %v131
    %151 = vmatprep.subr.bf16.mxu0 0
    %152 = vmatpush1.bf16.msra.mxu0 %v130
    %153 = vmatprep.subr.bf16.mxu0 0
    %154 = vmatpush1.bf16.msra.mxu0 %v129
    %155 = vmatprep.subr.bf16.mxu0 0
    %156 = vmatpush1.bf16.msra.mxu0 %v128
    %157 = vmatprep.subr.bf16.mxu0 0
    %158 = vmatpush1.bf16.msra.mxu0 %v127
    %159 = vmatprep.subr.bf16.mxu0 0
    %160 = vmatpush2.bf16.msra.mxu0 0
    %161 = vmatprep.subr.bf16.mxu0 0
    %162 = vmatpush2.bf16.msra.mxu0 0
    %163 = vmatprep.subr.bf16.mxu0 0
    %164 = vmatpush2.bf16.msra.mxu0 0
    %165 = vmatprep.subr.bf16.mxu0 0
    %166 = vmatpush2.bf16.msra.mxu0 0
    %167 = vmatprep.subr.bf16.mxu0 0
    %168 = vmatpush2.bf16.msra.mxu0 0
    %169 = vmatprep.subr.bf16.mxu0 0
    %170 = vmatpush2.bf16.msra.mxu0 0
    %171 = vmatprep.subr.bf16.mxu0 0
    %172 = vmatpush2.bf16.msra.mxu0 0
    %173 = vmatprep.subr.bf16.mxu0 0
    %174 = vmatpush2.bf16.msra.mxu0 0
    %175 = vmatprep.mubr.bf16.mxu0 0
    %176 = vmatmul.mubr.bf16.gmra.mxu0 %v77
    %v177 = vpop.f32.mrf.mxu0
    %v178 = vadd.f32 %v94, %v177
    %v179 = vpop.f32.mrf.mxu0
    %v180 = vpop.f32.mrf.mxu0
    %v181 = vadd.f32 %v94, %v180
    %v182 = vpop.f32.mrf.mxu0
    %183 = vdwg.mxu0
    %v184 = vlaneseq
    %v185 = vshrl.u32 %v184, 7
    %vm186 = vcmp.le.s32.totalorder %v64, %v185
    %v187 = vsel %vm186, 0.0, -1e+30
    %v188 = vld [vmem:[%s3] sm:$0x1]
    %v189 = vld [vmem:[%s4] sm:$0x1]
    %vm190 = vcmask 523264
    %v191 = vsel %vm190, %v178, 0.0
    %192 = vadd.xlane.f32.xlu0 %v191
    %v193 = vpop.xlane.xlu0 %192
    %v194 = vsel %vm190, %v181, 0.0
    %195 = vadd.xlane.f32.xlu0 %v194
    %v196 = vpop.xlane.xlu0 %195
    %v197 = vrcp.pop 64.0
    %v198 = vmul.f32 %v193, %v197
    %v199 = vmul.f32 %v196, %v197
    %v200 = vsub.f32 %v178, %v198
    %v201 = vsub.f32 %v181, %v199
    %v202 = vmul.f32 %v200, %v200
    %v203 = vmul.f32 %v201, %v201
    %v204 = vsel %vm190, %v202, 0.0
    %205 = vadd.xlane.f32.xlu0 %v204
    %v206 = vpop.xlane.xlu0 %205
    %v207 = vsel %vm190, %v203, 0.0
    %208 = vadd.xlane.f32.xlu0 %v207
    %v209 = vpop.xlane.xlu0 %208
    %v210 = vmul.f32 %v206, %v197
    %v211 = vmul.f32 %v209, %v197
    %v212 = vadd.f32 %v210, 1e-05
    %v213 = vadd.f32 %v211, 1e-05
    %v214 = vrsqrt.pop %v212
    %v215 = vrsqrt.pop %v213
    %v216 = vmul.f32 %v200, %v214
    %v217 = vmul.f32 %v201, %v215
    %v219 = vlaneseq
    %v220 = vshrl.u32 %v219, 7
    %v221 = vsub.s32 0, %v220
    %v222 = vrot.slane %v188, %v221
    %v224 = vmul.f32 %v216, %v222
    %v225 = vmul.f32 %v217, %v222
    %v227 = vlaneseq
    %v228 = vshrl.u32 %v227, 7
    %v229 = vsub.s32 0, %v228
    %v230 = vrot.slane %v189, %v229
    %v232 = vadd.f32 %v224, %v230
    %v233 = vadd.f32 %v225, %v230
    %v234 = vpack.c.bf16 %v233, %v232
    %v235 = vld [vmem:[%s5] sm:$0xff]
    %v236 = vld [vmem:[%s5 + $0x8] sm:$0xff]
    %v237 = vld [vmem:[%s5 + $0x10] sm:$0xff]
    %v238 = vld [vmem:[%s5 + $0x18] sm:$0xff]
    %v239 = vld [vmem:[%s5 + $0x20] sm:$0xff]
    %v240 = vld [vmem:[%s5 + $0x28] sm:$0xff]
    %v241 = vld [vmem:[%s5 + $0x30] sm:$0xff]
    %v242 = vld [vmem:[%s5 + $0x38] sm:$0xff]
    %v251 = vunpack.c.l.b16 %v235
    %v252 = vunpack.c.h.b16 %v235
    %v253 = vunpack.c.l.b16 %v236
    %v254 = vunpack.c.h.b16 %v236
    %v255 = vunpack.c.l.b16 %v237
    %v256 = vunpack.c.h.b16 %v237
    %v257 = vunpack.c.l.b16 %v238
    %v258 = vunpack.c.h.b16 %v238
    %v259 = vunpack.c.l.b16 %v239
    %v260 = vunpack.c.h.b16 %v239
    %v261 = vunpack.c.l.b16 %v240
    %v262 = vunpack.c.h.b16 %v240
    %v263 = vunpack.c.l.b16 %v241
    %v264 = vunpack.c.h.b16 %v241
    %v265 = vunpack.c.l.b16 %v242
    %v266 = vunpack.c.h.b16 %v242
    %v267 = vpack.c.b16 %v253, %v251
    %v268 = vpack.c.b16 %v254, %v252
    %v269 = vpack.c.b16 %v257, %v255
    %v270 = vpack.c.b16 %v258, %v256
    %v271 = vpack.c.b16 %v261, %v259
    %v272 = vpack.c.b16 %v262, %v260
    %v273 = vpack.c.b16 %v265, %v263
    %v274 = vpack.c.b16 %v266, %v264
    %v284 = vsel %vm190, %v234, 0
    %286 = vmatprep.subr.bf16.mxu0 0
    %287 = vmatpush1.bf16.msra.mxu0 0
    %288 = vmatprep.subr.bf16.mxu0 0
    %289 = vmatpush1.bf16.msra.mxu0 0
    %290 = vmatprep.subr.bf16.mxu0 0
    %291 = vmatpush1.bf16.msra.mxu0 0
    %292 = vmatprep.subr.bf16.mxu0 0
    %293 = vmatpush1.bf16.msra.mxu0 0
    %294 = vmatprep.subr.bf16.mxu0 %v274
    %295 = vmatpush1.bf16.msra.mxu0 %v273
    %296 = vmatprep.subr.bf16.mxu0 %v272
    %297 = vmatpush1.bf16.msra.mxu0 %v271
    %298 = vmatprep.subr.bf16.mxu0 %v270
    %299 = vmatpush1.bf16.msra.mxu0 %v269
    %300 = vmatprep.subr.bf16.mxu0 %v268
    %301 = vmatpush1.bf16.msra.mxu0 %v267
    %302 = vmatprep.subr.bf16.mxu0 0
    %303 = vmatpush2.bf16.msra.mxu0 0
    %304 = vmatprep.subr.bf16.mxu0 0
    %305 = vmatpush2.bf16.msra.mxu0 0
    %306 = vmatprep.subr.bf16.mxu0 0
    %307 = vmatpush2.bf16.msra.mxu0 0
    %308 = vmatprep.subr.bf16.mxu0 0
    %309 = vmatpush2.bf16.msra.mxu0 0
    %310 = vmatprep.subr.bf16.mxu0 0
    %311 = vmatpush2.bf16.msra.mxu0 0
    %312 = vmatprep.subr.bf16.mxu0 0
    %313 = vmatpush2.bf16.msra.mxu0 0
    %314 = vmatprep.subr.bf16.mxu0 0
    %315 = vmatpush2.bf16.msra.mxu0 0
    %316 = vmatprep.subr.bf16.mxu0 0
    %317 = vmatpush2.bf16.msra.mxu0 0
    %318 = vmatprep.mubr.bf16.mxu0 0
    %319 = vmatmul.mubr.bf16.gmra.mxu0 %v284
    %v320 = vpop.f32.mrf.mxu0
    %v321 = vadd.f32 0.0, %v320
    %v322 = vpop.f32.mrf.mxu0
    %v323 = vadd.f32 0.0, %v322
    %v324 = vpop.f32.mrf.mxu0
    %v325 = vadd.f32 0.0, %v324
    %v326 = vpop.f32.mrf.mxu0
    %v327 = vadd.f32 0.0, %v326
    %328 = vdwg.mxu0
    %v329 = vpack.c.bf16 %v321, %v321
    %v330 = vpack.c.bf16 %v325, %v325
    %v331 = vpack.c.bf16 %v323, %v323
    %v332 = vpack.c.bf16 %v327, %v327
    %334 = vrot.lane.b32.xlu0 %v329, 64
    %v335 = vpop.permute.xlu0 %334
    %vm336 = vcmask 130048
    %v338 = vsel %vm336, %v329, 0
    %v341 = vsel %vm336, %v335, 0
    %343 = vmatprep.subr.bf16.mxu0 0
    %344 = vmatpush1.bf16.xpose.msra.mxu0 0
    %345 = vmatprep.subr.bf16.mxu0 0
    %346 = vmatpush1.bf16.xpose.msra.mxu0 0
    %347 = vmatprep.subr.bf16.mxu0 0
    %348 = vmatpush1.bf16.xpose.msra.mxu0 0
    %349 = vmatprep.subr.bf16.mxu0 0
    %350 = vmatpush1.bf16.xpose.msra.mxu0 0
    %351 = vmatprep.subr.bf16.mxu0 0
    %352 = vmatpush1.bf16.xpose.msra.mxu0 0
    %353 = vmatprep.subr.bf16.mxu0 0
    %354 = vmatpush1.bf16.xpose.msra.mxu0 0
    %355 = vmatprep.subr.bf16.mxu0 0
    %356 = vmatpush1.bf16.xpose.msra.mxu0 0
    %357 = vmatprep.subr.bf16.mxu0 0
    %358 = vmatpush1.bf16.xpose.msra.mxu0 %v341
    %359 = vmatprep.subr.bf16.mxu0 0
    %360 = vmatpush2.bf16.xpose.msra.mxu0 0
    %361 = vmatprep.subr.bf16.mxu0 0
    %362 = vmatpush2.bf16.xpose.msra.mxu0 0
    %363 = vmatprep.subr.bf16.mxu0 0
    %364 = vmatpush2.bf16.xpose.msra.mxu0 0
    %365 = vmatprep.subr.bf16.mxu0 0
    %366 = vmatpush2.bf16.xpose.msra.mxu0 0
    %367 = vmatprep.subr.bf16.mxu0 0
    %368 = vmatpush2.bf16.xpose.msra.mxu0 0
    %369 = vmatprep.subr.bf16.mxu0 0
    %370 = vmatpush2.bf16.xpose.msra.mxu0 0
    %371 = vmatprep.subr.bf16.mxu0 0
    %372 = vmatpush2.bf16.xpose.msra.mxu0 0
    %373 = vmatprep.subr.bf16.mxu0 0
    %374 = vmatpush2.bf16.xpose.msra.mxu0 0
    %375 = vmatprep.mubr.bf16.mxu0 0
    %376 = vmatmul.mubr.bf16.gmra.mxu0 %v338
    %v377 = vpop.f32.mrf.mxu0
    %v378 = vadd.f32 %v187, %v377
    %v379 = vpop.f32.mrf.mxu0
    %v380 = vpop.f32.mrf.mxu0
    %v381 = vpop.f32.mrf.mxu0
    %382 = vdwg.mxu0
    %384 = vrot.lane.b32.xlu0 %v330, 64
    %v385 = vpop.permute.xlu0 %384
    %v387 = vsel %vm336, %v330, 0
    %v390 = vsel %vm336, %v385, 0
    %392 = vmatprep.subr.bf16.mxu0 0
    %393 = vmatpush1.bf16.xpose.msra.mxu0 0
    %394 = vmatprep.subr.bf16.mxu0 0
    %395 = vmatpush1.bf16.xpose.msra.mxu0 0
    %396 = vmatprep.subr.bf16.mxu0 0
    %397 = vmatpush1.bf16.xpose.msra.mxu0 0
    %398 = vmatprep.subr.bf16.mxu0 0
    %399 = vmatpush1.bf16.xpose.msra.mxu0 0
    %400 = vmatprep.subr.bf16.mxu0 0
    %401 = vmatpush1.bf16.xpose.msra.mxu0 0
    %402 = vmatprep.subr.bf16.mxu0 0
    %403 = vmatpush1.bf16.xpose.msra.mxu0 0
    %404 = vmatprep.subr.bf16.mxu0 0
    %405 = vmatpush1.bf16.xpose.msra.mxu0 0
    %406 = vmatprep.subr.bf16.mxu0 0
    %407 = vmatpush1.bf16.xpose.msra.mxu0 %v390
    %408 = vmatprep.subr.bf16.mxu0 0
    %409 = vmatpush2.bf16.xpose.msra.mxu0 0
    %410 = vmatprep.subr.bf16.mxu0 0
    %411 = vmatpush2.bf16.xpose.msra.mxu0 0
    %412 = vmatprep.subr.bf16.mxu0 0
    %413 = vmatpush2.bf16.xpose.msra.mxu0 0
    %414 = vmatprep.subr.bf16.mxu0 0
    %415 = vmatpush2.bf16.xpose.msra.mxu0 0
    %416 = vmatprep.subr.bf16.mxu0 0
    %417 = vmatpush2.bf16.xpose.msra.mxu0 0
    %418 = vmatprep.subr.bf16.mxu0 0
    %419 = vmatpush2.bf16.xpose.msra.mxu0 0
    %420 = vmatprep.subr.bf16.mxu0 0
    %421 = vmatpush2.bf16.xpose.msra.mxu0 0
    %422 = vmatprep.subr.bf16.mxu0 0
    %423 = vmatpush2.bf16.xpose.msra.mxu0 0
    %424 = vmatprep.mubr.bf16.mxu0 0
    %425 = vmatmul.mubr.bf16.gmra.mxu0 %v387
    %v426 = vpop.f32.mrf.mxu0
    %v427 = vadd.f32 %v187, %v426
    %v428 = vpop.f32.mrf.mxu0
    %v429 = vpop.f32.mrf.mxu0
    %v430 = vpop.f32.mrf.mxu0
    %431 = vdwg.mxu0
    %vm432 = vcmask 64512
    %v433 = vsel %vm432, %v378, -inf
    %434 = vmax.xlane.f32.xlu0 %v433
    %v435 = vpop.xlane.xlu0 %434
    %v436 = vsel %vm432, %v427, -inf
    %437 = vmax.xlane.f32.xlu0 %v436
    %v438 = vpop.xlane.xlu0 %437
    %v439 = vsub.f32 %v378, %v435
    %v440 = vsub.f32 %v427, %v438
    %v441 = vmul.f32 %v439, 1.442695
    %v442 = vpow.pop %v441
    %v443 = vmul.f32 %v440, 1.442695
    %v444 = vpow.pop %v443
    %v445 = vsel %vm432, %v442, 0.0
    %446 = vadd.xlane.f32.xlu0 %v445
    %v447 = vpop.xlane.xlu0 %446
    %v448 = vsel %vm432, %v444, 0.0
    %449 = vadd.xlane.f32.xlu0 %v448
    %v450 = vpop.xlane.xlu0 %449
    %v451 = vrcp.pop %v447
    %v452 = vmul.f32 %v442, %v451
    %v453 = vrcp.pop %v450
    %v454 = vmul.f32 %v444, %v453
    %v455 = vpack.c.bf16 %v452, %v452
    %v456 = vpack.c.bf16 %v454, %v454
    %v458 = vsel %vm432, %v455, 0
    %vm460 = vcmask 1043456
    %v462 = vsel %vm460, %v331, 0
    %464 = vmatprep.subr.bf16.mxu0 0
    %465 = vmatpush1.bf16.msra.mxu0 0
    %466 = vmatprep.subr.bf16.mxu0 0
    %467 = vmatpush1.bf16.msra.mxu0 0
    %468 = vmatprep.subr.bf16.mxu0 0
    %469 = vmatpush1.bf16.msra.mxu0 0
    %470 = vmatprep.subr.bf16.mxu0 0
    %471 = vmatpush1.bf16.msra.mxu0 0
    %472 = vmatprep.subr.bf16.mxu0 0
    %473 = vmatpush1.bf16.msra.mxu0 0
    %474 = vmatprep.subr.bf16.mxu0 0
    %475 = vmatpush1.bf16.msra.mxu0 0
    %476 = vmatprep.subr.bf16.mxu0 0
    %477 = vmatpush1.bf16.msra.mxu0 0
    %478 = vmatprep.subr.bf16.mxu0 0
    %479 = vmatpush1.bf16.msra.mxu0 %v462
    %480 = vmatprep.subr.bf16.mxu0 0
    %481 = vmatpush2.bf16.msra.mxu0 0
    %482 = vmatprep.subr.bf16.mxu0 0
    %483 = vmatpush2.bf16.msra.mxu0 0
    %484 = vmatprep.subr.bf16.mxu0 0
    %485 = vmatpush2.bf16.msra.mxu0 0
    %486 = vmatprep.subr.bf16.mxu0 0
    %487 = vmatpush2.bf16.msra.mxu0 0
    %488 = vmatprep.subr.bf16.mxu0 0
    %489 = vmatpush2.bf16.msra.mxu0 0
    %490 = vmatprep.subr.bf16.mxu0 0
    %491 = vmatpush2.bf16.msra.mxu0 0
    %492 = vmatprep.subr.bf16.mxu0 0
    %493 = vmatpush2.bf16.msra.mxu0 0
    %494 = vmatprep.subr.bf16.mxu0 0
    %495 = vmatpush2.bf16.msra.mxu0 0
    %496 = vmatprep.mubr.bf16.mxu0 0
    %497 = vmatmul.mubr.bf16.gmra.mxu0 %v458
    %v498 = vpop.f32.mrf.mxu0
    %v499 = vadd.f32 0.0, %v498
    %v500 = vpop.f32.mrf.mxu0
    %v501 = vpop.f32.mrf.mxu0
    %v502 = vpop.f32.mrf.mxu0
    %503 = vdwg.mxu0
    %v505 = vsel %vm432, %v456, 0
    %v508 = vsel %vm460, %v332, 0
    %510 = vmatprep.subr.bf16.mxu0 0
    %511 = vmatpush1.bf16.msra.mxu0 0
    %512 = vmatprep.subr.bf16.mxu0 0
    %513 = vmatpush1.bf16.msra.mxu0 0
    %514 = vmatprep.subr.bf16.mxu0 0
    %515 = vmatpush1.bf16.msra.mxu0 0
    %516 = vmatprep.subr.bf16.mxu0 0
    %517 = vmatpush1.bf16.msra.mxu0 0
    %518 = vmatprep.subr.bf16.mxu0 0
    %519 = vmatpush1.bf16.msra.mxu0 0
    %520 = vmatprep.subr.bf16.mxu0 0
    %521 = vmatpush1.bf16.msra.mxu0 0
    %522 = vmatprep.subr.bf16.mxu0 0
    %523 = vmatpush1.bf16.msra.mxu0 0
    %524 = vmatprep.subr.bf16.mxu0 0
    %525 = vmatpush1.bf16.msra.mxu0 %v508
    %526 = vmatprep.subr.bf16.mxu0 0
    %527 = vmatpush2.bf16.msra.mxu0 0
    %528 = vmatprep.subr.bf16.mxu0 0
    %529 = vmatpush2.bf16.msra.mxu0 0
    %530 = vmatprep.subr.bf16.mxu0 0
    %531 = vmatpush2.bf16.msra.mxu0 0
    %532 = vmatprep.subr.bf16.mxu0 0
    %533 = vmatpush2.bf16.msra.mxu0 0
    %534 = vmatprep.subr.bf16.mxu0 0
    %535 = vmatpush2.bf16.msra.mxu0 0
    %536 = vmatprep.subr.bf16.mxu0 0
    %537 = vmatpush2.bf16.msra.mxu0 0
    %538 = vmatprep.subr.bf16.mxu0 0
    %539 = vmatpush2.bf16.msra.mxu0 0
    %540 = vmatprep.subr.bf16.mxu0 0
    %541 = vmatpush2.bf16.msra.mxu0 0
    %542 = vmatprep.mubr.bf16.mxu0 0
    %543 = vmatmul.mubr.bf16.gmra.mxu0 %v505
    %v544 = vpop.f32.mrf.mxu0
    %v545 = vadd.f32 0.0, %v544
    %v546 = vpop.f32.mrf.mxu0
    %v547 = vpop.f32.mrf.mxu0
    %v548 = vpop.f32.mrf.mxu0
    %549 = vdwg.mxu0
    %550 = vrot.lane.b32.xlu0 %v329, 112
    %v551 = vpop.permute.xlu0 %550
    %552 = vrot.lane.b32.xlu0 %v329, 48
    %v553 = vpop.permute.xlu0 %552
    %v555 = vsel %vm336, %v551, 0
    %v558 = vsel %vm336, %v553, 0
    %560 = vmatprep.subr.bf16.mxu0 0
    %561 = vmatpush1.bf16.xpose.msra.mxu0 0
    %562 = vmatprep.subr.bf16.mxu0 0
    %563 = vmatpush1.bf16.xpose.msra.mxu0 0
    %564 = vmatprep.subr.bf16.mxu0 0
    %565 = vmatpush1.bf16.xpose.msra.mxu0 0
    %566 = vmatprep.subr.bf16.mxu0 0
    %567 = vmatpush1.bf16.xpose.msra.mxu0 0
    %568 = vmatprep.subr.bf16.mxu0 0
    %569 = vmatpush1.bf16.xpose.msra.mxu0 0
    %570 = vmatprep.subr.bf16.mxu0 0
    %571 = vmatpush1.bf16.xpose.msra.mxu0 0
    %572 = vmatprep.subr.bf16.mxu0 0
    %573 = vmatpush1.bf16.xpose.msra.mxu0 0
    %574 = vmatprep.subr.bf16.mxu0 0
    %575 = vmatpush1.bf16.xpose.msra.mxu0 %v558
    %576 = vmatprep.subr.bf16.mxu0 0
    %577 = vmatpush2.bf16.xpose.msra.mxu0 0
    %578 = vmatprep.subr.bf16.mxu0 0
    %579 = vmatpush2.bf16.xpose.msra.mxu0 0
    %580 = vmatprep.subr.bf16.mxu0 0
    %581 = vmatpush2.bf16.xpose.msra.mxu0 0
    %582 = vmatprep.subr.bf16.mxu0 0
    %583 = vmatpush2.bf16.xpose.msra.mxu0 0
    %584 = vmatprep.subr.bf16.mxu0 0
    %585 = vmatpush2.bf16.xpose.msra.mxu0 0
    %586 = vmatprep.subr.bf16.mxu0 0
    %587 = vmatpush2.bf16.xpose.msra.mxu0 0
    %588 = vmatprep.subr.bf16.mxu0 0
    %589 = vmatpush2.bf16.xpose.msra.mxu0 0
    %590 = vmatprep.subr.bf16.mxu0 0
    %591 = vmatpush2.bf16.xpose.msra.mxu0 0
    %592 = vmatprep.mubr.bf16.mxu0 0
    %593 = vmatmul.mubr.bf16.gmra.mxu0 %v555
    %v594 = vpop.f32.mrf.mxu0
    %v595 = vadd.f32 %v187, %v594
    %v596 = vpop.f32.mrf.mxu0
    %v597 = vpop.f32.mrf.mxu0
    %v598 = vpop.f32.mrf.mxu0
    %599 = vdwg.mxu0
    %600 = vrot.lane.b32.xlu0 %v330, 112
    %v601 = vpop.permute.xlu0 %600
    %602 = vrot.lane.b32.xlu0 %v330, 48
    %v603 = vpop.permute.xlu0 %602
    %v605 = vsel %vm336, %v601, 0
    %v608 = vsel %vm336, %v603, 0
    %610 = vmatprep.subr.bf16.mxu0 0
    %611 = vmatpush1.bf16.xpose.msra.mxu0 0
    %612 = vmatprep.subr.bf16.mxu0 0
    %613 = vmatpush1.bf16.xpose.msra.mxu0 0
    %614 = vmatprep.subr.bf16.mxu0 0
    %615 = vmatpush1.bf16.xpose.msra.mxu0 0
    %616 = vmatprep.subr.bf16.mxu0 0
    %617 = vmatpush1.bf16.xpose.msra.mxu0 0
    %618 = vmatprep.subr.bf16.mxu0 0
    %619 = vmatpush1.bf16.xpose.msra.mxu0 0
    %620 = vmatprep.subr.bf16.mxu0 0
    %621 = vmatpush1.bf16.xpose.msra.mxu0 0
    %622 = vmatprep.subr.bf16.mxu0 0
    %623 = vmatpush1.bf16.xpose.msra.mxu0 0
    %624 = vmatprep.subr.bf16.mxu0 0
    %625 = vmatpush1.bf16.xpose.msra.mxu0 %v608
    %626 = vmatprep.subr.bf16.mxu0 0
    %627 = vmatpush2.bf16.xpose.msra.mxu0 0
    %628 = vmatprep.subr.bf16.mxu0 0
    %629 = vmatpush2.bf16.xpose.msra.mxu0 0
    %630 = vmatprep.subr.bf16.mxu0 0
    %631 = vmatpush2.bf16.xpose.msra.mxu0 0
    %632 = vmatprep.subr.bf16.mxu0 0
    %633 = vmatpush2.bf16.xpose.msra.mxu0 0
    %634 = vmatprep.subr.bf16.mxu0 0
    %635 = vmatpush2.bf16.xpose.msra.mxu0 0
    %636 = vmatprep.subr.bf16.mxu0 0
    %637 = vmatpush2.bf16.xpose.msra.mxu0 0
    %638 = vmatprep.subr.bf16.mxu0 0
    %639 = vmatpush2.bf16.xpose.msra.mxu0 0
    %640 = vmatprep.subr.bf16.mxu0 0
    %641 = vmatpush2.bf16.xpose.msra.mxu0 0
    %642 = vmatprep.mubr.bf16.mxu0 0
    %643 = vmatmul.mubr.bf16.gmra.mxu0 %v605
    %v644 = vpop.f32.mrf.mxu0
    %v645 = vadd.f32 %v187, %v644
    %v646 = vpop.f32.mrf.mxu0
    %v647 = vpop.f32.mrf.mxu0
    %v648 = vpop.f32.mrf.mxu0
    %649 = vdwg.mxu0
    %v650 = vsel %vm432, %v595, -inf
    %651 = vmax.xlane.f32.xlu0 %v650
    %v652 = vpop.xlane.xlu0 %651
    %v653 = vsel %vm432, %v645, -inf
    %654 = vmax.xlane.f32.xlu0 %v653
    %v655 = vpop.xlane.xlu0 %654
    %v656 = vsub.f32 %v595, %v652
    %v657 = vsub.f32 %v645, %v655
    %v658 = vmul.f32 %v656, 1.442695
    %v659 = vpow.pop %v658
    %v660 = vmul.f32 %v657, 1.442695
    %v661 = vpow.pop %v660
    %v662 = vsel %vm432, %v659, 0.0
    %663 = vadd.xlane.f32.xlu0 %v662
    %v664 = vpop.xlane.xlu0 %663
    %v665 = vsel %vm432, %v661, 0.0
    %666 = vadd.xlane.f32.xlu0 %v665
    %v667 = vpop.xlane.xlu0 %666
    %v668 = vrcp.pop %v664
    %v669 = vmul.f32 %v659, %v668
    %v670 = vrcp.pop %v667
    %v671 = vmul.f32 %v661, %v670
    %v672 = vpack.c.bf16 %v669, %v669
    %v673 = vpack.c.bf16 %v671, %v671
    %675 = vrot.lane.b32.xlu0 %v331, 112
    %v676 = vpop.permute.xlu0 %675
    %v678 = vsel %vm432, %v672, 0
    %v681 = vsel %vm460, %v676, 0
    %683 = vmatprep.subr.bf16.mxu0 0
    %684 = vmatpush1.bf16.msra.mxu0 0
    %685 = vmatprep.subr.bf16.mxu0 0
    %686 = vmatpush1.bf16.msra.mxu0 0
    %687 = vmatprep.subr.bf16.mxu0 0
    %688 = vmatpush1.bf16.msra.mxu0 0
    %689 = vmatprep.subr.bf16.mxu0 0
    %690 = vmatpush1.bf16.msra.mxu0 0
    %691 = vmatprep.subr.bf16.mxu0 0
    %692 = vmatpush1.bf16.msra.mxu0 0
    %693 = vmatprep.subr.bf16.mxu0 0
    %694 = vmatpush1.bf16.msra.mxu0 0
    %695 = vmatprep.subr.bf16.mxu0 0
    %696 = vmatpush1.bf16.msra.mxu0 0
    %697 = vmatprep.subr.bf16.mxu0 0
    %698 = vmatpush1.bf16.msra.mxu0 %v681
    %699 = vmatprep.subr.bf16.mxu0 0
    %700 = vmatpush2.bf16.msra.mxu0 0
    %701 = vmatprep.subr.bf16.mxu0 0
    %702 = vmatpush2.bf16.msra.mxu0 0
    %703 = vmatprep.subr.bf16.mxu0 0
    %704 = vmatpush2.bf16.msra.mxu0 0
    %705 = vmatprep.subr.bf16.mxu0 0
    %706 = vmatpush2.bf16.msra.mxu0 0
    %707 = vmatprep.subr.bf16.mxu0 0
    %708 = vmatpush2.bf16.msra.mxu0 0
    %709 = vmatprep.subr.bf16.mxu0 0
    %710 = vmatpush2.bf16.msra.mxu0 0
    %711 = vmatprep.subr.bf16.mxu0 0
    %712 = vmatpush2.bf16.msra.mxu0 0
    %713 = vmatprep.subr.bf16.mxu0 0
    %714 = vmatpush2.bf16.msra.mxu0 0
    %715 = vmatprep.mubr.bf16.mxu0 0
    %716 = vmatmul.mubr.bf16.gmra.mxu0 %v678
    %v717 = vpop.f32.mrf.mxu0
    %v718 = vadd.f32 0.0, %v717
    %v719 = vpop.f32.mrf.mxu0
    %v720 = vpop.f32.mrf.mxu0
    %v721 = vpop.f32.mrf.mxu0
    %722 = vdwg.mxu0
    %724 = vrot.lane.b32.xlu0 %v332, 112
    %v725 = vpop.permute.xlu0 %724
    %v727 = vsel %vm432, %v673, 0
    %v730 = vsel %vm460, %v725, 0
    %732 = vmatprep.subr.bf16.mxu0 0
    %733 = vmatpush1.bf16.msra.mxu0 0
    %734 = vmatprep.subr.bf16.mxu0 0
    %735 = vmatpush1.bf16.msra.mxu0 0
    %736 = vmatprep.subr.bf16.mxu0 0
    %737 = vmatpush1.bf16.msra.mxu0 0
    %738 = vmatprep.subr.bf16.mxu0 0
    %739 = vmatpush1.bf16.msra.mxu0 0
    %740 = vmatprep.subr.bf16.mxu0 0
    %741 = vmatpush1.bf16.msra.mxu0 0
    %742 = vmatprep.subr.bf16.mxu0 0
    %743 = vmatpush1.bf16.msra.mxu0 0
    %744 = vmatprep.subr.bf16.mxu0 0
    %745 = vmatpush1.bf16.msra.mxu0 0
    %746 = vmatprep.subr.bf16.mxu0 0
    %747 = vmatpush1.bf16.msra.mxu0 %v730
    %748 = vmatprep.subr.bf16.mxu0 0
    %749 = vmatpush2.bf16.msra.mxu0 0
    %750 = vmatprep.subr.bf16.mxu0 0
    %751 = vmatpush2.bf16.msra.mxu0 0
    %752 = vmatprep.subr.bf16.mxu0 0
    %753 = vmatpush2.bf16.msra.mxu0 0
    %754 = vmatprep.subr.bf16.mxu0 0
    %755 = vmatpush2.bf16.msra.mxu0 0
    %756 = vmatprep.subr.bf16.mxu0 0
    %757 = vmatpush2.bf16.msra.mxu0 0
    %758 = vmatprep.subr.bf16.mxu0 0
    %759 = vmatpush2.bf16.msra.mxu0 0
    %760 = vmatprep.subr.bf16.mxu0 0
    %761 = vmatpush2.bf16.msra.mxu0 0
    %762 = vmatprep.subr.bf16.mxu0 0
    %763 = vmatpush2.bf16.msra.mxu0 0
    %764 = vmatprep.mubr.bf16.mxu0 0
    %765 = vmatmul.mubr.bf16.gmra.mxu0 %v727
    %v766 = vpop.f32.mrf.mxu0
    %v767 = vadd.f32 0.0, %v766
    %v768 = vpop.f32.mrf.mxu0
    %v769 = vpop.f32.mrf.mxu0
    %v770 = vpop.f32.mrf.mxu0
    %771 = vdwg.mxu0
    %772 = vrot.lane.b32.xlu0 %v329, 96
    %v773 = vpop.permute.xlu0 %772
    %774 = vrot.lane.b32.xlu0 %v329, 32
    %v775 = vpop.permute.xlu0 %774
    %v777 = vsel %vm336, %v773, 0
    %v780 = vsel %vm336, %v775, 0
    %782 = vmatprep.subr.bf16.mxu0 0
    %783 = vmatpush1.bf16.xpose.msra.mxu0 0
    %784 = vmatprep.subr.bf16.mxu0 0
    %785 = vmatpush1.bf16.xpose.msra.mxu0 0
    %786 = vmatprep.subr.bf16.mxu0 0
    %787 = vmatpush1.bf16.xpose.msra.mxu0 0
    %788 = vmatprep.subr.bf16.mxu0 0
    %789 = vmatpush1.bf16.xpose.msra.mxu0 0
    %790 = vmatprep.subr.bf16.mxu0 0
    %791 = vmatpush1.bf16.xpose.msra.mxu0 0
    %792 = vmatprep.subr.bf16.mxu0 0
    %793 = vmatpush1.bf16.xpose.msra.mxu0 0
    %794 = vmatprep.subr.bf16.mxu0 0
    %795 = vmatpush1.bf16.xpose.msra.mxu0 0
    %796 = vmatprep.subr.bf16.mxu0 0
    %797 = vmatpush1.bf16.xpose.msra.mxu0 %v780
    %798 = vmatprep.subr.bf16.mxu0 0
    %799 = vmatpush2.bf16.xpose.msra.mxu0 0
    %800 = vmatprep.subr.bf16.mxu0 0
    %801 = vmatpush2.bf16.xpose.msra.mxu0 0
    %802 = vmatprep.subr.bf16.mxu0 0
    %803 = vmatpush2.bf16.xpose.msra.mxu0 0
    %804 = vmatprep.subr.bf16.mxu0 0
    %805 = vmatpush2.bf16.xpose.msra.mxu0 0
    %806 = vmatprep.subr.bf16.mxu0 0
    %807 = vmatpush2.bf16.xpose.msra.mxu0 0
    %808 = vmatprep.subr.bf16.mxu0 0
    %809 = vmatpush2.bf16.xpose.msra.mxu0 0
    %810 = vmatprep.subr.bf16.mxu0 0
    %811 = vmatpush2.bf16.xpose.msra.mxu0 0
    %812 = vmatprep.subr.bf16.mxu0 0
    %813 = vmatpush2.bf16.xpose.msra.mxu0 0
    %814 = vmatprep.mubr.bf16.mxu0 0
    %815 = vmatmul.mubr.bf16.gmra.mxu0 %v777
    %v816 = vpop.f32.mrf.mxu0
    %v817 = vadd.f32 %v187, %v816
    %v818 = vpop.f32.mrf.mxu0
    %v819 = vpop.f32.mrf.mxu0
    %v820 = vpop.f32.mrf.mxu0
    %821 = vdwg.mxu0
    %822 = vrot.lane.b32.xlu0 %v330, 96
    %v823 = vpop.permute.xlu0 %822
    %824 = vrot.lane.b32.xlu0 %v330, 32
    %v825 = vpop.permute.xlu0 %824
    %v827 = vsel %vm336, %v823, 0
    %v830 = vsel %vm336, %v825, 0
    %832 = vmatprep.subr.bf16.mxu0 0
    %833 = vmatpush1.bf16.xpose.msra.mxu0 0
    %834 = vmatprep.subr.bf16.mxu0 0
    %835 = vmatpush1.bf16.xpose.msra.mxu0 0
    %836 = vmatprep.subr.bf16.mxu0 0
    %837 = vmatpush1.bf16.xpose.msra.mxu0 0
    %838 = vmatprep.subr.bf16.mxu0 0
    %839 = vmatpush1.bf16.xpose.msra.mxu0 0
    %840 = vmatprep.subr.bf16.mxu0 0
    %841 = vmatpush1.bf16.xpose.msra.mxu0 0
    %842 = vmatprep.subr.bf16.mxu0 0
    %843 = vmatpush1.bf16.xpose.msra.mxu0 0
    %844 = vmatprep.subr.bf16.mxu0 0
    %845 = vmatpush1.bf16.xpose.msra.mxu0 0
    %846 = vmatprep.subr.bf16.mxu0 0
    %847 = vmatpush1.bf16.xpose.msra.mxu0 %v830
    %848 = vmatprep.subr.bf16.mxu0 0
    %849 = vmatpush2.bf16.xpose.msra.mxu0 0
    %850 = vmatprep.subr.bf16.mxu0 0
    %851 = vmatpush2.bf16.xpose.msra.mxu0 0
    %852 = vmatprep.subr.bf16.mxu0 0
    %853 = vmatpush2.bf16.xpose.msra.mxu0 0
    %854 = vmatprep.subr.bf16.mxu0 0
    %855 = vmatpush2.bf16.xpose.msra.mxu0 0
    %856 = vmatprep.subr.bf16.mxu0 0
    %857 = vmatpush2.bf16.xpose.msra.mxu0 0
    %858 = vmatprep.subr.bf16.mxu0 0
    %859 = vmatpush2.bf16.xpose.msra.mxu0 0
    %860 = vmatprep.subr.bf16.mxu0 0
    %861 = vmatpush2.bf16.xpose.msra.mxu0 0
    %862 = vmatprep.subr.bf16.mxu0 0
    %863 = vmatpush2.bf16.xpose.msra.mxu0 0
    %864 = vmatprep.mubr.bf16.mxu0 0
    %865 = vmatmul.mubr.bf16.gmra.mxu0 %v827
    %v866 = vpop.f32.mrf.mxu0
    %v867 = vadd.f32 %v187, %v866
    %v868 = vpop.f32.mrf.mxu0
    %v869 = vpop.f32.mrf.mxu0
    %v870 = vpop.f32.mrf.mxu0
    %871 = vdwg.mxu0
    %v872 = vsel %vm432, %v817, -inf
    %873 = vmax.xlane.f32.xlu0 %v872
    %v874 = vpop.xlane.xlu0 %873
    %v875 = vsel %vm432, %v867, -inf
    %876 = vmax.xlane.f32.xlu0 %v875
    %v877 = vpop.xlane.xlu0 %876
    %v878 = vsub.f32 %v817, %v874
    %v879 = vsub.f32 %v867, %v877
    %v880 = vmul.f32 %v878, 1.442695
    %v881 = vpow.pop %v880
    %v882 = vmul.f32 %v879, 1.442695
    %v883 = vpow.pop %v882
    %v884 = vsel %vm432, %v881, 0.0
    %885 = vadd.xlane.f32.xlu0 %v884
    %v886 = vpop.xlane.xlu0 %885
    %v887 = vsel %vm432, %v883, 0.0
    %888 = vadd.xlane.f32.xlu0 %v887
    %v889 = vpop.xlane.xlu0 %888
    %v890 = vrcp.pop %v886
    %v891 = vmul.f32 %v881, %v890
    %v892 = vrcp.pop %v889
    %v893 = vmul.f32 %v883, %v892
    %v894 = vpack.c.bf16 %v891, %v891
    %v895 = vpack.c.bf16 %v893, %v893
    %896 = vrot.lane.b32.xlu0 %v331, 96
    %v897 = vpop.permute.xlu0 %896
    %v899 = vsel %vm432, %v894, 0
    %v902 = vsel %vm460, %v897, 0
    %904 = vmatprep.subr.bf16.mxu0 0
    %905 = vmatpush1.bf16.msra.mxu0 0
    %906 = vmatprep.subr.bf16.mxu0 0
    %907 = vmatpush1.bf16.msra.mxu0 0
    %908 = vmatprep.subr.bf16.mxu0 0
    %909 = vmatpush1.bf16.msra.mxu0 0
    %910 = vmatprep.subr.bf16.mxu0 0
    %911 = vmatpush1.bf16.msra.mxu0 0
    %912 = vmatprep.subr.bf16.mxu0 0
    %913 = vmatpush1.bf16.msra.mxu0 0
    %914 = vmatprep.subr.bf16.mxu0 0
    %915 = vmatpush1.bf16.msra.mxu0 0
    %916 = vmatprep.subr.bf16.mxu0 0
    %917 = vmatpush1.bf16.msra.mxu0 0
    %918 = vmatprep.subr.bf16.mxu0 0
    %919 = vmatpush1.bf16.msra.mxu0 %v902
    %920 = vmatprep.subr.bf16.mxu0 0
    %921 = vmatpush2.bf16.msra.mxu0 0
    %922 = vmatprep.subr.bf16.mxu0 0
    %923 = vmatpush2.bf16.msra.mxu0 0
    %924 = vmatprep.subr.bf16.mxu0 0
    %925 = vmatpush2.bf16.msra.mxu0 0
    %926 = vmatprep.subr.bf16.mxu0 0
    %927 = vmatpush2.bf16.msra.mxu0 0
    %928 = vmatprep.subr.bf16.mxu0 0
    %929 = vmatpush2.bf16.msra.mxu0 0
    %930 = vmatprep.subr.bf16.mxu0 0
    %931 = vmatpush2.bf16.msra.mxu0 0
    %932 = vmatprep.subr.bf16.mxu0 0
    %933 = vmatpush2.bf16.msra.mxu0 0
    %934 = vmatprep.subr.bf16.mxu0 0
    %935 = vmatpush2.bf16.msra.mxu0 0
    %936 = vmatprep.mubr.bf16.mxu0 0
    %937 = vmatmul.mubr.bf16.gmra.mxu0 %v899
    %v938 = vpop.f32.mrf.mxu0
    %v939 = vadd.f32 0.0, %v938
    %v940 = vpop.f32.mrf.mxu0
    %v941 = vpop.f32.mrf.mxu0
    %v942 = vpop.f32.mrf.mxu0
    %943 = vdwg.mxu0
    %944 = vrot.lane.b32.xlu0 %v332, 96
    %v945 = vpop.permute.xlu0 %944
    %v947 = vsel %vm432, %v895, 0
    %v950 = vsel %vm460, %v945, 0
    %952 = vmatprep.subr.bf16.mxu0 0
    %953 = vmatpush1.bf16.msra.mxu0 0
    %954 = vmatprep.subr.bf16.mxu0 0
    %955 = vmatpush1.bf16.msra.mxu0 0
    %956 = vmatprep.subr.bf16.mxu0 0
    %957 = vmatpush1.bf16.msra.mxu0 0
    %958 = vmatprep.subr.bf16.mxu0 0
    %959 = vmatpush1.bf16.msra.mxu0 0
    %960 = vmatprep.subr.bf16.mxu0 0
    %961 = vmatpush1.bf16.msra.mxu0 0
    %962 = vmatprep.subr.bf16.mxu0 0
    %963 = vmatpush1.bf16.msra.mxu0 0
    %964 = vmatprep.subr.bf16.mxu0 0
    %965 = vmatpush1.bf16.msra.mxu0 0
    %966 = vmatprep.subr.bf16.mxu0 0
    %967 = vmatpush1.bf16.msra.mxu0 %v950
    %968 = vmatprep.subr.bf16.mxu0 0
    %969 = vmatpush2.bf16.msra.mxu0 0
    %970 = vmatprep.subr.bf16.mxu0 0
    %971 = vmatpush2.bf16.msra.mxu0 0
    %972 = vmatprep.subr.bf16.mxu0 0
    %973 = vmatpush2.bf16.msra.mxu0 0
    %974 = vmatprep.subr.bf16.mxu0 0
    %975 = vmatpush2.bf16.msra.mxu0 0
    %976 = vmatprep.subr.bf16.mxu0 0
    %977 = vmatpush2.bf16.msra.mxu0 0
    %978 = vmatprep.subr.bf16.mxu0 0
    %979 = vmatpush2.bf16.msra.mxu0 0
    %980 = vmatprep.subr.bf16.mxu0 0
    %981 = vmatpush2.bf16.msra.mxu0 0
    %982 = vmatprep.subr.bf16.mxu0 0
    %983 = vmatpush2.bf16.msra.mxu0 0
    %984 = vmatprep.mubr.bf16.mxu0 0
    %985 = vmatmul.mubr.bf16.gmra.mxu0 %v947
    %v986 = vpop.f32.mrf.mxu0
    %v987 = vadd.f32 0.0, %v986
    %v988 = vpop.f32.mrf.mxu0
    %v989 = vpop.f32.mrf.mxu0
    %v990 = vpop.f32.mrf.mxu0
    %991 = vdwg.mxu0
    %992 = vrot.lane.b32.xlu0 %v329, 80
    %v993 = vpop.permute.xlu0 %992
    %994 = vrot.lane.b32.xlu0 %v329, 16
    %v995 = vpop.permute.xlu0 %994
    %v997 = vsel %vm336, %v993, 0
    %v1000 = vsel %vm336, %v995, 0
    %1002 = vmatprep.subr.bf16.mxu0 0
    %1003 = vmatpush1.bf16.xpose.msra.mxu0 0
    %1004 = vmatprep.subr.bf16.mxu0 0
    %1005 = vmatpush1.bf16.xpose.msra.mxu0 0
    %1006 = vmatprep.subr.bf16.mxu0 0
    %1007 = vmatpush1.bf16.xpose.msra.mxu0 0
    %1008 = vmatprep.subr.bf16.mxu0 0
    %1009 = vmatpush1.bf16.xpose.msra.mxu0 0
    %1010 = vmatprep.subr.bf16.mxu0 0
    %1011 = vmatpush1.bf16.xpose.msra.mxu0 0
    %1012 = vmatprep.subr.bf16.mxu0 0
    %1013 = vmatpush1.bf16.xpose.msra.mxu0 0
    %1014 = vmatprep.subr.bf16.mxu0 0
    %1015 = vmatpush1.bf16.xpose.msra.mxu0 0
    %1016 = vmatprep.subr.bf16.mxu0 0
    %1017 = vmatpush1.bf16.xpose.msra.mxu0 %v1000
    %1018 = vmatprep.subr.bf16.mxu0 0
    %1019 = vmatpush2.bf16.xpose.msra.mxu0 0
    %1020 = vmatprep.subr.bf16.mxu0 0
    %1021 = vmatpush2.bf16.xpose.msra.mxu0 0
    %1022 = vmatprep.subr.bf16.mxu0 0
    %1023 = vmatpush2.bf16.xpose.msra.mxu0 0
    %1024 = vmatprep.subr.bf16.mxu0 0
    %1025 = vmatpush2.bf16.xpose.msra.mxu0 0
    %1026 = vmatprep.subr.bf16.mxu0 0
    %1027 = vmatpush2.bf16.xpose.msra.mxu0 0
    %1028 = vmatprep.subr.bf16.mxu0 0
    %1029 = vmatpush2.bf16.xpose.msra.mxu0 0
    %1030 = vmatprep.subr.bf16.mxu0 0
    %1031 = vmatpush2.bf16.xpose.msra.mxu0 0
    %1032 = vmatprep.subr.bf16.mxu0 0
    %1033 = vmatpush2.bf16.xpose.msra.mxu0 0
    %1034 = vmatprep.mubr.bf16.mxu0 0
    %1035 = vmatmul.mubr.bf16.gmra.mxu0 %v997
    %v1036 = vpop.f32.mrf.mxu0
    %v1037 = vadd.f32 %v187, %v1036
    %v1038 = vpop.f32.mrf.mxu0
    %v1039 = vpop.f32.mrf.mxu0
    %v1040 = vpop.f32.mrf.mxu0
    %1041 = vdwg.mxu0
    %1042 = vrot.lane.b32.xlu0 %v330, 80
    %v1043 = vpop.permute.xlu0 %1042
    %1044 = vrot.lane.b32.xlu0 %v330, 16
    %v1045 = vpop.permute.xlu0 %1044
    %v1047 = vsel %vm336, %v1043, 0
    %v1050 = vsel %vm336, %v1045, 0
    %1052 = vmatprep.subr.bf16.mxu0 0
    %1053 = vmatpush1.bf16.xpose.msra.mxu0 0
    %1054 = vmatprep.subr.bf16.mxu0 0
    %1055 = vmatpush1.bf16.xpose.msra.mxu0 0
    %1056 = vmatprep.subr.bf16.mxu0 0
    %1057 = vmatpush1.bf16.xpose.msra.mxu0 0
    %1058 = vmatprep.subr.bf16.mxu0 0
    %1059 = vmatpush1.bf16.xpose.msra.mxu0 0
    %1060 = vmatprep.subr.bf16.mxu0 0
    %1061 = vmatpush1.bf16.xpose.msra.mxu0 0
    %1062 = vmatprep.subr.bf16.mxu0 0
    %1063 = vmatpush1.bf16.xpose.msra.mxu0 0
    %1064 = vmatprep.subr.bf16.mxu0 0
    %1065 = vmatpush1.bf16.xpose.msra.mxu0 0
    %1066 = vmatprep.subr.bf16.mxu0 0
    %1067 = vmatpush1.bf16.xpose.msra.mxu0 %v1050
    %1068 = vmatprep.subr.bf16.mxu0 0
    %1069 = vmatpush2.bf16.xpose.msra.mxu0 0
    %1070 = vmatprep.subr.bf16.mxu0 0
    %1071 = vmatpush2.bf16.xpose.msra.mxu0 0
    %1072 = vmatprep.subr.bf16.mxu0 0
    %1073 = vmatpush2.bf16.xpose.msra.mxu0 0
    %1074 = vmatprep.subr.bf16.mxu0 0
    %1075 = vmatpush2.bf16.xpose.msra.mxu0 0
    %1076 = vmatprep.subr.bf16.mxu0 0
    %1077 = vmatpush2.bf16.xpose.msra.mxu0 0
    %1078 = vmatprep.subr.bf16.mxu0 0
    %1079 = vmatpush2.bf16.xpose.msra.mxu0 0
    %1080 = vmatprep.subr.bf16.mxu0 0
    %1081 = vmatpush2.bf16.xpose.msra.mxu0 0
    %1082 = vmatprep.subr.bf16.mxu0 0
    %1083 = vmatpush2.bf16.xpose.msra.mxu0 0
    %1084 = vmatprep.mubr.bf16.mxu0 0
    %1085 = vmatmul.mubr.bf16.gmra.mxu0 %v1047
    %v1086 = vpop.f32.mrf.mxu0
    %v1087 = vadd.f32 %v187, %v1086
    %v1088 = vpop.f32.mrf.mxu0
    %v1089 = vpop.f32.mrf.mxu0
    %v1090 = vpop.f32.mrf.mxu0
    %1091 = vdwg.mxu0
    %v1092 = vsel %vm432, %v1037, -inf
    %1093 = vmax.xlane.f32.xlu0 %v1092
    %v1094 = vpop.xlane.xlu0 %1093
    %v1095 = vsel %vm432, %v1087, -inf
    %1096 = vmax.xlane.f32.xlu0 %v1095
    %v1097 = vpop.xlane.xlu0 %1096
    %v1098 = vsub.f32 %v1037, %v1094
    %v1099 = vsub.f32 %v1087, %v1097
    %v1100 = vmul.f32 %v1098, 1.442695
    %v1101 = vpow.pop %v1100
    %v1102 = vmul.f32 %v1099, 1.442695
    %v1103 = vpow.pop %v1102
    %v1104 = vsel %vm432, %v1101, 0.0
    %1105 = vadd.xlane.f32.xlu0 %v1104
    %v1106 = vpop.xlane.xlu0 %1105
    %v1107 = vsel %vm432, %v1103, 0.0
    %1108 = vadd.xlane.f32.xlu0 %v1107
    %v1109 = vpop.xlane.xlu0 %1108
    %v1110 = vrcp.pop %v1106
    %v1111 = vmul.f32 %v1101, %v1110
    %v1112 = vrcp.pop %v1109
    %v1113 = vmul.f32 %v1103, %v1112
    %v1114 = vpack.c.bf16 %v1111, %v1111
    %v1115 = vpack.c.bf16 %v1113, %v1113
    %1116 = vrot.lane.b32.xlu0 %v331, 80
    %v1117 = vpop.permute.xlu0 %1116
    %v1119 = vsel %vm432, %v1114, 0
    %v1122 = vsel %vm460, %v1117, 0
    %1124 = vmatprep.subr.bf16.mxu0 0
    %1125 = vmatpush1.bf16.msra.mxu0 0
    %1126 = vmatprep.subr.bf16.mxu0 0
    %1127 = vmatpush1.bf16.msra.mxu0 0
    %1128 = vmatprep.subr.bf16.mxu0 0
    %1129 = vmatpush1.bf16.msra.mxu0 0
    %1130 = vmatprep.subr.bf16.mxu0 0
    %1131 = vmatpush1.bf16.msra.mxu0 0
    %1132 = vmatprep.subr.bf16.mxu0 0
    %1133 = vmatpush1.bf16.msra.mxu0 0
    %1134 = vmatprep.subr.bf16.mxu0 0
    %1135 = vmatpush1.bf16.msra.mxu0 0
    %1136 = vmatprep.subr.bf16.mxu0 0
    %1137 = vmatpush1.bf16.msra.mxu0 0
    %1138 = vmatprep.subr.bf16.mxu0 0
    %1139 = vmatpush1.bf16.msra.mxu0 %v1122
    %1140 = vmatprep.subr.bf16.mxu0 0
    %1141 = vmatpush2.bf16.msra.mxu0 0
    %1142 = vmatprep.subr.bf16.mxu0 0
    %1143 = vmatpush2.bf16.msra.mxu0 0
    %1144 = vmatprep.subr.bf16.mxu0 0
    %1145 = vmatpush2.bf16.msra.mxu0 0
    %1146 = vmatprep.subr.bf16.mxu0 0
    %1147 = vmatpush2.bf16.msra.mxu0 0
    %1148 = vmatprep.subr.bf16.mxu0 0
    %1149 = vmatpush2.bf16.msra.mxu0 0
    %1150 = vmatprep.subr.bf16.mxu0 0
    %1151 = vmatpush2.bf16.msra.mxu0 0
    %1152 = vmatprep.subr.bf16.mxu0 0
    %1153 = vmatpush2.bf16.msra.mxu0 0
    %1154 = vmatprep.subr.bf16.mxu0 0
    %1155 = vmatpush2.bf16.msra.mxu0 0
    %1156 = vmatprep.mubr.bf16.mxu0 0
    %1157 = vmatmul.mubr.bf16.gmra.mxu0 %v1119
    %v1158 = vpop.f32.mrf.mxu0
    %v1159 = vadd.f32 0.0, %v1158
    %v1160 = vpop.f32.mrf.mxu0
    %v1161 = vpop.f32.mrf.mxu0
    %v1162 = vpop.f32.mrf.mxu0
    %1163 = vdwg.mxu0
    %1164 = vrot.lane.b32.xlu0 %v332, 80
    %v1165 = vpop.permute.xlu0 %1164
    %v1167 = vsel %vm432, %v1115, 0
    %v1170 = vsel %vm460, %v1165, 0
    %1172 = vmatprep.subr.bf16.mxu0 0
    %1173 = vmatpush1.bf16.msra.mxu0 0
    %1174 = vmatprep.subr.bf16.mxu0 0
    %1175 = vmatpush1.bf16.msra.mxu0 0
    %1176 = vmatprep.subr.bf16.mxu0 0
    %1177 = vmatpush1.bf16.msra.mxu0 0
    %1178 = vmatprep.subr.bf16.mxu0 0
    %1179 = vmatpush1.bf16.msra.mxu0 0
    %1180 = vmatprep.subr.bf16.mxu0 0
    %1181 = vmatpush1.bf16.msra.mxu0 0
    %1182 = vmatprep.subr.bf16.mxu0 0
    %1183 = vmatpush1.bf16.msra.mxu0 0
    %1184 = vmatprep.subr.bf16.mxu0 0
    %1185 = vmatpush1.bf16.msra.mxu0 0
    %1186 = vmatprep.subr.bf16.mxu0 0
    %1187 = vmatpush1.bf16.msra.mxu0 %v1170
    %1188 = vmatprep.subr.bf16.mxu0 0
    %1189 = vmatpush2.bf16.msra.mxu0 0
    %1190 = vmatprep.subr.bf16.mxu0 0
    %1191 = vmatpush2.bf16.msra.mxu0 0
    %1192 = vmatprep.subr.bf16.mxu0 0
    %1193 = vmatpush2.bf16.msra.mxu0 0
    %1194 = vmatprep.subr.bf16.mxu0 0
    %1195 = vmatpush2.bf16.msra.mxu0 0
    %1196 = vmatprep.subr.bf16.mxu0 0
    %1197 = vmatpush2.bf16.msra.mxu0 0
    %1198 = vmatprep.subr.bf16.mxu0 0
    %1199 = vmatpush2.bf16.msra.mxu0 0
    %1200 = vmatprep.subr.bf16.mxu0 0
    %1201 = vmatpush2.bf16.msra.mxu0 0
    %1202 = vmatprep.subr.bf16.mxu0 0
    %1203 = vmatpush2.bf16.msra.mxu0 0
    %1204 = vmatprep.mubr.bf16.mxu0 0
    %1205 = vmatmul.mubr.bf16.gmra.mxu0 %v1167
    %v1206 = vpop.f32.mrf.mxu0
    %v1207 = vadd.f32 0.0, %v1206
    %v1208 = vpop.f32.mrf.mxu0
    %v1209 = vpop.f32.mrf.mxu0
    %v1210 = vpop.f32.mrf.mxu0
    %1211 = vdwg.mxu0
    %1214 = vrot.lane.b32.xlu0 %v718, 16
    %v1215 = vpop.permute.xlu0 %1214
    %1216 = vrot.lane.b32.xlu0 %v767, 16
    %v1217 = vpop.permute.xlu0 %1216
    %1222 = vrot.lane.b32.xlu0 %v939, 32
    %v1223 = vpop.permute.xlu0 %1222
    %1224 = vrot.lane.b32.xlu0 %v987, 32
    %v1225 = vpop.permute.xlu0 %1224
    %1230 = vrot.lane.b32.xlu0 %v1159, 48
    %v1231 = vpop.permute.xlu0 %1230
    %1232 = vrot.lane.b32.xlu0 %v1207, 48
    %v1233 = vpop.permute.xlu0 %1232
    %v1236 = vsel %vm336, %v499, %v1215
    %v1237 = vsel %vm336, %v545, %v1217
    %vm1238 = vcmask 261120
    %v1239 = vsel %vm1238, %v1236, %v1223
    %v1240 = vsel %vm1238, %v1237, %v1225
    %vm1241 = vcmask 392192
    %v1242 = vsel %vm1241, %v1239, %v1231
    %v1243 = vsel %vm1241, %v1240, %v1233
    %v1244 = vpack.c.bf16 %v1243, %v1242
    %v1245 = vld [vmem:[%s6] sm:$0xf]
    %v1246 = vld [vmem:[%s6 + $0x4] sm:$0xf]
    %v1247 = vld [vmem:[%s6 + $0x8] sm:$0xf]
    %v1248 = vld [vmem:[%s6 + $0xc] sm:$0xf]
    %v1249 = vld [vmem:[%s6 + $0x10] sm:$0xf]
    %v1250 = vld [vmem:[%s6 + $0x14] sm:$0xf]
    %v1251 = vld [vmem:[%s6 + $0x18] sm:$0xf]
    %v1252 = vld [vmem:[%s6 + $0x1c] sm:$0xf]
    %v1253 = vld [vmem:[%s7] sm:$0x1]
    %v1255 = vlaneseq
    %v1256 = vshrl.u32 %v1255, 7
    %v1257 = vsub.s32 0, %v1256
    %v1258 = vrot.slane %v1253, %v1257
    %v1268 = vunpack.c.l.b16 %v1245
    %v1269 = vunpack.c.l.b16 %v1246
    %v1270 = vunpack.c.l.b16 %v1247
    %v1271 = vunpack.c.l.b16 %v1248
    %v1272 = vunpack.c.l.b16 %v1249
    %v1273 = vunpack.c.l.b16 %v1250
    %v1274 = vunpack.c.l.b16 %v1251
    %v1275 = vunpack.c.l.b16 %v1252
    %v1276 = vpack.c.b16 %v1269, %v1268
    %v1277 = vpack.c.b16 %v1271, %v1270
    %v1278 = vpack.c.b16 %v1273, %v1272
    %v1279 = vpack.c.b16 %v1275, %v1274
    %v1285 = vsel %vm190, %v1244, 0
    %1287 = vmatprep.subr.bf16.mxu0 0
    %1288 = vmatpush1.bf16.msra.mxu0 0
    %1289 = vmatprep.subr.bf16.mxu0 0
    %1290 = vmatpush1.bf16.msra.mxu0 0
    %1291 = vmatprep.subr.bf16.mxu0 0
    %1292 = vmatpush1.bf16.msra.mxu0 0
    %1293 = vmatprep.subr.bf16.mxu0 0
    %1294 = vmatpush1.bf16.msra.mxu0 0
    %1295 = vmatprep.subr.bf16.mxu0 0
    %1296 = vmatpush1.bf16.msra.mxu0 %v1279
    %1297 = vmatprep.subr.bf16.mxu0 0
    %1298 = vmatpush1.bf16.msra.mxu0 %v1278
    %1299 = vmatprep.subr.bf16.mxu0 0
    %1300 = vmatpush1.bf16.msra.mxu0 %v1277
    %1301 = vmatprep.subr.bf16.mxu0 0
    %1302 = vmatpush1.bf16.msra.mxu0 %v1276
    %1303 = vmatprep.subr.bf16.mxu0 0
    %1304 = vmatpush2.bf16.msra.mxu0 0
    %1305 = vmatprep.subr.bf16.mxu0 0
    %1306 = vmatpush2.bf16.msra.mxu0 0
    %1307 = vmatprep.subr.bf16.mxu0 0
    %1308 = vmatpush2.bf16.msra.mxu0 0
    %1309 = vmatprep.subr.bf16.mxu0 0
    %1310 = vmatpush2.bf16.msra.mxu0 0
    %1311 = vmatprep.subr.bf16.mxu0 0
    %1312 = vmatpush2.bf16.msra.mxu0 0
    %1313 = vmatprep.subr.bf16.mxu0 0
    %1314 = vmatpush2.bf16.msra.mxu0 0
    %1315 = vmatprep.subr.bf16.mxu0 0
    %1316 = vmatpush2.bf16.msra.mxu0 0
    %1317 = vmatprep.subr.bf16.mxu0 0
    %1318 = vmatpush2.bf16.msra.mxu0 0
    %1319 = vmatprep.mubr.bf16.mxu0 0
    %1320 = vmatmul.mubr.bf16.gmra.mxu0 %v1285
    %v1321 = vpop.f32.mrf.mxu0
    %v1322 = vadd.f32 %v1258, %v1321
    %v1323 = vpop.f32.mrf.mxu0
    %v1324 = vpop.f32.mrf.mxu0
    %v1325 = vadd.f32 %v1258, %v1324
    %v1326 = vpop.f32.mrf.mxu0
    %1327 = vdwg.mxu0
    %v1328 = vadd.f32 %v178, %v1322
    %v1329 = vadd.f32 %v181, %v1325
    %v1330 = vld [vmem:[%s8] sm:$0x1]
    %v1331 = vld [vmem:[%s9] sm:$0x1]
    %v1332 = vsel %vm190, %v1328, 0.0
    %1333 = vadd.xlane.f32.xlu0 %v1332
    %v1334 = vpop.xlane.xlu0 %1333
    %v1335 = vsel %vm190, %v1329, 0.0
    %1336 = vadd.xlane.f32.xlu0 %v1335
    %v1337 = vpop.xlane.xlu0 %1336
    %v1338 = vmul.f32 %v1334, %v197
    %v1339 = vmul.f32 %v1337, %v197
    %v1340 = vsub.f32 %v1328, %v1338
    %v1341 = vsub.f32 %v1329, %v1339
    %v1342 = vmul.f32 %v1340, %v1340
    %v1343 = vmul.f32 %v1341, %v1341
    %v1344 = vsel %vm190, %v1342, 0.0
    %1345 = vadd.xlane.f32.xlu0 %v1344
    %v1346 = vpop.xlane.xlu0 %1345
    %v1347 = vsel %vm190, %v1343, 0.0
    %1348 = vadd.xlane.f32.xlu0 %v1347
    %v1349 = vpop.xlane.xlu0 %1348
    %v1350 = vmul.f32 %v1346, %v197
    %v1351 = vmul.f32 %v1349, %v197
    %v1352 = vadd.f32 %v1350, 1e-05
    %v1353 = vadd.f32 %v1351, 1e-05
    %v1354 = vrsqrt.pop %v1352
    %v1355 = vrsqrt.pop %v1353
    %v1356 = vmul.f32 %v1340, %v1354
    %v1357 = vmul.f32 %v1341, %v1355
    %v1359 = vlaneseq
    %v1360 = vshrl.u32 %v1359, 7
    %v1361 = vsub.s32 0, %v1360
    %v1362 = vrot.slane %v1330, %v1361
    %v1364 = vmul.f32 %v1356, %v1362
    %v1365 = vmul.f32 %v1357, %v1362
    %v1367 = vlaneseq
    %v1368 = vshrl.u32 %v1367, 7
    %v1369 = vsub.s32 0, %v1368
    %v1370 = vrot.slane %v1331, %v1369
    %v1372 = vadd.f32 %v1364, %v1370
    %v1373 = vadd.f32 %v1365, %v1370
    %v1374 = vpack.c.bf16 %v1373, %v1372
    %v1375 = vld [vmem:[%s10] sm:$0xff]
    %v1376 = vld [vmem:[%s10 + $0x8] sm:$0xff]
    %v1377 = vld [vmem:[%s10 + $0x10] sm:$0xff]
    %v1378 = vld [vmem:[%s10 + $0x18] sm:$0xff]
    %v1379 = vld [vmem:[%s10 + $0x20] sm:$0xff]
    %v1380 = vld [vmem:[%s10 + $0x28] sm:$0xff]
    %v1381 = vld [vmem:[%s10 + $0x30] sm:$0xff]
    %v1382 = vld [vmem:[%s10 + $0x38] sm:$0xff]
    %v1383 = vld [vmem:[%s11] sm:$0x3]
    %v1385 = vlaneseq
    %v1386 = vshrl.u32 %v1385, 7
    %v1387 = vsub.s32 0, %v1386
    %v1388 = vrot.slane %v1383, %v1387
    %v1389 = vlaneseq
    %v1390 = vshrl.u32 %v1389, 7
    %v1391 = vsub.s32 1, %v1390
    %v1392 = vrot.slane %v1383, %v1391
    %v1403 = vunpack.c.l.b16 %v1375
    %v1404 = vunpack.c.h.b16 %v1375
    %v1405 = vunpack.c.l.b16 %v1376
    %v1406 = vunpack.c.h.b16 %v1376
    %v1407 = vunpack.c.l.b16 %v1377
    %v1408 = vunpack.c.h.b16 %v1377
    %v1409 = vunpack.c.l.b16 %v1378
    %v1410 = vunpack.c.h.b16 %v1378
    %v1411 = vunpack.c.l.b16 %v1379
    %v1412 = vunpack.c.h.b16 %v1379
    %v1413 = vunpack.c.l.b16 %v1380
    %v1414 = vunpack.c.h.b16 %v1380
    %v1415 = vunpack.c.l.b16 %v1381
    %v1416 = vunpack.c.h.b16 %v1381
    %v1417 = vunpack.c.l.b16 %v1382
    %v1418 = vunpack.c.h.b16 %v1382
    %v1419 = vpack.c.b16 %v1405, %v1403
    %v1420 = vpack.c.b16 %v1406, %v1404
    %v1421 = vpack.c.b16 %v1409, %v1407
    %v1422 = vpack.c.b16 %v1410, %v1408
    %v1423 = vpack.c.b16 %v1413, %v1411
    %v1424 = vpack.c.b16 %v1414, %v1412
    %v1425 = vpack.c.b16 %v1417, %v1415
    %v1426 = vpack.c.b16 %v1418, %v1416
    %v1436 = vsel %vm190, %v1374, 0
    %1438 = vmatprep.subr.bf16.mxu0 0
    %1439 = vmatpush1.bf16.msra.mxu0 0
    %1440 = vmatprep.subr.bf16.mxu0 0
    %1441 = vmatpush1.bf16.msra.mxu0 0
    %1442 = vmatprep.subr.bf16.mxu0 0
    %1443 = vmatpush1.bf16.msra.mxu0 0
    %1444 = vmatprep.subr.bf16.mxu0 0
    %1445 = vmatpush1.bf16.msra.mxu0 0
    %1446 = vmatprep.subr.bf16.mxu0 %v1426
    %1447 = vmatpush1.bf16.msra.mxu0 %v1425
    %1448 = vmatprep.subr.bf16.mxu0 %v1424
    %1449 = vmatpush1.bf16.msra.mxu0 %v1423
    %1450 = vmatprep.subr.bf16.mxu0 %v1422
    %1451 = vmatpush1.bf16.msra.mxu0 %v1421
    %1452 = vmatprep.subr.bf16.mxu0 %v1420
    %1453 = vmatpush1.bf16.msra.mxu0 %v1419
    %1454 = vmatprep.subr.bf16.mxu0 0
    %1455 = vmatpush2.bf16.msra.mxu0 0
    %1456 = vmatprep.subr.bf16.mxu0 0
    %1457 = vmatpush2.bf16.msra.mxu0 0
    %1458 = vmatprep.subr.bf16.mxu0 0
    %1459 = vmatpush2.bf16.msra.mxu0 0
    %1460 = vmatprep.subr.bf16.mxu0 0
    %1461 = vmatpush2.bf16.msra.mxu0 0
    %1462 = vmatprep.subr.bf16.mxu0 0
    %1463 = vmatpush2.bf16.msra.mxu0 0
    %1464 = vmatprep.subr.bf16.mxu0 0
    %1465 = vmatpush2.bf16.msra.mxu0 0
    %1466 = vmatprep.subr.bf16.mxu0 0
    %1467 = vmatpush2.bf16.msra.mxu0 0
    %1468 = vmatprep.subr.bf16.mxu0 0
    %1469 = vmatpush2.bf16.msra.mxu0 0
    %1470 = vmatprep.mubr.bf16.mxu0 0
    %1471 = vmatmul.mubr.bf16.gmra.mxu0 %v1436
    %v1472 = vpop.f32.mrf.mxu0
    %v1473 = vadd.f32 %v1388, %v1472
    %v1474 = vpop.f32.mrf.mxu0
    %v1475 = vadd.f32 %v1392, %v1474
    %v1476 = vpop.f32.mrf.mxu0
    %v1477 = vadd.f32 %v1388, %v1476
    %v1478 = vpop.f32.mrf.mxu0
    %v1479 = vadd.f32 %v1392, %v1478
    %1480 = vdwg.mxu0
    %v1481 = vmax.f32 %v1473, 0.0
    %v1482 = vmax.f32 %v1475, 0.0
    %v1483 = vmax.f32 %v1477, 0.0
    %v1484 = vmax.f32 %v1479, 0.0
    %v1485 = vpack.c.bf16 %v1483, %v1481
    %v1486 = vpack.c.bf16 %v1484, %v1482
    %v1487 = vld [vmem:[%s12] sm:$0xf]
    %v1488 = vld [vmem:[%s12 + $0x4] sm:$0xf]
    %v1489 = vld [vmem:[%s12 + $0x8] sm:$0xf]
    %v1490 = vld [vmem:[%s12 + $0xc] sm:$0xf]
    %v1491 = vld [vmem:[%s12 + $0x10] sm:$0xf]
    %v1492 = vld [vmem:[%s12 + $0x14] sm:$0xf]
    %v1493 = vld [vmem:[%s12 + $0x18] sm:$0xf]
    %v1494 = vld [vmem:[%s12 + $0x1c] sm:$0xf]
    %v1495 = vld [vmem:[%s12 + $0x20] sm:$0xf]
    %v1496 = vld [vmem:[%s12 + $0x24] sm:$0xf]
    %v1497 = vld [vmem:[%s12 + $0x28] sm:$0xf]
    %v1498 = vld [vmem:[%s12 + $0x2c] sm:$0xf]
    %v1499 = vld [vmem:[%s12 + $0x30] sm:$0xf]
    %v1500 = vld [vmem:[%s12 + $0x34] sm:$0xf]
    %v1501 = vld [vmem:[%s12 + $0x38] sm:$0xf]
    %v1502 = vld [vmem:[%s12 + $0x3c] sm:$0xf]
    %v1503 = vld [vmem:[%s12 + $0x40] sm:$0xf]
    %v1504 = vld [vmem:[%s12 + $0x44] sm:$0xf]
    %v1505 = vld [vmem:[%s12 + $0x48] sm:$0xf]
    %v1506 = vld [vmem:[%s12 + $0x4c] sm:$0xf]
    %v1507 = vld [vmem:[%s12 + $0x50] sm:$0xf]
    %v1508 = vld [vmem:[%s12 + $0x54] sm:$0xf]
    %v1509 = vld [vmem:[%s12 + $0x58] sm:$0xf]
    %v1510 = vld [vmem:[%s12 + $0x5c] sm:$0xf]
    %v1511 = vld [vmem:[%s12 + $0x60] sm:$0xf]
    %v1512 = vld [vmem:[%s12 + $0x64] sm:$0xf]
    %v1513 = vld [vmem:[%s12 + $0x68] sm:$0xf]
    %v1514 = vld [vmem:[%s12 + $0x6c] sm:$0xf]
    %v1515 = vld [vmem:[%s12 + $0x70] sm:$0xf]
    %v1516 = vld [vmem:[%s12 + $0x74] sm:$0xf]
    %v1517 = vld [vmem:[%s12 + $0x78] sm:$0xf]
    %v1518 = vld [vmem:[%s12 + $0x7c] sm:$0xf]
    %v1519 = vld [vmem:[%s13] sm:$0x1]
    %v1521 = vlaneseq
    %v1522 = vshrl.u32 %v1521, 7
    %v1523 = vsub.s32 0, %v1522
    %v1524 = vrot.slane %v1519, %v1523
    %v1558 = vunpack.c.l.b16 %v1487
    %v1559 = vunpack.c.l.b16 %v1488
    %v1560 = vunpack.c.l.b16 %v1489
    %v1561 = vunpack.c.l.b16 %v1490
    %v1562 = vunpack.c.l.b16 %v1491
    %v1563 = vunpack.c.l.b16 %v1492
    %v1564 = vunpack.c.l.b16 %v1493
    %v1565 = vunpack.c.l.b16 %v1494
    %v1566 = vunpack.c.l.b16 %v1495
    %v1567 = vunpack.c.l.b16 %v1496
    %v1568 = vunpack.c.l.b16 %v1497
    %v1569 = vunpack.c.l.b16 %v1498
    %v1570 = vunpack.c.l.b16 %v1499
    %v1571 = vunpack.c.l.b16 %v1500
    %v1572 = vunpack.c.l.b16 %v1501
    %v1573 = vunpack.c.l.b16 %v1502
    %v1574 = vunpack.c.l.b16 %v1503
    %v1575 = vunpack.c.l.b16 %v1504
    %v1576 = vunpack.c.l.b16 %v1505
    %v1577 = vunpack.c.l.b16 %v1506
    %v1578 = vunpack.c.l.b16 %v1507
    %v1579 = vunpack.c.l.b16 %v1508
    %v1580 = vunpack.c.l.b16 %v1509
    %v1581 = vunpack.c.l.b16 %v1510
    %v1582 = vunpack.c.l.b16 %v1511
    %v1583 = vunpack.c.l.b16 %v1512
    %v1584 = vunpack.c.l.b16 %v1513
    %v1585 = vunpack.c.l.b16 %v1514
    %v1586 = vunpack.c.l.b16 %v1515
    %v1587 = vunpack.c.l.b16 %v1516
    %v1588 = vunpack.c.l.b16 %v1517
    %v1589 = vunpack.c.l.b16 %v1518
    %v1590 = vpack.c.b16 %v1559, %v1558
    %v1591 = vpack.c.b16 %v1561, %v1560
    %v1592 = vpack.c.b16 %v1563, %v1562
    %v1593 = vpack.c.b16 %v1565, %v1564
    %v1594 = vpack.c.b16 %v1567, %v1566
    %v1595 = vpack.c.b16 %v1569, %v1568
    %v1596 = vpack.c.b16 %v1571, %v1570
    %v1597 = vpack.c.b16 %v1573, %v1572
    %v1598 = vpack.c.b16 %v1575, %v1574
    %v1599 = vpack.c.b16 %v1577, %v1576
    %v1600 = vpack.c.b16 %v1579, %v1578
    %v1601 = vpack.c.b16 %v1581, %v1580
    %v1602 = vpack.c.b16 %v1583, %v1582
    %v1603 = vpack.c.b16 %v1585, %v1584
    %v1604 = vpack.c.b16 %v1587, %v1586
    %v1605 = vpack.c.b16 %v1589, %v1588
    %1622 = vmatprep.subr.bf16.mxu0 0
    %1623 = vmatpush1.bf16.msra.mxu0 %v1597
    %1624 = vmatprep.subr.bf16.mxu0 0
    %1625 = vmatpush1.bf16.msra.mxu0 %v1596
    %1626 = vmatprep.subr.bf16.mxu0 0
    %1627 = vmatpush1.bf16.msra.mxu0 %v1595
    %1628 = vmatprep.subr.bf16.mxu0 0
    %1629 = vmatpush1.bf16.msra.mxu0 %v1594
    %1630 = vmatprep.subr.bf16.mxu0 0
    %1631 = vmatpush1.bf16.msra.mxu0 %v1593
    %1632 = vmatprep.subr.bf16.mxu0 0
    %1633 = vmatpush1.bf16.msra.mxu0 %v1592
    %1634 = vmatprep.subr.bf16.mxu0 0
    %1635 = vmatpush1.bf16.msra.mxu0 %v1591
    %1636 = vmatprep.subr.bf16.mxu0 0
    %1637 = vmatpush1.bf16.msra.mxu0 %v1590
    %1638 = vmatprep.subr.bf16.mxu0 0
    %1639 = vmatpush2.bf16.msra.mxu0 %v1605
    %1640 = vmatprep.subr.bf16.mxu0 0
    %1641 = vmatpush2.bf16.msra.mxu0 %v1604
    %1642 = vmatprep.subr.bf16.mxu0 0
    %1643 = vmatpush2.bf16.msra.mxu0 %v1603
    %1644 = vmatprep.subr.bf16.mxu0 0
    %1645 = vmatpush2.bf16.msra.mxu0 %v1602
    %1646 = vmatprep.subr.bf16.mxu0 0
    %1647 = vmatpush2.bf16.msra.mxu0 %v1601
    %1648 = vmatprep.subr.bf16.mxu0 0
    %1649 = vmatpush2.bf16.msra.mxu0 %v1600
    %1650 = vmatprep.subr.bf16.mxu0 0
    %1651 = vmatpush2.bf16.msra.mxu0 %v1599
    %1652 = vmatprep.subr.bf16.mxu0 0
    %1653 = vmatpush2.bf16.msra.mxu0 %v1598
    %1654 = vmatprep.mubr.bf16.mxu0 %v1486
    %1655 = vmatmul.mubr.bf16.gmra.mxu0 %v1485
    %v1656 = vpop.f32.mrf.mxu0
    %v1657 = vadd.f32 %v1524, %v1656
    %v1658 = vpop.f32.mrf.mxu0
    %v1659 = vpop.f32.mrf.mxu0
    %v1660 = vadd.f32 %v1524, %v1659
    %v1661 = vpop.f32.mrf.mxu0
    %1662 = vdwg.mxu0
    %v1663 = vadd.f32 %v1328, %v1657
    %v1664 = vadd.f32 %v1329, %v1660
    %s1665 = scalar_lea.vmem %s3, 1
    %v1666 = vld [vmem:[%s1665] sm:$0x1]
    %s1667 = scalar_lea.vmem %s4, 1
    %v1668 = vld [vmem:[%s1667] sm:$0x1]
    %v1669 = vsel %vm190, %v1663, 0.0
    %1670 = vadd.xlane.f32.xlu0 %v1669
    %v1671 = vpop.xlane.xlu0 %1670
    %v1672 = vsel %vm190, %v1664, 0.0
    %1673 = vadd.xlane.f32.xlu0 %v1672
    %v1674 = vpop.xlane.xlu0 %1673
    %v1675 = vmul.f32 %v1671, %v197
    %v1676 = vmul.f32 %v1674, %v197
    %v1677 = vsub.f32 %v1663, %v1675
    %v1678 = vsub.f32 %v1664, %v1676
    %v1679 = vmul.f32 %v1677, %v1677
    %v1680 = vmul.f32 %v1678, %v1678
    %v1681 = vsel %vm190, %v1679, 0.0
    %1682 = vadd.xlane.f32.xlu0 %v1681
    %v1683 = vpop.xlane.xlu0 %1682
    %v1684 = vsel %vm190, %v1680, 0.0
    %1685 = vadd.xlane.f32.xlu0 %v1684
    %v1686 = vpop.xlane.xlu0 %1685
    %v1687 = vmul.f32 %v1683, %v197
    %v1688 = vmul.f32 %v1686, %v197
    %v1689 = vadd.f32 %v1687, 1e-05
    %v1690 = vadd.f32 %v1688, 1e-05
    %v1691 = vrsqrt.pop %v1689
    %v1692 = vrsqrt.pop %v1690
    %v1693 = vmul.f32 %v1677, %v1691
    %v1694 = vmul.f32 %v1678, %v1692
    %v1696 = vlaneseq
    %v1697 = vshrl.u32 %v1696, 7
    %v1698 = vsub.s32 0, %v1697
    %v1699 = vrot.slane %v1666, %v1698
    %v1701 = vmul.f32 %v1693, %v1699
    %v1702 = vmul.f32 %v1694, %v1699
    %v1704 = vlaneseq
    %v1705 = vshrl.u32 %v1704, 7
    %v1706 = vsub.s32 0, %v1705
    %v1707 = vrot.slane %v1668, %v1706
    %v1709 = vadd.f32 %v1701, %v1707
    %v1710 = vadd.f32 %v1702, %v1707
    %v1711 = vpack.c.bf16 %v1710, %v1709
    %s1712 = scalar_lea.vmem %s5, 64
    %v1713 = vld [vmem:[%s1712] sm:$0xff]
    %v1714 = vld [vmem:[%s1712 + $0x8] sm:$0xff]
    %v1715 = vld [vmem:[%s1712 + $0x10] sm:$0xff]
    %v1716 = vld [vmem:[%s1712 + $0x18] sm:$0xff]
    %v1717 = vld [vmem:[%s1712 + $0x20] sm:$0xff]
    %v1718 = vld [vmem:[%s1712 + $0x28] sm:$0xff]
    %v1719 = vld [vmem:[%s1712 + $0x30] sm:$0xff]
    %v1720 = vld [vmem:[%s1712 + $0x38] sm:$0xff]
    %v1729 = vunpack.c.l.b16 %v1713
    %v1730 = vunpack.c.h.b16 %v1713
    %v1731 = vunpack.c.l.b16 %v1714
    %v1732 = vunpack.c.h.b16 %v1714
    %v1733 = vunpack.c.l.b16 %v1715
    %v1734 = vunpack.c.h.b16 %v1715
    %v1735 = vunpack.c.l.b16 %v1716
    %v1736 = vunpack.c.h.b16 %v1716
    %v1737 = vunpack.c.l.b16 %v1717
    %v1738 = vunpack.c.h.b16 %v1717
    %v1739 = vunpack.c.l.b16 %v1718
    %v1740 = vunpack.c.h.b16 %v1718
    %v1741 = vunpack.c.l.b16 %v1719
    %v1742 = vunpack.c.h.b16 %v1719
    %v1743 = vunpack.c.l.b16 %v1720
    %v1744 = vunpack.c.h.b16 %v1720
    %v1745 = vpack.c.b16 %v1731, %v1729
    %v1746 = vpack.c.b16 %v1732, %v1730
    %v1747 = vpack.c.b16 %v1735, %v1733
    %v1748 = vpack.c.b16 %v1736, %v1734
    %v1749 = vpack.c.b16 %v1739, %v1737
    %v1750 = vpack.c.b16 %v1740, %v1738
    %v1751 = vpack.c.b16 %v1743, %v1741
    %v1752 = vpack.c.b16 %v1744, %v1742
    %v1762 = vsel %vm190, %v1711, 0
    %1764 = vmatprep.subr.bf16.mxu0 0
    %1765 = vmatpush1.bf16.msra.mxu0 0
    %1766 = vmatprep.subr.bf16.mxu0 0
    %1767 = vmatpush1.bf16.msra.mxu0 0
    %1768 = vmatprep.subr.bf16.mxu0 0
    %1769 = vmatpush1.bf16.msra.mxu0 0
    %1770 = vmatprep.subr.bf16.mxu0 0
    %1771 = vmatpush1.bf16.msra.mxu0 0
    %1772 = vmatprep.subr.bf16.mxu0 %v1752
    %1773 = vmatpush1.bf16.msra.mxu0 %v1751
    %1774 = vmatprep.subr.bf16.mxu0 %v1750
    %1775 = vmatpush1.bf16.msra.mxu0 %v1749
    %1776 = vmatprep.subr.bf16.mxu0 %v1748
    %1777 = vmatpush1.bf16.msra.mxu0 %v1747
    %1778 = vmatprep.subr.bf16.mxu0 %v1746
    %1779 = vmatpush1.bf16.msra.mxu0 %v1745
    %1780 = vmatprep.subr.bf16.mxu0 0
    %1781 = vmatpush2.bf16.msra.mxu0 0
    %1782 = vmatprep.subr.bf16.mxu0 0
    %1783 = vmatpush2.bf16.msra.mxu0 0
    %1784 = vmatprep.subr.bf16.mxu0 0
    %1785 = vmatpush2.bf16.msra.mxu0 0
    %1786 = vmatprep.subr.bf16.mxu0 0
    %1787 = vmatpush2.bf16.msra.mxu0 0
    %1788 = vmatprep.subr.bf16.mxu0 0
    %1789 = vmatpush2.bf16.msra.mxu0 0
    %1790 = vmatprep.subr.bf16.mxu0 0
    %1791 = vmatpush2.bf16.msra.mxu0 0
    %1792 = vmatprep.subr.bf16.mxu0 0
    %1793 = vmatpush2.bf16.msra.mxu0 0
    %1794 = vmatprep.subr.bf16.mxu0 0
    %1795 = vmatpush2.bf16.msra.mxu0 0
    %1796 = vmatprep.mubr.bf16.mxu0 0
    %1797 = vmatmul.mubr.bf16.gmra.mxu0 %v1762
    %v1798 = vpop.f32.mrf.mxu0
    %v1799 = vadd.f32 0.0, %v1798
    %v1800 = vpop.f32.mrf.mxu0
    %v1801 = vadd.f32 0.0, %v1800
    %v1802 = vpop.f32.mrf.mxu0
    %v1803 = vadd.f32 0.0, %v1802
    %v1804 = vpop.f32.mrf.mxu0
    %v1805 = vadd.f32 0.0, %v1804
    %1806 = vdwg.mxu0
    %v1807 = vpack.c.bf16 %v1799, %v1799
    %v1808 = vpack.c.bf16 %v1803, %v1803
    %v1809 = vpack.c.bf16 %v1801, %v1801
    %v1810 = vpack.c.bf16 %v1805, %v1805
    %1812 = vrot.lane.b32.xlu0 %v1807, 64
    %v1813 = vpop.permute.xlu0 %1812
    %v1815 = vsel %vm336, %v1807, 0
    %v1818 = vsel %vm336, %v1813, 0
    %1820 = vmatprep.subr.bf16.mxu0 0
    %1821 = vmatpush1.bf16.xpose.msra.mxu0 0
    %1822 = vmatprep.subr.bf16.mxu0 0
    %1823 = vmatpush1.bf16.xpose.msra.mxu0 0
    %1824 = vmatprep.subr.bf16.mxu0 0
    %1825 = vmatpush1.bf16.xpose.msra.mxu0 0
    %1826 = vmatprep.subr.bf16.mxu0 0
    %1827 = vmatpush1.bf16.xpose.msra.mxu0 0
    %1828 = vmatprep.subr.bf16.mxu0 0
    %1829 = vmatpush1.bf16.xpose.msra.mxu0 0
    %1830 = vmatprep.subr.bf16.mxu0 0
    %1831 = vmatpush1.bf16.xpose.msra.mxu0 0
    %1832 = vmatprep.subr.bf16.mxu0 0
    %1833 = vmatpush1.bf16.xpose.msra.mxu0 0
    %1834 = vmatprep.subr.bf16.mxu0 0
    %1835 = vmatpush1.bf16.xpose.msra.mxu0 %v1818
    %1836 = vmatprep.subr.bf16.mxu0 0
    %1837 = vmatpush2.bf16.xpose.msra.mxu0 0
    %1838 = vmatprep.subr.bf16.mxu0 0
    %1839 = vmatpush2.bf16.xpose.msra.mxu0 0
    %1840 = vmatprep.subr.bf16.mxu0 0
    %1841 = vmatpush2.bf16.xpose.msra.mxu0 0
    %1842 = vmatprep.subr.bf16.mxu0 0
    %1843 = vmatpush2.bf16.xpose.msra.mxu0 0
    %1844 = vmatprep.subr.bf16.mxu0 0
    %1845 = vmatpush2.bf16.xpose.msra.mxu0 0
    %1846 = vmatprep.subr.bf16.mxu0 0
    %1847 = vmatpush2.bf16.xpose.msra.mxu0 0
    %1848 = vmatprep.subr.bf16.mxu0 0
    %1849 = vmatpush2.bf16.xpose.msra.mxu0 0
    %1850 = vmatprep.subr.bf16.mxu0 0
    %1851 = vmatpush2.bf16.xpose.msra.mxu0 0
    %1852 = vmatprep.mubr.bf16.mxu0 0
    %1853 = vmatmul.mubr.bf16.gmra.mxu0 %v1815
    %v1854 = vpop.f32.mrf.mxu0
    %v1855 = vadd.f32 %v187, %v1854
    %v1856 = vpop.f32.mrf.mxu0
    %v1857 = vpop.f32.mrf.mxu0
    %v1858 = vpop.f32.mrf.mxu0
    %1859 = vdwg.mxu0
    %1861 = vrot.lane.b32.xlu0 %v1808, 64
    %v1862 = vpop.permute.xlu0 %1861
    %v1864 = vsel %vm336, %v1808, 0
    %v1867 = vsel %vm336, %v1862, 0
    %1869 = vmatprep.subr.bf16.mxu0 0
    %1870 = vmatpush1.bf16.xpose.msra.mxu0 0
    %1871 = vmatprep.subr.bf16.mxu0 0
    %1872 = vmatpush1.bf16.xpose.msra.mxu0 0
    %1873 = vmatprep.subr.bf16.mxu0 0
    %1874 = vmatpush1.bf16.xpose.msra.mxu0 0
    %1875 = vmatprep.subr.bf16.mxu0 0
    %1876 = vmatpush1.bf16.xpose.msra.mxu0 0
    %1877 = vmatprep.subr.bf16.mxu0 0
    %1878 = vmatpush1.bf16.xpose.msra.mxu0 0
    %1879 = vmatprep.subr.bf16.mxu0 0
    %1880 = vmatpush1.bf16.xpose.msra.mxu0 0
    %1881 = vmatprep.subr.bf16.mxu0 0
    %1882 = vmatpush1.bf16.xpose.msra.mxu0 0
    %1883 = vmatprep.subr.bf16.mxu0 0
    %1884 = vmatpush1.bf16.xpose.msra.mxu0 %v1867
    %1885 = vmatprep.subr.bf16.mxu0 0
    %1886 = vmatpush2.bf16.xpose.msra.mxu0 0
    %1887 = vmatprep.subr.bf16.mxu0 0
    %1888 = vmatpush2.bf16.xpose.msra.mxu0 0
    %1889 = vmatprep.subr.bf16.mxu0 0
    %1890 = vmatpush2.bf16.xpose.msra.mxu0 0
    %1891 = vmatprep.subr.bf16.mxu0 0
    %1892 = vmatpush2.bf16.xpose.msra.mxu0 0
    %1893 = vmatprep.subr.bf16.mxu0 0
    %1894 = vmatpush2.bf16.xpose.msra.mxu0 0
    %1895 = vmatprep.subr.bf16.mxu0 0
    %1896 = vmatpush2.bf16.xpose.msra.mxu0 0
    %1897 = vmatprep.subr.bf16.mxu0 0
    %1898 = vmatpush2.bf16.xpose.msra.mxu0 0
    %1899 = vmatprep.subr.bf16.mxu0 0
    %1900 = vmatpush2.bf16.xpose.msra.mxu0 0
    %1901 = vmatprep.mubr.bf16.mxu0 0
    %1902 = vmatmul.mubr.bf16.gmra.mxu0 %v1864
    %v1903 = vpop.f32.mrf.mxu0
    %v1904 = vadd.f32 %v187, %v1903
    %v1905 = vpop.f32.mrf.mxu0
    %v1906 = vpop.f32.mrf.mxu0
    %v1907 = vpop.f32.mrf.mxu0
    %1908 = vdwg.mxu0
    %v1909 = vsel %vm432, %v1855, -inf
    %1910 = vmax.xlane.f32.xlu0 %v1909
    %v1911 = vpop.xlane.xlu0 %1910
    %v1912 = vsel %vm432, %v1904, -inf
    %1913 = vmax.xlane.f32.xlu0 %v1912
    %v1914 = vpop.xlane.xlu0 %1913
    %v1915 = vsub.f32 %v1855, %v1911
    %v1916 = vsub.f32 %v1904, %v1914
    %v1917 = vmul.f32 %v1915, 1.442695
    %v1918 = vpow.pop %v1917
    %v1919 = vmul.f32 %v1916, 1.442695
    %v1920 = vpow.pop %v1919
    %v1921 = vsel %vm432, %v1918, 0.0
    %1922 = vadd.xlane.f32.xlu0 %v1921
    %v1923 = vpop.xlane.xlu0 %1922
    %v1924 = vsel %vm432, %v1920, 0.0
    %1925 = vadd.xlane.f32.xlu0 %v1924
    %v1926 = vpop.xlane.xlu0 %1925
    %v1927 = vrcp.pop %v1923
    %v1928 = vmul.f32 %v1918, %v1927
    %v1929 = vrcp.pop %v1926
    %v1930 = vmul.f32 %v1920, %v1929
    %v1931 = vpack.c.bf16 %v1928, %v1928
    %v1932 = vpack.c.bf16 %v1930, %v1930
    %v1934 = vsel %vm432, %v1931, 0
    %v1937 = vsel %vm460, %v1809, 0
    %1939 = vmatprep.subr.bf16.mxu0 0
    %1940 = vmatpush1.bf16.msra.mxu0 0
    %1941 = vmatprep.subr.bf16.mxu0 0
    %1942 = vmatpush1.bf16.msra.mxu0 0
    %1943 = vmatprep.subr.bf16.mxu0 0
    %1944 = vmatpush1.bf16.msra.mxu0 0
    %1945 = vmatprep.subr.bf16.mxu0 0
    %1946 = vmatpush1.bf16.msra.mxu0 0
    %1947 = vmatprep.subr.bf16.mxu0 0
    %1948 = vmatpush1.bf16.msra.mxu0 0
    %1949 = vmatprep.subr.bf16.mxu0 0
    %1950 = vmatpush1.bf16.msra.mxu0 0
    %1951 = vmatprep.subr.bf16.mxu0 0
    %1952 = vmatpush1.bf16.msra.mxu0 0
    %1953 = vmatprep.subr.bf16.mxu0 0
    %1954 = vmatpush1.bf16.msra.mxu0 %v1937
    %1955 = vmatprep.subr.bf16.mxu0 0
    %1956 = vmatpush2.bf16.msra.mxu0 0
    %1957 = vmatprep.subr.bf16.mxu0 0
    %1958 = vmatpush2.bf16.msra.mxu0 0
    %1959 = vmatprep.subr.bf16.mxu0 0
    %1960 = vmatpush2.bf16.msra.mxu0 0
    %1961 = vmatprep.subr.bf16.mxu0 0
    %1962 = vmatpush2.bf16.msra.mxu0 0
    %1963 = vmatprep.subr.bf16.mxu0 0
    %1964 = vmatpush2.bf16.msra.mxu0 0
    %1965 = vmatprep.subr.bf16.mxu0 0
    %1966 = vmatpush2.bf16.msra.mxu0 0
    %1967 = vmatprep.subr.bf16.mxu0 0
    %1968 = vmatpush2.bf16.msra.mxu0 0
    %1969 = vmatprep.subr.bf16.mxu0 0
    %1970 = vmatpush2.bf16.msra.mxu0 0
    %1971 = vmatprep.mubr.bf16.mxu0 0
    %1972 = vmatmul.mubr.bf16.gmra.mxu0 %v1934
    %v1973 = vpop.f32.mrf.mxu0
    %v1974 = vadd.f32 0.0, %v1973
    %v1975 = vpop.f32.mrf.mxu0
    %v1976 = vpop.f32.mrf.mxu0
    %v1977 = vpop.f32.mrf.mxu0
    %1978 = vdwg.mxu0
    %v1980 = vsel %vm432, %v1932, 0
    %v1983 = vsel %vm460, %v1810, 0
    %1985 = vmatprep.subr.bf16.mxu0 0
    %1986 = vmatpush1.bf16.msra.mxu0 0
    %1987 = vmatprep.subr.bf16.mxu0 0
    %1988 = vmatpush1.bf16.msra.mxu0 0
    %1989 = vmatprep.subr.bf16.mxu0 0
    %1990 = vmatpush1.bf16.msra.mxu0 0
    %1991 = vmatprep.subr.bf16.mxu0 0
    %1992 = vmatpush1.bf16.msra.mxu0 0
    %1993 = vmatprep.subr.bf16.mxu0 0
    %1994 = vmatpush1.bf16.msra.mxu0 0
    %1995 = vmatprep.subr.bf16.mxu0 0
    %1996 = vmatpush1.bf16.msra.mxu0 0
    %1997 = vmatprep.subr.bf16.mxu0 0
    %1998 = vmatpush1.bf16.msra.mxu0 0
    %1999 = vmatprep.subr.bf16.mxu0 0
    %2000 = vmatpush1.bf16.msra.mxu0 %v1983
    %2001 = vmatprep.subr.bf16.mxu0 0
    %2002 = vmatpush2.bf16.msra.mxu0 0
    %2003 = vmatprep.subr.bf16.mxu0 0
    %2004 = vmatpush2.bf16.msra.mxu0 0
    %2005 = vmatprep.subr.bf16.mxu0 0
    %2006 = vmatpush2.bf16.msra.mxu0 0
    %2007 = vmatprep.subr.bf16.mxu0 0
    %2008 = vmatpush2.bf16.msra.mxu0 0
    %2009 = vmatprep.subr.bf16.mxu0 0
    %2010 = vmatpush2.bf16.msra.mxu0 0
    %2011 = vmatprep.subr.bf16.mxu0 0
    %2012 = vmatpush2.bf16.msra.mxu0 0
    %2013 = vmatprep.subr.bf16.mxu0 0
    %2014 = vmatpush2.bf16.msra.mxu0 0
    %2015 = vmatprep.subr.bf16.mxu0 0
    %2016 = vmatpush2.bf16.msra.mxu0 0
    %2017 = vmatprep.mubr.bf16.mxu0 0
    %2018 = vmatmul.mubr.bf16.gmra.mxu0 %v1980
    %v2019 = vpop.f32.mrf.mxu0
    %v2020 = vadd.f32 0.0, %v2019
    %v2021 = vpop.f32.mrf.mxu0
    %v2022 = vpop.f32.mrf.mxu0
    %v2023 = vpop.f32.mrf.mxu0
    %2024 = vdwg.mxu0
    %2025 = vrot.lane.b32.xlu0 %v1807, 112
    %v2026 = vpop.permute.xlu0 %2025
    %2027 = vrot.lane.b32.xlu0 %v1807, 48
    %v2028 = vpop.permute.xlu0 %2027
    %v2030 = vsel %vm336, %v2026, 0
    %v2033 = vsel %vm336, %v2028, 0
    %2035 = vmatprep.subr.bf16.mxu0 0
    %2036 = vmatpush1.bf16.xpose.msra.mxu0 0
    %2037 = vmatprep.subr.bf16.mxu0 0
    %2038 = vmatpush1.bf16.xpose.msra.mxu0 0
    %2039 = vmatprep.subr.bf16.mxu0 0
    %2040 = vmatpush1.bf16.xpose.msra.mxu0 0
    %2041 = vmatprep.subr.bf16.mxu0 0
    %2042 = vmatpush1.bf16.xpose.msra.mxu0 0
    %2043 = vmatprep.subr.bf16.mxu0 0
    %2044 = vmatpush1.bf16.xpose.msra.mxu0 0
    %2045 = vmatprep.subr.bf16.mxu0 0
    %2046 = vmatpush1.bf16.xpose.msra.mxu0 0
    %2047 = vmatprep.subr.bf16.mxu0 0
    %2048 = vmatpush1.bf16.xpose.msra.mxu0 0
    %2049 = vmatprep.subr.bf16.mxu0 0
    %2050 = vmatpush1.bf16.xpose.msra.mxu0 %v2033
    %2051 = vmatprep.subr.bf16.mxu0 0
    %2052 = vmatpush2.bf16.xpose.msra.mxu0 0
    %2053 = vmatprep.subr.bf16.mxu0 0
    %2054 = vmatpush2.bf16.xpose.msra.mxu0 0
    %2055 = vmatprep.subr.bf16.mxu0 0
    %2056 = vmatpush2.bf16.xpose.msra.mxu0 0
    %2057 = vmatprep.subr.bf16.mxu0 0
    %2058 = vmatpush2.bf16.xpose.msra.mxu0 0
    %2059 = vmatprep.subr.bf16.mxu0 0
    %2060 = vmatpush2.bf16.xpose.msra.mxu0 0
    %2061 = vmatprep.subr.bf16.mxu0 0
    %2062 = vmatpush2.bf16.xpose.msra.mxu0 0
    %2063 = vmatprep.subr.bf16.mxu0 0
    %2064 = vmatpush2.bf16.xpose.msra.mxu0 0
    %2065 = vmatprep.subr.bf16.mxu0 0
    %2066 = vmatpush2.bf16.xpose.msra.mxu0 0
    %2067 = vmatprep.mubr.bf16.mxu0 0
    %2068 = vmatmul.mubr.bf16.gmra.mxu0 %v2030
    %v2069 = vpop.f32.mrf.mxu0
    %v2070 = vadd.f32 %v187, %v2069
    %v2071 = vpop.f32.mrf.mxu0
    %v2072 = vpop.f32.mrf.mxu0
    %v2073 = vpop.f32.mrf.mxu0
    %2074 = vdwg.mxu0
    %2075 = vrot.lane.b32.xlu0 %v1808, 112
    %v2076 = vpop.permute.xlu0 %2075
    %2077 = vrot.lane.b32.xlu0 %v1808, 48
    %v2078 = vpop.permute.xlu0 %2077
    %v2080 = vsel %vm336, %v2076, 0
    %v2083 = vsel %vm336, %v2078, 0
    %2085 = vmatprep.subr.bf16.mxu0 0
    %2086 = vmatpush1.bf16.xpose.msra.mxu0 0
    %2087 = vmatprep.subr.bf16.mxu0 0
    %2088 = vmatpush1.bf16.xpose.msra.mxu0 0
    %2089 = vmatprep.subr.bf16.mxu0 0
    %2090 = vmatpush1.bf16.xpose.msra.mxu0 0
    %2091 = vmatprep.subr.bf16.mxu0 0
    %2092 = vmatpush1.bf16.xpose.msra.mxu0 0
    %2093 = vmatprep.subr.bf16.mxu0 0
    %2094 = vmatpush1.bf16.xpose.msra.mxu0 0
    %2095 = vmatprep.subr.bf16.mxu0 0
    %2096 = vmatpush1.bf16.xpose.msra.mxu0 0
    %2097 = vmatprep.subr.bf16.mxu0 0
    %2098 = vmatpush1.bf16.xpose.msra.mxu0 0
    %2099 = vmatprep.subr.bf16.mxu0 0
    %2100 = vmatpush1.bf16.xpose.msra.mxu0 %v2083
    %2101 = vmatprep.subr.bf16.mxu0 0
    %2102 = vmatpush2.bf16.xpose.msra.mxu0 0
    %2103 = vmatprep.subr.bf16.mxu0 0
    %2104 = vmatpush2.bf16.xpose.msra.mxu0 0
    %2105 = vmatprep.subr.bf16.mxu0 0
    %2106 = vmatpush2.bf16.xpose.msra.mxu0 0
    %2107 = vmatprep.subr.bf16.mxu0 0
    %2108 = vmatpush2.bf16.xpose.msra.mxu0 0
    %2109 = vmatprep.subr.bf16.mxu0 0
    %2110 = vmatpush2.bf16.xpose.msra.mxu0 0
    %2111 = vmatprep.subr.bf16.mxu0 0
    %2112 = vmatpush2.bf16.xpose.msra.mxu0 0
    %2113 = vmatprep.subr.bf16.mxu0 0
    %2114 = vmatpush2.bf16.xpose.msra.mxu0 0
    %2115 = vmatprep.subr.bf16.mxu0 0
    %2116 = vmatpush2.bf16.xpose.msra.mxu0 0
    %2117 = vmatprep.mubr.bf16.mxu0 0
    %2118 = vmatmul.mubr.bf16.gmra.mxu0 %v2080
    %v2119 = vpop.f32.mrf.mxu0
    %v2120 = vadd.f32 %v187, %v2119
    %v2121 = vpop.f32.mrf.mxu0
    %v2122 = vpop.f32.mrf.mxu0
    %v2123 = vpop.f32.mrf.mxu0
    %2124 = vdwg.mxu0
    %v2125 = vsel %vm432, %v2070, -inf
    %2126 = vmax.xlane.f32.xlu0 %v2125
    %v2127 = vpop.xlane.xlu0 %2126
    %v2128 = vsel %vm432, %v2120, -inf
    %2129 = vmax.xlane.f32.xlu0 %v2128
    %v2130 = vpop.xlane.xlu0 %2129
    %v2131 = vsub.f32 %v2070, %v2127
    %v2132 = vsub.f32 %v2120, %v2130
    %v2133 = vmul.f32 %v2131, 1.442695
    %v2134 = vpow.pop %v2133
    %v2135 = vmul.f32 %v2132, 1.442695
    %v2136 = vpow.pop %v2135
    %v2137 = vsel %vm432, %v2134, 0.0
    %2138 = vadd.xlane.f32.xlu0 %v2137
    %v2139 = vpop.xlane.xlu0 %2138
    %v2140 = vsel %vm432, %v2136, 0.0
    %2141 = vadd.xlane.f32.xlu0 %v2140
    %v2142 = vpop.xlane.xlu0 %2141
    %v2143 = vrcp.pop %v2139
    %v2144 = vmul.f32 %v2134, %v2143
    %v2145 = vrcp.pop %v2142
    %v2146 = vmul.f32 %v2136, %v2145
    %v2147 = vpack.c.bf16 %v2144, %v2144
    %v2148 = vpack.c.bf16 %v2146, %v2146
    %2150 = vrot.lane.b32.xlu0 %v1809, 112
    %v2151 = vpop.permute.xlu0 %2150
    %v2153 = vsel %vm432, %v2147, 0
    %v2156 = vsel %vm460, %v2151, 0
    %2158 = vmatprep.subr.bf16.mxu0 0
    %2159 = vmatpush1.bf16.msra.mxu0 0
    %2160 = vmatprep.subr.bf16.mxu0 0
    %2161 = vmatpush1.bf16.msra.mxu0 0
    %2162 = vmatprep.subr.bf16.mxu0 0
    %2163 = vmatpush1.bf16.msra.mxu0 0
    %2164 = vmatprep.subr.bf16.mxu0 0
    %2165 = vmatpush1.bf16.msra.mxu0 0
    %2166 = vmatprep.subr.bf16.mxu0 0
    %2167 = vmatpush1.bf16.msra.mxu0 0
    %2168 = vmatprep.subr.bf16.mxu0 0
    %2169 = vmatpush1.bf16.msra.mxu0 0
    %2170 = vmatprep.subr.bf16.mxu0 0
    %2171 = vmatpush1.bf16.msra.mxu0 0
    %2172 = vmatprep.subr.bf16.mxu0 0
    %2173 = vmatpush1.bf16.msra.mxu0 %v2156
    %2174 = vmatprep.subr.bf16.mxu0 0
    %2175 = vmatpush2.bf16.msra.mxu0 0
    %2176 = vmatprep.subr.bf16.mxu0 0
    %2177 = vmatpush2.bf16.msra.mxu0 0
    %2178 = vmatprep.subr.bf16.mxu0 0
    %2179 = vmatpush2.bf16.msra.mxu0 0
    %2180 = vmatprep.subr.bf16.mxu0 0
    %2181 = vmatpush2.bf16.msra.mxu0 0
    %2182 = vmatprep.subr.bf16.mxu0 0
    %2183 = vmatpush2.bf16.msra.mxu0 0
    %2184 = vmatprep.subr.bf16.mxu0 0
    %2185 = vmatpush2.bf16.msra.mxu0 0
    %2186 = vmatprep.subr.bf16.mxu0 0
    %2187 = vmatpush2.bf16.msra.mxu0 0
    %2188 = vmatprep.subr.bf16.mxu0 0
    %2189 = vmatpush2.bf16.msra.mxu0 0
    %2190 = vmatprep.mubr.bf16.mxu0 0
    %2191 = vmatmul.mubr.bf16.gmra.mxu0 %v2153
    %v2192 = vpop.f32.mrf.mxu0
    %v2193 = vadd.f32 0.0, %v2192
    %v2194 = vpop.f32.mrf.mxu0
    %v2195 = vpop.f32.mrf.mxu0
    %v2196 = vpop.f32.mrf.mxu0
    %2197 = vdwg.mxu0
    %2199 = vrot.lane.b32.xlu0 %v1810, 112
    %v2200 = vpop.permute.xlu0 %2199
    %v2202 = vsel %vm432, %v2148, 0
    %v2205 = vsel %vm460, %v2200, 0
    %2207 = vmatprep.subr.bf16.mxu0 0
    %2208 = vmatpush1.bf16.msra.mxu0 0
    %2209 = vmatprep.subr.bf16.mxu0 0
    %2210 = vmatpush1.bf16.msra.mxu0 0
    %2211 = vmatprep.subr.bf16.mxu0 0
    %2212 = vmatpush1.bf16.msra.mxu0 0
    %2213 = vmatprep.subr.bf16.mxu0 0
    %2214 = vmatpush1.bf16.msra.mxu0 0
    %2215 = vmatprep.subr.bf16.mxu0 0
    %2216 = vmatpush1.bf16.msra.mxu0 0
    %2217 = vmatprep.subr.bf16.mxu0 0
    %2218 = vmatpush1.bf16.msra.mxu0 0
    %2219 = vmatprep.subr.bf16.mxu0 0
    %2220 = vmatpush1.bf16.msra.mxu0 0
    %2221 = vmatprep.subr.bf16.mxu0 0
    %2222 = vmatpush1.bf16.msra.mxu0 %v2205
    %2223 = vmatprep.subr.bf16.mxu0 0
    %2224 = vmatpush2.bf16.msra.mxu0 0
    %2225 = vmatprep.subr.bf16.mxu0 0
    %2226 = vmatpush2.bf16.msra.mxu0 0
    %2227 = vmatprep.subr.bf16.mxu0 0
    %2228 = vmatpush2.bf16.msra.mxu0 0
    %2229 = vmatprep.subr.bf16.mxu0 0
    %2230 = vmatpush2.bf16.msra.mxu0 0
    %2231 = vmatprep.subr.bf16.mxu0 0
    %2232 = vmatpush2.bf16.msra.mxu0 0
    %2233 = vmatprep.subr.bf16.mxu0 0
    %2234 = vmatpush2.bf16.msra.mxu0 0
    %2235 = vmatprep.subr.bf16.mxu0 0
    %2236 = vmatpush2.bf16.msra.mxu0 0
    %2237 = vmatprep.subr.bf16.mxu0 0
    %2238 = vmatpush2.bf16.msra.mxu0 0
    %2239 = vmatprep.mubr.bf16.mxu0 0
    %2240 = vmatmul.mubr.bf16.gmra.mxu0 %v2202
    %v2241 = vpop.f32.mrf.mxu0
    %v2242 = vadd.f32 0.0, %v2241
    %v2243 = vpop.f32.mrf.mxu0
    %v2244 = vpop.f32.mrf.mxu0
    %v2245 = vpop.f32.mrf.mxu0
    %2246 = vdwg.mxu0
    %2247 = vrot.lane.b32.xlu0 %v1807, 96
    %v2248 = vpop.permute.xlu0 %2247
    %2249 = vrot.lane.b32.xlu0 %v1807, 32
    %v2250 = vpop.permute.xlu0 %2249
    %v2252 = vsel %vm336, %v2248, 0
    %v2255 = vsel %vm336, %v2250, 0
    %2257 = vmatprep.subr.bf16.mxu0 0
    %2258 = vmatpush1.bf16.xpose.msra.mxu0 0
    %2259 = vmatprep.subr.bf16.mxu0 0
    %2260 = vmatpush1.bf16.xpose.msra.mxu0 0
    %2261 = vmatprep.subr.bf16.mxu0 0
    %2262 = vmatpush1.bf16.xpose.msra.mxu0 0
    %2263 = vmatprep.subr.bf16.mxu0 0
    %2264 = vmatpush1.bf16.xpose.msra.mxu0 0
    %2265 = vmatprep.subr.bf16.mxu0 0
    %2266 = vmatpush1.bf16.xpose.msra.mxu0 0
    %2267 = vmatprep.subr.bf16.mxu0 0
    %2268 = vmatpush1.bf16.xpose.msra.mxu0 0
    %2269 = vmatprep.subr.bf16.mxu0 0
    %2270 = vmatpush1.bf16.xpose.msra.mxu0 0
    %2271 = vmatprep.subr.bf16.mxu0 0
    %2272 = vmatpush1.bf16.xpose.msra.mxu0 %v2255
    %2273 = vmatprep.subr.bf16.mxu0 0
    %2274 = vmatpush2.bf16.xpose.msra.mxu0 0
    %2275 = vmatprep.subr.bf16.mxu0 0
    %2276 = vmatpush2.bf16.xpose.msra.mxu0 0
    %2277 = vmatprep.subr.bf16.mxu0 0
    %2278 = vmatpush2.bf16.xpose.msra.mxu0 0
    %2279 = vmatprep.subr.bf16.mxu0 0
    %2280 = vmatpush2.bf16.xpose.msra.mxu0 0
    %2281 = vmatprep.subr.bf16.mxu0 0
    %2282 = vmatpush2.bf16.xpose.msra.mxu0 0
    %2283 = vmatprep.subr.bf16.mxu0 0
    %2284 = vmatpush2.bf16.xpose.msra.mxu0 0
    %2285 = vmatprep.subr.bf16.mxu0 0
    %2286 = vmatpush2.bf16.xpose.msra.mxu0 0
    %2287 = vmatprep.subr.bf16.mxu0 0
    %2288 = vmatpush2.bf16.xpose.msra.mxu0 0
    %2289 = vmatprep.mubr.bf16.mxu0 0
    %2290 = vmatmul.mubr.bf16.gmra.mxu0 %v2252
    %v2291 = vpop.f32.mrf.mxu0
    %v2292 = vadd.f32 %v187, %v2291
    %v2293 = vpop.f32.mrf.mxu0
    %v2294 = vpop.f32.mrf.mxu0
    %v2295 = vpop.f32.mrf.mxu0
    %2296 = vdwg.mxu0
    %2297 = vrot.lane.b32.xlu0 %v1808, 96
    %v2298 = vpop.permute.xlu0 %2297
    %2299 = vrot.lane.b32.xlu0 %v1808, 32
    %v2300 = vpop.permute.xlu0 %2299
    %v2302 = vsel %vm336, %v2298, 0
    %v2305 = vsel %vm336, %v2300, 0
    %2307 = vmatprep.subr.bf16.mxu0 0
    %2308 = vmatpush1.bf16.xpose.msra.mxu0 0
    %2309 = vmatprep.subr.bf16.mxu0 0
    %2310 = vmatpush1.bf16.xpose.msra.mxu0 0
    %2311 = vmatprep.subr.bf16.mxu0 0
    %2312 = vmatpush1.bf16.xpose.msra.mxu0 0
    %2313 = vmatprep.subr.bf16.mxu0 0
    %2314 = vmatpush1.bf16.xpose.msra.mxu0 0
    %2315 = vmatprep.subr.bf16.mxu0 0
    %2316 = vmatpush1.bf16.xpose.msra.mxu0 0
    %2317 = vmatprep.subr.bf16.mxu0 0
    %2318 = vmatpush1.bf16.xpose.msra.mxu0 0
    %2319 = vmatprep.subr.bf16.mxu0 0
    %2320 = vmatpush1.bf16.xpose.msra.mxu0 0
    %2321 = vmatprep.subr.bf16.mxu0 0
    %2322 = vmatpush1.bf16.xpose.msra.mxu0 %v2305
    %2323 = vmatprep.subr.bf16.mxu0 0
    %2324 = vmatpush2.bf16.xpose.msra.mxu0 0
    %2325 = vmatprep.subr.bf16.mxu0 0
    %2326 = vmatpush2.bf16.xpose.msra.mxu0 0
    %2327 = vmatprep.subr.bf16.mxu0 0
    %2328 = vmatpush2.bf16.xpose.msra.mxu0 0
    %2329 = vmatprep.subr.bf16.mxu0 0
    %2330 = vmatpush2.bf16.xpose.msra.mxu0 0
    %2331 = vmatprep.subr.bf16.mxu0 0
    %2332 = vmatpush2.bf16.xpose.msra.mxu0 0
    %2333 = vmatprep.subr.bf16.mxu0 0
    %2334 = vmatpush2.bf16.xpose.msra.mxu0 0
    %2335 = vmatprep.subr.bf16.mxu0 0
    %2336 = vmatpush2.bf16.xpose.msra.mxu0 0
    %2337 = vmatprep.subr.bf16.mxu0 0
    %2338 = vmatpush2.bf16.xpose.msra.mxu0 0
    %2339 = vmatprep.mubr.bf16.mxu0 0
    %2340 = vmatmul.mubr.bf16.gmra.mxu0 %v2302
    %v2341 = vpop.f32.mrf.mxu0
    %v2342 = vadd.f32 %v187, %v2341
    %v2343 = vpop.f32.mrf.mxu0
    %v2344 = vpop.f32.mrf.mxu0
    %v2345 = vpop.f32.mrf.mxu0
    %2346 = vdwg.mxu0
    %v2347 = vsel %vm432, %v2292, -inf
    %2348 = vmax.xlane.f32.xlu0 %v2347
    %v2349 = vpop.xlane.xlu0 %2348
    %v2350 = vsel %vm432, %v2342, -inf
    %2351 = vmax.xlane.f32.xlu0 %v2350
    %v2352 = vpop.xlane.xlu0 %2351
    %v2353 = vsub.f32 %v2292, %v2349
    %v2354 = vsub.f32 %v2342, %v2352
    %v2355 = vmul.f32 %v2353, 1.442695
    %v2356 = vpow.pop %v2355
    %v2357 = vmul.f32 %v2354, 1.442695
    %v2358 = vpow.pop %v2357
    %v2359 = vsel %vm432, %v2356, 0.0
    %2360 = vadd.xlane.f32.xlu0 %v2359
    %v2361 = vpop.xlane.xlu0 %2360
    %v2362 = vsel %vm432, %v2358, 0.0
    %2363 = vadd.xlane.f32.xlu0 %v2362
    %v2364 = vpop.xlane.xlu0 %2363
    %v2365 = vrcp.pop %v2361
    %v2366 = vmul.f32 %v2356, %v2365
    %v2367 = vrcp.pop %v2364
    %v2368 = vmul.f32 %v2358, %v2367
    %v2369 = vpack.c.bf16 %v2366, %v2366
    %v2370 = vpack.c.bf16 %v2368, %v2368
    %2371 = vrot.lane.b32.xlu0 %v1809, 96
    %v2372 = vpop.permute.xlu0 %2371
    %v2374 = vsel %vm432, %v2369, 0
    %v2377 = vsel %vm460, %v2372, 0
    %2379 = vmatprep.subr.bf16.mxu0 0
    %2380 = vmatpush1.bf16.msra.mxu0 0
    %2381 = vmatprep.subr.bf16.mxu0 0
    %2382 = vmatpush1.bf16.msra.mxu0 0
    %2383 = vmatprep.subr.bf16.mxu0 0
    %2384 = vmatpush1.bf16.msra.mxu0 0
    %2385 = vmatprep.subr.bf16.mxu0 0
    %2386 = vmatpush1.bf16.msra.mxu0 0
    %2387 = vmatprep.subr.bf16.mxu0 0
    %2388 = vmatpush1.bf16.msra.mxu0 0
    %2389 = vmatprep.subr.bf16.mxu0 0
    %2390 = vmatpush1.bf16.msra.mxu0 0
    %2391 = vmatprep.subr.bf16.mxu0 0
    %2392 = vmatpush1.bf16.msra.mxu0 0
    %2393 = vmatprep.subr.bf16.mxu0 0
    %2394 = vmatpush1.bf16.msra.mxu0 %v2377
    %2395 = vmatprep.subr.bf16.mxu0 0
    %2396 = vmatpush2.bf16.msra.mxu0 0
    %2397 = vmatprep.subr.bf16.mxu0 0
    %2398 = vmatpush2.bf16.msra.mxu0 0
    %2399 = vmatprep.subr.bf16.mxu0 0
    %2400 = vmatpush2.bf16.msra.mxu0 0
    %2401 = vmatprep.subr.bf16.mxu0 0
    %2402 = vmatpush2.bf16.msra.mxu0 0
    %2403 = vmatprep.subr.bf16.mxu0 0
    %2404 = vmatpush2.bf16.msra.mxu0 0
    %2405 = vmatprep.subr.bf16.mxu0 0
    %2406 = vmatpush2.bf16.msra.mxu0 0
    %2407 = vmatprep.subr.bf16.mxu0 0
    %2408 = vmatpush2.bf16.msra.mxu0 0
    %2409 = vmatprep.subr.bf16.mxu0 0
    %2410 = vmatpush2.bf16.msra.mxu0 0
    %2411 = vmatprep.mubr.bf16.mxu0 0
    %2412 = vmatmul.mubr.bf16.gmra.mxu0 %v2374
    %v2413 = vpop.f32.mrf.mxu0
    %v2414 = vadd.f32 0.0, %v2413
    %v2415 = vpop.f32.mrf.mxu0
    %v2416 = vpop.f32.mrf.mxu0
    %v2417 = vpop.f32.mrf.mxu0
    %2418 = vdwg.mxu0
    %2419 = vrot.lane.b32.xlu0 %v1810, 96
    %v2420 = vpop.permute.xlu0 %2419
    %v2422 = vsel %vm432, %v2370, 0
    %v2425 = vsel %vm460, %v2420, 0
    %2427 = vmatprep.subr.bf16.mxu0 0
    %2428 = vmatpush1.bf16.msra.mxu0 0
    %2429 = vmatprep.subr.bf16.mxu0 0
    %2430 = vmatpush1.bf16.msra.mxu0 0
    %2431 = vmatprep.subr.bf16.mxu0 0
    %2432 = vmatpush1.bf16.msra.mxu0 0
    %2433 = vmatprep.subr.bf16.mxu0 0
    %2434 = vmatpush1.bf16.msra.mxu0 0
    %2435 = vmatprep.subr.bf16.mxu0 0
    %2436 = vmatpush1.bf16.msra.mxu0 0
    %2437 = vmatprep.subr.bf16.mxu0 0
    %2438 = vmatpush1.bf16.msra.mxu0 0
    %2439 = vmatprep.subr.bf16.mxu0 0
    %2440 = vmatpush1.bf16.msra.mxu0 0
    %2441 = vmatprep.subr.bf16.mxu0 0
    %2442 = vmatpush1.bf16.msra.mxu0 %v2425
    %2443 = vmatprep.subr.bf16.mxu0 0
    %2444 = vmatpush2.bf16.msra.mxu0 0
    %2445 = vmatprep.subr.bf16.mxu0 0
    %2446 = vmatpush2.bf16.msra.mxu0 0
    %2447 = vmatprep.subr.bf16.mxu0 0
    %2448 = vmatpush2.bf16.msra.mxu0 0
    %2449 = vmatprep.subr.bf16.mxu0 0
    %2450 = vmatpush2.bf16.msra.mxu0 0
    %2451 = vmatprep.subr.bf16.mxu0 0
    %2452 = vmatpush2.bf16.msra.mxu0 0
    %2453 = vmatprep.subr.bf16.mxu0 0
    %2454 = vmatpush2.bf16.msra.mxu0 0
    %2455 = vmatprep.subr.bf16.mxu0 0
    %2456 = vmatpush2.bf16.msra.mxu0 0
    %2457 = vmatprep.subr.bf16.mxu0 0
    %2458 = vmatpush2.bf16.msra.mxu0 0
    %2459 = vmatprep.mubr.bf16.mxu0 0
    %2460 = vmatmul.mubr.bf16.gmra.mxu0 %v2422
    %v2461 = vpop.f32.mrf.mxu0
    %v2462 = vadd.f32 0.0, %v2461
    %v2463 = vpop.f32.mrf.mxu0
    %v2464 = vpop.f32.mrf.mxu0
    %v2465 = vpop.f32.mrf.mxu0
    %2466 = vdwg.mxu0
    %2467 = vrot.lane.b32.xlu0 %v1807, 80
    %v2468 = vpop.permute.xlu0 %2467
    %2469 = vrot.lane.b32.xlu0 %v1807, 16
    %v2470 = vpop.permute.xlu0 %2469
    %v2472 = vsel %vm336, %v2468, 0
    %v2475 = vsel %vm336, %v2470, 0
    %2477 = vmatprep.subr.bf16.mxu0 0
    %2478 = vmatpush1.bf16.xpose.msra.mxu0 0
    %2479 = vmatprep.subr.bf16.mxu0 0
    %2480 = vmatpush1.bf16.xpose.msra.mxu0 0
    %2481 = vmatprep.subr.bf16.mxu0 0
    %2482 = vmatpush1.bf16.xpose.msra.mxu0 0
    %2483 = vmatprep.subr.bf16.mxu0 0
    %2484 = vmatpush1.bf16.xpose.msra.mxu0 0
    %2485 = vmatprep.subr.bf16.mxu0 0
    %2486 = vmatpush1.bf16.xpose.msra.mxu0 0
    %2487 = vmatprep.subr.bf16.mxu0 0
    %2488 = vmatpush1.bf16.xpose.msra.mxu0 0
    %2489 = vmatprep.subr.bf16.mxu0 0
    %2490 = vmatpush1.bf16.xpose.msra.mxu0 0
    %2491 = vmatprep.subr.bf16.mxu0 0
    %2492 = vmatpush1.bf16.xpose.msra.mxu0 %v2475
    %2493 = vmatprep.subr.bf16.mxu0 0
    %2494 = vmatpush2.bf16.xpose.msra.mxu0 0
    %2495 = vmatprep.subr.bf16.mxu0 0
    %2496 = vmatpush2.bf16.xpose.msra.mxu0 0
    %2497 = vmatprep.subr.bf16.mxu0 0
    %2498 = vmatpush2.bf16.xpose.msra.mxu0 0
    %2499 = vmatprep.subr.bf16.mxu0 0
    %2500 = vmatpush2.bf16.xpose.msra.mxu0 0
    %2501 = vmatprep.subr.bf16.mxu0 0
    %2502 = vmatpush2.bf16.xpose.msra.mxu0 0
    %2503 = vmatprep.subr.bf16.mxu0 0
    %2504 = vmatpush2.bf16.xpose.msra.mxu0 0
    %2505 = vmatprep.subr.bf16.mxu0 0
    %2506 = vmatpush2.bf16.xpose.msra.mxu0 0
    %2507 = vmatprep.subr.bf16.mxu0 0
    %2508 = vmatpush2.bf16.xpose.msra.mxu0 0
    %2509 = vmatprep.mubr.bf16.mxu0 0
    %2510 = vmatmul.mubr.bf16.gmra.mxu0 %v2472
    %v2511 = vpop.f32.mrf.mxu0
    %v2512 = vadd.f32 %v187, %v2511
    %v2513 = vpop.f32.mrf.mxu0
    %v2514 = vpop.f32.mrf.mxu0
    %v2515 = vpop.f32.mrf.mxu0
    %2516 = vdwg.mxu0
    %2517 = vrot.lane.b32.xlu0 %v1808, 80
    %v2518 = vpop.permute.xlu0 %2517
    %2519 = vrot.lane.b32.xlu0 %v1808, 16
    %v2520 = vpop.permute.xlu0 %2519
    %v2522 = vsel %vm336, %v2518, 0
    %v2525 = vsel %vm336, %v2520, 0
    %2527 = vmatprep.subr.bf16.mxu0 0
    %2528 = vmatpush1.bf16.xpose.msra.mxu0 0
    %2529 = vmatprep.subr.bf16.mxu0 0
    %2530 = vmatpush1.bf16.xpose.msra.mxu0 0
    %2531 = vmatprep.subr.bf16.mxu0 0
    %2532 = vmatpush1.bf16.xpose.msra.mxu0 0
    %2533 = vmatprep.subr.bf16.mxu0 0
    %2534 = vmatpush1.bf16.xpose.msra.mxu0 0
    %2535 = vmatprep.subr.bf16.mxu0 0
    %2536 = vmatpush1.bf16.xpose.msra.mxu0 0
    %2537 = vmatprep.subr.bf16.mxu0 0
    %2538 = vmatpush1.bf16.xpose.msra.mxu0 0
    %2539 = vmatprep.subr.bf16.mxu0 0
    %2540 = vmatpush1.bf16.xpose.msra.mxu0 0
    %2541 = vmatprep.subr.bf16.mxu0 0
    %2542 = vmatpush1.bf16.xpose.msra.mxu0 %v2525
    %2543 = vmatprep.subr.bf16.mxu0 0
    %2544 = vmatpush2.bf16.xpose.msra.mxu0 0
    %2545 = vmatprep.subr.bf16.mxu0 0
    %2546 = vmatpush2.bf16.xpose.msra.mxu0 0
    %2547 = vmatprep.subr.bf16.mxu0 0
    %2548 = vmatpush2.bf16.xpose.msra.mxu0 0
    %2549 = vmatprep.subr.bf16.mxu0 0
    %2550 = vmatpush2.bf16.xpose.msra.mxu0 0
    %2551 = vmatprep.subr.bf16.mxu0 0
    %2552 = vmatpush2.bf16.xpose.msra.mxu0 0
    %2553 = vmatprep.subr.bf16.mxu0 0
    %2554 = vmatpush2.bf16.xpose.msra.mxu0 0
    %2555 = vmatprep.subr.bf16.mxu0 0
    %2556 = vmatpush2.bf16.xpose.msra.mxu0 0
    %2557 = vmatprep.subr.bf16.mxu0 0
    %2558 = vmatpush2.bf16.xpose.msra.mxu0 0
    %2559 = vmatprep.mubr.bf16.mxu0 0
    %2560 = vmatmul.mubr.bf16.gmra.mxu0 %v2522
    %v2561 = vpop.f32.mrf.mxu0
    %v2562 = vadd.f32 %v187, %v2561
    %v2563 = vpop.f32.mrf.mxu0
    %v2564 = vpop.f32.mrf.mxu0
    %v2565 = vpop.f32.mrf.mxu0
    %2566 = vdwg.mxu0
    %v2567 = vsel %vm432, %v2512, -inf
    %2568 = vmax.xlane.f32.xlu0 %v2567
    %v2569 = vpop.xlane.xlu0 %2568
    %v2570 = vsel %vm432, %v2562, -inf
    %2571 = vmax.xlane.f32.xlu0 %v2570
    %v2572 = vpop.xlane.xlu0 %2571
    %v2573 = vsub.f32 %v2512, %v2569
    %v2574 = vsub.f32 %v2562, %v2572
    %v2575 = vmul.f32 %v2573, 1.442695
    %v2576 = vpow.pop %v2575
    %v2577 = vmul.f32 %v2574, 1.442695
    %v2578 = vpow.pop %v2577
    %v2579 = vsel %vm432, %v2576, 0.0
    %2580 = vadd.xlane.f32.xlu0 %v2579
    %v2581 = vpop.xlane.xlu0 %2580
    %v2582 = vsel %vm432, %v2578, 0.0
    %2583 = vadd.xlane.f32.xlu0 %v2582
    %v2584 = vpop.xlane.xlu0 %2583
    %v2585 = vrcp.pop %v2581
    %v2586 = vmul.f32 %v2576, %v2585
    %v2587 = vrcp.pop %v2584
    %v2588 = vmul.f32 %v2578, %v2587
    %v2589 = vpack.c.bf16 %v2586, %v2586
    %v2590 = vpack.c.bf16 %v2588, %v2588
    %2591 = vrot.lane.b32.xlu0 %v1809, 80
    %v2592 = vpop.permute.xlu0 %2591
    %v2594 = vsel %vm432, %v2589, 0
    %v2597 = vsel %vm460, %v2592, 0
    %2599 = vmatprep.subr.bf16.mxu0 0
    %2600 = vmatpush1.bf16.msra.mxu0 0
    %2601 = vmatprep.subr.bf16.mxu0 0
    %2602 = vmatpush1.bf16.msra.mxu0 0
    %2603 = vmatprep.subr.bf16.mxu0 0
    %2604 = vmatpush1.bf16.msra.mxu0 0
    %2605 = vmatprep.subr.bf16.mxu0 0
    %2606 = vmatpush1.bf16.msra.mxu0 0
    %2607 = vmatprep.subr.bf16.mxu0 0
    %2608 = vmatpush1.bf16.msra.mxu0 0
    %2609 = vmatprep.subr.bf16.mxu0 0
    %2610 = vmatpush1.bf16.msra.mxu0 0
    %2611 = vmatprep.subr.bf16.mxu0 0
    %2612 = vmatpush1.bf16.msra.mxu0 0
    %2613 = vmatprep.subr.bf16.mxu0 0
    %2614 = vmatpush1.bf16.msra.mxu0 %v2597
    %2615 = vmatprep.subr.bf16.mxu0 0
    %2616 = vmatpush2.bf16.msra.mxu0 0
    %2617 = vmatprep.subr.bf16.mxu0 0
    %2618 = vmatpush2.bf16.msra.mxu0 0
    %2619 = vmatprep.subr.bf16.mxu0 0
    %2620 = vmatpush2.bf16.msra.mxu0 0
    %2621 = vmatprep.subr.bf16.mxu0 0
    %2622 = vmatpush2.bf16.msra.mxu0 0
    %2623 = vmatprep.subr.bf16.mxu0 0
    %2624 = vmatpush2.bf16.msra.mxu0 0
    %2625 = vmatprep.subr.bf16.mxu0 0
    %2626 = vmatpush2.bf16.msra.mxu0 0
    %2627 = vmatprep.subr.bf16.mxu0 0
    %2628 = vmatpush2.bf16.msra.mxu0 0
    %2629 = vmatprep.subr.bf16.mxu0 0
    %2630 = vmatpush2.bf16.msra.mxu0 0
    %2631 = vmatprep.mubr.bf16.mxu0 0
    %2632 = vmatmul.mubr.bf16.gmra.mxu0 %v2594
    %v2633 = vpop.f32.mrf.mxu0
    %v2634 = vadd.f32 0.0, %v2633
    %v2635 = vpop.f32.mrf.mxu0
    %v2636 = vpop.f32.mrf.mxu0
    %v2637 = vpop.f32.mrf.mxu0
    %2638 = vdwg.mxu0
    %2639 = vrot.lane.b32.xlu0 %v1810, 80
    %v2640 = vpop.permute.xlu0 %2639
    %v2642 = vsel %vm432, %v2590, 0
    %v2645 = vsel %vm460, %v2640, 0
    %2647 = vmatprep.subr.bf16.mxu0 0
    %2648 = vmatpush1.bf16.msra.mxu0 0
    %2649 = vmatprep.subr.bf16.mxu0 0
    %2650 = vmatpush1.bf16.msra.mxu0 0
    %2651 = vmatprep.subr.bf16.mxu0 0
    %2652 = vmatpush1.bf16.msra.mxu0 0
    %2653 = vmatprep.subr.bf16.mxu0 0
    %2654 = vmatpush1.bf16.msra.mxu0 0
    %2655 = vmatprep.subr.bf16.mxu0 0
    %2656 = vmatpush1.bf16.msra.mxu0 0
    %2657 = vmatprep.subr.bf16.mxu0 0
    %2658 = vmatpush1.bf16.msra.mxu0 0
    %2659 = vmatprep.subr.bf16.mxu0 0
    %2660 = vmatpush1.bf16.msra.mxu0 0
    %2661 = vmatprep.subr.bf16.mxu0 0
    %2662 = vmatpush1.bf16.msra.mxu0 %v2645
    %2663 = vmatprep.subr.bf16.mxu0 0
    %2664 = vmatpush2.bf16.msra.mxu0 0
    %2665 = vmatprep.subr.bf16.mxu0 0
    %2666 = vmatpush2.bf16.msra.mxu0 0
    %2667 = vmatprep.subr.bf16.mxu0 0
    %2668 = vmatpush2.bf16.msra.mxu0 0
    %2669 = vmatprep.subr.bf16.mxu0 0
    %2670 = vmatpush2.bf16.msra.mxu0 0
    %2671 = vmatprep.subr.bf16.mxu0 0
    %2672 = vmatpush2.bf16.msra.mxu0 0
    %2673 = vmatprep.subr.bf16.mxu0 0
    %2674 = vmatpush2.bf16.msra.mxu0 0
    %2675 = vmatprep.subr.bf16.mxu0 0
    %2676 = vmatpush2.bf16.msra.mxu0 0
    %2677 = vmatprep.subr.bf16.mxu0 0
    %2678 = vmatpush2.bf16.msra.mxu0 0
    %2679 = vmatprep.mubr.bf16.mxu0 0
    %2680 = vmatmul.mubr.bf16.gmra.mxu0 %v2642
    %v2681 = vpop.f32.mrf.mxu0
    %v2682 = vadd.f32 0.0, %v2681
    %v2683 = vpop.f32.mrf.mxu0
    %v2684 = vpop.f32.mrf.mxu0
    %v2685 = vpop.f32.mrf.mxu0
    %2686 = vdwg.mxu0
    %2689 = vrot.lane.b32.xlu0 %v2193, 16
    %v2690 = vpop.permute.xlu0 %2689
    %2691 = vrot.lane.b32.xlu0 %v2242, 16
    %v2692 = vpop.permute.xlu0 %2691
    %2697 = vrot.lane.b32.xlu0 %v2414, 32
    %v2698 = vpop.permute.xlu0 %2697
    %2699 = vrot.lane.b32.xlu0 %v2462, 32
    %v2700 = vpop.permute.xlu0 %2699
    %2705 = vrot.lane.b32.xlu0 %v2634, 48
    %v2706 = vpop.permute.xlu0 %2705
    %2707 = vrot.lane.b32.xlu0 %v2682, 48
    %v2708 = vpop.permute.xlu0 %2707
    %v2711 = vsel %vm336, %v1974, %v2690
    %v2712 = vsel %vm336, %v2020, %v2692
    %v2713 = vsel %vm1238, %v2711, %v2698
    %v2714 = vsel %vm1238, %v2712, %v2700
    %v2715 = vsel %vm1241, %v2713, %v2706
    %v2716 = vsel %vm1241, %v2714, %v2708
    %v2717 = vpack.c.bf16 %v2716, %v2715
    %s2718 = scalar_lea.vmem %s6, 32
    %v2719 = vld [vmem:[%s2718] sm:$0xf]
    %v2720 = vld [vmem:[%s2718 + $0x4] sm:$0xf]
    %v2721 = vld [vmem:[%s2718 + $0x8] sm:$0xf]
    %v2722 = vld [vmem:[%s2718 + $0xc] sm:$0xf]
    %v2723 = vld [vmem:[%s2718 + $0x10] sm:$0xf]
    %v2724 = vld [vmem:[%s2718 + $0x14] sm:$0xf]
    %v2725 = vld [vmem:[%s2718 + $0x18] sm:$0xf]
    %v2726 = vld [vmem:[%s2718 + $0x1c] sm:$0xf]
    %s2727 = scalar_lea.vmem %s7, 1
    %v2728 = vld [vmem:[%s2727] sm:$0x1]
    %v2730 = vlaneseq
    %v2731 = vshrl.u32 %v2730, 7
    %v2732 = vsub.s32 0, %v2731
    %v2733 = vrot.slane %v2728, %v2732
    %v2743 = vunpack.c.l.b16 %v2719
    %v2744 = vunpack.c.l.b16 %v2720
    %v2745 = vunpack.c.l.b16 %v2721
    %v2746 = vunpack.c.l.b16 %v2722
    %v2747 = vunpack.c.l.b16 %v2723
    %v2748 = vunpack.c.l.b16 %v2724
    %v2749 = vunpack.c.l.b16 %v2725
    %v2750 = vunpack.c.l.b16 %v2726
    %v2751 = vpack.c.b16 %v2744, %v2743
    %v2752 = vpack.c.b16 %v2746, %v2745
    %v2753 = vpack.c.b16 %v2748, %v2747
    %v2754 = vpack.c.b16 %v2750, %v2749
    %v2760 = vsel %vm190, %v2717, 0
    %2762 = vmatprep.subr.bf16.mxu0 0
    %2763 = vmatpush1.bf16.msra.mxu0 0
    %2764 = vmatprep.subr.bf16.mxu0 0
    %2765 = vmatpush1.bf16.msra.mxu0 0
    %2766 = vmatprep.subr.bf16.mxu0 0
    %2767 = vmatpush1.bf16.msra.mxu0 0
    %2768 = vmatprep.subr.bf16.mxu0 0
    %2769 = vmatpush1.bf16.msra.mxu0 0
    %2770 = vmatprep.subr.bf16.mxu0 0
    %2771 = vmatpush1.bf16.msra.mxu0 %v2754
    %2772 = vmatprep.subr.bf16.mxu0 0
    %2773 = vmatpush1.bf16.msra.mxu0 %v2753
    %2774 = vmatprep.subr.bf16.mxu0 0
    %2775 = vmatpush1.bf16.msra.mxu0 %v2752
    %2776 = vmatprep.subr.bf16.mxu0 0
    %2777 = vmatpush1.bf16.msra.mxu0 %v2751
    %2778 = vmatprep.subr.bf16.mxu0 0
    %2779 = vmatpush2.bf16.msra.mxu0 0
    %2780 = vmatprep.subr.bf16.mxu0 0
    %2781 = vmatpush2.bf16.msra.mxu0 0
    %2782 = vmatprep.subr.bf16.mxu0 0
    %2783 = vmatpush2.bf16.msra.mxu0 0
    %2784 = vmatprep.subr.bf16.mxu0 0
    %2785 = vmatpush2.bf16.msra.mxu0 0
    %2786 = vmatprep.subr.bf16.mxu0 0
    %2787 = vmatpush2.bf16.msra.mxu0 0
    %2788 = vmatprep.subr.bf16.mxu0 0
    %2789 = vmatpush2.bf16.msra.mxu0 0
    %2790 = vmatprep.subr.bf16.mxu0 0
    %2791 = vmatpush2.bf16.msra.mxu0 0
    %2792 = vmatprep.subr.bf16.mxu0 0
    %2793 = vmatpush2.bf16.msra.mxu0 0
    %2794 = vmatprep.mubr.bf16.mxu0 0
    %2795 = vmatmul.mubr.bf16.gmra.mxu0 %v2760
    %v2796 = vpop.f32.mrf.mxu0
    %v2797 = vadd.f32 %v2733, %v2796
    %v2798 = vpop.f32.mrf.mxu0
    %v2799 = vpop.f32.mrf.mxu0
    %v2800 = vadd.f32 %v2733, %v2799
    %v2801 = vpop.f32.mrf.mxu0
    %2802 = vdwg.mxu0
    %v2803 = vadd.f32 %v1663, %v2797
    %v2804 = vadd.f32 %v1664, %v2800
    %s2805 = scalar_lea.vmem %s8, 1
    %v2806 = vld [vmem:[%s2805] sm:$0x1]
    %s2807 = scalar_lea.vmem %s9, 1
    %v2808 = vld [vmem:[%s2807] sm:$0x1]
    %v2809 = vsel %vm190, %v2803, 0.0
    %2810 = vadd.xlane.f32.xlu0 %v2809
    %v2811 = vpop.xlane.xlu0 %2810
    %v2812 = vsel %vm190, %v2804, 0.0
    %2813 = vadd.xlane.f32.xlu0 %v2812
    %v2814 = vpop.xlane.xlu0 %2813
    %v2815 = vmul.f32 %v2811, %v197
    %v2816 = vmul.f32 %v2814, %v197
    %v2817 = vsub.f32 %v2803, %v2815
    %v2818 = vsub.f32 %v2804, %v2816
    %v2819 = vmul.f32 %v2817, %v2817
    %v2820 = vmul.f32 %v2818, %v2818
    %v2821 = vsel %vm190, %v2819, 0.0
    %2822 = vadd.xlane.f32.xlu0 %v2821
    %v2823 = vpop.xlane.xlu0 %2822
    %v2824 = vsel %vm190, %v2820, 0.0
    %2825 = vadd.xlane.f32.xlu0 %v2824
    %v2826 = vpop.xlane.xlu0 %2825
    %v2827 = vmul.f32 %v2823, %v197
    %v2828 = vmul.f32 %v2826, %v197
    %v2829 = vadd.f32 %v2827, 1e-05
    %v2830 = vadd.f32 %v2828, 1e-05
    %v2831 = vrsqrt.pop %v2829
    %v2832 = vrsqrt.pop %v2830
    %v2833 = vmul.f32 %v2817, %v2831
    %v2834 = vmul.f32 %v2818, %v2832
    %v2836 = vlaneseq
    %v2837 = vshrl.u32 %v2836, 7
    %v2838 = vsub.s32 0, %v2837
    %v2839 = vrot.slane %v2806, %v2838
    %v2841 = vmul.f32 %v2833, %v2839
    %v2842 = vmul.f32 %v2834, %v2839
    %v2844 = vlaneseq
    %v2845 = vshrl.u32 %v2844, 7
    %v2846 = vsub.s32 0, %v2845
    %v2847 = vrot.slane %v2808, %v2846
    %v2849 = vadd.f32 %v2841, %v2847
    %v2850 = vadd.f32 %v2842, %v2847
    %v2851 = vpack.c.bf16 %v2850, %v2849
    %s2852 = scalar_lea.vmem %s10, 64
    %v2853 = vld [vmem:[%s2852] sm:$0xff]
    %v2854 = vld [vmem:[%s2852 + $0x8] sm:$0xff]
    %v2855 = vld [vmem:[%s2852 + $0x10] sm:$0xff]
    %v2856 = vld [vmem:[%s2852 + $0x18] sm:$0xff]
    %v2857 = vld [vmem:[%s2852 + $0x20] sm:$0xff]
    %v2858 = vld [vmem:[%s2852 + $0x28] sm:$0xff]
    %v2859 = vld [vmem:[%s2852 + $0x30] sm:$0xff]
    %v2860 = vld [vmem:[%s2852 + $0x38] sm:$0xff]
    %s2861 = scalar_lea.vmem %s11, 2
    %v2862 = vld [vmem:[%s2861] sm:$0x3]
    %v2864 = vlaneseq
    %v2865 = vshrl.u32 %v2864, 7
    %v2866 = vsub.s32 0, %v2865
    %v2867 = vrot.slane %v2862, %v2866
    %v2868 = vlaneseq
    %v2869 = vshrl.u32 %v2868, 7
    %v2870 = vsub.s32 1, %v2869
    %v2871 = vrot.slane %v2862, %v2870
    %v2882 = vunpack.c.l.b16 %v2853
    %v2883 = vunpack.c.h.b16 %v2853
    %v2884 = vunpack.c.l.b16 %v2854
    %v2885 = vunpack.c.h.b16 %v2854
    %v2886 = vunpack.c.l.b16 %v2855
    %v2887 = vunpack.c.h.b16 %v2855
    %v2888 = vunpack.c.l.b16 %v2856
    %v2889 = vunpack.c.h.b16 %v2856
    %v2890 = vunpack.c.l.b16 %v2857
    %v2891 = vunpack.c.h.b16 %v2857
    %v2892 = vunpack.c.l.b16 %v2858
    %v2893 = vunpack.c.h.b16 %v2858
    %v2894 = vunpack.c.l.b16 %v2859
    %v2895 = vunpack.c.h.b16 %v2859
    %v2896 = vunpack.c.l.b16 %v2860
    %v2897 = vunpack.c.h.b16 %v2860
    %v2898 = vpack.c.b16 %v2884, %v2882
    %v2899 = vpack.c.b16 %v2885, %v2883
    %v2900 = vpack.c.b16 %v2888, %v2886
    %v2901 = vpack.c.b16 %v2889, %v2887
    %v2902 = vpack.c.b16 %v2892, %v2890
    %v2903 = vpack.c.b16 %v2893, %v2891
    %v2904 = vpack.c.b16 %v2896, %v2894
    %v2905 = vpack.c.b16 %v2897, %v2895
    %v2915 = vsel %vm190, %v2851, 0
    %2917 = vmatprep.subr.bf16.mxu0 0
    %2918 = vmatpush1.bf16.msra.mxu0 0
    %2919 = vmatprep.subr.bf16.mxu0 0
    %2920 = vmatpush1.bf16.msra.mxu0 0
    %2921 = vmatprep.subr.bf16.mxu0 0
    %2922 = vmatpush1.bf16.msra.mxu0 0
    %2923 = vmatprep.subr.bf16.mxu0 0
    %2924 = vmatpush1.bf16.msra.mxu0 0
    %2925 = vmatprep.subr.bf16.mxu0 %v2905
    %2926 = vmatpush1.bf16.msra.mxu0 %v2904
    %2927 = vmatprep.subr.bf16.mxu0 %v2903
    %2928 = vmatpush1.bf16.msra.mxu0 %v2902
    %2929 = vmatprep.subr.bf16.mxu0 %v2901
    %2930 = vmatpush1.bf16.msra.mxu0 %v2900
    %2931 = vmatprep.subr.bf16.mxu0 %v2899
    %2932 = vmatpush1.bf16.msra.mxu0 %v2898
    %2933 = vmatprep.subr.bf16.mxu0 0
    %2934 = vmatpush2.bf16.msra.mxu0 0
    %2935 = vmatprep.subr.bf16.mxu0 0
    %2936 = vmatpush2.bf16.msra.mxu0 0
    %2937 = vmatprep.subr.bf16.mxu0 0
    %2938 = vmatpush2.bf16.msra.mxu0 0
    %2939 = vmatprep.subr.bf16.mxu0 0
    %2940 = vmatpush2.bf16.msra.mxu0 0
    %2941 = vmatprep.subr.bf16.mxu0 0
    %2942 = vmatpush2.bf16.msra.mxu0 0
    %2943 = vmatprep.subr.bf16.mxu0 0
    %2944 = vmatpush2.bf16.msra.mxu0 0
    %2945 = vmatprep.subr.bf16.mxu0 0
    %2946 = vmatpush2.bf16.msra.mxu0 0
    %2947 = vmatprep.subr.bf16.mxu0 0
    %2948 = vmatpush2.bf16.msra.mxu0 0
    %2949 = vmatprep.mubr.bf16.mxu0 0
    %2950 = vmatmul.mubr.bf16.gmra.mxu0 %v2915
    %v2951 = vpop.f32.mrf.mxu0
    %v2952 = vadd.f32 %v2867, %v2951
    %v2953 = vpop.f32.mrf.mxu0
    %v2954 = vadd.f32 %v2871, %v2953
    %v2955 = vpop.f32.mrf.mxu0
    %v2956 = vadd.f32 %v2867, %v2955
    %v2957 = vpop.f32.mrf.mxu0
    %v2958 = vadd.f32 %v2871, %v2957
    %2959 = vdwg.mxu0
    %v2960 = vmax.f32 %v2952, 0.0
    %v2961 = vmax.f32 %v2954, 0.0
    %v2962 = vmax.f32 %v2956, 0.0
    %v2963 = vmax.f32 %v2958, 0.0
    %v2964 = vpack.c.bf16 %v2962, %v2960
    %v2965 = vpack.c.bf16 %v2963, %v2961
    %s2966 = scalar_lea.vmem %s12, 128
    %v2967 = vld [vmem:[%s2966] sm:$0xf]
    %v2968 = vld [vmem:[%s2966 + $0x4] sm:$0xf]
    %v2969 = vld [vmem:[%s2966 + $0x8] sm:$0xf]
    %v2970 = vld [vmem:[%s2966 + $0xc] sm:$0xf]
    %v2971 = vld [vmem:[%s2966 + $0x10] sm:$0xf]
    %v2972 = vld [vmem:[%s2966 + $0x14] sm:$0xf]
    %v2973 = vld [vmem:[%s2966 + $0x18] sm:$0xf]
    %v2974 = vld [vmem:[%s2966 + $0x1c] sm:$0xf]
    %v2975 = vld [vmem:[%s2966 + $0x20] sm:$0xf]
    %v2976 = vld [vmem:[%s2966 + $0x24] sm:$0xf]
    %v2977 = vld [vmem:[%s2966 + $0x28] sm:$0xf]
    %v2978 = vld [vmem:[%s2966 + $0x2c] sm:$0xf]
    %v2979 = vld [vmem:[%s2966 + $0x30] sm:$0xf]
    %v2980 = vld [vmem:[%s2966 + $0x34] sm:$0xf]
    %v2981 = vld [vmem:[%s2966 + $0x38] sm:$0xf]
    %v2982 = vld [vmem:[%s2966 + $0x3c] sm:$0xf]
    %v2983 = vld [vmem:[%s2966 + $0x40] sm:$0xf]
    %v2984 = vld [vmem:[%s2966 + $0x44] sm:$0xf]
    %v2985 = vld [vmem:[%s2966 + $0x48] sm:$0xf]
    %v2986 = vld [vmem:[%s2966 + $0x4c] sm:$0xf]
    %v2987 = vld [vmem:[%s2966 + $0x50] sm:$0xf]
    %v2988 = vld [vmem:[%s2966 + $0x54] sm:$0xf]
    %v2989 = vld [vmem:[%s2966 + $0x58] sm:$0xf]
    %v2990 = vld [vmem:[%s2966 + $0x5c] sm:$0xf]
    %v2991 = vld [vmem:[%s2966 + $0x60] sm:$0xf]
    %v2992 = vld [vmem:[%s2966 + $0x64] sm:$0xf]
    %v2993 = vld [vmem:[%s2966 + $0x68] sm:$0xf]
    %v2994 = vld [vmem:[%s2966 + $0x6c] sm:$0xf]
    %v2995 = vld [vmem:[%s2966 + $0x70] sm:$0xf]
    %v2996 = vld [vmem:[%s2966 + $0x74] sm:$0xf]
    %v2997 = vld [vmem:[%s2966 + $0x78] sm:$0xf]
    %v2998 = vld [vmem:[%s2966 + $0x7c] sm:$0xf]
    %s2999 = scalar_lea.vmem %s13, 1
    %v3000 = vld [vmem:[%s2999] sm:$0x1]
    %v3002 = vlaneseq
    %v3003 = vshrl.u32 %v3002, 7
    %v3004 = vsub.s32 0, %v3003
    %v3005 = vrot.slane %v3000, %v3004
    %v3039 = vunpack.c.l.b16 %v2967
    %v3040 = vunpack.c.l.b16 %v2968
    %v3041 = vunpack.c.l.b16 %v2969
    %v3042 = vunpack.c.l.b16 %v2970
    %v3043 = vunpack.c.l.b16 %v2971
    %v3044 = vunpack.c.l.b16 %v2972
    %v3045 = vunpack.c.l.b16 %v2973
    %v3046 = vunpack.c.l.b16 %v2974
    %v3047 = vunpack.c.l.b16 %v2975
    %v3048 = vunpack.c.l.b16 %v2976
    %v3049 = vunpack.c.l.b16 %v2977
    %v3050 = vunpack.c.l.b16 %v2978
    %v3051 = vunpack.c.l.b16 %v2979
    %v3052 = vunpack.c.l.b16 %v2980
    %v3053 = vunpack.c.l.b16 %v2981
    %v3054 = vunpack.c.l.b16 %v2982
    %v3055 = vunpack.c.l.b16 %v2983
    %v3056 = vunpack.c.l.b16 %v2984
    %v3057 = vunpack.c.l.b16 %v2985
    %v3058 = vunpack.c.l.b16 %v2986
    %v3059 = vunpack.c.l.b16 %v2987
    %v3060 = vunpack.c.l.b16 %v2988
    %v3061 = vunpack.c.l.b16 %v2989
    %v3062 = vunpack.c.l.b16 %v2990
    %v3063 = vunpack.c.l.b16 %v2991
    %v3064 = vunpack.c.l.b16 %v2992
    %v3065 = vunpack.c.l.b16 %v2993
    %v3066 = vunpack.c.l.b16 %v2994
    %v3067 = vunpack.c.l.b16 %v2995
    %v3068 = vunpack.c.l.b16 %v2996
    %v3069 = vunpack.c.l.b16 %v2997
    %v3070 = vunpack.c.l.b16 %v2998
    %v3071 = vpack.c.b16 %v3040, %v3039
    %v3072 = vpack.c.b16 %v3042, %v3041
    %v3073 = vpack.c.b16 %v3044, %v3043
    %v3074 = vpack.c.b16 %v3046, %v3045
    %v3075 = vpack.c.b16 %v3048, %v3047
    %v3076 = vpack.c.b16 %v3050, %v3049
    %v3077 = vpack.c.b16 %v3052, %v3051
    %v3078 = vpack.c.b16 %v3054, %v3053
    %v3079 = vpack.c.b16 %v3056, %v3055
    %v3080 = vpack.c.b16 %v3058, %v3057
    %v3081 = vpack.c.b16 %v3060, %v3059
    %v3082 = vpack.c.b16 %v3062, %v3061
    %v3083 = vpack.c.b16 %v3064, %v3063
    %v3084 = vpack.c.b16 %v3066, %v3065
    %v3085 = vpack.c.b16 %v3068, %v3067
    %v3086 = vpack.c.b16 %v3070, %v3069
    %3103 = vmatprep.subr.bf16.mxu0 0
    %3104 = vmatpush1.bf16.msra.mxu0 %v3078
    %3105 = vmatprep.subr.bf16.mxu0 0
    %3106 = vmatpush1.bf16.msra.mxu0 %v3077
    %3107 = vmatprep.subr.bf16.mxu0 0
    %3108 = vmatpush1.bf16.msra.mxu0 %v3076
    %3109 = vmatprep.subr.bf16.mxu0 0
    %3110 = vmatpush1.bf16.msra.mxu0 %v3075
    %3111 = vmatprep.subr.bf16.mxu0 0
    %3112 = vmatpush1.bf16.msra.mxu0 %v3074
    %3113 = vmatprep.subr.bf16.mxu0 0
    %3114 = vmatpush1.bf16.msra.mxu0 %v3073
    %3115 = vmatprep.subr.bf16.mxu0 0
    %3116 = vmatpush1.bf16.msra.mxu0 %v3072
    %3117 = vmatprep.subr.bf16.mxu0 0
    %3118 = vmatpush1.bf16.msra.mxu0 %v3071
    %3119 = vmatprep.subr.bf16.mxu0 0
    %3120 = vmatpush2.bf16.msra.mxu0 %v3086
    %3121 = vmatprep.subr.bf16.mxu0 0
    %3122 = vmatpush2.bf16.msra.mxu0 %v3085
    %3123 = vmatprep.subr.bf16.mxu0 0
    %3124 = vmatpush2.bf16.msra.mxu0 %v3084
    %3125 = vmatprep.subr.bf16.mxu0 0
    %3126 = vmatpush2.bf16.msra.mxu0 %v3083
    %3127 = vmatprep.subr.bf16.mxu0 0
    %3128 = vmatpush2.bf16.msra.mxu0 %v3082
    %3129 = vmatprep.subr.bf16.mxu0 0
    %3130 = vmatpush2.bf16.msra.mxu0 %v3081
    %3131 = vmatprep.subr.bf16.mxu0 0
    %3132 = vmatpush2.bf16.msra.mxu0 %v3080
    %3133 = vmatprep.subr.bf16.mxu0 0
    %3134 = vmatpush2.bf16.msra.mxu0 %v3079
    %3135 = vmatprep.mubr.bf16.mxu0 %v2965
    %3136 = vmatmul.mubr.bf16.gmra.mxu0 %v2964
    %v3137 = vpop.f32.mrf.mxu0
    %v3138 = vadd.f32 %v3005, %v3137
    %v3139 = vpop.f32.mrf.mxu0
    %v3140 = vpop.f32.mrf.mxu0
    %v3141 = vadd.f32 %v3005, %v3140
    %v3142 = vpop.f32.mrf.mxu0
    %3143 = vdwg.mxu0
    %v3144 = vadd.f32 %v2803, %v3138
    %v3145 = vadd.f32 %v2804, %v3141
    %s3146 = scalar_lea.vmem %s3, 2
    %v3147 = vld [vmem:[%s3146] sm:$0x1]
    %s3148 = scalar_lea.vmem %s4, 2
    %v3149 = vld [vmem:[%s3148] sm:$0x1]
    %v3150 = vsel %vm190, %v3144, 0.0
    %3151 = vadd.xlane.f32.xlu0 %v3150
    %v3152 = vpop.xlane.xlu0 %3151
    %v3153 = vsel %vm190, %v3145, 0.0
    %3154 = vadd.xlane.f32.xlu0 %v3153
    %v3155 = vpop.xlane.xlu0 %3154
    %v3156 = vmul.f32 %v3152, %v197
    %v3157 = vmul.f32 %v3155, %v197
    %v3158 = vsub.f32 %v3144, %v3156
    %v3159 = vsub.f32 %v3145, %v3157
    %v3160 = vmul.f32 %v3158, %v3158
    %v3161 = vmul.f32 %v3159, %v3159
    %v3162 = vsel %vm190, %v3160, 0.0
    %3163 = vadd.xlane.f32.xlu0 %v3162
    %v3164 = vpop.xlane.xlu0 %3163
    %v3165 = vsel %vm190, %v3161, 0.0
    %3166 = vadd.xlane.f32.xlu0 %v3165
    %v3167 = vpop.xlane.xlu0 %3166
    %v3168 = vmul.f32 %v3164, %v197
    %v3169 = vmul.f32 %v3167, %v197
    %v3170 = vadd.f32 %v3168, 1e-05
    %v3171 = vadd.f32 %v3169, 1e-05
    %v3172 = vrsqrt.pop %v3170
    %v3173 = vrsqrt.pop %v3171
    %v3174 = vmul.f32 %v3158, %v3172
    %v3175 = vmul.f32 %v3159, %v3173
    %v3177 = vlaneseq
    %v3178 = vshrl.u32 %v3177, 7
    %v3179 = vsub.s32 0, %v3178
    %v3180 = vrot.slane %v3147, %v3179
    %v3182 = vmul.f32 %v3174, %v3180
    %v3183 = vmul.f32 %v3175, %v3180
    %v3185 = vlaneseq
    %v3186 = vshrl.u32 %v3185, 7
    %v3187 = vsub.s32 0, %v3186
    %v3188 = vrot.slane %v3149, %v3187
    %v3190 = vadd.f32 %v3182, %v3188
    %v3191 = vadd.f32 %v3183, %v3188
    %v3192 = vpack.c.bf16 %v3191, %v3190
    %s3193 = scalar_lea.vmem %s5, 128
    %v3194 = vld [vmem:[%s3193] sm:$0xff]
    %v3195 = vld [vmem:[%s3193 + $0x8] sm:$0xff]
    %v3196 = vld [vmem:[%s3193 + $0x10] sm:$0xff]
    %v3197 = vld [vmem:[%s3193 + $0x18] sm:$0xff]
    %v3198 = vld [vmem:[%s3193 + $0x20] sm:$0xff]
    %v3199 = vld [vmem:[%s3193 + $0x28] sm:$0xff]
    %v3200 = vld [vmem:[%s3193 + $0x30] sm:$0xff]
    %v3201 = vld [vmem:[%s3193 + $0x38] sm:$0xff]
    %v3210 = vunpack.c.l.b16 %v3194
    %v3211 = vunpack.c.h.b16 %v3194
    %v3212 = vunpack.c.l.b16 %v3195
    %v3213 = vunpack.c.h.b16 %v3195
    %v3214 = vunpack.c.l.b16 %v3196
    %v3215 = vunpack.c.h.b16 %v3196
    %v3216 = vunpack.c.l.b16 %v3197
    %v3217 = vunpack.c.h.b16 %v3197
    %v3218 = vunpack.c.l.b16 %v3198
    %v3219 = vunpack.c.h.b16 %v3198
    %v3220 = vunpack.c.l.b16 %v3199
    %v3221 = vunpack.c.h.b16 %v3199
    %v3222 = vunpack.c.l.b16 %v3200
    %v3223 = vunpack.c.h.b16 %v3200
    %v3224 = vunpack.c.l.b16 %v3201
    %v3225 = vunpack.c.h.b16 %v3201
    %v3226 = vpack.c.b16 %v3212, %v3210
    %v3227 = vpack.c.b16 %v3213, %v3211
    %v3228 = vpack.c.b16 %v3216, %v3214
    %v3229 = vpack.c.b16 %v3217, %v3215
    %v3230 = vpack.c.b16 %v3220, %v3218
    %v3231 = vpack.c.b16 %v3221, %v3219
    %v3232 = vpack.c.b16 %v3224, %v3222
    %v3233 = vpack.c.b16 %v3225, %v3223
    %v3243 = vsel %vm190, %v3192, 0
    %3245 = vmatprep.subr.bf16.mxu0 0
    %3246 = vmatpush1.bf16.msra.mxu0 0
    %3247 = vmatprep.subr.bf16.mxu0 0
    %3248 = vmatpush1.bf16.msra.mxu0 0
    %3249 = vmatprep.subr.bf16.mxu0 0
    %3250 = vmatpush1.bf16.msra.mxu0 0
    %3251 = vmatprep.subr.bf16.mxu0 0
    %3252 = vmatpush1.bf16.msra.mxu0 0
    %3253 = vmatprep.subr.bf16.mxu0 %v3233
    %3254 = vmatpush1.bf16.msra.mxu0 %v3232
    %3255 = vmatprep.subr.bf16.mxu0 %v3231
    %3256 = vmatpush1.bf16.msra.mxu0 %v3230
    %3257 = vmatprep.subr.bf16.mxu0 %v3229
    %3258 = vmatpush1.bf16.msra.mxu0 %v3228
    %3259 = vmatprep.subr.bf16.mxu0 %v3227
    %3260 = vmatpush1.bf16.msra.mxu0 %v3226
    %3261 = vmatprep.subr.bf16.mxu0 0
    %3262 = vmatpush2.bf16.msra.mxu0 0
    %3263 = vmatprep.subr.bf16.mxu0 0
    %3264 = vmatpush2.bf16.msra.mxu0 0
    %3265 = vmatprep.subr.bf16.mxu0 0
    %3266 = vmatpush2.bf16.msra.mxu0 0
    %3267 = vmatprep.subr.bf16.mxu0 0
    %3268 = vmatpush2.bf16.msra.mxu0 0
    %3269 = vmatprep.subr.bf16.mxu0 0
    %3270 = vmatpush2.bf16.msra.mxu0 0
    %3271 = vmatprep.subr.bf16.mxu0 0
    %3272 = vmatpush2.bf16.msra.mxu0 0
    %3273 = vmatprep.subr.bf16.mxu0 0
    %3274 = vmatpush2.bf16.msra.mxu0 0
    %3275 = vmatprep.subr.bf16.mxu0 0
    %3276 = vmatpush2.bf16.msra.mxu0 0
    %3277 = vmatprep.mubr.bf16.mxu0 0
    %3278 = vmatmul.mubr.bf16.gmra.mxu0 %v3243
    %v3279 = vpop.f32.mrf.mxu0
    %v3280 = vadd.f32 0.0, %v3279
    %v3281 = vpop.f32.mrf.mxu0
    %v3282 = vadd.f32 0.0, %v3281
    %v3283 = vpop.f32.mrf.mxu0
    %v3284 = vadd.f32 0.0, %v3283
    %v3285 = vpop.f32.mrf.mxu0
    %v3286 = vadd.f32 0.0, %v3285
    %3287 = vdwg.mxu0
    %v3288 = vpack.c.bf16 %v3280, %v3280
    %v3289 = vpack.c.bf16 %v3284, %v3284
    %v3290 = vpack.c.bf16 %v3282, %v3282
    %v3291 = vpack.c.bf16 %v3286, %v3286
    %3293 = vrot.lane.b32.xlu0 %v3288, 64
    %v3294 = vpop.permute.xlu0 %3293
    %v3296 = vsel %vm336, %v3288, 0
    %v3299 = vsel %vm336, %v3294, 0
    %3301 = vmatprep.subr.bf16.mxu0 0
    %3302 = vmatpush1.bf16.xpose.msra.mxu0 0
    %3303 = vmatprep.subr.bf16.mxu0 0
    %3304 = vmatpush1.bf16.xpose.msra.mxu0 0
    %3305 = vmatprep.subr.bf16.mxu0 0
    %3306 = vmatpush1.bf16.xpose.msra.mxu0 0
    %3307 = vmatprep.subr.bf16.mxu0 0
    %3308 = vmatpush1.bf16.xpose.msra.mxu0 0
    %3309 = vmatprep.subr.bf16.mxu0 0
    %3310 = vmatpush1.bf16.xpose.msra.mxu0 0
    %3311 = vmatprep.subr.bf16.mxu0 0
    %3312 = vmatpush1.bf16.xpose.msra.mxu0 0
    %3313 = vmatprep.subr.bf16.mxu0 0
    %3314 = vmatpush1.bf16.xpose.msra.mxu0 0
    %3315 = vmatprep.subr.bf16.mxu0 0
    %3316 = vmatpush1.bf16.xpose.msra.mxu0 %v3299
    %3317 = vmatprep.subr.bf16.mxu0 0
    %3318 = vmatpush2.bf16.xpose.msra.mxu0 0
    %3319 = vmatprep.subr.bf16.mxu0 0
    %3320 = vmatpush2.bf16.xpose.msra.mxu0 0
    %3321 = vmatprep.subr.bf16.mxu0 0
    %3322 = vmatpush2.bf16.xpose.msra.mxu0 0
    %3323 = vmatprep.subr.bf16.mxu0 0
    %3324 = vmatpush2.bf16.xpose.msra.mxu0 0
    %3325 = vmatprep.subr.bf16.mxu0 0
    %3326 = vmatpush2.bf16.xpose.msra.mxu0 0
    %3327 = vmatprep.subr.bf16.mxu0 0
    %3328 = vmatpush2.bf16.xpose.msra.mxu0 0
    %3329 = vmatprep.subr.bf16.mxu0 0
    %3330 = vmatpush2.bf16.xpose.msra.mxu0 0
    %3331 = vmatprep.subr.bf16.mxu0 0
    %3332 = vmatpush2.bf16.xpose.msra.mxu0 0
    %3333 = vmatprep.mubr.bf16.mxu0 0
    %3334 = vmatmul.mubr.bf16.gmra.mxu0 %v3296
    %v3335 = vpop.f32.mrf.mxu0
    %v3336 = vadd.f32 %v187, %v3335
    %v3337 = vpop.f32.mrf.mxu0
    %v3338 = vpop.f32.mrf.mxu0
    %v3339 = vpop.f32.mrf.mxu0
    %3340 = vdwg.mxu0
    %3342 = vrot.lane.b32.xlu0 %v3289, 64
    %v3343 = vpop.permute.xlu0 %3342
    %v3345 = vsel %vm336, %v3289, 0
    %v3348 = vsel %vm336, %v3343, 0
    %3350 = vmatprep.subr.bf16.mxu0 0
    %3351 = vmatpush1.bf16.xpose.msra.mxu0 0
    %3352 = vmatprep.subr.bf16.mxu0 0
    %3353 = vmatpush1.bf16.xpose.msra.mxu0 0
    %3354 = vmatprep.subr.bf16.mxu0 0
    %3355 = vmatpush1.bf16.xpose.msra.mxu0 0
    %3356 = vmatprep.subr.bf16.mxu0 0
    %3357 = vmatpush1.bf16.xpose.msra.mxu0 0
    %3358 = vmatprep.subr.bf16.mxu0 0
    %3359 = vmatpush1.bf16.xpose.msra.mxu0 0
    %3360 = vmatprep.subr.bf16.mxu0 0
    %3361 = vmatpush1.bf16.xpose.msra.mxu0 0
    %3362 = vmatprep.subr.bf16.mxu0 0
    %3363 = vmatpush1.bf16.xpose.msra.mxu0 0
    %3364 = vmatprep.subr.bf16.mxu0 0
    %3365 = vmatpush1.bf16.xpose.msra.mxu0 %v3348
    %3366 = vmatprep.subr.bf16.mxu0 0
    %3367 = vmatpush2.bf16.xpose.msra.mxu0 0
    %3368 = vmatprep.subr.bf16.mxu0 0
    %3369 = vmatpush2.bf16.xpose.msra.mxu0 0
    %3370 = vmatprep.subr.bf16.mxu0 0
    %3371 = vmatpush2.bf16.xpose.msra.mxu0 0
    %3372 = vmatprep.subr.bf16.mxu0 0
    %3373 = vmatpush2.bf16.xpose.msra.mxu0 0
    %3374 = vmatprep.subr.bf16.mxu0 0
    %3375 = vmatpush2.bf16.xpose.msra.mxu0 0
    %3376 = vmatprep.subr.bf16.mxu0 0
    %3377 = vmatpush2.bf16.xpose.msra.mxu0 0
    %3378 = vmatprep.subr.bf16.mxu0 0
    %3379 = vmatpush2.bf16.xpose.msra.mxu0 0
    %3380 = vmatprep.subr.bf16.mxu0 0
    %3381 = vmatpush2.bf16.xpose.msra.mxu0 0
    %3382 = vmatprep.mubr.bf16.mxu0 0
    %3383 = vmatmul.mubr.bf16.gmra.mxu0 %v3345
    %v3384 = vpop.f32.mrf.mxu0
    %v3385 = vadd.f32 %v187, %v3384
    %v3386 = vpop.f32.mrf.mxu0
    %v3387 = vpop.f32.mrf.mxu0
    %v3388 = vpop.f32.mrf.mxu0
    %3389 = vdwg.mxu0
    %v3390 = vsel %vm432, %v3336, -inf
    %3391 = vmax.xlane.f32.xlu0 %v3390
    %v3392 = vpop.xlane.xlu0 %3391
    %v3393 = vsel %vm432, %v3385, -inf
    %3394 = vmax.xlane.f32.xlu0 %v3393
    %v3395 = vpop.xlane.xlu0 %3394
    %v3396 = vsub.f32 %v3336, %v3392
    %v3397 = vsub.f32 %v3385, %v3395
    %v3398 = vmul.f32 %v3396, 1.442695
    %v3399 = vpow.pop %v3398
    %v3400 = vmul.f32 %v3397, 1.442695
    %v3401 = vpow.pop %v3400
    %v3402 = vsel %vm432, %v3399, 0.0
    %3403 = vadd.xlane.f32.xlu0 %v3402
    %v3404 = vpop.xlane.xlu0 %3403
    %v3405 = vsel %vm432, %v3401, 0.0
    %3406 = vadd.xlane.f32.xlu0 %v3405
    %v3407 = vpop.xlane.xlu0 %3406
    %v3408 = vrcp.pop %v3404
    %v3409 = vmul.f32 %v3399, %v3408
    %v3410 = vrcp.pop %v3407
    %v3411 = vmul.f32 %v3401, %v3410
    %v3412 = vpack.c.bf16 %v3409, %v3409
    %v3413 = vpack.c.bf16 %v3411, %v3411
    %v3415 = vsel %vm432, %v3412, 0
    %v3418 = vsel %vm460, %v3290, 0
    %3420 = vmatprep.subr.bf16.mxu0 0
    %3421 = vmatpush1.bf16.msra.mxu0 0
    %3422 = vmatprep.subr.bf16.mxu0 0
    %3423 = vmatpush1.bf16.msra.mxu0 0
    %3424 = vmatprep.subr.bf16.mxu0 0
    %3425 = vmatpush1.bf16.msra.mxu0 0
    %3426 = vmatprep.subr.bf16.mxu0 0
    %3427 = vmatpush1.bf16.msra.mxu0 0
    %3428 = vmatprep.subr.bf16.mxu0 0
    %3429 = vmatpush1.bf16.msra.mxu0 0
    %3430 = vmatprep.subr.bf16.mxu0 0
    %3431 = vmatpush1.bf16.msra.mxu0 0
    %3432 = vmatprep.subr.bf16.mxu0 0
    %3433 = vmatpush1.bf16.msra.mxu0 0
    %3434 = vmatprep.subr.bf16.mxu0 0
    %3435 = vmatpush1.bf16.msra.mxu0 %v3418
    %3436 = vmatprep.subr.bf16.mxu0 0
    %3437 = vmatpush2.bf16.msra.mxu0 0
    %3438 = vmatprep.subr.bf16.mxu0 0
    %3439 = vmatpush2.bf16.msra.mxu0 0
    %3440 = vmatprep.subr.bf16.mxu0 0
    %3441 = vmatpush2.bf16.msra.mxu0 0
    %3442 = vmatprep.subr.bf16.mxu0 0
    %3443 = vmatpush2.bf16.msra.mxu0 0
    %3444 = vmatprep.subr.bf16.mxu0 0
    %3445 = vmatpush2.bf16.msra.mxu0 0
    %3446 = vmatprep.subr.bf16.mxu0 0
    %3447 = vmatpush2.bf16.msra.mxu0 0
    %3448 = vmatprep.subr.bf16.mxu0 0
    %3449 = vmatpush2.bf16.msra.mxu0 0
    %3450 = vmatprep.subr.bf16.mxu0 0
    %3451 = vmatpush2.bf16.msra.mxu0 0
    %3452 = vmatprep.mubr.bf16.mxu0 0
    %3453 = vmatmul.mubr.bf16.gmra.mxu0 %v3415
    %v3454 = vpop.f32.mrf.mxu0
    %v3455 = vadd.f32 0.0, %v3454
    %v3456 = vpop.f32.mrf.mxu0
    %v3457 = vpop.f32.mrf.mxu0
    %v3458 = vpop.f32.mrf.mxu0
    %3459 = vdwg.mxu0
    %v3461 = vsel %vm432, %v3413, 0
    %v3464 = vsel %vm460, %v3291, 0
    %3466 = vmatprep.subr.bf16.mxu0 0
    %3467 = vmatpush1.bf16.msra.mxu0 0
    %3468 = vmatprep.subr.bf16.mxu0 0
    %3469 = vmatpush1.bf16.msra.mxu0 0
    %3470 = vmatprep.subr.bf16.mxu0 0
    %3471 = vmatpush1.bf16.msra.mxu0 0
    %3472 = vmatprep.subr.bf16.mxu0 0
    %3473 = vmatpush1.bf16.msra.mxu0 0
    %3474 = vmatprep.subr.bf16.mxu0 0
    %3475 = vmatpush1.bf16.msra.mxu0 0
    %3476 = vmatprep.subr.bf16.mxu0 0
    %3477 = vmatpush1.bf16.msra.mxu0 0
    %3478 = vmatprep.subr.bf16.mxu0 0
    %3479 = vmatpush1.bf16.msra.mxu0 0
    %3480 = vmatprep.subr.bf16.mxu0 0
    %3481 = vmatpush1.bf16.msra.mxu0 %v3464
    %3482 = vmatprep.subr.bf16.mxu0 0
    %3483 = vmatpush2.bf16.msra.mxu0 0
    %3484 = vmatprep.subr.bf16.mxu0 0
    %3485 = vmatpush2.bf16.msra.mxu0 0
    %3486 = vmatprep.subr.bf16.mxu0 0
    %3487 = vmatpush2.bf16.msra.mxu0 0
    %3488 = vmatprep.subr.bf16.mxu0 0
    %3489 = vmatpush2.bf16.msra.mxu0 0
    %3490 = vmatprep.subr.bf16.mxu0 0
    %3491 = vmatpush2.bf16.msra.mxu0 0
    %3492 = vmatprep.subr.bf16.mxu0 0
    %3493 = vmatpush2.bf16.msra.mxu0 0
    %3494 = vmatprep.subr.bf16.mxu0 0
    %3495 = vmatpush2.bf16.msra.mxu0 0
    %3496 = vmatprep.subr.bf16.mxu0 0
    %3497 = vmatpush2.bf16.msra.mxu0 0
    %3498 = vmatprep.mubr.bf16.mxu0 0
    %3499 = vmatmul.mubr.bf16.gmra.mxu0 %v3461
    %v3500 = vpop.f32.mrf.mxu0
    %v3501 = vadd.f32 0.0, %v3500
    %v3502 = vpop.f32.mrf.mxu0
    %v3503 = vpop.f32.mrf.mxu0
    %v3504 = vpop.f32.mrf.mxu0
    %3505 = vdwg.mxu0
    %3506 = vrot.lane.b32.xlu0 %v3288, 112
    %v3507 = vpop.permute.xlu0 %3506
    %3508 = vrot.lane.b32.xlu0 %v3288, 48
    %v3509 = vpop.permute.xlu0 %3508
    %v3511 = vsel %vm336, %v3507, 0
    %v3514 = vsel %vm336, %v3509, 0
    %3516 = vmatprep.subr.bf16.mxu0 0
    %3517 = vmatpush1.bf16.xpose.msra.mxu0 0
    %3518 = vmatprep.subr.bf16.mxu0 0
    %3519 = vmatpush1.bf16.xpose.msra.mxu0 0
    %3520 = vmatprep.subr.bf16.mxu0 0
    %3521 = vmatpush1.bf16.xpose.msra.mxu0 0
    %3522 = vmatprep.subr.bf16.mxu0 0
    %3523 = vmatpush1.bf16.xpose.msra.mxu0 0
    %3524 = vmatprep.subr.bf16.mxu0 0
    %3525 = vmatpush1.bf16.xpose.msra.mxu0 0
    %3526 = vmatprep.subr.bf16.mxu0 0
    %3527 = vmatpush1.bf16.xpose.msra.mxu0 0
    %3528 = vmatprep.subr.bf16.mxu0 0
    %3529 = vmatpush1.bf16.xpose.msra.mxu0 0
    %3530 = vmatprep.subr.bf16.mxu0 0
    %3531 = vmatpush1.bf16.xpose.msra.mxu0 %v3514
    %3532 = vmatprep.subr.bf16.mxu0 0
    %3533 = vmatpush2.bf16.xpose.msra.mxu0 0
    %3534 = vmatprep.subr.bf16.mxu0 0
    %3535 = vmatpush2.bf16.xpose.msra.mxu0 0
    %3536 = vmatprep.subr.bf16.mxu0 0
    %3537 = vmatpush2.bf16.xpose.msra.mxu0 0
    %3538 = vmatprep.subr.bf16.mxu0 0
    %3539 = vmatpush2.bf16.xpose.msra.mxu0 0
    %3540 = vmatprep.subr.bf16.mxu0 0
    %3541 = vmatpush2.bf16.xpose.msra.mxu0 0
    %3542 = vmatprep.subr.bf16.mxu0 0
    %3543 = vmatpush2.bf16.xpose.msra.mxu0 0
    %3544 = vmatprep.subr.bf16.mxu0 0
    %3545 = vmatpush2.bf16.xpose.msra.mxu0 0
    %3546 = vmatprep.subr.bf16.mxu0 0
    %3547 = vmatpush2.bf16.xpose.msra.mxu0 0
    %3548 = vmatprep.mubr.bf16.mxu0 0
    %3549 = vmatmul.mubr.bf16.gmra.mxu0 %v3511
    %v3550 = vpop.f32.mrf.mxu0
    %v3551 = vadd.f32 %v187, %v3550
    %v3552 = vpop.f32.mrf.mxu0
    %v3553 = vpop.f32.mrf.mxu0
    %v3554 = vpop.f32.mrf.mxu0
    %3555 = vdwg.mxu0
    %3556 = vrot.lane.b32.xlu0 %v3289, 112
    %v3557 = vpop.permute.xlu0 %3556
    %3558 = vrot.lane.b32.xlu0 %v3289, 48
    %v3559 = vpop.permute.xlu0 %3558
    %v3561 = vsel %vm336, %v3557, 0
    %v3564 = vsel %vm336, %v3559, 0
    %3566 = vmatprep.subr.bf16.mxu0 0
    %3567 = vmatpush1.bf16.xpose.msra.mxu0 0
    %3568 = vmatprep.subr.bf16.mxu0 0
    %3569 = vmatpush1.bf16.xpose.msra.mxu0 0
    %3570 = vmatprep.subr.bf16.mxu0 0
    %3571 = vmatpush1.bf16.xpose.msra.mxu0 0
    %3572 = vmatprep.subr.bf16.mxu0 0
    %3573 = vmatpush1.bf16.xpose.msra.mxu0 0
    %3574 = vmatprep.subr.bf16.mxu0 0
    %3575 = vmatpush1.bf16.xpose.msra.mxu0 0
    %3576 = vmatprep.subr.bf16.mxu0 0
    %3577 = vmatpush1.bf16.xpose.msra.mxu0 0
    %3578 = vmatprep.subr.bf16.mxu0 0
    %3579 = vmatpush1.bf16.xpose.msra.mxu0 0
    %3580 = vmatprep.subr.bf16.mxu0 0
    %3581 = vmatpush1.bf16.xpose.msra.mxu0 %v3564
    %3582 = vmatprep.subr.bf16.mxu0 0
    %3583 = vmatpush2.bf16.xpose.msra.mxu0 0
    %3584 = vmatprep.subr.bf16.mxu0 0
    %3585 = vmatpush2.bf16.xpose.msra.mxu0 0
    %3586 = vmatprep.subr.bf16.mxu0 0
    %3587 = vmatpush2.bf16.xpose.msra.mxu0 0
    %3588 = vmatprep.subr.bf16.mxu0 0
    %3589 = vmatpush2.bf16.xpose.msra.mxu0 0
    %3590 = vmatprep.subr.bf16.mxu0 0
    %3591 = vmatpush2.bf16.xpose.msra.mxu0 0
    %3592 = vmatprep.subr.bf16.mxu0 0
    %3593 = vmatpush2.bf16.xpose.msra.mxu0 0
    %3594 = vmatprep.subr.bf16.mxu0 0
    %3595 = vmatpush2.bf16.xpose.msra.mxu0 0
    %3596 = vmatprep.subr.bf16.mxu0 0
    %3597 = vmatpush2.bf16.xpose.msra.mxu0 0
    %3598 = vmatprep.mubr.bf16.mxu0 0
    %3599 = vmatmul.mubr.bf16.gmra.mxu0 %v3561
    %v3600 = vpop.f32.mrf.mxu0
    %v3601 = vadd.f32 %v187, %v3600
    %v3602 = vpop.f32.mrf.mxu0
    %v3603 = vpop.f32.mrf.mxu0
    %v3604 = vpop.f32.mrf.mxu0
    %3605 = vdwg.mxu0
    %v3606 = vsel %vm432, %v3551, -inf
    %3607 = vmax.xlane.f32.xlu0 %v3606
    %v3608 = vpop.xlane.xlu0 %3607
    %v3609 = vsel %vm432, %v3601, -inf
    %3610 = vmax.xlane.f32.xlu0 %v3609
    %v3611 = vpop.xlane.xlu0 %3610
    %v3612 = vsub.f32 %v3551, %v3608
    %v3613 = vsub.f32 %v3601, %v3611
    %v3614 = vmul.f32 %v3612, 1.442695
    %v3615 = vpow.pop %v3614
    %v3616 = vmul.f32 %v3613, 1.442695
    %v3617 = vpow.pop %v3616
    %v3618 = vsel %vm432, %v3615, 0.0
    %3619 = vadd.xlane.f32.xlu0 %v3618
    %v3620 = vpop.xlane.xlu0 %3619
    %v3621 = vsel %vm432, %v3617, 0.0
    %3622 = vadd.xlane.f32.xlu0 %v3621
    %v3623 = vpop.xlane.xlu0 %3622
    %v3624 = vrcp.pop %v3620
    %v3625 = vmul.f32 %v3615, %v3624
    %v3626 = vrcp.pop %v3623
    %v3627 = vmul.f32 %v3617, %v3626
    %v3628 = vpack.c.bf16 %v3625, %v3625
    %v3629 = vpack.c.bf16 %v3627, %v3627
    %3631 = vrot.lane.b32.xlu0 %v3290, 112
    %v3632 = vpop.permute.xlu0 %3631
    %v3634 = vsel %vm432, %v3628, 0
    %v3637 = vsel %vm460, %v3632, 0
    %3639 = vmatprep.subr.bf16.mxu0 0
    %3640 = vmatpush1.bf16.msra.mxu0 0
    %3641 = vmatprep.subr.bf16.mxu0 0
    %3642 = vmatpush1.bf16.msra.mxu0 0
    %3643 = vmatprep.subr.bf16.mxu0 0
    %3644 = vmatpush1.bf16.msra.mxu0 0
    %3645 = vmatprep.subr.bf16.mxu0 0
    %3646 = vmatpush1.bf16.msra.mxu0 0
    %3647 = vmatprep.subr.bf16.mxu0 0
    %3648 = vmatpush1.bf16.msra.mxu0 0
    %3649 = vmatprep.subr.bf16.mxu0 0
    %3650 = vmatpush1.bf16.msra.mxu0 0
    %3651 = vmatprep.subr.bf16.mxu0 0
    %3652 = vmatpush1.bf16.msra.mxu0 0
    %3653 = vmatprep.subr.bf16.mxu0 0
    %3654 = vmatpush1.bf16.msra.mxu0 %v3637
    %3655 = vmatprep.subr.bf16.mxu0 0
    %3656 = vmatpush2.bf16.msra.mxu0 0
    %3657 = vmatprep.subr.bf16.mxu0 0
    %3658 = vmatpush2.bf16.msra.mxu0 0
    %3659 = vmatprep.subr.bf16.mxu0 0
    %3660 = vmatpush2.bf16.msra.mxu0 0
    %3661 = vmatprep.subr.bf16.mxu0 0
    %3662 = vmatpush2.bf16.msra.mxu0 0
    %3663 = vmatprep.subr.bf16.mxu0 0
    %3664 = vmatpush2.bf16.msra.mxu0 0
    %3665 = vmatprep.subr.bf16.mxu0 0
    %3666 = vmatpush2.bf16.msra.mxu0 0
    %3667 = vmatprep.subr.bf16.mxu0 0
    %3668 = vmatpush2.bf16.msra.mxu0 0
    %3669 = vmatprep.subr.bf16.mxu0 0
    %3670 = vmatpush2.bf16.msra.mxu0 0
    %3671 = vmatprep.mubr.bf16.mxu0 0
    %3672 = vmatmul.mubr.bf16.gmra.mxu0 %v3634
    %v3673 = vpop.f32.mrf.mxu0
    %v3674 = vadd.f32 0.0, %v3673
    %v3675 = vpop.f32.mrf.mxu0
    %v3676 = vpop.f32.mrf.mxu0
    %v3677 = vpop.f32.mrf.mxu0
    %3678 = vdwg.mxu0
    %3680 = vrot.lane.b32.xlu0 %v3291, 112
    %v3681 = vpop.permute.xlu0 %3680
    %v3683 = vsel %vm432, %v3629, 0
    %v3686 = vsel %vm460, %v3681, 0
    %3688 = vmatprep.subr.bf16.mxu0 0
    %3689 = vmatpush1.bf16.msra.mxu0 0
    %3690 = vmatprep.subr.bf16.mxu0 0
    %3691 = vmatpush1.bf16.msra.mxu0 0
    %3692 = vmatprep.subr.bf16.mxu0 0
    %3693 = vmatpush1.bf16.msra.mxu0 0
    %3694 = vmatprep.subr.bf16.mxu0 0
    %3695 = vmatpush1.bf16.msra.mxu0 0
    %3696 = vmatprep.subr.bf16.mxu0 0
    %3697 = vmatpush1.bf16.msra.mxu0 0
    %3698 = vmatprep.subr.bf16.mxu0 0
    %3699 = vmatpush1.bf16.msra.mxu0 0
    %3700 = vmatprep.subr.bf16.mxu0 0
    %3701 = vmatpush1.bf16.msra.mxu0 0
    %3702 = vmatprep.subr.bf16.mxu0 0
    %3703 = vmatpush1.bf16.msra.mxu0 %v3686
    %3704 = vmatprep.subr.bf16.mxu0 0
    %3705 = vmatpush2.bf16.msra.mxu0 0
    %3706 = vmatprep.subr.bf16.mxu0 0
    %3707 = vmatpush2.bf16.msra.mxu0 0
    %3708 = vmatprep.subr.bf16.mxu0 0
    %3709 = vmatpush2.bf16.msra.mxu0 0
    %3710 = vmatprep.subr.bf16.mxu0 0
    %3711 = vmatpush2.bf16.msra.mxu0 0
    %3712 = vmatprep.subr.bf16.mxu0 0
    %3713 = vmatpush2.bf16.msra.mxu0 0
    %3714 = vmatprep.subr.bf16.mxu0 0
    %3715 = vmatpush2.bf16.msra.mxu0 0
    %3716 = vmatprep.subr.bf16.mxu0 0
    %3717 = vmatpush2.bf16.msra.mxu0 0
    %3718 = vmatprep.subr.bf16.mxu0 0
    %3719 = vmatpush2.bf16.msra.mxu0 0
    %3720 = vmatprep.mubr.bf16.mxu0 0
    %3721 = vmatmul.mubr.bf16.gmra.mxu0 %v3683
    %v3722 = vpop.f32.mrf.mxu0
    %v3723 = vadd.f32 0.0, %v3722
    %v3724 = vpop.f32.mrf.mxu0
    %v3725 = vpop.f32.mrf.mxu0
    %v3726 = vpop.f32.mrf.mxu0
    %3727 = vdwg.mxu0
    %3728 = vrot.lane.b32.xlu0 %v3288, 96
    %v3729 = vpop.permute.xlu0 %3728
    %3730 = vrot.lane.b32.xlu0 %v3288, 32
    %v3731 = vpop.permute.xlu0 %3730
    %v3733 = vsel %vm336, %v3729, 0
    %v3736 = vsel %vm336, %v3731, 0
    %3738 = vmatprep.subr.bf16.mxu0 0
    %3739 = vmatpush1.bf16.xpose.msra.mxu0 0
    %3740 = vmatprep.subr.bf16.mxu0 0
    %3741 = vmatpush1.bf16.xpose.msra.mxu0 0
    %3742 = vmatprep.subr.bf16.mxu0 0
    %3743 = vmatpush1.bf16.xpose.msra.mxu0 0
    %3744 = vmatprep.subr.bf16.mxu0 0
    %3745 = vmatpush1.bf16.xpose.msra.mxu0 0
    %3746 = vmatprep.subr.bf16.mxu0 0
    %3747 = vmatpush1.bf16.xpose.msra.mxu0 0
    %3748 = vmatprep.subr.bf16.mxu0 0
    %3749 = vmatpush1.bf16.xpose.msra.mxu0 0
    %3750 = vmatprep.subr.bf16.mxu0 0
    %3751 = vmatpush1.bf16.xpose.msra.mxu0 0
    %3752 = vmatprep.subr.bf16.mxu0 0
    %3753 = vmatpush1.bf16.xpose.msra.mxu0 %v3736
    %3754 = vmatprep.subr.bf16.mxu0 0
    %3755 = vmatpush2.bf16.xpose.msra.mxu0 0
    %3756 = vmatprep.subr.bf16.mxu0 0
    %3757 = vmatpush2.bf16.xpose.msra.mxu0 0
    %3758 = vmatprep.subr.bf16.mxu0 0
    %3759 = vmatpush2.bf16.xpose.msra.mxu0 0
    %3760 = vmatprep.subr.bf16.mxu0 0
    %3761 = vmatpush2.bf16.xpose.msra.mxu0 0
    %3762 = vmatprep.subr.bf16.mxu0 0
    %3763 = vmatpush2.bf16.xpose.msra.mxu0 0
    %3764 = vmatprep.subr.bf16.mxu0 0
    %3765 = vmatpush2.bf16.xpose.msra.mxu0 0
    %3766 = vmatprep.subr.bf16.mxu0 0
    %3767 = vmatpush2.bf16.xpose.msra.mxu0 0
    %3768 = vmatprep.subr.bf16.mxu0 0
    %3769 = vmatpush2.bf16.xpose.msra.mxu0 0
    %3770 = vmatprep.mubr.bf16.mxu0 0
    %3771 = vmatmul.mubr.bf16.gmra.mxu0 %v3733
    %v3772 = vpop.f32.mrf.mxu0
    %v3773 = vadd.f32 %v187, %v3772
    %v3774 = vpop.f32.mrf.mxu0
    %v3775 = vpop.f32.mrf.mxu0
    %v3776 = vpop.f32.mrf.mxu0
    %3777 = vdwg.mxu0
    %3778 = vrot.lane.b32.xlu0 %v3289, 96
    %v3779 = vpop.permute.xlu0 %3778
    %3780 = vrot.lane.b32.xlu0 %v3289, 32
    %v3781 = vpop.permute.xlu0 %3780
    %v3783 = vsel %vm336, %v3779, 0
    %v3786 = vsel %vm336, %v3781, 0
    %3788 = vmatprep.subr.bf16.mxu0 0
    %3789 = vmatpush1.bf16.xpose.msra.mxu0 0
    %3790 = vmatprep.subr.bf16.mxu0 0
    %3791 = vmatpush1.bf16.xpose.msra.mxu0 0
    %3792 = vmatprep.subr.bf16.mxu0 0
    %3793 = vmatpush1.bf16.xpose.msra.mxu0 0
    %3794 = vmatprep.subr.bf16.mxu0 0
    %3795 = vmatpush1.bf16.xpose.msra.mxu0 0
    %3796 = vmatprep.subr.bf16.mxu0 0
    %3797 = vmatpush1.bf16.xpose.msra.mxu0 0
    %3798 = vmatprep.subr.bf16.mxu0 0
    %3799 = vmatpush1.bf16.xpose.msra.mxu0 0
    %3800 = vmatprep.subr.bf16.mxu0 0
    %3801 = vmatpush1.bf16.xpose.msra.mxu0 0
    %3802 = vmatprep.subr.bf16.mxu0 0
    %3803 = vmatpush1.bf16.xpose.msra.mxu0 %v3786
    %3804 = vmatprep.subr.bf16.mxu0 0
    %3805 = vmatpush2.bf16.xpose.msra.mxu0 0
    %3806 = vmatprep.subr.bf16.mxu0 0
    %3807 = vmatpush2.bf16.xpose.msra.mxu0 0
    %3808 = vmatprep.subr.bf16.mxu0 0
    %3809 = vmatpush2.bf16.xpose.msra.mxu0 0
    %3810 = vmatprep.subr.bf16.mxu0 0
    %3811 = vmatpush2.bf16.xpose.msra.mxu0 0
    %3812 = vmatprep.subr.bf16.mxu0 0
    %3813 = vmatpush2.bf16.xpose.msra.mxu0 0
    %3814 = vmatprep.subr.bf16.mxu0 0
    %3815 = vmatpush2.bf16.xpose.msra.mxu0 0
    %3816 = vmatprep.subr.bf16.mxu0 0
    %3817 = vmatpush2.bf16.xpose.msra.mxu0 0
    %3818 = vmatprep.subr.bf16.mxu0 0
    %3819 = vmatpush2.bf16.xpose.msra.mxu0 0
    %3820 = vmatprep.mubr.bf16.mxu0 0
    %3821 = vmatmul.mubr.bf16.gmra.mxu0 %v3783
    %v3822 = vpop.f32.mrf.mxu0
    %v3823 = vadd.f32 %v187, %v3822
    %v3824 = vpop.f32.mrf.mxu0
    %v3825 = vpop.f32.mrf.mxu0
    %v3826 = vpop.f32.mrf.mxu0
    %3827 = vdwg.mxu0
    %v3828 = vsel %vm432, %v3773, -inf
    %3829 = vmax.xlane.f32.xlu0 %v3828
    %v3830 = vpop.xlane.xlu0 %3829
    %v3831 = vsel %vm432, %v3823, -inf
    %3832 = vmax.xlane.f32.xlu0 %v3831
    %v3833 = vpop.xlane.xlu0 %3832
    %v3834 = vsub.f32 %v3773, %v3830
    %v3835 = vsub.f32 %v3823, %v3833
    %v3836 = vmul.f32 %v3834, 1.442695
    %v3837 = vpow.pop %v3836
    %v3838 = vmul.f32 %v3835, 1.442695
    %v3839 = vpow.pop %v3838
    %v3840 = vsel %vm432, %v3837, 0.0
    %3841 = vadd.xlane.f32.xlu0 %v3840
    %v3842 = vpop.xlane.xlu0 %3841
    %v3843 = vsel %vm432, %v3839, 0.0
    %3844 = vadd.xlane.f32.xlu0 %v3843
    %v3845 = vpop.xlane.xlu0 %3844
    %v3846 = vrcp.pop %v3842
    %v3847 = vmul.f32 %v3837, %v3846
    %v3848 = vrcp.pop %v3845
    %v3849 = vmul.f32 %v3839, %v3848
    %v3850 = vpack.c.bf16 %v3847, %v3847
    %v3851 = vpack.c.bf16 %v3849, %v3849
    %3852 = vrot.lane.b32.xlu0 %v3290, 96
    %v3853 = vpop.permute.xlu0 %3852
    %v3855 = vsel %vm432, %v3850, 0
    %v3858 = vsel %vm460, %v3853, 0
    %3860 = vmatprep.subr.bf16.mxu0 0
    %3861 = vmatpush1.bf16.msra.mxu0 0
    %3862 = vmatprep.subr.bf16.mxu0 0
    %3863 = vmatpush1.bf16.msra.mxu0 0
    %3864 = vmatprep.subr.bf16.mxu0 0
    %3865 = vmatpush1.bf16.msra.mxu0 0
    %3866 = vmatprep.subr.bf16.mxu0 0
    %3867 = vmatpush1.bf16.msra.mxu0 0
    %3868 = vmatprep.subr.bf16.mxu0 0
    %3869 = vmatpush1.bf16.msra.mxu0 0
    %3870 = vmatprep.subr.bf16.mxu0 0
    %3871 = vmatpush1.bf16.msra.mxu0 0
    %3872 = vmatprep.subr.bf16.mxu0 0
    %3873 = vmatpush1.bf16.msra.mxu0 0
    %3874 = vmatprep.subr.bf16.mxu0 0
    %3875 = vmatpush1.bf16.msra.mxu0 %v3858
    %3876 = vmatprep.subr.bf16.mxu0 0
    %3877 = vmatpush2.bf16.msra.mxu0 0
    %3878 = vmatprep.subr.bf16.mxu0 0
    %3879 = vmatpush2.bf16.msra.mxu0 0
    %3880 = vmatprep.subr.bf16.mxu0 0
    %3881 = vmatpush2.bf16.msra.mxu0 0
    %3882 = vmatprep.subr.bf16.mxu0 0
    %3883 = vmatpush2.bf16.msra.mxu0 0
    %3884 = vmatprep.subr.bf16.mxu0 0
    %3885 = vmatpush2.bf16.msra.mxu0 0
    %3886 = vmatprep.subr.bf16.mxu0 0
    %3887 = vmatpush2.bf16.msra.mxu0 0
    %3888 = vmatprep.subr.bf16.mxu0 0
    %3889 = vmatpush2.bf16.msra.mxu0 0
    %3890 = vmatprep.subr.bf16.mxu0 0
    %3891 = vmatpush2.bf16.msra.mxu0 0
    %3892 = vmatprep.mubr.bf16.mxu0 0
    %3893 = vmatmul.mubr.bf16.gmra.mxu0 %v3855
    %v3894 = vpop.f32.mrf.mxu0
    %v3895 = vadd.f32 0.0, %v3894
    %v3896 = vpop.f32.mrf.mxu0
    %v3897 = vpop.f32.mrf.mxu0
    %v3898 = vpop.f32.mrf.mxu0
    %3899 = vdwg.mxu0
    %3900 = vrot.lane.b32.xlu0 %v3291, 96
    %v3901 = vpop.permute.xlu0 %3900
    %v3903 = vsel %vm432, %v3851, 0
    %v3906 = vsel %vm460, %v3901, 0
    %3908 = vmatprep.subr.bf16.mxu0 0
    %3909 = vmatpush1.bf16.msra.mxu0 0
    %3910 = vmatprep.subr.bf16.mxu0 0
    %3911 = vmatpush1.bf16.msra.mxu0 0
    %3912 = vmatprep.subr.bf16.mxu0 0
    %3913 = vmatpush1.bf16.msra.mxu0 0
    %3914 = vmatprep.subr.bf16.mxu0 0
    %3915 = vmatpush1.bf16.msra.mxu0 0
    %3916 = vmatprep.subr.bf16.mxu0 0
    %3917 = vmatpush1.bf16.msra.mxu0 0
    %3918 = vmatprep.subr.bf16.mxu0 0
    %3919 = vmatpush1.bf16.msra.mxu0 0
    %3920 = vmatprep.subr.bf16.mxu0 0
    %3921 = vmatpush1.bf16.msra.mxu0 0
    %3922 = vmatprep.subr.bf16.mxu0 0
    %3923 = vmatpush1.bf16.msra.mxu0 %v3906
    %3924 = vmatprep.subr.bf16.mxu0 0
    %3925 = vmatpush2.bf16.msra.mxu0 0
    %3926 = vmatprep.subr.bf16.mxu0 0
    %3927 = vmatpush2.bf16.msra.mxu0 0
    %3928 = vmatprep.subr.bf16.mxu0 0
    %3929 = vmatpush2.bf16.msra.mxu0 0
    %3930 = vmatprep.subr.bf16.mxu0 0
    %3931 = vmatpush2.bf16.msra.mxu0 0
    %3932 = vmatprep.subr.bf16.mxu0 0
    %3933 = vmatpush2.bf16.msra.mxu0 0
    %3934 = vmatprep.subr.bf16.mxu0 0
    %3935 = vmatpush2.bf16.msra.mxu0 0
    %3936 = vmatprep.subr.bf16.mxu0 0
    %3937 = vmatpush2.bf16.msra.mxu0 0
    %3938 = vmatprep.subr.bf16.mxu0 0
    %3939 = vmatpush2.bf16.msra.mxu0 0
    %3940 = vmatprep.mubr.bf16.mxu0 0
    %3941 = vmatmul.mubr.bf16.gmra.mxu0 %v3903
    %v3942 = vpop.f32.mrf.mxu0
    %v3943 = vadd.f32 0.0, %v3942
    %v3944 = vpop.f32.mrf.mxu0
    %v3945 = vpop.f32.mrf.mxu0
    %v3946 = vpop.f32.mrf.mxu0
    %3947 = vdwg.mxu0
    %3948 = vrot.lane.b32.xlu0 %v3288, 80
    %v3949 = vpop.permute.xlu0 %3948
    %3950 = vrot.lane.b32.xlu0 %v3288, 16
    %v3951 = vpop.permute.xlu0 %3950
    %v3953 = vsel %vm336, %v3949, 0
    %v3956 = vsel %vm336, %v3951, 0
    %3958 = vmatprep.subr.bf16.mxu0 0
    %3959 = vmatpush1.bf16.xpose.msra.mxu0 0
    %3960 = vmatprep.subr.bf16.mxu0 0
    %3961 = vmatpush1.bf16.xpose.msra.mxu0 0
    %3962 = vmatprep.subr.bf16.mxu0 0
    %3963 = vmatpush1.bf16.xpose.msra.mxu0 0
    %3964 = vmatprep.subr.bf16.mxu0 0
    %3965 = vmatpush1.bf16.xpose.msra.mxu0 0
    %3966 = vmatprep.subr.bf16.mxu0 0
    %3967 = vmatpush1.bf16.xpose.msra.mxu0 0
    %3968 = vmatprep.subr.bf16.mxu0 0
    %3969 = vmatpush1.bf16.xpose.msra.mxu0 0
    %3970 = vmatprep.subr.bf16.mxu0 0
    %3971 = vmatpush1.bf16.xpose.msra.mxu0 0
    %3972 = vmatprep.subr.bf16.mxu0 0
    %3973 = vmatpush1.bf16.xpose.msra.mxu0 %v3956
    %3974 = vmatprep.subr.bf16.mxu0 0
    %3975 = vmatpush2.bf16.xpose.msra.mxu0 0
    %3976 = vmatprep.subr.bf16.mxu0 0
    %3977 = vmatpush2.bf16.xpose.msra.mxu0 0
    %3978 = vmatprep.subr.bf16.mxu0 0
    %3979 = vmatpush2.bf16.xpose.msra.mxu0 0
    %3980 = vmatprep.subr.bf16.mxu0 0
    %3981 = vmatpush2.bf16.xpose.msra.mxu0 0
    %3982 = vmatprep.subr.bf16.mxu0 0
    %3983 = vmatpush2.bf16.xpose.msra.mxu0 0
    %3984 = vmatprep.subr.bf16.mxu0 0
    %3985 = vmatpush2.bf16.xpose.msra.mxu0 0
    %3986 = vmatprep.subr.bf16.mxu0 0
    %3987 = vmatpush2.bf16.xpose.msra.mxu0 0
    %3988 = vmatprep.subr.bf16.mxu0 0
    %3989 = vmatpush2.bf16.xpose.msra.mxu0 0
    %3990 = vmatprep.mubr.bf16.mxu0 0
    %3991 = vmatmul.mubr.bf16.gmra.mxu0 %v3953
    %v3992 = vpop.f32.mrf.mxu0
    %v3993 = vadd.f32 %v187, %v3992
    %v3994 = vpop.f32.mrf.mxu0
    %v3995 = vpop.f32.mrf.mxu0
    %v3996 = vpop.f32.mrf.mxu0
    %3997 = vdwg.mxu0
    %3998 = vrot.lane.b32.xlu0 %v3289, 80
    %v3999 = vpop.permute.xlu0 %3998
    %4000 = vrot.lane.b32.xlu0 %v3289, 16
    %v4001 = vpop.permute.xlu0 %4000
    %v4003 = vsel %vm336, %v3999, 0
    %v4006 = vsel %vm336, %v4001, 0
    %4008 = vmatprep.subr.bf16.mxu0 0
    %4009 = vmatpush1.bf16.xpose.msra.mxu0 0
    %4010 = vmatprep.subr.bf16.mxu0 0
    %4011 = vmatpush1.bf16.xpose.msra.mxu0 0
    %4012 = vmatprep.subr.bf16.mxu0 0
    %4013 = vmatpush1.bf16.xpose.msra.mxu0 0
    %4014 = vmatprep.subr.bf16.mxu0 0
    %4015 = vmatpush1.bf16.xpose.msra.mxu0 0
    %4016 = vmatprep.subr.bf16.mxu0 0
    %4017 = vmatpush1.bf16.xpose.msra.mxu0 0
    %4018 = vmatprep.subr.bf16.mxu0 0
    %4019 = vmatpush1.bf16.xpose.msra.mxu0 0
    %4020 = vmatprep.subr.bf16.mxu0 0
    %4021 = vmatpush1.bf16.xpose.msra.mxu0 0
    %4022 = vmatprep.subr.bf16.mxu0 0
    %4023 = vmatpush1.bf16.xpose.msra.mxu0 %v4006
    %4024 = vmatprep.subr.bf16.mxu0 0
    %4025 = vmatpush2.bf16.xpose.msra.mxu0 0
    %4026 = vmatprep.subr.bf16.mxu0 0
    %4027 = vmatpush2.bf16.xpose.msra.mxu0 0
    %4028 = vmatprep.subr.bf16.mxu0 0
    %4029 = vmatpush2.bf16.xpose.msra.mxu0 0
    %4030 = vmatprep.subr.bf16.mxu0 0
    %4031 = vmatpush2.bf16.xpose.msra.mxu0 0
    %4032 = vmatprep.subr.bf16.mxu0 0
    %4033 = vmatpush2.bf16.xpose.msra.mxu0 0
    %4034 = vmatprep.subr.bf16.mxu0 0
    %4035 = vmatpush2.bf16.xpose.msra.mxu0 0
    %4036 = vmatprep.subr.bf16.mxu0 0
    %4037 = vmatpush2.bf16.xpose.msra.mxu0 0
    %4038 = vmatprep.subr.bf16.mxu0 0
    %4039 = vmatpush2.bf16.xpose.msra.mxu0 0
    %4040 = vmatprep.mubr.bf16.mxu0 0
    %4041 = vmatmul.mubr.bf16.gmra.mxu0 %v4003
    %v4042 = vpop.f32.mrf.mxu0
    %v4043 = vadd.f32 %v187, %v4042
    %v4044 = vpop.f32.mrf.mxu0
    %v4045 = vpop.f32.mrf.mxu0
    %v4046 = vpop.f32.mrf.mxu0
    %4047 = vdwg.mxu0
    %v4048 = vsel %vm432, %v3993, -inf
    %4049 = vmax.xlane.f32.xlu0 %v4048
    %v4050 = vpop.xlane.xlu0 %4049
    %v4051 = vsel %vm432, %v4043, -inf
    %4052 = vmax.xlane.f32.xlu0 %v4051
    %v4053 = vpop.xlane.xlu0 %4052
    %v4054 = vsub.f32 %v3993, %v4050
    %v4055 = vsub.f32 %v4043, %v4053
    %v4056 = vmul.f32 %v4054, 1.442695
    %v4057 = vpow.pop %v4056
    %v4058 = vmul.f32 %v4055, 1.442695
    %v4059 = vpow.pop %v4058
    %v4060 = vsel %vm432, %v4057, 0.0
    %4061 = vadd.xlane.f32.xlu0 %v4060
    %v4062 = vpop.xlane.xlu0 %4061
    %v4063 = vsel %vm432, %v4059, 0.0
    %4064 = vadd.xlane.f32.xlu0 %v4063
    %v4065 = vpop.xlane.xlu0 %4064
    %v4066 = vrcp.pop %v4062
    %v4067 = vmul.f32 %v4057, %v4066
    %v4068 = vrcp.pop %v4065
    %v4069 = vmul.f32 %v4059, %v4068
    %v4070 = vpack.c.bf16 %v4067, %v4067
    %v4071 = vpack.c.bf16 %v4069, %v4069
    %4072 = vrot.lane.b32.xlu0 %v3290, 80
    %v4073 = vpop.permute.xlu0 %4072
    %v4075 = vsel %vm432, %v4070, 0
    %v4078 = vsel %vm460, %v4073, 0
    %4080 = vmatprep.subr.bf16.mxu0 0
    %4081 = vmatpush1.bf16.msra.mxu0 0
    %4082 = vmatprep.subr.bf16.mxu0 0
    %4083 = vmatpush1.bf16.msra.mxu0 0
    %4084 = vmatprep.subr.bf16.mxu0 0
    %4085 = vmatpush1.bf16.msra.mxu0 0
    %4086 = vmatprep.subr.bf16.mxu0 0
    %4087 = vmatpush1.bf16.msra.mxu0 0
    %4088 = vmatprep.subr.bf16.mxu0 0
    %4089 = vmatpush1.bf16.msra.mxu0 0
    %4090 = vmatprep.subr.bf16.mxu0 0
    %4091 = vmatpush1.bf16.msra.mxu0 0
    %4092 = vmatprep.subr.bf16.mxu0 0
    %4093 = vmatpush1.bf16.msra.mxu0 0
    %4094 = vmatprep.subr.bf16.mxu0 0
    %4095 = vmatpush1.bf16.msra.mxu0 %v4078
    %4096 = vmatprep.subr.bf16.mxu0 0
    %4097 = vmatpush2.bf16.msra.mxu0 0
    %4098 = vmatprep.subr.bf16.mxu0 0
    %4099 = vmatpush2.bf16.msra.mxu0 0
    %4100 = vmatprep.subr.bf16.mxu0 0
    %4101 = vmatpush2.bf16.msra.mxu0 0
    %4102 = vmatprep.subr.bf16.mxu0 0
    %4103 = vmatpush2.bf16.msra.mxu0 0
    %4104 = vmatprep.subr.bf16.mxu0 0
    %4105 = vmatpush2.bf16.msra.mxu0 0
    %4106 = vmatprep.subr.bf16.mxu0 0
    %4107 = vmatpush2.bf16.msra.mxu0 0
    %4108 = vmatprep.subr.bf16.mxu0 0
    %4109 = vmatpush2.bf16.msra.mxu0 0
    %4110 = vmatprep.subr.bf16.mxu0 0
    %4111 = vmatpush2.bf16.msra.mxu0 0
    %4112 = vmatprep.mubr.bf16.mxu0 0
    %4113 = vmatmul.mubr.bf16.gmra.mxu0 %v4075
    %v4114 = vpop.f32.mrf.mxu0
    %v4115 = vadd.f32 0.0, %v4114
    %v4116 = vpop.f32.mrf.mxu0
    %v4117 = vpop.f32.mrf.mxu0
    %v4118 = vpop.f32.mrf.mxu0
    %4119 = vdwg.mxu0
    %4120 = vrot.lane.b32.xlu0 %v3291, 80
    %v4121 = vpop.permute.xlu0 %4120
    %v4123 = vsel %vm432, %v4071, 0
    %v4126 = vsel %vm460, %v4121, 0
    %4128 = vmatprep.subr.bf16.mxu0 0
    %4129 = vmatpush1.bf16.msra.mxu0 0
    %4130 = vmatprep.subr.bf16.mxu0 0
    %4131 = vmatpush1.bf16.msra.mxu0 0
    %4132 = vmatprep.subr.bf16.mxu0 0
    %4133 = vmatpush1.bf16.msra.mxu0 0
    %4134 = vmatprep.subr.bf16.mxu0 0
    %4135 = vmatpush1.bf16.msra.mxu0 0
    %4136 = vmatprep.subr.bf16.mxu0 0
    %4137 = vmatpush1.bf16.msra.mxu0 0
    %4138 = vmatprep.subr.bf16.mxu0 0
    %4139 = vmatpush1.bf16.msra.mxu0 0
    %4140 = vmatprep.subr.bf16.mxu0 0
    %4141 = vmatpush1.bf16.msra.mxu0 0
    %4142 = vmatprep.subr.bf16.mxu0 0
    %4143 = vmatpush1.bf16.msra.mxu0 %v4126
    %4144 = vmatprep.subr.bf16.mxu0 0
    %4145 = vmatpush2.bf16.msra.mxu0 0
    %4146 = vmatprep.subr.bf16.mxu0 0
    %4147 = vmatpush2.bf16.msra.mxu0 0
    %4148 = vmatprep.subr.bf16.mxu0 0
    %4149 = vmatpush2.bf16.msra.mxu0 0
    %4150 = vmatprep.subr.bf16.mxu0 0
    %4151 = vmatpush2.bf16.msra.mxu0 0
    %4152 = vmatprep.subr.bf16.mxu0 0
    %4153 = vmatpush2.bf16.msra.mxu0 0
    %4154 = vmatprep.subr.bf16.mxu0 0
    %4155 = vmatpush2.bf16.msra.mxu0 0
    %4156 = vmatprep.subr.bf16.mxu0 0
    %4157 = vmatpush2.bf16.msra.mxu0 0
    %4158 = vmatprep.subr.bf16.mxu0 0
    %4159 = vmatpush2.bf16.msra.mxu0 0
    %4160 = vmatprep.mubr.bf16.mxu0 0
    %4161 = vmatmul.mubr.bf16.gmra.mxu0 %v4123
    %v4162 = vpop.f32.mrf.mxu0
    %v4163 = vadd.f32 0.0, %v4162
    %v4164 = vpop.f32.mrf.mxu0
    %v4165 = vpop.f32.mrf.mxu0
    %v4166 = vpop.f32.mrf.mxu0
    %4167 = vdwg.mxu0
    %4170 = vrot.lane.b32.xlu0 %v3674, 16
    %v4171 = vpop.permute.xlu0 %4170
    %4172 = vrot.lane.b32.xlu0 %v3723, 16
    %v4173 = vpop.permute.xlu0 %4172
    %4178 = vrot.lane.b32.xlu0 %v3895, 32
    %v4179 = vpop.permute.xlu0 %4178
    %4180 = vrot.lane.b32.xlu0 %v3943, 32
    %v4181 = vpop.permute.xlu0 %4180
    %4186 = vrot.lane.b32.xlu0 %v4115, 48
    %v4187 = vpop.permute.xlu0 %4186
    %4188 = vrot.lane.b32.xlu0 %v4163, 48
    %v4189 = vpop.permute.xlu0 %4188
    %v4192 = vsel %vm336, %v3455, %v4171
    %v4193 = vsel %vm336, %v3501, %v4173
    %v4194 = vsel %vm1238, %v4192, %v4179
    %v4195 = vsel %vm1238, %v4193, %v4181
    %v4196 = vsel %vm1241, %v4194, %v4187
    %v4197 = vsel %vm1241, %v4195, %v4189
    %v4198 = vpack.c.bf16 %v4197, %v4196
    %s4199 = scalar_lea.vmem %s6, 64
    %v4200 = vld [vmem:[%s4199] sm:$0xf]
    %v4201 = vld [vmem:[%s4199 + $0x4] sm:$0xf]
    %v4202 = vld [vmem:[%s4199 + $0x8] sm:$0xf]
    %v4203 = vld [vmem:[%s4199 + $0xc] sm:$0xf]
    %v4204 = vld [vmem:[%s4199 + $0x10] sm:$0xf]
    %v4205 = vld [vmem:[%s4199 + $0x14] sm:$0xf]
    %v4206 = vld [vmem:[%s4199 + $0x18] sm:$0xf]
    %v4207 = vld [vmem:[%s4199 + $0x1c] sm:$0xf]
    %s4208 = scalar_lea.vmem %s7, 2
    %v4209 = vld [vmem:[%s4208] sm:$0x1]
    %v4211 = vlaneseq
    %v4212 = vshrl.u32 %v4211, 7
    %v4213 = vsub.s32 0, %v4212
    %v4214 = vrot.slane %v4209, %v4213
    %v4224 = vunpack.c.l.b16 %v4200
    %v4225 = vunpack.c.l.b16 %v4201
    %v4226 = vunpack.c.l.b16 %v4202
    %v4227 = vunpack.c.l.b16 %v4203
    %v4228 = vunpack.c.l.b16 %v4204
    %v4229 = vunpack.c.l.b16 %v4205
    %v4230 = vunpack.c.l.b16 %v4206
    %v4231 = vunpack.c.l.b16 %v4207
    %v4232 = vpack.c.b16 %v4225, %v4224
    %v4233 = vpack.c.b16 %v4227, %v4226
    %v4234 = vpack.c.b16 %v4229, %v4228
    %v4235 = vpack.c.b16 %v4231, %v4230
    %v4241 = vsel %vm190, %v4198, 0
    %4243 = vmatprep.subr.bf16.mxu0 0
    %4244 = vmatpush1.bf16.msra.mxu0 0
    %4245 = vmatprep.subr.bf16.mxu0 0
    %4246 = vmatpush1.bf16.msra.mxu0 0
    %4247 = vmatprep.subr.bf16.mxu0 0
    %4248 = vmatpush1.bf16.msra.mxu0 0
    %4249 = vmatprep.subr.bf16.mxu0 0
    %4250 = vmatpush1.bf16.msra.mxu0 0
    %4251 = vmatprep.subr.bf16.mxu0 0
    %4252 = vmatpush1.bf16.msra.mxu0 %v4235
    %4253 = vmatprep.subr.bf16.mxu0 0
    %4254 = vmatpush1.bf16.msra.mxu0 %v4234
    %4255 = vmatprep.subr.bf16.mxu0 0
    %4256 = vmatpush1.bf16.msra.mxu0 %v4233
    %4257 = vmatprep.subr.bf16.mxu0 0
    %4258 = vmatpush1.bf16.msra.mxu0 %v4232
    %4259 = vmatprep.subr.bf16.mxu0 0
    %4260 = vmatpush2.bf16.msra.mxu0 0
    %4261 = vmatprep.subr.bf16.mxu0 0
    %4262 = vmatpush2.bf16.msra.mxu0 0
    %4263 = vmatprep.subr.bf16.mxu0 0
    %4264 = vmatpush2.bf16.msra.mxu0 0
    %4265 = vmatprep.subr.bf16.mxu0 0
    %4266 = vmatpush2.bf16.msra.mxu0 0
    %4267 = vmatprep.subr.bf16.mxu0 0
    %4268 = vmatpush2.bf16.msra.mxu0 0
    %4269 = vmatprep.subr.bf16.mxu0 0
    %4270 = vmatpush2.bf16.msra.mxu0 0
    %4271 = vmatprep.subr.bf16.mxu0 0
    %4272 = vmatpush2.bf16.msra.mxu0 0
    %4273 = vmatprep.subr.bf16.mxu0 0
    %4274 = vmatpush2.bf16.msra.mxu0 0
    %4275 = vmatprep.mubr.bf16.mxu0 0
    %4276 = vmatmul.mubr.bf16.gmra.mxu0 %v4241
    %v4277 = vpop.f32.mrf.mxu0
    %v4278 = vadd.f32 %v4214, %v4277
    %v4279 = vpop.f32.mrf.mxu0
    %v4280 = vpop.f32.mrf.mxu0
    %v4281 = vadd.f32 %v4214, %v4280
    %v4282 = vpop.f32.mrf.mxu0
    %4283 = vdwg.mxu0
    %v4284 = vadd.f32 %v3144, %v4278
    %v4285 = vadd.f32 %v3145, %v4281
    %s4286 = scalar_lea.vmem %s8, 2
    %v4287 = vld [vmem:[%s4286] sm:$0x1]
    %s4288 = scalar_lea.vmem %s9, 2
    %v4289 = vld [vmem:[%s4288] sm:$0x1]
    %v4290 = vsel %vm190, %v4284, 0.0
    %4291 = vadd.xlane.f32.xlu0 %v4290
    %v4292 = vpop.xlane.xlu0 %4291
    %v4293 = vsel %vm190, %v4285, 0.0
    %4294 = vadd.xlane.f32.xlu0 %v4293
    %v4295 = vpop.xlane.xlu0 %4294
    %v4296 = vmul.f32 %v4292, %v197
    %v4297 = vmul.f32 %v4295, %v197
    %v4298 = vsub.f32 %v4284, %v4296
    %v4299 = vsub.f32 %v4285, %v4297
    %v4300 = vmul.f32 %v4298, %v4298
    %v4301 = vmul.f32 %v4299, %v4299
    %v4302 = vsel %vm190, %v4300, 0.0
    %4303 = vadd.xlane.f32.xlu0 %v4302
    %v4304 = vpop.xlane.xlu0 %4303
    %v4305 = vsel %vm190, %v4301, 0.0
    %4306 = vadd.xlane.f32.xlu0 %v4305
    %v4307 = vpop.xlane.xlu0 %4306
    %v4308 = vmul.f32 %v4304, %v197
    %v4309 = vmul.f32 %v4307, %v197
    %v4310 = vadd.f32 %v4308, 1e-05
    %v4311 = vadd.f32 %v4309, 1e-05
    %v4312 = vrsqrt.pop %v4310
    %v4313 = vrsqrt.pop %v4311
    %v4314 = vmul.f32 %v4298, %v4312
    %v4315 = vmul.f32 %v4299, %v4313
    %v4317 = vlaneseq
    %v4318 = vshrl.u32 %v4317, 7
    %v4319 = vsub.s32 0, %v4318
    %v4320 = vrot.slane %v4287, %v4319
    %v4322 = vmul.f32 %v4314, %v4320
    %v4323 = vmul.f32 %v4315, %v4320
    %v4325 = vlaneseq
    %v4326 = vshrl.u32 %v4325, 7
    %v4327 = vsub.s32 0, %v4326
    %v4328 = vrot.slane %v4289, %v4327
    %v4330 = vadd.f32 %v4322, %v4328
    %v4331 = vadd.f32 %v4323, %v4328
    %v4332 = vpack.c.bf16 %v4331, %v4330
    %s4333 = scalar_lea.vmem %s10, 128
    %v4334 = vld [vmem:[%s4333] sm:$0xff]
    %v4335 = vld [vmem:[%s4333 + $0x8] sm:$0xff]
    %v4336 = vld [vmem:[%s4333 + $0x10] sm:$0xff]
    %v4337 = vld [vmem:[%s4333 + $0x18] sm:$0xff]
    %v4338 = vld [vmem:[%s4333 + $0x20] sm:$0xff]
    %v4339 = vld [vmem:[%s4333 + $0x28] sm:$0xff]
    %v4340 = vld [vmem:[%s4333 + $0x30] sm:$0xff]
    %v4341 = vld [vmem:[%s4333 + $0x38] sm:$0xff]
    %s4342 = scalar_lea.vmem %s11, 4
    %v4343 = vld [vmem:[%s4342] sm:$0x3]
    %v4345 = vlaneseq
    %v4346 = vshrl.u32 %v4345, 7
    %v4347 = vsub.s32 0, %v4346
    %v4348 = vrot.slane %v4343, %v4347
    %v4349 = vlaneseq
    %v4350 = vshrl.u32 %v4349, 7
    %v4351 = vsub.s32 1, %v4350
    %v4352 = vrot.slane %v4343, %v4351
    %v4363 = vunpack.c.l.b16 %v4334
    %v4364 = vunpack.c.h.b16 %v4334
    %v4365 = vunpack.c.l.b16 %v4335
    %v4366 = vunpack.c.h.b16 %v4335
    %v4367 = vunpack.c.l.b16 %v4336
    %v4368 = vunpack.c.h.b16 %v4336
    %v4369 = vunpack.c.l.b16 %v4337
    %v4370 = vunpack.c.h.b16 %v4337
    %v4371 = vunpack.c.l.b16 %v4338
    %v4372 = vunpack.c.h.b16 %v4338
    %v4373 = vunpack.c.l.b16 %v4339
    %v4374 = vunpack.c.h.b16 %v4339
    %v4375 = vunpack.c.l.b16 %v4340
    %v4376 = vunpack.c.h.b16 %v4340
    %v4377 = vunpack.c.l.b16 %v4341
    %v4378 = vunpack.c.h.b16 %v4341
    %v4379 = vpack.c.b16 %v4365, %v4363
    %v4380 = vpack.c.b16 %v4366, %v4364
    %v4381 = vpack.c.b16 %v4369, %v4367
    %v4382 = vpack.c.b16 %v4370, %v4368
    %v4383 = vpack.c.b16 %v4373, %v4371
    %v4384 = vpack.c.b16 %v4374, %v4372
    %v4385 = vpack.c.b16 %v4377, %v4375
    %v4386 = vpack.c.b16 %v4378, %v4376
    %v4396 = vsel %vm190, %v4332, 0
    %4398 = vmatprep.subr.bf16.mxu0 0
    %4399 = vmatpush1.bf16.msra.mxu0 0
    %4400 = vmatprep.subr.bf16.mxu0 0
    %4401 = vmatpush1.bf16.msra.mxu0 0
    %4402 = vmatprep.subr.bf16.mxu0 0
    %4403 = vmatpush1.bf16.msra.mxu0 0
    %4404 = vmatprep.subr.bf16.mxu0 0
    %4405 = vmatpush1.bf16.msra.mxu0 0
    %4406 = vmatprep.subr.bf16.mxu0 %v4386
    %4407 = vmatpush1.bf16.msra.mxu0 %v4385
    %4408 = vmatprep.subr.bf16.mxu0 %v4384
    %4409 = vmatpush1.bf16.msra.mxu0 %v4383
    %4410 = vmatprep.subr.bf16.mxu0 %v4382
    %4411 = vmatpush1.bf16.msra.mxu0 %v4381
    %4412 = vmatprep.subr.bf16.mxu0 %v4380
    %4413 = vmatpush1.bf16.msra.mxu0 %v4379
    %4414 = vmatprep.subr.bf16.mxu0 0
    %4415 = vmatpush2.bf16.msra.mxu0 0
    %4416 = vmatprep.subr.bf16.mxu0 0
    %4417 = vmatpush2.bf16.msra.mxu0 0
    %4418 = vmatprep.subr.bf16.mxu0 0
    %4419 = vmatpush2.bf16.msra.mxu0 0
    %4420 = vmatprep.subr.bf16.mxu0 0
    %4421 = vmatpush2.bf16.msra.mxu0 0
    %4422 = vmatprep.subr.bf16.mxu0 0
    %4423 = vmatpush2.bf16.msra.mxu0 0
    %4424 = vmatprep.subr.bf16.mxu0 0
    %4425 = vmatpush2.bf16.msra.mxu0 0
    %4426 = vmatprep.subr.bf16.mxu0 0
    %4427 = vmatpush2.bf16.msra.mxu0 0
    %4428 = vmatprep.subr.bf16.mxu0 0
    %4429 = vmatpush2.bf16.msra.mxu0 0
    %4430 = vmatprep.mubr.bf16.mxu0 0
    %4431 = vmatmul.mubr.bf16.gmra.mxu0 %v4396
    %v4432 = vpop.f32.mrf.mxu0
    %v4433 = vadd.f32 %v4348, %v4432
    %v4434 = vpop.f32.mrf.mxu0
    %v4435 = vadd.f32 %v4352, %v4434
    %v4436 = vpop.f32.mrf.mxu0
    %v4437 = vadd.f32 %v4348, %v4436
    %v4438 = vpop.f32.mrf.mxu0
    %v4439 = vadd.f32 %v4352, %v4438
    %4440 = vdwg.mxu0
    %v4441 = vmax.f32 %v4433, 0.0
    %v4442 = vmax.f32 %v4435, 0.0
    %v4443 = vmax.f32 %v4437, 0.0
    %v4444 = vmax.f32 %v4439, 0.0
    %v4445 = vpack.c.bf16 %v4443, %v4441
    %v4446 = vpack.c.bf16 %v4444, %v4442
    %s4447 = scalar_lea.vmem %s12, 256
    %v4448 = vld [vmem:[%s4447] sm:$0xf]
    %v4449 = vld [vmem:[%s4447 + $0x4] sm:$0xf]
    %v4450 = vld [vmem:[%s4447 + $0x8] sm:$0xf]
    %v4451 = vld [vmem:[%s4447 + $0xc] sm:$0xf]
    %v4452 = vld [vmem:[%s4447 + $0x10] sm:$0xf]
    %v4453 = vld [vmem:[%s4447 + $0x14] sm:$0xf]
    %v4454 = vld [vmem:[%s4447 + $0x18] sm:$0xf]
    %v4455 = vld [vmem:[%s4447 + $0x1c] sm:$0xf]
    %v4456 = vld [vmem:[%s4447 + $0x20] sm:$0xf]
    %v4457 = vld [vmem:[%s4447 + $0x24] sm:$0xf]
    %v4458 = vld [vmem:[%s4447 + $0x28] sm:$0xf]
    %v4459 = vld [vmem:[%s4447 + $0x2c] sm:$0xf]
    %v4460 = vld [vmem:[%s4447 + $0x30] sm:$0xf]
    %v4461 = vld [vmem:[%s4447 + $0x34] sm:$0xf]
    %v4462 = vld [vmem:[%s4447 + $0x38] sm:$0xf]
    %v4463 = vld [vmem:[%s4447 + $0x3c] sm:$0xf]
    %v4464 = vld [vmem:[%s4447 + $0x40] sm:$0xf]
    %v4465 = vld [vmem:[%s4447 + $0x44] sm:$0xf]
    %v4466 = vld [vmem:[%s4447 + $0x48] sm:$0xf]
    %v4467 = vld [vmem:[%s4447 + $0x4c] sm:$0xf]
    %v4468 = vld [vmem:[%s4447 + $0x50] sm:$0xf]
    %v4469 = vld [vmem:[%s4447 + $0x54] sm:$0xf]
    %v4470 = vld [vmem:[%s4447 + $0x58] sm:$0xf]
    %v4471 = vld [vmem:[%s4447 + $0x5c] sm:$0xf]
    %v4472 = vld [vmem:[%s4447 + $0x60] sm:$0xf]
    %v4473 = vld [vmem:[%s4447 + $0x64] sm:$0xf]
    %v4474 = vld [vmem:[%s4447 + $0x68] sm:$0xf]
    %v4475 = vld [vmem:[%s4447 + $0x6c] sm:$0xf]
    %v4476 = vld [vmem:[%s4447 + $0x70] sm:$0xf]
    %v4477 = vld [vmem:[%s4447 + $0x74] sm:$0xf]
    %v4478 = vld [vmem:[%s4447 + $0x78] sm:$0xf]
    %v4479 = vld [vmem:[%s4447 + $0x7c] sm:$0xf]
    %s4480 = scalar_lea.vmem %s13, 2
    %v4481 = vld [vmem:[%s4480] sm:$0x1]
    %v4483 = vlaneseq
    %v4484 = vshrl.u32 %v4483, 7
    %v4485 = vsub.s32 0, %v4484
    %v4486 = vrot.slane %v4481, %v4485
    %v4520 = vunpack.c.l.b16 %v4448
    %v4521 = vunpack.c.l.b16 %v4449
    %v4522 = vunpack.c.l.b16 %v4450
    %v4523 = vunpack.c.l.b16 %v4451
    %v4524 = vunpack.c.l.b16 %v4452
    %v4525 = vunpack.c.l.b16 %v4453
    %v4526 = vunpack.c.l.b16 %v4454
    %v4527 = vunpack.c.l.b16 %v4455
    %v4528 = vunpack.c.l.b16 %v4456
    %v4529 = vunpack.c.l.b16 %v4457
    %v4530 = vunpack.c.l.b16 %v4458
    %v4531 = vunpack.c.l.b16 %v4459
    %v4532 = vunpack.c.l.b16 %v4460
    %v4533 = vunpack.c.l.b16 %v4461
    %v4534 = vunpack.c.l.b16 %v4462
    %v4535 = vunpack.c.l.b16 %v4463
    %v4536 = vunpack.c.l.b16 %v4464
    %v4537 = vunpack.c.l.b16 %v4465
    %v4538 = vunpack.c.l.b16 %v4466
    %v4539 = vunpack.c.l.b16 %v4467
    %v4540 = vunpack.c.l.b16 %v4468
    %v4541 = vunpack.c.l.b16 %v4469
    %v4542 = vunpack.c.l.b16 %v4470
    %v4543 = vunpack.c.l.b16 %v4471
    %v4544 = vunpack.c.l.b16 %v4472
    %v4545 = vunpack.c.l.b16 %v4473
    %v4546 = vunpack.c.l.b16 %v4474
    %v4547 = vunpack.c.l.b16 %v4475
    %v4548 = vunpack.c.l.b16 %v4476
    %v4549 = vunpack.c.l.b16 %v4477
    %v4550 = vunpack.c.l.b16 %v4478
    %v4551 = vunpack.c.l.b16 %v4479
    %v4552 = vpack.c.b16 %v4521, %v4520
    %v4553 = vpack.c.b16 %v4523, %v4522
    %v4554 = vpack.c.b16 %v4525, %v4524
    %v4555 = vpack.c.b16 %v4527, %v4526
    %v4556 = vpack.c.b16 %v4529, %v4528
    %v4557 = vpack.c.b16 %v4531, %v4530
    %v4558 = vpack.c.b16 %v4533, %v4532
    %v4559 = vpack.c.b16 %v4535, %v4534
    %v4560 = vpack.c.b16 %v4537, %v4536
    %v4561 = vpack.c.b16 %v4539, %v4538
    %v4562 = vpack.c.b16 %v4541, %v4540
    %v4563 = vpack.c.b16 %v4543, %v4542
    %v4564 = vpack.c.b16 %v4545, %v4544
    %v4565 = vpack.c.b16 %v4547, %v4546
    %v4566 = vpack.c.b16 %v4549, %v4548
    %v4567 = vpack.c.b16 %v4551, %v4550
    %4584 = vmatprep.subr.bf16.mxu0 0
    %4585 = vmatpush1.bf16.msra.mxu0 %v4559
    %4586 = vmatprep.subr.bf16.mxu0 0
    %4587 = vmatpush1.bf16.msra.mxu0 %v4558
    %4588 = vmatprep.subr.bf16.mxu0 0
    %4589 = vmatpush1.bf16.msra.mxu0 %v4557
    %4590 = vmatprep.subr.bf16.mxu0 0
    %4591 = vmatpush1.bf16.msra.mxu0 %v4556
    %4592 = vmatprep.subr.bf16.mxu0 0
    %4593 = vmatpush1.bf16.msra.mxu0 %v4555
    %4594 = vmatprep.subr.bf16.mxu0 0
    %4595 = vmatpush1.bf16.msra.mxu0 %v4554
    %4596 = vmatprep.subr.bf16.mxu0 0
    %4597 = vmatpush1.bf16.msra.mxu0 %v4553
    %4598 = vmatprep.subr.bf16.mxu0 0
    %4599 = vmatpush1.bf16.msra.mxu0 %v4552
    %4600 = vmatprep.subr.bf16.mxu0 0
    %4601 = vmatpush2.bf16.msra.mxu0 %v4567
    %4602 = vmatprep.subr.bf16.mxu0 0
    %4603 = vmatpush2.bf16.msra.mxu0 %v4566
    %4604 = vmatprep.subr.bf16.mxu0 0
    %4605 = vmatpush2.bf16.msra.mxu0 %v4565
    %4606 = vmatprep.subr.bf16.mxu0 0
    %4607 = vmatpush2.bf16.msra.mxu0 %v4564
    %4608 = vmatprep.subr.bf16.mxu0 0
    %4609 = vmatpush2.bf16.msra.mxu0 %v4563
    %4610 = vmatprep.subr.bf16.mxu0 0
    %4611 = vmatpush2.bf16.msra.mxu0 %v4562
    %4612 = vmatprep.subr.bf16.mxu0 0
    %4613 = vmatpush2.bf16.msra.mxu0 %v4561
    %4614 = vmatprep.subr.bf16.mxu0 0
    %4615 = vmatpush2.bf16.msra.mxu0 %v4560
    %4616 = vmatprep.mubr.bf16.mxu0 %v4446
    %4617 = vmatmul.mubr.bf16.gmra.mxu0 %v4445
    %v4618 = vpop.f32.mrf.mxu0
    %v4619 = vadd.f32 %v4486, %v4618
    %v4620 = vpop.f32.mrf.mxu0
    %v4621 = vpop.f32.mrf.mxu0
    %v4622 = vadd.f32 %v4486, %v4621
    %v4623 = vpop.f32.mrf.mxu0
    %4624 = vdwg.mxu0
    %v4625 = vadd.f32 %v4284, %v4619
    %v4626 = vadd.f32 %v4285, %v4622
    %s4627 = scalar_lea.vmem %s3, 3
    %v4628 = vld [vmem:[%s4627] sm:$0x1]
    %s4629 = scalar_lea.vmem %s4, 3
    %v4630 = vld [vmem:[%s4629] sm:$0x1]
    %v4631 = vsel %vm190, %v4625, 0.0
    %4632 = vadd.xlane.f32.xlu0 %v4631
    %v4633 = vpop.xlane.xlu0 %4632
    %v4634 = vsel %vm190, %v4626, 0.0
    %4635 = vadd.xlane.f32.xlu0 %v4634
    %v4636 = vpop.xlane.xlu0 %4635
    %v4637 = vmul.f32 %v4633, %v197
    %v4638 = vmul.f32 %v4636, %v197
    %v4639 = vsub.f32 %v4625, %v4637
    %v4640 = vsub.f32 %v4626, %v4638
    %v4641 = vmul.f32 %v4639, %v4639
    %v4642 = vmul.f32 %v4640, %v4640
    %v4643 = vsel %vm190, %v4641, 0.0
    %4644 = vadd.xlane.f32.xlu0 %v4643
    %v4645 = vpop.xlane.xlu0 %4644
    %v4646 = vsel %vm190, %v4642, 0.0
    %4647 = vadd.xlane.f32.xlu0 %v4646
    %v4648 = vpop.xlane.xlu0 %4647
    %v4649 = vmul.f32 %v4645, %v197
    %v4650 = vmul.f32 %v4648, %v197
    %v4651 = vadd.f32 %v4649, 1e-05
    %v4652 = vadd.f32 %v4650, 1e-05
    %v4653 = vrsqrt.pop %v4651
    %v4654 = vrsqrt.pop %v4652
    %v4655 = vmul.f32 %v4639, %v4653
    %v4656 = vmul.f32 %v4640, %v4654
    %v4658 = vlaneseq
    %v4659 = vshrl.u32 %v4658, 7
    %v4660 = vsub.s32 0, %v4659
    %v4661 = vrot.slane %v4628, %v4660
    %v4663 = vmul.f32 %v4655, %v4661
    %v4664 = vmul.f32 %v4656, %v4661
    %v4666 = vlaneseq
    %v4667 = vshrl.u32 %v4666, 7
    %v4668 = vsub.s32 0, %v4667
    %v4669 = vrot.slane %v4630, %v4668
    %v4671 = vadd.f32 %v4663, %v4669
    %v4672 = vadd.f32 %v4664, %v4669
    %v4673 = vpack.c.bf16 %v4672, %v4671
    %s4674 = scalar_lea.vmem %s5, 192
    %v4675 = vld [vmem:[%s4674] sm:$0xff]
    %v4676 = vld [vmem:[%s4674 + $0x8] sm:$0xff]
    %v4677 = vld [vmem:[%s4674 + $0x10] sm:$0xff]
    %v4678 = vld [vmem:[%s4674 + $0x18] sm:$0xff]
    %v4679 = vld [vmem:[%s4674 + $0x20] sm:$0xff]
    %v4680 = vld [vmem:[%s4674 + $0x28] sm:$0xff]
    %v4681 = vld [vmem:[%s4674 + $0x30] sm:$0xff]
    %v4682 = vld [vmem:[%s4674 + $0x38] sm:$0xff]
    %v4691 = vunpack.c.l.b16 %v4675
    %v4692 = vunpack.c.h.b16 %v4675
    %v4693 = vunpack.c.l.b16 %v4676
    %v4694 = vunpack.c.h.b16 %v4676
    %v4695 = vunpack.c.l.b16 %v4677
    %v4696 = vunpack.c.h.b16 %v4677
    %v4697 = vunpack.c.l.b16 %v4678
    %v4698 = vunpack.c.h.b16 %v4678
    %v4699 = vunpack.c.l.b16 %v4679
    %v4700 = vunpack.c.h.b16 %v4679
    %v4701 = vunpack.c.l.b16 %v4680
    %v4702 = vunpack.c.h.b16 %v4680
    %v4703 = vunpack.c.l.b16 %v4681
    %v4704 = vunpack.c.h.b16 %v4681
    %v4705 = vunpack.c.l.b16 %v4682
    %v4706 = vunpack.c.h.b16 %v4682
    %v4707 = vpack.c.b16 %v4693, %v4691
    %v4708 = vpack.c.b16 %v4694, %v4692
    %v4709 = vpack.c.b16 %v4697, %v4695
    %v4710 = vpack.c.b16 %v4698, %v4696
    %v4711 = vpack.c.b16 %v4701, %v4699
    %v4712 = vpack.c.b16 %v4702, %v4700
    %v4713 = vpack.c.b16 %v4705, %v4703
    %v4714 = vpack.c.b16 %v4706, %v4704
    %v4724 = vsel %vm190, %v4673, 0
    %4726 = vmatprep.subr.bf16.mxu0 0
    %4727 = vmatpush1.bf16.msra.mxu0 0
    %4728 = vmatprep.subr.bf16.mxu0 0
    %4729 = vmatpush1.bf16.msra.mxu0 0
    %4730 = vmatprep.subr.bf16.mxu0 0
    %4731 = vmatpush1.bf16.msra.mxu0 0
    %4732 = vmatprep.subr.bf16.mxu0 0
    %4733 = vmatpush1.bf16.msra.mxu0 0
    %4734 = vmatprep.subr.bf16.mxu0 %v4714
    %4735 = vmatpush1.bf16.msra.mxu0 %v4713
    %4736 = vmatprep.subr.bf16.mxu0 %v4712
    %4737 = vmatpush1.bf16.msra.mxu0 %v4711
    %4738 = vmatprep.subr.bf16.mxu0 %v4710
    %4739 = vmatpush1.bf16.msra.mxu0 %v4709
    %4740 = vmatprep.subr.bf16.mxu0 %v4708
    %4741 = vmatpush1.bf16.msra.mxu0 %v4707
    %4742 = vmatprep.subr.bf16.mxu0 0
    %4743 = vmatpush2.bf16.msra.mxu0 0
    %4744 = vmatprep.subr.bf16.mxu0 0
    %4745 = vmatpush2.bf16.msra.mxu0 0
    %4746 = vmatprep.subr.bf16.mxu0 0
    %4747 = vmatpush2.bf16.msra.mxu0 0
    %4748 = vmatprep.subr.bf16.mxu0 0
    %4749 = vmatpush2.bf16.msra.mxu0 0
    %4750 = vmatprep.subr.bf16.mxu0 0
    %4751 = vmatpush2.bf16.msra.mxu0 0
    %4752 = vmatprep.subr.bf16.mxu0 0
    %4753 = vmatpush2.bf16.msra.mxu0 0
    %4754 = vmatprep.subr.bf16.mxu0 0
    %4755 = vmatpush2.bf16.msra.mxu0 0
    %4756 = vmatprep.subr.bf16.mxu0 0
    %4757 = vmatpush2.bf16.msra.mxu0 0
    %4758 = vmatprep.mubr.bf16.mxu0 0
    %4759 = vmatmul.mubr.bf16.gmra.mxu0 %v4724
    %v4760 = vpop.f32.mrf.mxu0
    %v4761 = vadd.f32 0.0, %v4760
    %v4762 = vpop.f32.mrf.mxu0
    %v4763 = vadd.f32 0.0, %v4762
    %v4764 = vpop.f32.mrf.mxu0
    %v4765 = vadd.f32 0.0, %v4764
    %v4766 = vpop.f32.mrf.mxu0
    %v4767 = vadd.f32 0.0, %v4766
    %4768 = vdwg.mxu0
    %v4769 = vpack.c.bf16 %v4761, %v4761
    %v4770 = vpack.c.bf16 %v4765, %v4765
    %v4771 = vpack.c.bf16 %v4763, %v4763
    %v4772 = vpack.c.bf16 %v4767, %v4767
    %4774 = vrot.lane.b32.xlu0 %v4769, 64
    %v4775 = vpop.permute.xlu0 %4774
    %v4777 = vsel %vm336, %v4769, 0
    %v4780 = vsel %vm336, %v4775, 0
    %4782 = vmatprep.subr.bf16.mxu0 0
    %4783 = vmatpush1.bf16.xpose.msra.mxu0 0
    %4784 = vmatprep.subr.bf16.mxu0 0
    %4785 = vmatpush1.bf16.xpose.msra.mxu0 0
    %4786 = vmatprep.subr.bf16.mxu0 0
    %4787 = vmatpush1.bf16.xpose.msra.mxu0 0
    %4788 = vmatprep.subr.bf16.mxu0 0
    %4789 = vmatpush1.bf16.xpose.msra.mxu0 0
    %4790 = vmatprep.subr.bf16.mxu0 0
    %4791 = vmatpush1.bf16.xpose.msra.mxu0 0
    %4792 = vmatprep.subr.bf16.mxu0 0
    %4793 = vmatpush1.bf16.xpose.msra.mxu0 0
    %4794 = vmatprep.subr.bf16.mxu0 0
    %4795 = vmatpush1.bf16.xpose.msra.mxu0 0
    %4796 = vmatprep.subr.bf16.mxu0 0
    %4797 = vmatpush1.bf16.xpose.msra.mxu0 %v4780
    %4798 = vmatprep.subr.bf16.mxu0 0
    %4799 = vmatpush2.bf16.xpose.msra.mxu0 0
    %4800 = vmatprep.subr.bf16.mxu0 0
    %4801 = vmatpush2.bf16.xpose.msra.mxu0 0
    %4802 = vmatprep.subr.bf16.mxu0 0
    %4803 = vmatpush2.bf16.xpose.msra.mxu0 0
    %4804 = vmatprep.subr.bf16.mxu0 0
    %4805 = vmatpush2.bf16.xpose.msra.mxu0 0
    %4806 = vmatprep.subr.bf16.mxu0 0
    %4807 = vmatpush2.bf16.xpose.msra.mxu0 0
    %4808 = vmatprep.subr.bf16.mxu0 0
    %4809 = vmatpush2.bf16.xpose.msra.mxu0 0
    %4810 = vmatprep.subr.bf16.mxu0 0
    %4811 = vmatpush2.bf16.xpose.msra.mxu0 0
    %4812 = vmatprep.subr.bf16.mxu0 0
    %4813 = vmatpush2.bf16.xpose.msra.mxu0 0
    %4814 = vmatprep.mubr.bf16.mxu0 0
    %4815 = vmatmul.mubr.bf16.gmra.mxu0 %v4777
    %v4816 = vpop.f32.mrf.mxu0
    %v4817 = vadd.f32 %v187, %v4816
    %v4818 = vpop.f32.mrf.mxu0
    %v4819 = vpop.f32.mrf.mxu0
    %v4820 = vpop.f32.mrf.mxu0
    %4821 = vdwg.mxu0
    %4823 = vrot.lane.b32.xlu0 %v4770, 64
    %v4824 = vpop.permute.xlu0 %4823
    %v4826 = vsel %vm336, %v4770, 0
    %v4829 = vsel %vm336, %v4824, 0
    %4831 = vmatprep.subr.bf16.mxu0 0
    %4832 = vmatpush1.bf16.xpose.msra.mxu0 0
    %4833 = vmatprep.subr.bf16.mxu0 0
    %4834 = vmatpush1.bf16.xpose.msra.mxu0 0
    %4835 = vmatprep.subr.bf16.mxu0 0
    %4836 = vmatpush1.bf16.xpose.msra.mxu0 0
    %4837 = vmatprep.subr.bf16.mxu0 0
    %4838 = vmatpush1.bf16.xpose.msra.mxu0 0
    %4839 = vmatprep.subr.bf16.mxu0 0
    %4840 = vmatpush1.bf16.xpose.msra.mxu0 0
    %4841 = vmatprep.subr.bf16.mxu0 0
    %4842 = vmatpush1.bf16.xpose.msra.mxu0 0
    %4843 = vmatprep.subr.bf16.mxu0 0
    %4844 = vmatpush1.bf16.xpose.msra.mxu0 0
    %4845 = vmatprep.subr.bf16.mxu0 0
    %4846 = vmatpush1.bf16.xpose.msra.mxu0 %v4829
    %4847 = vmatprep.subr.bf16.mxu0 0
    %4848 = vmatpush2.bf16.xpose.msra.mxu0 0
    %4849 = vmatprep.subr.bf16.mxu0 0
    %4850 = vmatpush2.bf16.xpose.msra.mxu0 0
    %4851 = vmatprep.subr.bf16.mxu0 0
    %4852 = vmatpush2.bf16.xpose.msra.mxu0 0
    %4853 = vmatprep.subr.bf16.mxu0 0
    %4854 = vmatpush2.bf16.xpose.msra.mxu0 0
    %4855 = vmatprep.subr.bf16.mxu0 0
    %4856 = vmatpush2.bf16.xpose.msra.mxu0 0
    %4857 = vmatprep.subr.bf16.mxu0 0
    %4858 = vmatpush2.bf16.xpose.msra.mxu0 0
    %4859 = vmatprep.subr.bf16.mxu0 0
    %4860 = vmatpush2.bf16.xpose.msra.mxu0 0
    %4861 = vmatprep.subr.bf16.mxu0 0
    %4862 = vmatpush2.bf16.xpose.msra.mxu0 0
    %4863 = vmatprep.mubr.bf16.mxu0 0
    %4864 = vmatmul.mubr.bf16.gmra.mxu0 %v4826
    %v4865 = vpop.f32.mrf.mxu0
    %v4866 = vadd.f32 %v187, %v4865
    %v4867 = vpop.f32.mrf.mxu0
    %v4868 = vpop.f32.mrf.mxu0
    %v4869 = vpop.f32.mrf.mxu0
    %4870 = vdwg.mxu0
    %v4871 = vsel %vm432, %v4817, -inf
    %4872 = vmax.xlane.f32.xlu0 %v4871
    %v4873 = vpop.xlane.xlu0 %4872
    %v4874 = vsel %vm432, %v4866, -inf
    %4875 = vmax.xlane.f32.xlu0 %v4874
    %v4876 = vpop.xlane.xlu0 %4875
    %v4877 = vsub.f32 %v4817, %v4873
    %v4878 = vsub.f32 %v4866, %v4876
    %v4879 = vmul.f32 %v4877, 1.442695
    %v4880 = vpow.pop %v4879
    %v4881 = vmul.f32 %v4878, 1.442695
    %v4882 = vpow.pop %v4881
    %v4883 = vsel %vm432, %v4880, 0.0
    %4884 = vadd.xlane.f32.xlu0 %v4883
    %v4885 = vpop.xlane.xlu0 %4884
    %v4886 = vsel %vm432, %v4882, 0.0
    %4887 = vadd.xlane.f32.xlu0 %v4886
    %v4888 = vpop.xlane.xlu0 %4887
    %v4889 = vrcp.pop %v4885
    %v4890 = vmul.f32 %v4880, %v4889
    %v4891 = vrcp.pop %v4888
    %v4892 = vmul.f32 %v4882, %v4891
    %v4893 = vpack.c.bf16 %v4890, %v4890
    %v4894 = vpack.c.bf16 %v4892, %v4892
    %v4896 = vsel %vm432, %v4893, 0
    %v4899 = vsel %vm460, %v4771, 0
    %4901 = vmatprep.subr.bf16.mxu0 0
    %4902 = vmatpush1.bf16.msra.mxu0 0
    %4903 = vmatprep.subr.bf16.mxu0 0
    %4904 = vmatpush1.bf16.msra.mxu0 0
    %4905 = vmatprep.subr.bf16.mxu0 0
    %4906 = vmatpush1.bf16.msra.mxu0 0
    %4907 = vmatprep.subr.bf16.mxu0 0
    %4908 = vmatpush1.bf16.msra.mxu0 0
    %4909 = vmatprep.subr.bf16.mxu0 0
    %4910 = vmatpush1.bf16.msra.mxu0 0
    %4911 = vmatprep.subr.bf16.mxu0 0
    %4912 = vmatpush1.bf16.msra.mxu0 0
    %4913 = vmatprep.subr.bf16.mxu0 0
    %4914 = vmatpush1.bf16.msra.mxu0 0
    %4915 = vmatprep.subr.bf16.mxu0 0
    %4916 = vmatpush1.bf16.msra.mxu0 %v4899
    %4917 = vmatprep.subr.bf16.mxu0 0
    %4918 = vmatpush2.bf16.msra.mxu0 0
    %4919 = vmatprep.subr.bf16.mxu0 0
    %4920 = vmatpush2.bf16.msra.mxu0 0
    %4921 = vmatprep.subr.bf16.mxu0 0
    %4922 = vmatpush2.bf16.msra.mxu0 0
    %4923 = vmatprep.subr.bf16.mxu0 0
    %4924 = vmatpush2.bf16.msra.mxu0 0
    %4925 = vmatprep.subr.bf16.mxu0 0
    %4926 = vmatpush2.bf16.msra.mxu0 0
    %4927 = vmatprep.subr.bf16.mxu0 0
    %4928 = vmatpush2.bf16.msra.mxu0 0
    %4929 = vmatprep.subr.bf16.mxu0 0
    %4930 = vmatpush2.bf16.msra.mxu0 0
    %4931 = vmatprep.subr.bf16.mxu0 0
    %4932 = vmatpush2.bf16.msra.mxu0 0
    %4933 = vmatprep.mubr.bf16.mxu0 0
    %4934 = vmatmul.mubr.bf16.gmra.mxu0 %v4896
    %v4935 = vpop.f32.mrf.mxu0
    %v4936 = vadd.f32 0.0, %v4935
    %v4937 = vpop.f32.mrf.mxu0
    %v4938 = vpop.f32.mrf.mxu0
    %v4939 = vpop.f32.mrf.mxu0
    %4940 = vdwg.mxu0
    %v4942 = vsel %vm432, %v4894, 0
    %v4945 = vsel %vm460, %v4772, 0
    %4947 = vmatprep.subr.bf16.mxu0 0
    %4948 = vmatpush1.bf16.msra.mxu0 0
    %4949 = vmatprep.subr.bf16.mxu0 0
    %4950 = vmatpush1.bf16.msra.mxu0 0
    %4951 = vmatprep.subr.bf16.mxu0 0
    %4952 = vmatpush1.bf16.msra.mxu0 0
    %4953 = vmatprep.subr.bf16.mxu0 0
    %4954 = vmatpush1.bf16.msra.mxu0 0
    %4955 = vmatprep.subr.bf16.mxu0 0
    %4956 = vmatpush1.bf16.msra.mxu0 0
    %4957 = vmatprep.subr.bf16.mxu0 0
    %4958 = vmatpush1.bf16.msra.mxu0 0
    %4959 = vmatprep.subr.bf16.mxu0 0
    %4960 = vmatpush1.bf16.msra.mxu0 0
    %4961 = vmatprep.subr.bf16.mxu0 0
    %4962 = vmatpush1.bf16.msra.mxu0 %v4945
    %4963 = vmatprep.subr.bf16.mxu0 0
    %4964 = vmatpush2.bf16.msra.mxu0 0
    %4965 = vmatprep.subr.bf16.mxu0 0
    %4966 = vmatpush2.bf16.msra.mxu0 0
    %4967 = vmatprep.subr.bf16.mxu0 0
    %4968 = vmatpush2.bf16.msra.mxu0 0
    %4969 = vmatprep.subr.bf16.mxu0 0
    %4970 = vmatpush2.bf16.msra.mxu0 0
    %4971 = vmatprep.subr.bf16.mxu0 0
    %4972 = vmatpush2.bf16.msra.mxu0 0
    %4973 = vmatprep.subr.bf16.mxu0 0
    %4974 = vmatpush2.bf16.msra.mxu0 0
    %4975 = vmatprep.subr.bf16.mxu0 0
    %4976 = vmatpush2.bf16.msra.mxu0 0
    %4977 = vmatprep.subr.bf16.mxu0 0
    %4978 = vmatpush2.bf16.msra.mxu0 0
    %4979 = vmatprep.mubr.bf16.mxu0 0
    %4980 = vmatmul.mubr.bf16.gmra.mxu0 %v4942
    %v4981 = vpop.f32.mrf.mxu0
    %v4982 = vadd.f32 0.0, %v4981
    %v4983 = vpop.f32.mrf.mxu0
    %v4984 = vpop.f32.mrf.mxu0
    %v4985 = vpop.f32.mrf.mxu0
    %4986 = vdwg.mxu0
    %4987 = vrot.lane.b32.xlu0 %v4769, 112
    %v4988 = vpop.permute.xlu0 %4987
    %4989 = vrot.lane.b32.xlu0 %v4769, 48
    %v4990 = vpop.permute.xlu0 %4989
    %v4992 = vsel %vm336, %v4988, 0
    %v4995 = vsel %vm336, %v4990, 0
    %4997 = vmatprep.subr.bf16.mxu0 0
    %4998 = vmatpush1.bf16.xpose.msra.mxu0 0
    %4999 = vmatprep.subr.bf16.mxu0 0
    %5000 = vmatpush1.bf16.xpose.msra.mxu0 0
    %5001 = vmatprep.subr.bf16.mxu0 0
    %5002 = vmatpush1.bf16.xpose.msra.mxu0 0
    %5003 = vmatprep.subr.bf16.mxu0 0
    %5004 = vmatpush1.bf16.xpose.msra.mxu0 0
    %5005 = vmatprep.subr.bf16.mxu0 0
    %5006 = vmatpush1.bf16.xpose.msra.mxu0 0
    %5007 = vmatprep.subr.bf16.mxu0 0
    %5008 = vmatpush1.bf16.xpose.msra.mxu0 0
    %5009 = vmatprep.subr.bf16.mxu0 0
    %5010 = vmatpush1.bf16.xpose.msra.mxu0 0
    %5011 = vmatprep.subr.bf16.mxu0 0
    %5012 = vmatpush1.bf16.xpose.msra.mxu0 %v4995
    %5013 = vmatprep.subr.bf16.mxu0 0
    %5014 = vmatpush2.bf16.xpose.msra.mxu0 0
    %5015 = vmatprep.subr.bf16.mxu0 0
    %5016 = vmatpush2.bf16.xpose.msra.mxu0 0
    %5017 = vmatprep.subr.bf16.mxu0 0
    %5018 = vmatpush2.bf16.xpose.msra.mxu0 0
    %5019 = vmatprep.subr.bf16.mxu0 0
    %5020 = vmatpush2.bf16.xpose.msra.mxu0 0
    %5021 = vmatprep.subr.bf16.mxu0 0
    %5022 = vmatpush2.bf16.xpose.msra.mxu0 0
    %5023 = vmatprep.subr.bf16.mxu0 0
    %5024 = vmatpush2.bf16.xpose.msra.mxu0 0
    %5025 = vmatprep.subr.bf16.mxu0 0
    %5026 = vmatpush2.bf16.xpose.msra.mxu0 0
    %5027 = vmatprep.subr.bf16.mxu0 0
    %5028 = vmatpush2.bf16.xpose.msra.mxu0 0
    %5029 = vmatprep.mubr.bf16.mxu0 0
    %5030 = vmatmul.mubr.bf16.gmra.mxu0 %v4992
    %v5031 = vpop.f32.mrf.mxu0
    %v5032 = vadd.f32 %v187, %v5031
    %v5033 = vpop.f32.mrf.mxu0
    %v5034 = vpop.f32.mrf.mxu0
    %v5035 = vpop.f32.mrf.mxu0
    %5036 = vdwg.mxu0
    %5037 = vrot.lane.b32.xlu0 %v4770, 112
    %v5038 = vpop.permute.xlu0 %5037
    %5039 = vrot.lane.b32.xlu0 %v4770, 48
    %v5040 = vpop.permute.xlu0 %5039
    %v5042 = vsel %vm336, %v5038, 0
    %v5045 = vsel %vm336, %v5040, 0
    %5047 = vmatprep.subr.bf16.mxu0 0
    %5048 = vmatpush1.bf16.xpose.msra.mxu0 0
    %5049 = vmatprep.subr.bf16.mxu0 0
    %5050 = vmatpush1.bf16.xpose.msra.mxu0 0
    %5051 = vmatprep.subr.bf16.mxu0 0
    %5052 = vmatpush1.bf16.xpose.msra.mxu0 0
    %5053 = vmatprep.subr.bf16.mxu0 0
    %5054 = vmatpush1.bf16.xpose.msra.mxu0 0
    %5055 = vmatprep.subr.bf16.mxu0 0
    %5056 = vmatpush1.bf16.xpose.msra.mxu0 0
    %5057 = vmatprep.subr.bf16.mxu0 0
    %5058 = vmatpush1.bf16.xpose.msra.mxu0 0
    %5059 = vmatprep.subr.bf16.mxu0 0
    %5060 = vmatpush1.bf16.xpose.msra.mxu0 0
    %5061 = vmatprep.subr.bf16.mxu0 0
    %5062 = vmatpush1.bf16.xpose.msra.mxu0 %v5045
    %5063 = vmatprep.subr.bf16.mxu0 0
    %5064 = vmatpush2.bf16.xpose.msra.mxu0 0
    %5065 = vmatprep.subr.bf16.mxu0 0
    %5066 = vmatpush2.bf16.xpose.msra.mxu0 0
    %5067 = vmatprep.subr.bf16.mxu0 0
    %5068 = vmatpush2.bf16.xpose.msra.mxu0 0
    %5069 = vmatprep.subr.bf16.mxu0 0
    %5070 = vmatpush2.bf16.xpose.msra.mxu0 0
    %5071 = vmatprep.subr.bf16.mxu0 0
    %5072 = vmatpush2.bf16.xpose.msra.mxu0 0
    %5073 = vmatprep.subr.bf16.mxu0 0
    %5074 = vmatpush2.bf16.xpose.msra.mxu0 0
    %5075 = vmatprep.subr.bf16.mxu0 0
    %5076 = vmatpush2.bf16.xpose.msra.mxu0 0
    %5077 = vmatprep.subr.bf16.mxu0 0
    %5078 = vmatpush2.bf16.xpose.msra.mxu0 0
    %5079 = vmatprep.mubr.bf16.mxu0 0
    %5080 = vmatmul.mubr.bf16.gmra.mxu0 %v5042
    %v5081 = vpop.f32.mrf.mxu0
    %v5082 = vadd.f32 %v187, %v5081
    %v5083 = vpop.f32.mrf.mxu0
    %v5084 = vpop.f32.mrf.mxu0
    %v5085 = vpop.f32.mrf.mxu0
    %5086 = vdwg.mxu0
    %v5087 = vsel %vm432, %v5032, -inf
    %5088 = vmax.xlane.f32.xlu0 %v5087
    %v5089 = vpop.xlane.xlu0 %5088
    %v5090 = vsel %vm432, %v5082, -inf
    %5091 = vmax.xlane.f32.xlu0 %v5090
    %v5092 = vpop.xlane.xlu0 %5091
    %v5093 = vsub.f32 %v5032, %v5089
    %v5094 = vsub.f32 %v5082, %v5092
    %v5095 = vmul.f32 %v5093, 1.442695
    %v5096 = vpow.pop %v5095
    %v5097 = vmul.f32 %v5094, 1.442695
    %v5098 = vpow.pop %v5097
    %v5099 = vsel %vm432, %v5096, 0.0
    %5100 = vadd.xlane.f32.xlu0 %v5099
    %v5101 = vpop.xlane.xlu0 %5100
    %v5102 = vsel %vm432, %v5098, 0.0
    %5103 = vadd.xlane.f32.xlu0 %v5102
    %v5104 = vpop.xlane.xlu0 %5103
    %v5105 = vrcp.pop %v5101
    %v5106 = vmul.f32 %v5096, %v5105
    %v5107 = vrcp.pop %v5104
    %v5108 = vmul.f32 %v5098, %v5107
    %v5109 = vpack.c.bf16 %v5106, %v5106
    %v5110 = vpack.c.bf16 %v5108, %v5108
    %5112 = vrot.lane.b32.xlu0 %v4771, 112
    %v5113 = vpop.permute.xlu0 %5112
    %v5115 = vsel %vm432, %v5109, 0
    %v5118 = vsel %vm460, %v5113, 0
    %5120 = vmatprep.subr.bf16.mxu0 0
    %5121 = vmatpush1.bf16.msra.mxu0 0
    %5122 = vmatprep.subr.bf16.mxu0 0
    %5123 = vmatpush1.bf16.msra.mxu0 0
    %5124 = vmatprep.subr.bf16.mxu0 0
    %5125 = vmatpush1.bf16.msra.mxu0 0
    %5126 = vmatprep.subr.bf16.mxu0 0
    %5127 = vmatpush1.bf16.msra.mxu0 0
    %5128 = vmatprep.subr.bf16.mxu0 0
    %5129 = vmatpush1.bf16.msra.mxu0 0
    %5130 = vmatprep.subr.bf16.mxu0 0
    %5131 = vmatpush1.bf16.msra.mxu0 0
    %5132 = vmatprep.subr.bf16.mxu0 0
    %5133 = vmatpush1.bf16.msra.mxu0 0
    %5134 = vmatprep.subr.bf16.mxu0 0
    %5135 = vmatpush1.bf16.msra.mxu0 %v5118
    %5136 = vmatprep.subr.bf16.mxu0 0
    %5137 = vmatpush2.bf16.msra.mxu0 0
    %5138 = vmatprep.subr.bf16.mxu0 0
    %5139 = vmatpush2.bf16.msra.mxu0 0
    %5140 = vmatprep.subr.bf16.mxu0 0
    %5141 = vmatpush2.bf16.msra.mxu0 0
    %5142 = vmatprep.subr.bf16.mxu0 0
    %5143 = vmatpush2.bf16.msra.mxu0 0
    %5144 = vmatprep.subr.bf16.mxu0 0
    %5145 = vmatpush2.bf16.msra.mxu0 0
    %5146 = vmatprep.subr.bf16.mxu0 0
    %5147 = vmatpush2.bf16.msra.mxu0 0
    %5148 = vmatprep.subr.bf16.mxu0 0
    %5149 = vmatpush2.bf16.msra.mxu0 0
    %5150 = vmatprep.subr.bf16.mxu0 0
    %5151 = vmatpush2.bf16.msra.mxu0 0
    %5152 = vmatprep.mubr.bf16.mxu0 0
    %5153 = vmatmul.mubr.bf16.gmra.mxu0 %v5115
    %v5154 = vpop.f32.mrf.mxu0
    %v5155 = vadd.f32 0.0, %v5154
    %v5156 = vpop.f32.mrf.mxu0
    %v5157 = vpop.f32.mrf.mxu0
    %v5158 = vpop.f32.mrf.mxu0
    %5159 = vdwg.mxu0
    %5161 = vrot.lane.b32.xlu0 %v4772, 112
    %v5162 = vpop.permute.xlu0 %5161
    %v5164 = vsel %vm432, %v5110, 0
    %v5167 = vsel %vm460, %v5162, 0
    %5169 = vmatprep.subr.bf16.mxu0 0
    %5170 = vmatpush1.bf16.msra.mxu0 0
    %5171 = vmatprep.subr.bf16.mxu0 0
    %5172 = vmatpush1.bf16.msra.mxu0 0
    %5173 = vmatprep.subr.bf16.mxu0 0
    %5174 = vmatpush1.bf16.msra.mxu0 0
    %5175 = vmatprep.subr.bf16.mxu0 0
    %5176 = vmatpush1.bf16.msra.mxu0 0
    %5177 = vmatprep.subr.bf16.mxu0 0
    %5178 = vmatpush1.bf16.msra.mxu0 0
    %5179 = vmatprep.subr.bf16.mxu0 0
    %5180 = vmatpush1.bf16.msra.mxu0 0
    %5181 = vmatprep.subr.bf16.mxu0 0
    %5182 = vmatpush1.bf16.msra.mxu0 0
    %5183 = vmatprep.subr.bf16.mxu0 0
    %5184 = vmatpush1.bf16.msra.mxu0 %v5167
    %5185 = vmatprep.subr.bf16.mxu0 0
    %5186 = vmatpush2.bf16.msra.mxu0 0
    %5187 = vmatprep.subr.bf16.mxu0 0
    %5188 = vmatpush2.bf16.msra.mxu0 0
    %5189 = vmatprep.subr.bf16.mxu0 0
    %5190 = vmatpush2.bf16.msra.mxu0 0
    %5191 = vmatprep.subr.bf16.mxu0 0
    %5192 = vmatpush2.bf16.msra.mxu0 0
    %5193 = vmatprep.subr.bf16.mxu0 0
    %5194 = vmatpush2.bf16.msra.mxu0 0
    %5195 = vmatprep.subr.bf16.mxu0 0
    %5196 = vmatpush2.bf16.msra.mxu0 0
    %5197 = vmatprep.subr.bf16.mxu0 0
    %5198 = vmatpush2.bf16.msra.mxu0 0
    %5199 = vmatprep.subr.bf16.mxu0 0
    %5200 = vmatpush2.bf16.msra.mxu0 0
    %5201 = vmatprep.mubr.bf16.mxu0 0
    %5202 = vmatmul.mubr.bf16.gmra.mxu0 %v5164
    %v5203 = vpop.f32.mrf.mxu0
    %v5204 = vadd.f32 0.0, %v5203
    %v5205 = vpop.f32.mrf.mxu0
    %v5206 = vpop.f32.mrf.mxu0
    %v5207 = vpop.f32.mrf.mxu0
    %5208 = vdwg.mxu0
    %5209 = vrot.lane.b32.xlu0 %v4769, 96
    %v5210 = vpop.permute.xlu0 %5209
    %5211 = vrot.lane.b32.xlu0 %v4769, 32
    %v5212 = vpop.permute.xlu0 %5211
    %v5214 = vsel %vm336, %v5210, 0
    %v5217 = vsel %vm336, %v5212, 0
    %5219 = vmatprep.subr.bf16.mxu0 0
    %5220 = vmatpush1.bf16.xpose.msra.mxu0 0
    %5221 = vmatprep.subr.bf16.mxu0 0
    %5222 = vmatpush1.bf16.xpose.msra.mxu0 0
    %5223 = vmatprep.subr.bf16.mxu0 0
    %5224 = vmatpush1.bf16.xpose.msra.mxu0 0
    %5225 = vmatprep.subr.bf16.mxu0 0
    %5226 = vmatpush1.bf16.xpose.msra.mxu0 0
    %5227 = vmatprep.subr.bf16.mxu0 0
    %5228 = vmatpush1.bf16.xpose.msra.mxu0 0
    %5229 = vmatprep.subr.bf16.mxu0 0
    %5230 = vmatpush1.bf16.xpose.msra.mxu0 0
    %5231 = vmatprep.subr.bf16.mxu0 0
    %5232 = vmatpush1.bf16.xpose.msra.mxu0 0
    %5233 = vmatprep.subr.bf16.mxu0 0
    %5234 = vmatpush1.bf16.xpose.msra.mxu0 %v5217
    %5235 = vmatprep.subr.bf16.mxu0 0
    %5236 = vmatpush2.bf16.xpose.msra.mxu0 0
    %5237 = vmatprep.subr.bf16.mxu0 0
    %5238 = vmatpush2.bf16.xpose.msra.mxu0 0
    %5239 = vmatprep.subr.bf16.mxu0 0
    %5240 = vmatpush2.bf16.xpose.msra.mxu0 0
    %5241 = vmatprep.subr.bf16.mxu0 0
    %5242 = vmatpush2.bf16.xpose.msra.mxu0 0
    %5243 = vmatprep.subr.bf16.mxu0 0
    %5244 = vmatpush2.bf16.xpose.msra.mxu0 0
    %5245 = vmatprep.subr.bf16.mxu0 0
    %5246 = vmatpush2.bf16.xpose.msra.mxu0 0
    %5247 = vmatprep.subr.bf16.mxu0 0
    %5248 = vmatpush2.bf16.xpose.msra.mxu0 0
    %5249 = vmatprep.subr.bf16.mxu0 0
    %5250 = vmatpush2.bf16.xpose.msra.mxu0 0
    %5251 = vmatprep.mubr.bf16.mxu0 0
    %5252 = vmatmul.mubr.bf16.gmra.mxu0 %v5214
    %v5253 = vpop.f32.mrf.mxu0
    %v5254 = vadd.f32 %v187, %v5253
    %v5255 = vpop.f32.mrf.mxu0
    %v5256 = vpop.f32.mrf.mxu0
    %v5257 = vpop.f32.mrf.mxu0
    %5258 = vdwg.mxu0
    %5259 = vrot.lane.b32.xlu0 %v4770, 96
    %v5260 = vpop.permute.xlu0 %5259
    %5261 = vrot.lane.b32.xlu0 %v4770, 32
    %v5262 = vpop.permute.xlu0 %5261
    %v5264 = vsel %vm336, %v5260, 0
    %v5267 = vsel %vm336, %v5262, 0
    %5269 = vmatprep.subr.bf16.mxu0 0
    %5270 = vmatpush1.bf16.xpose.msra.mxu0 0
    %5271 = vmatprep.subr.bf16.mxu0 0
    %5272 = vmatpush1.bf16.xpose.msra.mxu0 0
    %5273 = vmatprep.subr.bf16.mxu0 0
    %5274 = vmatpush1.bf16.xpose.msra.mxu0 0
    %5275 = vmatprep.subr.bf16.mxu0 0
    %5276 = vmatpush1.bf16.xpose.msra.mxu0 0
    %5277 = vmatprep.subr.bf16.mxu0 0
    %5278 = vmatpush1.bf16.xpose.msra.mxu0 0
    %5279 = vmatprep.subr.bf16.mxu0 0
    %5280 = vmatpush1.bf16.xpose.msra.mxu0 0
    %5281 = vmatprep.subr.bf16.mxu0 0
    %5282 = vmatpush1.bf16.xpose.msra.mxu0 0
    %5283 = vmatprep.subr.bf16.mxu0 0
    %5284 = vmatpush1.bf16.xpose.msra.mxu0 %v5267
    %5285 = vmatprep.subr.bf16.mxu0 0
    %5286 = vmatpush2.bf16.xpose.msra.mxu0 0
    %5287 = vmatprep.subr.bf16.mxu0 0
    %5288 = vmatpush2.bf16.xpose.msra.mxu0 0
    %5289 = vmatprep.subr.bf16.mxu0 0
    %5290 = vmatpush2.bf16.xpose.msra.mxu0 0
    %5291 = vmatprep.subr.bf16.mxu0 0
    %5292 = vmatpush2.bf16.xpose.msra.mxu0 0
    %5293 = vmatprep.subr.bf16.mxu0 0
    %5294 = vmatpush2.bf16.xpose.msra.mxu0 0
    %5295 = vmatprep.subr.bf16.mxu0 0
    %5296 = vmatpush2.bf16.xpose.msra.mxu0 0
    %5297 = vmatprep.subr.bf16.mxu0 0
    %5298 = vmatpush2.bf16.xpose.msra.mxu0 0
    %5299 = vmatprep.subr.bf16.mxu0 0
    %5300 = vmatpush2.bf16.xpose.msra.mxu0 0
    %5301 = vmatprep.mubr.bf16.mxu0 0
    %5302 = vmatmul.mubr.bf16.gmra.mxu0 %v5264
    %v5303 = vpop.f32.mrf.mxu0
    %v5304 = vadd.f32 %v187, %v5303
    %v5305 = vpop.f32.mrf.mxu0
    %v5306 = vpop.f32.mrf.mxu0
    %v5307 = vpop.f32.mrf.mxu0
    %5308 = vdwg.mxu0
    %v5309 = vsel %vm432, %v5254, -inf
    %5310 = vmax.xlane.f32.xlu0 %v5309
    %v5311 = vpop.xlane.xlu0 %5310
    %v5312 = vsel %vm432, %v5304, -inf
    %5313 = vmax.xlane.f32.xlu0 %v5312
    %v5314 = vpop.xlane.xlu0 %5313
    %v5315 = vsub.f32 %v5254, %v5311
    %v5316 = vsub.f32 %v5304, %v5314
    %v5317 = vmul.f32 %v5315, 1.442695
    %v5318 = vpow.pop %v5317
    %v5319 = vmul.f32 %v5316, 1.442695
    %v5320 = vpow.pop %v5319
    %v5321 = vsel %vm432, %v5318, 0.0
    %5322 = vadd.xlane.f32.xlu0 %v5321
    %v5323 = vpop.xlane.xlu0 %5322
    %v5324 = vsel %vm432, %v5320, 0.0
    %5325 = vadd.xlane.f32.xlu0 %v5324
    %v5326 = vpop.xlane.xlu0 %5325
    %v5327 = vrcp.pop %v5323
    %v5328 = vmul.f32 %v5318, %v5327
    %v5329 = vrcp.pop %v5326
    %v5330 = vmul.f32 %v5320, %v5329
    %v5331 = vpack.c.bf16 %v5328, %v5328
    %v5332 = vpack.c.bf16 %v5330, %v5330
    %5333 = vrot.lane.b32.xlu0 %v4771, 96
    %v5334 = vpop.permute.xlu0 %5333
    %v5336 = vsel %vm432, %v5331, 0
    %v5339 = vsel %vm460, %v5334, 0
    %5341 = vmatprep.subr.bf16.mxu0 0
    %5342 = vmatpush1.bf16.msra.mxu0 0
    %5343 = vmatprep.subr.bf16.mxu0 0
    %5344 = vmatpush1.bf16.msra.mxu0 0
    %5345 = vmatprep.subr.bf16.mxu0 0
    %5346 = vmatpush1.bf16.msra.mxu0 0
    %5347 = vmatprep.subr.bf16.mxu0 0
    %5348 = vmatpush1.bf16.msra.mxu0 0
    %5349 = vmatprep.subr.bf16.mxu0 0
    %5350 = vmatpush1.bf16.msra.mxu0 0
    %5351 = vmatprep.subr.bf16.mxu0 0
    %5352 = vmatpush1.bf16.msra.mxu0 0
    %5353 = vmatprep.subr.bf16.mxu0 0
    %5354 = vmatpush1.bf16.msra.mxu0 0
    %5355 = vmatprep.subr.bf16.mxu0 0
    %5356 = vmatpush1.bf16.msra.mxu0 %v5339
    %5357 = vmatprep.subr.bf16.mxu0 0
    %5358 = vmatpush2.bf16.msra.mxu0 0
    %5359 = vmatprep.subr.bf16.mxu0 0
    %5360 = vmatpush2.bf16.msra.mxu0 0
    %5361 = vmatprep.subr.bf16.mxu0 0
    %5362 = vmatpush2.bf16.msra.mxu0 0
    %5363 = vmatprep.subr.bf16.mxu0 0
    %5364 = vmatpush2.bf16.msra.mxu0 0
    %5365 = vmatprep.subr.bf16.mxu0 0
    %5366 = vmatpush2.bf16.msra.mxu0 0
    %5367 = vmatprep.subr.bf16.mxu0 0
    %5368 = vmatpush2.bf16.msra.mxu0 0
    %5369 = vmatprep.subr.bf16.mxu0 0
    %5370 = vmatpush2.bf16.msra.mxu0 0
    %5371 = vmatprep.subr.bf16.mxu0 0
    %5372 = vmatpush2.bf16.msra.mxu0 0
    %5373 = vmatprep.mubr.bf16.mxu0 0
    %5374 = vmatmul.mubr.bf16.gmra.mxu0 %v5336
    %v5375 = vpop.f32.mrf.mxu0
    %v5376 = vadd.f32 0.0, %v5375
    %v5377 = vpop.f32.mrf.mxu0
    %v5378 = vpop.f32.mrf.mxu0
    %v5379 = vpop.f32.mrf.mxu0
    %5380 = vdwg.mxu0
    %5381 = vrot.lane.b32.xlu0 %v4772, 96
    %v5382 = vpop.permute.xlu0 %5381
    %v5384 = vsel %vm432, %v5332, 0
    %v5387 = vsel %vm460, %v5382, 0
    %5389 = vmatprep.subr.bf16.mxu0 0
    %5390 = vmatpush1.bf16.msra.mxu0 0
    %5391 = vmatprep.subr.bf16.mxu0 0
    %5392 = vmatpush1.bf16.msra.mxu0 0
    %5393 = vmatprep.subr.bf16.mxu0 0
    %5394 = vmatpush1.bf16.msra.mxu0 0
    %5395 = vmatprep.subr.bf16.mxu0 0
    %5396 = vmatpush1.bf16.msra.mxu0 0
    %5397 = vmatprep.subr.bf16.mxu0 0
    %5398 = vmatpush1.bf16.msra.mxu0 0
    %5399 = vmatprep.subr.bf16.mxu0 0
    %5400 = vmatpush1.bf16.msra.mxu0 0
    %5401 = vmatprep.subr.bf16.mxu0 0
    %5402 = vmatpush1.bf16.msra.mxu0 0
    %5403 = vmatprep.subr.bf16.mxu0 0
    %5404 = vmatpush1.bf16.msra.mxu0 %v5387
    %5405 = vmatprep.subr.bf16.mxu0 0
    %5406 = vmatpush2.bf16.msra.mxu0 0
    %5407 = vmatprep.subr.bf16.mxu0 0
    %5408 = vmatpush2.bf16.msra.mxu0 0
    %5409 = vmatprep.subr.bf16.mxu0 0
    %5410 = vmatpush2.bf16.msra.mxu0 0
    %5411 = vmatprep.subr.bf16.mxu0 0
    %5412 = vmatpush2.bf16.msra.mxu0 0
    %5413 = vmatprep.subr.bf16.mxu0 0
    %5414 = vmatpush2.bf16.msra.mxu0 0
    %5415 = vmatprep.subr.bf16.mxu0 0
    %5416 = vmatpush2.bf16.msra.mxu0 0
    %5417 = vmatprep.subr.bf16.mxu0 0
    %5418 = vmatpush2.bf16.msra.mxu0 0
    %5419 = vmatprep.subr.bf16.mxu0 0
    %5420 = vmatpush2.bf16.msra.mxu0 0
    %5421 = vmatprep.mubr.bf16.mxu0 0
    %5422 = vmatmul.mubr.bf16.gmra.mxu0 %v5384
    %v5423 = vpop.f32.mrf.mxu0
    %v5424 = vadd.f32 0.0, %v5423
    %v5425 = vpop.f32.mrf.mxu0
    %v5426 = vpop.f32.mrf.mxu0
    %v5427 = vpop.f32.mrf.mxu0
    %5428 = vdwg.mxu0
    %5429 = vrot.lane.b32.xlu0 %v4769, 80
    %v5430 = vpop.permute.xlu0 %5429
    %5431 = vrot.lane.b32.xlu0 %v4769, 16
    %v5432 = vpop.permute.xlu0 %5431
    %v5434 = vsel %vm336, %v5430, 0
    %v5437 = vsel %vm336, %v5432, 0
    %5439 = vmatprep.subr.bf16.mxu0 0
    %5440 = vmatpush1.bf16.xpose.msra.mxu0 0
    %5441 = vmatprep.subr.bf16.mxu0 0
    %5442 = vmatpush1.bf16.xpose.msra.mxu0 0
    %5443 = vmatprep.subr.bf16.mxu0 0
    %5444 = vmatpush1.bf16.xpose.msra.mxu0 0
    %5445 = vmatprep.subr.bf16.mxu0 0
    %5446 = vmatpush1.bf16.xpose.msra.mxu0 0
    %5447 = vmatprep.subr.bf16.mxu0 0
    %5448 = vmatpush1.bf16.xpose.msra.mxu0 0
    %5449 = vmatprep.subr.bf16.mxu0 0
    %5450 = vmatpush1.bf16.xpose.msra.mxu0 0
    %5451 = vmatprep.subr.bf16.mxu0 0
    %5452 = vmatpush1.bf16.xpose.msra.mxu0 0
    %5453 = vmatprep.subr.bf16.mxu0 0
    %5454 = vmatpush1.bf16.xpose.msra.mxu0 %v5437
    %5455 = vmatprep.subr.bf16.mxu0 0
    %5456 = vmatpush2.bf16.xpose.msra.mxu0 0
    %5457 = vmatprep.subr.bf16.mxu0 0
    %5458 = vmatpush2.bf16.xpose.msra.mxu0 0
    %5459 = vmatprep.subr.bf16.mxu0 0
    %5460 = vmatpush2.bf16.xpose.msra.mxu0 0
    %5461 = vmatprep.subr.bf16.mxu0 0
    %5462 = vmatpush2.bf16.xpose.msra.mxu0 0
    %5463 = vmatprep.subr.bf16.mxu0 0
    %5464 = vmatpush2.bf16.xpose.msra.mxu0 0
    %5465 = vmatprep.subr.bf16.mxu0 0
    %5466 = vmatpush2.bf16.xpose.msra.mxu0 0
    %5467 = vmatprep.subr.bf16.mxu0 0
    %5468 = vmatpush2.bf16.xpose.msra.mxu0 0
    %5469 = vmatprep.subr.bf16.mxu0 0
    %5470 = vmatpush2.bf16.xpose.msra.mxu0 0
    %5471 = vmatprep.mubr.bf16.mxu0 0
    %5472 = vmatmul.mubr.bf16.gmra.mxu0 %v5434
    %v5473 = vpop.f32.mrf.mxu0
    %v5474 = vadd.f32 %v187, %v5473
    %v5475 = vpop.f32.mrf.mxu0
    %v5476 = vpop.f32.mrf.mxu0
    %v5477 = vpop.f32.mrf.mxu0
    %5478 = vdwg.mxu0
    %5479 = vrot.lane.b32.xlu0 %v4770, 80
    %v5480 = vpop.permute.xlu0 %5479
    %5481 = vrot.lane.b32.xlu0 %v4770, 16
    %v5482 = vpop.permute.xlu0 %5481
    %v5484 = vsel %vm336, %v5480, 0
    %v5487 = vsel %vm336, %v5482, 0
    %5489 = vmatprep.subr.bf16.mxu0 0
    %5490 = vmatpush1.bf16.xpose.msra.mxu0 0
    %5491 = vmatprep.subr.bf16.mxu0 0
    %5492 = vmatpush1.bf16.xpose.msra.mxu0 0
    %5493 = vmatprep.subr.bf16.mxu0 0
    %5494 = vmatpush1.bf16.xpose.msra.mxu0 0
    %5495 = vmatprep.subr.bf16.mxu0 0
    %5496 = vmatpush1.bf16.xpose.msra.mxu0 0
    %5497 = vmatprep.subr.bf16.mxu0 0
    %5498 = vmatpush1.bf16.xpose.msra.mxu0 0
    %5499 = vmatprep.subr.bf16.mxu0 0
    %5500 = vmatpush1.bf16.xpose.msra.mxu0 0
    %5501 = vmatprep.subr.bf16.mxu0 0
    %5502 = vmatpush1.bf16.xpose.msra.mxu0 0
    %5503 = vmatprep.subr.bf16.mxu0 0
    %5504 = vmatpush1.bf16.xpose.msra.mxu0 %v5487
    %5505 = vmatprep.subr.bf16.mxu0 0
    %5506 = vmatpush2.bf16.xpose.msra.mxu0 0
    %5507 = vmatprep.subr.bf16.mxu0 0
    %5508 = vmatpush2.bf16.xpose.msra.mxu0 0
    %5509 = vmatprep.subr.bf16.mxu0 0
    %5510 = vmatpush2.bf16.xpose.msra.mxu0 0
    %5511 = vmatprep.subr.bf16.mxu0 0
    %5512 = vmatpush2.bf16.xpose.msra.mxu0 0
    %5513 = vmatprep.subr.bf16.mxu0 0
    %5514 = vmatpush2.bf16.xpose.msra.mxu0 0
    %5515 = vmatprep.subr.bf16.mxu0 0
    %5516 = vmatpush2.bf16.xpose.msra.mxu0 0
    %5517 = vmatprep.subr.bf16.mxu0 0
    %5518 = vmatpush2.bf16.xpose.msra.mxu0 0
    %5519 = vmatprep.subr.bf16.mxu0 0
    %5520 = vmatpush2.bf16.xpose.msra.mxu0 0
    %5521 = vmatprep.mubr.bf16.mxu0 0
    %5522 = vmatmul.mubr.bf16.gmra.mxu0 %v5484
    %v5523 = vpop.f32.mrf.mxu0
    %v5524 = vadd.f32 %v187, %v5523
    %v5525 = vpop.f32.mrf.mxu0
    %v5526 = vpop.f32.mrf.mxu0
    %v5527 = vpop.f32.mrf.mxu0
    %5528 = vdwg.mxu0
    %v5529 = vsel %vm432, %v5474, -inf
    %5530 = vmax.xlane.f32.xlu0 %v5529
    %v5531 = vpop.xlane.xlu0 %5530
    %v5532 = vsel %vm432, %v5524, -inf
    %5533 = vmax.xlane.f32.xlu0 %v5532
    %v5534 = vpop.xlane.xlu0 %5533
    %v5535 = vsub.f32 %v5474, %v5531
    %v5536 = vsub.f32 %v5524, %v5534
    %v5537 = vmul.f32 %v5535, 1.442695
    %v5538 = vpow.pop %v5537
    %v5539 = vmul.f32 %v5536, 1.442695
    %v5540 = vpow.pop %v5539
    %v5541 = vsel %vm432, %v5538, 0.0
    %5542 = vadd.xlane.f32.xlu0 %v5541
    %v5543 = vpop.xlane.xlu0 %5542
    %v5544 = vsel %vm432, %v5540, 0.0
    %5545 = vadd.xlane.f32.xlu0 %v5544
    %v5546 = vpop.xlane.xlu0 %5545
    %v5547 = vrcp.pop %v5543
    %v5548 = vmul.f32 %v5538, %v5547
    %v5549 = vrcp.pop %v5546
    %v5550 = vmul.f32 %v5540, %v5549
    %v5551 = vpack.c.bf16 %v5548, %v5548
    %v5552 = vpack.c.bf16 %v5550, %v5550
    %5553 = vrot.lane.b32.xlu0 %v4771, 80
    %v5554 = vpop.permute.xlu0 %5553
    %v5556 = vsel %vm432, %v5551, 0
    %v5559 = vsel %vm460, %v5554, 0
    %5561 = vmatprep.subr.bf16.mxu0 0
    %5562 = vmatpush1.bf16.msra.mxu0 0
    %5563 = vmatprep.subr.bf16.mxu0 0
    %5564 = vmatpush1.bf16.msra.mxu0 0
    %5565 = vmatprep.subr.bf16.mxu0 0
    %5566 = vmatpush1.bf16.msra.mxu0 0
    %5567 = vmatprep.subr.bf16.mxu0 0
    %5568 = vmatpush1.bf16.msra.mxu0 0
    %5569 = vmatprep.subr.bf16.mxu0 0
    %5570 = vmatpush1.bf16.msra.mxu0 0
    %5571 = vmatprep.subr.bf16.mxu0 0
    %5572 = vmatpush1.bf16.msra.mxu0 0
    %5573 = vmatprep.subr.bf16.mxu0 0
    %5574 = vmatpush1.bf16.msra.mxu0 0
    %5575 = vmatprep.subr.bf16.mxu0 0
    %5576 = vmatpush1.bf16.msra.mxu0 %v5559
    %5577 = vmatprep.subr.bf16.mxu0 0
    %5578 = vmatpush2.bf16.msra.mxu0 0
    %5579 = vmatprep.subr.bf16.mxu0 0
    %5580 = vmatpush2.bf16.msra.mxu0 0
    %5581 = vmatprep.subr.bf16.mxu0 0
    %5582 = vmatpush2.bf16.msra.mxu0 0
    %5583 = vmatprep.subr.bf16.mxu0 0
    %5584 = vmatpush2.bf16.msra.mxu0 0
    %5585 = vmatprep.subr.bf16.mxu0 0
    %5586 = vmatpush2.bf16.msra.mxu0 0
    %5587 = vmatprep.subr.bf16.mxu0 0
    %5588 = vmatpush2.bf16.msra.mxu0 0
    %5589 = vmatprep.subr.bf16.mxu0 0
    %5590 = vmatpush2.bf16.msra.mxu0 0
    %5591 = vmatprep.subr.bf16.mxu0 0
    %5592 = vmatpush2.bf16.msra.mxu0 0
    %5593 = vmatprep.mubr.bf16.mxu0 0
    %5594 = vmatmul.mubr.bf16.gmra.mxu0 %v5556
    %v5595 = vpop.f32.mrf.mxu0
    %v5596 = vadd.f32 0.0, %v5595
    %v5597 = vpop.f32.mrf.mxu0
    %v5598 = vpop.f32.mrf.mxu0
    %v5599 = vpop.f32.mrf.mxu0
    %5600 = vdwg.mxu0
    %5601 = vrot.lane.b32.xlu0 %v4772, 80
    %v5602 = vpop.permute.xlu0 %5601
    %v5604 = vsel %vm432, %v5552, 0
    %v5607 = vsel %vm460, %v5602, 0
    %5609 = vmatprep.subr.bf16.mxu0 0
    %5610 = vmatpush1.bf16.msra.mxu0 0
    %5611 = vmatprep.subr.bf16.mxu0 0
    %5612 = vmatpush1.bf16.msra.mxu0 0
    %5613 = vmatprep.subr.bf16.mxu0 0
    %5614 = vmatpush1.bf16.msra.mxu0 0
    %5615 = vmatprep.subr.bf16.mxu0 0
    %5616 = vmatpush1.bf16.msra.mxu0 0
    %5617 = vmatprep.subr.bf16.mxu0 0
    %5618 = vmatpush1.bf16.msra.mxu0 0
    %5619 = vmatprep.subr.bf16.mxu0 0
    %5620 = vmatpush1.bf16.msra.mxu0 0
    %5621 = vmatprep.subr.bf16.mxu0 0
    %5622 = vmatpush1.bf16.msra.mxu0 0
    %5623 = vmatprep.subr.bf16.mxu0 0
    %5624 = vmatpush1.bf16.msra.mxu0 %v5607
    %5625 = vmatprep.subr.bf16.mxu0 0
    %5626 = vmatpush2.bf16.msra.mxu0 0
    %5627 = vmatprep.subr.bf16.mxu0 0
    %5628 = vmatpush2.bf16.msra.mxu0 0
    %5629 = vmatprep.subr.bf16.mxu0 0
    %5630 = vmatpush2.bf16.msra.mxu0 0
    %5631 = vmatprep.subr.bf16.mxu0 0
    %5632 = vmatpush2.bf16.msra.mxu0 0
    %5633 = vmatprep.subr.bf16.mxu0 0
    %5634 = vmatpush2.bf16.msra.mxu0 0
    %5635 = vmatprep.subr.bf16.mxu0 0
    %5636 = vmatpush2.bf16.msra.mxu0 0
    %5637 = vmatprep.subr.bf16.mxu0 0
    %5638 = vmatpush2.bf16.msra.mxu0 0
    %5639 = vmatprep.subr.bf16.mxu0 0
    %5640 = vmatpush2.bf16.msra.mxu0 0
    %5641 = vmatprep.mubr.bf16.mxu0 0
    %5642 = vmatmul.mubr.bf16.gmra.mxu0 %v5604
    %v5643 = vpop.f32.mrf.mxu0
    %v5644 = vadd.f32 0.0, %v5643
    %v5645 = vpop.f32.mrf.mxu0
    %v5646 = vpop.f32.mrf.mxu0
    %v5647 = vpop.f32.mrf.mxu0
    %5648 = vdwg.mxu0
    %5651 = vrot.lane.b32.xlu0 %v5155, 16
    %v5652 = vpop.permute.xlu0 %5651
    %5653 = vrot.lane.b32.xlu0 %v5204, 16
    %v5654 = vpop.permute.xlu0 %5653
    %5659 = vrot.lane.b32.xlu0 %v5376, 32
    %v5660 = vpop.permute.xlu0 %5659
    %5661 = vrot.lane.b32.xlu0 %v5424, 32
    %v5662 = vpop.permute.xlu0 %5661
    %5667 = vrot.lane.b32.xlu0 %v5596, 48
    %v5668 = vpop.permute.xlu0 %5667
    %5669 = vrot.lane.b32.xlu0 %v5644, 48
    %v5670 = vpop.permute.xlu0 %5669
    %v5673 = vsel %vm336, %v4936, %v5652
    %v5674 = vsel %vm336, %v4982, %v5654
    %v5675 = vsel %vm1238, %v5673, %v5660
    %v5676 = vsel %vm1238, %v5674, %v5662
    %v5677 = vsel %vm1241, %v5675, %v5668
    %v5678 = vsel %vm1241, %v5676, %v5670
    %v5679 = vpack.c.bf16 %v5678, %v5677
    %s5680 = scalar_lea.vmem %s6, 96
    %v5681 = vld [vmem:[%s5680] sm:$0xf]
    %v5682 = vld [vmem:[%s5680 + $0x4] sm:$0xf]
    %v5683 = vld [vmem:[%s5680 + $0x8] sm:$0xf]
    %v5684 = vld [vmem:[%s5680 + $0xc] sm:$0xf]
    %v5685 = vld [vmem:[%s5680 + $0x10] sm:$0xf]
    %v5686 = vld [vmem:[%s5680 + $0x14] sm:$0xf]
    %v5687 = vld [vmem:[%s5680 + $0x18] sm:$0xf]
    %v5688 = vld [vmem:[%s5680 + $0x1c] sm:$0xf]
    %s5689 = scalar_lea.vmem %s7, 3
    %v5690 = vld [vmem:[%s5689] sm:$0x1]
    %v5692 = vlaneseq
    %v5693 = vshrl.u32 %v5692, 7
    %v5694 = vsub.s32 0, %v5693
    %v5695 = vrot.slane %v5690, %v5694
    %v5705 = vunpack.c.l.b16 %v5681
    %v5706 = vunpack.c.l.b16 %v5682
    %v5707 = vunpack.c.l.b16 %v5683
    %v5708 = vunpack.c.l.b16 %v5684
    %v5709 = vunpack.c.l.b16 %v5685
    %v5710 = vunpack.c.l.b16 %v5686
    %v5711 = vunpack.c.l.b16 %v5687
    %v5712 = vunpack.c.l.b16 %v5688
    %v5713 = vpack.c.b16 %v5706, %v5705
    %v5714 = vpack.c.b16 %v5708, %v5707
    %v5715 = vpack.c.b16 %v5710, %v5709
    %v5716 = vpack.c.b16 %v5712, %v5711
    %v5722 = vsel %vm190, %v5679, 0
    %5724 = vmatprep.subr.bf16.mxu0 0
    %5725 = vmatpush1.bf16.msra.mxu0 0
    %5726 = vmatprep.subr.bf16.mxu0 0
    %5727 = vmatpush1.bf16.msra.mxu0 0
    %5728 = vmatprep.subr.bf16.mxu0 0
    %5729 = vmatpush1.bf16.msra.mxu0 0
    %5730 = vmatprep.subr.bf16.mxu0 0
    %5731 = vmatpush1.bf16.msra.mxu0 0
    %5732 = vmatprep.subr.bf16.mxu0 0
    %5733 = vmatpush1.bf16.msra.mxu0 %v5716
    %5734 = vmatprep.subr.bf16.mxu0 0
    %5735 = vmatpush1.bf16.msra.mxu0 %v5715
    %5736 = vmatprep.subr.bf16.mxu0 0
    %5737 = vmatpush1.bf16.msra.mxu0 %v5714
    %5738 = vmatprep.subr.bf16.mxu0 0
    %5739 = vmatpush1.bf16.msra.mxu0 %v5713
    %5740 = vmatprep.subr.bf16.mxu0 0
    %5741 = vmatpush2.bf16.msra.mxu0 0
    %5742 = vmatprep.subr.bf16.mxu0 0
    %5743 = vmatpush2.bf16.msra.mxu0 0
    %5744 = vmatprep.subr.bf16.mxu0 0
    %5745 = vmatpush2.bf16.msra.mxu0 0
    %5746 = vmatprep.subr.bf16.mxu0 0
    %5747 = vmatpush2.bf16.msra.mxu0 0
    %5748 = vmatprep.subr.bf16.mxu0 0
    %5749 = vmatpush2.bf16.msra.mxu0 0
    %5750 = vmatprep.subr.bf16.mxu0 0
    %5751 = vmatpush2.bf16.msra.mxu0 0
    %5752 = vmatprep.subr.bf16.mxu0 0
    %5753 = vmatpush2.bf16.msra.mxu0 0
    %5754 = vmatprep.subr.bf16.mxu0 0
    %5755 = vmatpush2.bf16.msra.mxu0 0
    %5756 = vmatprep.mubr.bf16.mxu0 0
    %5757 = vmatmul.mubr.bf16.gmra.mxu0 %v5722
    %v5758 = vpop.f32.mrf.mxu0
    %v5759 = vadd.f32 %v5695, %v5758
    %v5760 = vpop.f32.mrf.mxu0
    %v5761 = vpop.f32.mrf.mxu0
    %v5762 = vadd.f32 %v5695, %v5761
    %v5763 = vpop.f32.mrf.mxu0
    %5764 = vdwg.mxu0
    %v5765 = vadd.f32 %v4625, %v5759
    %v5766 = vadd.f32 %v4626, %v5762
    %s5767 = scalar_lea.vmem %s8, 3
    %v5768 = vld [vmem:[%s5767] sm:$0x1]
    %s5769 = scalar_lea.vmem %s9, 3
    %v5770 = vld [vmem:[%s5769] sm:$0x1]
    %v5771 = vsel %vm190, %v5765, 0.0
    %5772 = vadd.xlane.f32.xlu0 %v5771
    %v5773 = vpop.xlane.xlu0 %5772
    %v5774 = vsel %vm190, %v5766, 0.0
    %5775 = vadd.xlane.f32.xlu0 %v5774
    %v5776 = vpop.xlane.xlu0 %5775
    %v5777 = vmul.f32 %v5773, %v197
    %v5778 = vmul.f32 %v5776, %v197
    %v5779 = vsub.f32 %v5765, %v5777
    %v5780 = vsub.f32 %v5766, %v5778
    %v5781 = vmul.f32 %v5779, %v5779
    %v5782 = vmul.f32 %v5780, %v5780
    %v5783 = vsel %vm190, %v5781, 0.0
    %5784 = vadd.xlane.f32.xlu0 %v5783
    %v5785 = vpop.xlane.xlu0 %5784
    %v5786 = vsel %vm190, %v5782, 0.0
    %5787 = vadd.xlane.f32.xlu0 %v5786
    %v5788 = vpop.xlane.xlu0 %5787
    %v5789 = vmul.f32 %v5785, %v197
    %v5790 = vmul.f32 %v5788, %v197
    %v5791 = vadd.f32 %v5789, 1e-05
    %v5792 = vadd.f32 %v5790, 1e-05
    %v5793 = vrsqrt.pop %v5791
    %v5794 = vrsqrt.pop %v5792
    %v5795 = vmul.f32 %v5779, %v5793
    %v5796 = vmul.f32 %v5780, %v5794
    %v5798 = vlaneseq
    %v5799 = vshrl.u32 %v5798, 7
    %v5800 = vsub.s32 0, %v5799
    %v5801 = vrot.slane %v5768, %v5800
    %v5803 = vmul.f32 %v5795, %v5801
    %v5804 = vmul.f32 %v5796, %v5801
    %v5806 = vlaneseq
    %v5807 = vshrl.u32 %v5806, 7
    %v5808 = vsub.s32 0, %v5807
    %v5809 = vrot.slane %v5770, %v5808
    %v5811 = vadd.f32 %v5803, %v5809
    %v5812 = vadd.f32 %v5804, %v5809
    %v5813 = vpack.c.bf16 %v5812, %v5811
    %s5814 = scalar_lea.vmem %s10, 192
    %v5815 = vld [vmem:[%s5814] sm:$0xff]
    %v5816 = vld [vmem:[%s5814 + $0x8] sm:$0xff]
    %v5817 = vld [vmem:[%s5814 + $0x10] sm:$0xff]
    %v5818 = vld [vmem:[%s5814 + $0x18] sm:$0xff]
    %v5819 = vld [vmem:[%s5814 + $0x20] sm:$0xff]
    %v5820 = vld [vmem:[%s5814 + $0x28] sm:$0xff]
    %v5821 = vld [vmem:[%s5814 + $0x30] sm:$0xff]
    %v5822 = vld [vmem:[%s5814 + $0x38] sm:$0xff]
    %s5823 = scalar_lea.vmem %s11, 6
    %v5824 = vld [vmem:[%s5823] sm:$0x3]
    %v5826 = vlaneseq
    %v5827 = vshrl.u32 %v5826, 7
    %v5828 = vsub.s32 0, %v5827
    %v5829 = vrot.slane %v5824, %v5828
    %v5830 = vlaneseq
    %v5831 = vshrl.u32 %v5830, 7
    %v5832 = vsub.s32 1, %v5831
    %v5833 = vrot.slane %v5824, %v5832
    %v5844 = vunpack.c.l.b16 %v5815
    %v5845 = vunpack.c.h.b16 %v5815
    %v5846 = vunpack.c.l.b16 %v5816
    %v5847 = vunpack.c.h.b16 %v5816
    %v5848 = vunpack.c.l.b16 %v5817
    %v5849 = vunpack.c.h.b16 %v5817
    %v5850 = vunpack.c.l.b16 %v5818
    %v5851 = vunpack.c.h.b16 %v5818
    %v5852 = vunpack.c.l.b16 %v5819
    %v5853 = vunpack.c.h.b16 %v5819
    %v5854 = vunpack.c.l.b16 %v5820
    %v5855 = vunpack.c.h.b16 %v5820
    %v5856 = vunpack.c.l.b16 %v5821
    %v5857 = vunpack.c.h.b16 %v5821
    %v5858 = vunpack.c.l.b16 %v5822
    %v5859 = vunpack.c.h.b16 %v5822
    %v5860 = vpack.c.b16 %v5846, %v5844
    %v5861 = vpack.c.b16 %v5847, %v5845
    %v5862 = vpack.c.b16 %v5850, %v5848
    %v5863 = vpack.c.b16 %v5851, %v5849
    %v5864 = vpack.c.b16 %v5854, %v5852
    %v5865 = vpack.c.b16 %v5855, %v5853
    %v5866 = vpack.c.b16 %v5858, %v5856
    %v5867 = vpack.c.b16 %v5859, %v5857
    %v5877 = vsel %vm190, %v5813, 0
    %5879 = vmatprep.subr.bf16.mxu0 0
    %5880 = vmatpush1.bf16.msra.mxu0 0
    %5881 = vmatprep.subr.bf16.mxu0 0
    %5882 = vmatpush1.bf16.msra.mxu0 0
    %5883 = vmatprep.subr.bf16.mxu0 0
    %5884 = vmatpush1.bf16.msra.mxu0 0
    %5885 = vmatprep.subr.bf16.mxu0 0
    %5886 = vmatpush1.bf16.msra.mxu0 0
    %5887 = vmatprep.subr.bf16.mxu0 %v5867
    %5888 = vmatpush1.bf16.msra.mxu0 %v5866
    %5889 = vmatprep.subr.bf16.mxu0 %v5865
    %5890 = vmatpush1.bf16.msra.mxu0 %v5864
    %5891 = vmatprep.subr.bf16.mxu0 %v5863
    %5892 = vmatpush1.bf16.msra.mxu0 %v5862
    %5893 = vmatprep.subr.bf16.mxu0 %v5861
    %5894 = vmatpush1.bf16.msra.mxu0 %v5860
    %5895 = vmatprep.subr.bf16.mxu0 0
    %5896 = vmatpush2.bf16.msra.mxu0 0
    %5897 = vmatprep.subr.bf16.mxu0 0
    %5898 = vmatpush2.bf16.msra.mxu0 0
    %5899 = vmatprep.subr.bf16.mxu0 0
    %5900 = vmatpush2.bf16.msra.mxu0 0
    %5901 = vmatprep.subr.bf16.mxu0 0
    %5902 = vmatpush2.bf16.msra.mxu0 0
    %5903 = vmatprep.subr.bf16.mxu0 0
    %5904 = vmatpush2.bf16.msra.mxu0 0
    %5905 = vmatprep.subr.bf16.mxu0 0
    %5906 = vmatpush2.bf16.msra.mxu0 0
    %5907 = vmatprep.subr.bf16.mxu0 0
    %5908 = vmatpush2.bf16.msra.mxu0 0
    %5909 = vmatprep.subr.bf16.mxu0 0
    %5910 = vmatpush2.bf16.msra.mxu0 0
    %5911 = vmatprep.mubr.bf16.mxu0 0
    %5912 = vmatmul.mubr.bf16.gmra.mxu0 %v5877
    %v5913 = vpop.f32.mrf.mxu0
    %v5914 = vadd.f32 %v5829, %v5913
    %v5915 = vpop.f32.mrf.mxu0
    %v5916 = vadd.f32 %v5833, %v5915
    %v5917 = vpop.f32.mrf.mxu0
    %v5918 = vadd.f32 %v5829, %v5917
    %v5919 = vpop.f32.mrf.mxu0
    %v5920 = vadd.f32 %v5833, %v5919
    %5921 = vdwg.mxu0
    %v5922 = vmax.f32 %v5914, 0.0
    %v5923 = vmax.f32 %v5916, 0.0
    %v5924 = vmax.f32 %v5918, 0.0
    %v5925 = vmax.f32 %v5920, 0.0
    %v5926 = vpack.c.bf16 %v5924, %v5922
    %v5927 = vpack.c.bf16 %v5925, %v5923
    %s5928 = scalar_lea.vmem %s12, 384
    %v5929 = vld [vmem:[%s5928] sm:$0xf]
    %v5930 = vld [vmem:[%s5928 + $0x4] sm:$0xf]
    %v5931 = vld [vmem:[%s5928 + $0x8] sm:$0xf]
    %v5932 = vld [vmem:[%s5928 + $0xc] sm:$0xf]
    %v5933 = vld [vmem:[%s5928 + $0x10] sm:$0xf]
    %v5934 = vld [vmem:[%s5928 + $0x14] sm:$0xf]
    %v5935 = vld [vmem:[%s5928 + $0x18] sm:$0xf]
    %v5936 = vld [vmem:[%s5928 + $0x1c] sm:$0xf]
    %v5937 = vld [vmem:[%s5928 + $0x20] sm:$0xf]
    %v5938 = vld [vmem:[%s5928 + $0x24] sm:$0xf]
    %v5939 = vld [vmem:[%s5928 + $0x28] sm:$0xf]
    %v5940 = vld [vmem:[%s5928 + $0x2c] sm:$0xf]
    %v5941 = vld [vmem:[%s5928 + $0x30] sm:$0xf]
    %v5942 = vld [vmem:[%s5928 + $0x34] sm:$0xf]
    %v5943 = vld [vmem:[%s5928 + $0x38] sm:$0xf]
    %v5944 = vld [vmem:[%s5928 + $0x3c] sm:$0xf]
    %v5945 = vld [vmem:[%s5928 + $0x40] sm:$0xf]
    %v5946 = vld [vmem:[%s5928 + $0x44] sm:$0xf]
    %v5947 = vld [vmem:[%s5928 + $0x48] sm:$0xf]
    %v5948 = vld [vmem:[%s5928 + $0x4c] sm:$0xf]
    %v5949 = vld [vmem:[%s5928 + $0x50] sm:$0xf]
    %v5950 = vld [vmem:[%s5928 + $0x54] sm:$0xf]
    %v5951 = vld [vmem:[%s5928 + $0x58] sm:$0xf]
    %v5952 = vld [vmem:[%s5928 + $0x5c] sm:$0xf]
    %v5953 = vld [vmem:[%s5928 + $0x60] sm:$0xf]
    %v5954 = vld [vmem:[%s5928 + $0x64] sm:$0xf]
    %v5955 = vld [vmem:[%s5928 + $0x68] sm:$0xf]
    %v5956 = vld [vmem:[%s5928 + $0x6c] sm:$0xf]
    %v5957 = vld [vmem:[%s5928 + $0x70] sm:$0xf]
    %v5958 = vld [vmem:[%s5928 + $0x74] sm:$0xf]
    %v5959 = vld [vmem:[%s5928 + $0x78] sm:$0xf]
    %v5960 = vld [vmem:[%s5928 + $0x7c] sm:$0xf]
    %s5961 = scalar_lea.vmem %s13, 3
    %v5962 = vld [vmem:[%s5961] sm:$0x1]
    %v5964 = vlaneseq
    %v5965 = vshrl.u32 %v5964, 7
    %v5966 = vsub.s32 0, %v5965
    %v5967 = vrot.slane %v5962, %v5966
    %v6001 = vunpack.c.l.b16 %v5929
    %v6002 = vunpack.c.l.b16 %v5930
    %v6003 = vunpack.c.l.b16 %v5931
    %v6004 = vunpack.c.l.b16 %v5932
    %v6005 = vunpack.c.l.b16 %v5933
    %v6006 = vunpack.c.l.b16 %v5934
    %v6007 = vunpack.c.l.b16 %v5935
    %v6008 = vunpack.c.l.b16 %v5936
    %v6009 = vunpack.c.l.b16 %v5937
    %v6010 = vunpack.c.l.b16 %v5938
    %v6011 = vunpack.c.l.b16 %v5939
    %v6012 = vunpack.c.l.b16 %v5940
    %v6013 = vunpack.c.l.b16 %v5941
    %v6014 = vunpack.c.l.b16 %v5942
    %v6015 = vunpack.c.l.b16 %v5943
    %v6016 = vunpack.c.l.b16 %v5944
    %v6017 = vunpack.c.l.b16 %v5945
    %v6018 = vunpack.c.l.b16 %v5946
    %v6019 = vunpack.c.l.b16 %v5947
    %v6020 = vunpack.c.l.b16 %v5948
    %v6021 = vunpack.c.l.b16 %v5949
    %v6022 = vunpack.c.l.b16 %v5950
    %v6023 = vunpack.c.l.b16 %v5951
    %v6024 = vunpack.c.l.b16 %v5952
    %v6025 = vunpack.c.l.b16 %v5953
    %v6026 = vunpack.c.l.b16 %v5954
    %v6027 = vunpack.c.l.b16 %v5955
    %v6028 = vunpack.c.l.b16 %v5956
    %v6029 = vunpack.c.l.b16 %v5957
    %v6030 = vunpack.c.l.b16 %v5958
    %v6031 = vunpack.c.l.b16 %v5959
    %v6032 = vunpack.c.l.b16 %v5960
    %v6033 = vpack.c.b16 %v6002, %v6001
    %v6034 = vpack.c.b16 %v6004, %v6003
    %v6035 = vpack.c.b16 %v6006, %v6005
    %v6036 = vpack.c.b16 %v6008, %v6007
    %v6037 = vpack.c.b16 %v6010, %v6009
    %v6038 = vpack.c.b16 %v6012, %v6011
    %v6039 = vpack.c.b16 %v6014, %v6013
    %v6040 = vpack.c.b16 %v6016, %v6015
    %v6041 = vpack.c.b16 %v6018, %v6017
    %v6042 = vpack.c.b16 %v6020, %v6019
    %v6043 = vpack.c.b16 %v6022, %v6021
    %v6044 = vpack.c.b16 %v6024, %v6023
    %v6045 = vpack.c.b16 %v6026, %v6025
    %v6046 = vpack.c.b16 %v6028, %v6027
    %v6047 = vpack.c.b16 %v6030, %v6029
    %v6048 = vpack.c.b16 %v6032, %v6031
    %6065 = vmatprep.subr.bf16.mxu0 0
    %6066 = vmatpush1.bf16.msra.mxu0 %v6040
    %6067 = vmatprep.subr.bf16.mxu0 0
    %6068 = vmatpush1.bf16.msra.mxu0 %v6039
    %6069 = vmatprep.subr.bf16.mxu0 0
    %6070 = vmatpush1.bf16.msra.mxu0 %v6038
    %6071 = vmatprep.subr.bf16.mxu0 0
    %6072 = vmatpush1.bf16.msra.mxu0 %v6037
    %6073 = vmatprep.subr.bf16.mxu0 0
    %6074 = vmatpush1.bf16.msra.mxu0 %v6036
    %6075 = vmatprep.subr.bf16.mxu0 0
    %6076 = vmatpush1.bf16.msra.mxu0 %v6035
    %6077 = vmatprep.subr.bf16.mxu0 0
    %6078 = vmatpush1.bf16.msra.mxu0 %v6034
    %6079 = vmatprep.subr.bf16.mxu0 0
    %6080 = vmatpush1.bf16.msra.mxu0 %v6033
    %6081 = vmatprep.subr.bf16.mxu0 0
    %6082 = vmatpush2.bf16.msra.mxu0 %v6048
    %6083 = vmatprep.subr.bf16.mxu0 0
    %6084 = vmatpush2.bf16.msra.mxu0 %v6047
    %6085 = vmatprep.subr.bf16.mxu0 0
    %6086 = vmatpush2.bf16.msra.mxu0 %v6046
    %6087 = vmatprep.subr.bf16.mxu0 0
    %6088 = vmatpush2.bf16.msra.mxu0 %v6045
    %6089 = vmatprep.subr.bf16.mxu0 0
    %6090 = vmatpush2.bf16.msra.mxu0 %v6044
    %6091 = vmatprep.subr.bf16.mxu0 0
    %6092 = vmatpush2.bf16.msra.mxu0 %v6043
    %6093 = vmatprep.subr.bf16.mxu0 0
    %6094 = vmatpush2.bf16.msra.mxu0 %v6042
    %6095 = vmatprep.subr.bf16.mxu0 0
    %6096 = vmatpush2.bf16.msra.mxu0 %v6041
    %6097 = vmatprep.mubr.bf16.mxu0 %v5927
    %6098 = vmatmul.mubr.bf16.gmra.mxu0 %v5926
    %v6099 = vpop.f32.mrf.mxu0
    %v6100 = vadd.f32 %v5967, %v6099
    %v6101 = vpop.f32.mrf.mxu0
    %v6102 = vpop.f32.mrf.mxu0
    %v6103 = vadd.f32 %v5967, %v6102
    %v6104 = vpop.f32.mrf.mxu0
    %6105 = vdwg.mxu0
    %v6106 = vadd.f32 %v5765, %v6100
    %v6107 = vadd.f32 %v5766, %v6103
    %v6108 = vld [vmem:[%s14] sm:$0x1]
    %v6109 = vld [vmem:[%s15] sm:$0x1]
    %v6110 = vsel %vm190, %v6106, 0.0
    %6111 = vadd.xlane.f32.xlu0 %v6110
    %v6112 = vpop.xlane.xlu0 %6111
    %v6113 = vsel %vm190, %v6107, 0.0
    %6114 = vadd.xlane.f32.xlu0 %v6113
    %v6115 = vpop.xlane.xlu0 %6114
    %v6116 = vmul.f32 %v6112, %v197
    %v6117 = vmul.f32 %v6115, %v197
    %v6118 = vsub.f32 %v6106, %v6116
    %v6119 = vsub.f32 %v6107, %v6117
    %v6120 = vmul.f32 %v6118, %v6118
    %v6121 = vmul.f32 %v6119, %v6119
    %v6122 = vsel %vm190, %v6120, 0.0
    %6123 = vadd.xlane.f32.xlu0 %v6122
    %v6124 = vpop.xlane.xlu0 %6123
    %v6125 = vsel %vm190, %v6121, 0.0
    %6126 = vadd.xlane.f32.xlu0 %v6125
    %v6127 = vpop.xlane.xlu0 %6126
    %v6128 = vmul.f32 %v6124, %v197
    %v6129 = vmul.f32 %v6127, %v197
    %v6130 = vadd.f32 %v6128, 1e-05
    %v6131 = vadd.f32 %v6129, 1e-05
    %v6132 = vrsqrt.pop %v6130
    %v6133 = vrsqrt.pop %v6131
    %v6134 = vmul.f32 %v6118, %v6132
    %v6135 = vmul.f32 %v6119, %v6133
    %v6137 = vlaneseq
    %v6138 = vshrl.u32 %v6137, 7
    %v6139 = vsub.s32 0, %v6138
    %v6140 = vrot.slane %v6108, %v6139
    %v6142 = vmul.f32 %v6134, %v6140
    %v6143 = vmul.f32 %v6135, %v6140
    %v6145 = vlaneseq
    %v6146 = vshrl.u32 %v6145, 7
    %v6147 = vsub.s32 0, %v6146
    %v6148 = vrot.slane %v6109, %v6147
    %v6150 = vadd.f32 %v6142, %v6148
    %v6151 = vadd.f32 %v6143, %v6148
    %v6152 = vpack.c.bf16 %v6151, %v6150
    %v6153 = vld [vmem:[%s16] sm:$0xf]
    %v6154 = vld [vmem:[%s16 + $0x4] sm:$0xf]
    %v6155 = vld [vmem:[%s16 + $0x8] sm:$0xf]
    %v6156 = vld [vmem:[%s16 + $0xc] sm:$0xf]
    %v6157 = vld [vmem:[%s16 + $0x10] sm:$0xf]
    %v6158 = vld [vmem:[%s16 + $0x14] sm:$0xf]
    %v6159 = vld [vmem:[%s16 + $0x18] sm:$0xf]
    %v6160 = vld [vmem:[%s16 + $0x1c] sm:$0xf]
    %v6161 = vld [vmem:[%s17] sm:$0x1]
    %v6163 = vlaneseq
    %v6164 = vshrl.u32 %v6163, 7
    %v6165 = vsub.s32 0, %v6164
    %v6166 = vrot.slane %v6161, %v6165
    %v6176 = vunpack.c.l.b16 %v6153
    %v6177 = vunpack.c.l.b16 %v6154
    %v6178 = vunpack.c.l.b16 %v6155
    %v6179 = vunpack.c.l.b16 %v6156
    %v6180 = vunpack.c.l.b16 %v6157
    %v6181 = vunpack.c.l.b16 %v6158
    %v6182 = vunpack.c.l.b16 %v6159
    %v6183 = vunpack.c.l.b16 %v6160
    %v6184 = vpack.c.b16 %v6177, %v6176
    %v6185 = vpack.c.b16 %v6179, %v6178
    %v6186 = vpack.c.b16 %v6181, %v6180
    %v6187 = vpack.c.b16 %v6183, %v6182
    %v6193 = vsel %vm190, %v6152, 0
    %6195 = vmatprep.subr.bf16.mxu0 0
    %6196 = vmatpush1.bf16.msra.mxu0 0
    %6197 = vmatprep.subr.bf16.mxu0 0
    %6198 = vmatpush1.bf16.msra.mxu0 0
    %6199 = vmatprep.subr.bf16.mxu0 0
    %6200 = vmatpush1.bf16.msra.mxu0 0
    %6201 = vmatprep.subr.bf16.mxu0 0
    %6202 = vmatpush1.bf16.msra.mxu0 0
    %6203 = vmatprep.subr.bf16.mxu0 0
    %6204 = vmatpush1.bf16.msra.mxu0 %v6187
    %6205 = vmatprep.subr.bf16.mxu0 0
    %6206 = vmatpush1.bf16.msra.mxu0 %v6186
    %6207 = vmatprep.subr.bf16.mxu0 0
    %6208 = vmatpush1.bf16.msra.mxu0 %v6185
    %6209 = vmatprep.subr.bf16.mxu0 0
    %6210 = vmatpush1.bf16.msra.mxu0 %v6184
    %6211 = vmatprep.subr.bf16.mxu0 0
    %6212 = vmatpush2.bf16.msra.mxu0 0
    %6213 = vmatprep.subr.bf16.mxu0 0
    %6214 = vmatpush2.bf16.msra.mxu0 0
    %6215 = vmatprep.subr.bf16.mxu0 0
    %6216 = vmatpush2.bf16.msra.mxu0 0
    %6217 = vmatprep.subr.bf16.mxu0 0
    %6218 = vmatpush2.bf16.msra.mxu0 0
    %6219 = vmatprep.subr.bf16.mxu0 0
    %6220 = vmatpush2.bf16.msra.mxu0 0
    %6221 = vmatprep.subr.bf16.mxu0 0
    %6222 = vmatpush2.bf16.msra.mxu0 0
    %6223 = vmatprep.subr.bf16.mxu0 0
    %6224 = vmatpush2.bf16.msra.mxu0 0
    %6225 = vmatprep.subr.bf16.mxu0 0
    %6226 = vmatpush2.bf16.msra.mxu0 0
    %6227 = vmatprep.mubr.bf16.mxu0 0
    %6228 = vmatmul.mubr.bf16.gmra.mxu0 %v6193
    %v6229 = vpop.f32.mrf.mxu0
    %v6230 = vadd.f32 %v6166, %v6229
    %v6231 = vpop.f32.mrf.mxu0
    %v6232 = vpop.f32.mrf.mxu0
    %v6233 = vadd.f32 %v6166, %v6232
    %v6234 = vpop.f32.mrf.mxu0
    %6235 = vdwg.mxu0
    %6236 = vst [vmem:[#allocation2] sm:$0xff] %v6230
    %6237 = vst [vmem:[#allocation2 + $0x8] sm:$0xff] %v6233
    // Predicated region
    $region74: #{forward.1} parent=1 // pred_check
      _
    $region75: #{forward.1} parent=1 // pred_check_branch
      %6239 = sbr.rel (0) target = $region77
    $region76: #{forward.1} parent=1 // pred_region
      %s6241 = ssub.s32 256, 256
      %6242 = vsyncadd [#allocation3], %s6241
      %s6243 = sshll.u32 [#allocation2], 4
      %s6244 = int_to_ptr.vmem [resolvable:$true] %s6243
      %6249 = dma.vmem_to_hbm [thread:$0]  %s6244, 256, %s18, [#allocation3], 128, 128, 8
    $region77: #{forward.1} parent=1 // pred_fallthru
      _
    // Predicated region
    $region78: #{forward.1} parent=1 // pred_check
      _
    $region79: #{forward.1} parent=1 // pred_check_branch
      %6251 = sbr.rel (0) target = $region81
    $region80: #{forward.1} parent=1 // pred_region
      %6252 = dma.done [#allocation3], 256
    $region81: #{forward.1} parent=1 // pred_fallthru
      _
    %6253 = vsyncpa [#allocation3], 1

</llo_original>
